<compile_context>
chip_gen: v7x
topology: tpu7x:2x2x1
jax: 0.10.0
libtpu: 0.0.40
codegen_flags: <defaults>
</compile_context>

<pallas_src>
import numpy as np
import jax
import jax.numpy as jnp
from jax.experimental import pallas as pl
from jax.experimental.pallas import tpu as pltpu


# ------------------------- model dims -------------------------

IN_DIM = 33
HIDDEN_DIM = 146
OUT_DIM = 146
N_CLASSES = 10
N_LAYERS = 4
BN_EPS = 1e-5

D_PAD = 256   # single lane-padded width used for every feature dimension

# vec-slab row layout: all per-channel vectors packed into ONE [16, D_PAD] f32 array
_ROW_EMB_B = 0


def _row_b(l):
    return 1 + 3 * l


def _row_gamma(l):
    return 2 + 3 * l


def _row_beta(l):
    return 3 + 3 * l


_ROW_MB1, _ROW_MB2, _ROW_MB3 = 13, 14, 15
_N_VEC_ROWS = 16

# all_ws stack layout: [0]=embedding, [1..4]=GCN layers, [5..7]=MLP readout
_W_EMB = 0
_W_GCN0 = 1
_W_MLP0 = 1 + N_LAYERS


def _vmem():
    return pl.BlockSpec(memory_space=pltpu.MemorySpace.VMEM)


def _pad2(a, rows, cols):
    return jnp.zeros((rows, cols), jnp.float32).at[: a.shape[0], : a.shape[1]].set(a)


# ------------------------- fused Pallas kernel -------------------------

def _gcn_net_fused_kernel(x_ref, adj_ref, snorm_ref, pool_ref, ws_ref, vec_ref, out_ref):
    f32, bf16 = jnp.float32, jnp.bfloat16
    inv_n = 1.0 / float(x_ref.shape[0])   # static node count

    adj = adj_ref[...]        # [N, N] bf16, loaded once, reused by all layers
    snorm = snorm_ref[...]    # [N, 1] f32

    # ---- embedding_h: H0 = X @ We + be  (in_feat_dropout p=0 -> identity) ----
    h = (jnp.dot(x_ref[...], ws_ref[_W_EMB], preferred_element_type=f32)
         + vec_ref[_ROW_EMB_B:_ROW_EMB_B + 1, :])

    # ---- 4 fused GCN layers (GraphConv -> graph_norm -> BN -> ReLU -> residual) ----
    for l in range(N_LAYERS):  # static unroll; stacked weights stay resident in VMEM
        h_in = h
        # GraphConv: A_norm @ (H W) + b   (bf16 MXU operands, f32 accumulation)
        hw = jnp.dot(h_in.astype(bf16), ws_ref[_W_GCN0 + l], preferred_element_type=f32)
        hc = (jnp.dot(adj, hw.astype(bf16), preferred_element_type=f32)
              + vec_ref[_row_b(l):_row_b(l) + 1, :])
        # graph_norm
        hc = hc * snorm
        # BatchNorm1d (training-mode batch stats, biased var), one-pass statistics:
        # two independent column sums instead of a dependent mean->var reduce chain.
        s1 = jnp.sum(hc, axis=0, keepdims=True)
        s2 = jnp.sum(hc * hc, axis=0, keepdims=True)
        mean = s1 * inv_n
        var = s2 * inv_n - mean * mean
        hc = (hc - mean) * jax.lax.rsqrt(var + BN_EPS)
        hc = hc * vec_ref[_row_gamma(l):_row_gamma(l) + 1, :] + vec_ref[_row_beta(l):_row_beta(l) + 1, :]
        # ReLU + residual
        h = h_in + jnp.maximum(hc, 0.0)

    # ---- mean readout: hg = pool @ H  (pool rows sum to 1 per graph) ----
    hg = jnp.dot(pool_ref[...], h.astype(bf16), preferred_element_type=f32)

    # ---- MLPReadout: 146 -> 73 -> 36 -> 10 (all dims lane-padded to 256) ----
    y = jnp.maximum(
        jnp.dot(hg.astype(bf16), ws_ref[_W_MLP0 + 0], preferred_element_type=f32)
        + vec_ref[_ROW_MB1:_ROW_MB1 + 1, :], 0.0)
    y = jnp.maximum(
        jnp.dot(y.astype(bf16), ws_ref[_W_MLP0 + 1], preferred_element_type=f32)
        + vec_ref[_ROW_MB2:_ROW_MB2 + 1, :], 0.0)
    y = (jnp.dot(y.astype(bf16), ws_ref[_W_MLP0 + 2], preferred_element_type=f32)
         + vec_ref[_ROW_MB3:_ROW_MB3 + 1, :])
    # lane-dense full-tile store; logical [:, :10] sliced in the wrapper
    out_ref[...] = y.astype(out_ref.dtype)


def gcn_net_forward(x_pad_bf16, adj_bf16, snorm_n, pool_bf16, all_ws, vec_slab):
    G = pool_bf16.shape[0]
    y_pad = pl.pallas_call(
        _gcn_net_fused_kernel,
        out_shape=jax.ShapeDtypeStruct((G, D_PAD), jnp.float32),
        in_specs=[_vmem()] * 6,
        out_specs=_vmem(),
        # total footprint < 3 MiB; explicit headroom keeps this safe on v5e's
        # 16 MiB scoped default as well.
        compiler_params=pltpu.CompilerParams(vmem_limit_bytes=32 * 1024 * 1024),
    )(x_pad_bf16, adj_bf16, snorm_n, pool_bf16, all_ws, vec_slab)
    return y_pad[:, :N_CLASSES]


# ------------------------- parameters -------------------------

def init_params(key):
    """Logical (unpadded) parameters, matching the PyTorch module's shapes."""
    keys = jax.random.split(key, 1 + N_LAYERS + 3)

    def lin(k, din, dout, scale=0.1):
        kw, kb = jax.random.split(k)
        w = scale * jax.random.normal(kw, (din, dout), jnp.float32)
        b = scale * jax.random.normal(kb, (dout,), jnp.float32)
        return w, b

    logical = {"emb": lin(keys[0], IN_DIM, HIDDEN_DIM)}
    layers = []
    for i in range(N_LAYERS):
        w, b = lin(keys[1 + i], HIDDEN_DIM, HIDDEN_DIM)
        gamma = jnp.ones((HIDDEN_DIM,), jnp.float32)
        beta = jnp.zeros((HIDDEN_DIM,), jnp.float32)
        layers.append((w, b, gamma, beta))
    logical["layers"] = layers
    # MLPReadout(146, 10, L=2): 146 -> 73 -> 36 -> 10
    dims = [OUT_DIM, OUT_DIM // 2, OUT_DIM // 4, N_CLASSES]
    logical["mlp"] = [lin(keys[1 + N_LAYERS + i], dims[i], dims[i + 1]) for i in range(3)]
    return logical


def pack_params(logical):
    """Pack ALL dense weights into one bf16 [8,256,256] stack and ALL per-channel
    vectors into one f32 [16,256] slab (zero padding keeps padded lanes exactly 0)."""
    emb_w, emb_b = logical["emb"]
    ws = [_pad2(emb_w, D_PAD, D_PAD)]
    vec = jnp.zeros((_N_VEC_ROWS, D_PAD), jnp.float32)
    vec = vec.at[_ROW_EMB_B, :HIDDEN_DIM].set(emb_b)
    for l, (w, b, g, be) in enumerate(logical["layers"]):
        ws.append(_pad2(w, D_PAD, D_PAD))
        vec = vec.at[_row_b(l), :HIDDEN_DIM].set(b)
        vec = vec.at[_row_gamma(l), :HIDDEN_DIM].set(g)
        vec = vec.at[_row_beta(l), :HIDDEN_DIM].set(be)
    for (w, b), row in zip(logical["mlp"], (_ROW_MB1, _ROW_MB2, _ROW_MB3)):
        ws.append(_pad2(w, D_PAD, D_PAD))
        vec = vec.at[row, : b.shape[0]].set(b)
    all_ws = jnp.stack(ws).astype(jnp.bfloat16)   # [8, 256, 256] bf16
    return all_ws, vec


# ------------------------- pure-JAX reference (f32, logical dims) -------------------------

def gcn_net_reference(logical, nodes_feat, adj_norm, snorm_n, pool):
    emb_w, emb_b = logical["emb"]
    h = nodes_feat @ emb_w + emb_b
    for (w, b, g, be) in logical["layers"]:
        h_in = h
        hc = adj_norm @ (h @ w) + b
        hc = hc * snorm_n
        mean = hc.mean(axis=0, keepdims=True)
        var = ((hc - mean) ** 2).mean(axis=0, keepdims=True)
        hc = (hc - mean) / jnp.sqrt(var + BN_EPS)
        hc = hc * g + be
        h = h_in + jnp.maximum(hc, 0.0)
    hg = pool @ h
    (w1, b1), (w2, b2), (w3, b3) = logical["mlp"]
    y = jnp.maximum(hg @ w1 + b1, 0.0)
    y = jnp.maximum(y @ w2 + b2, 0.0)
    return y @ w3 + b3


# ------------------------- example data / main -------------------------

if __name__ == "__main__":
    key = jax.random.PRNGKey(0)
    k_feat, k_adj, k_param = jax.random.split(key, 3)

    # 16 graphs (sizes alternating 12/20) -> 256 nodes total: fills the MXU M
    # dimension (256 rows) and is a multiple of the bf16 (16,128) sublane tile,
    # so no node padding (and no masked-BN correction) is needed.
    sizes = np.array([12, 20] * 8, dtype=np.int32)
    G = int(sizes.shape[0])
    N = int(sizes.sum())                                   # 256
    seg = jnp.asarray(np.repeat(np.arange(G, dtype=np.int32), sizes))

    # node features [N, in_dim=33]
    nodes_feat = jax.random.normal(k_feat, (N, IN_DIM), dtype=jnp.float32)

    # random symmetric block-diagonal adjacency with self-loops, symmetric normalization
    A = (jax.random.uniform(k_adj, (N, N)) < 0.3).astype(jnp.float32)
    A = jnp.maximum(A, A.T)
    same_graph = (seg[:, None] == seg[None, :]).astype(jnp.float32)
    A = A * same_graph
    A = jnp.maximum(A, jnp.eye(N, dtype=jnp.float32))
    deg = A.sum(axis=1)
    dinv_sqrt = 1.0 / jnp.sqrt(deg)
    adj_norm = A * dinv_sqrt[:, None] * dinv_sqrt[None, :]   # D^{-1/2} A D^{-1/2}

    # nodes_num_norm_sqrt: per-node 1/sqrt(|V_g|), shape [N, 1]
    graph_size_per_node = jnp.asarray(sizes, jnp.float32)[seg]
    snorm_n = (1.0 / jnp.sqrt(graph_size_per_node))[:, None]

    # mean-readout pooling matrix [G, N] (rows sum to 1)
    pool = (jnp.arange(G)[:, None] == seg[None, :]).astype(jnp.float32)
    pool = pool / pool.sum(axis=1, keepdims=True)

    logical = init_params(k_param)
    all_ws, vec_slab = pack_params(logical)

    # bf16 MXU operands (f32 accumulation inside the kernel)
    x_pad_bf16 = _pad2(nodes_feat, N, D_PAD).astype(jnp.bfloat16)   # feature dim 33 -> 256
    adj_bf16 = adj_norm.astype(jnp.bfloat16)
    pool_bf16 = pool.astype(jnp.bfloat16)

    logits = gcn_net_forward(x_pad_bf16, adj_bf16, snorm_n, pool_bf16, all_ws, vec_slab)
    logits = jax.block_until_ready(logits)
    assert logits.shape == (G, N_CLASSES)
    assert bool(jnp.all(jnp.isfinite(logits)))

    # sanity check vs. pure-JAX f32 reference (loose tolerance: bf16 operands throughout)
    ref = gcn_net_reference(logical, nodes_feat, adj_norm, snorm_n, pool)
    np.testing.assert_allclose(np.asarray(logits), np.asarray(ref), atol=0.15, rtol=0.1)

    print("KERNEL_OK")
</pallas_src>

<mosaic_0001>
module attributes {stable_mosaic.version = 11 : i64} {
  func.func @_gcn_net_fused_kernel(%arg0: memref<256x256xbf16, #tpu.memory_space<vmem>>, %arg1: memref<256x256xbf16, #tpu.memory_space<vmem>>, %arg2: memref<256x1xf32, #tpu.memory_space<vmem>>, %arg3: memref<16x256xbf16, #tpu.memory_space<vmem>>, %arg4: memref<8x256x256xbf16, #tpu.memory_space<vmem>>, %arg5: memref<16x256xf32, #tpu.memory_space<vmem>>, %arg6: memref<16x256xf32, #tpu.memory_space<vmem>>) attributes {dimension_semantics = [], scalar_prefetch = 0 : i64, scratch_operands = 0 : i64, tpu.core_type = #tpu.core_type<tc>} {
    %c0 = arith.constant 0 : index
    %c0_0 = arith.constant 0 : index
    %0 = vector.load %arg1[%c0, %c0_0] : memref<256x256xbf16, #tpu.memory_space<vmem>>, vector<256x256xbf16>
    %c0_1 = arith.constant 0 : index
    %c0_2 = arith.constant 0 : index
    %1 = vector.load %arg2[%c0_1, %c0_2] : memref<256x1xf32, #tpu.memory_space<vmem>>, vector<256x1xf32>
    %c0_3 = arith.constant 0 : index
    %c0_4 = arith.constant 0 : index
    %2 = vector.load %arg0[%c0_3, %c0_4] : memref<256x256xbf16, #tpu.memory_space<vmem>>, vector<256x256xbf16>
    %c0_5 = arith.constant 0 : index
    %c0_6 = arith.constant 0 : index
    %c0_7 = arith.constant 0 : index
    %3 = vector.load %arg4[%c0_5, %c0_6, %c0_7] : memref<8x256x256xbf16, #tpu.memory_space<vmem>>, vector<1x256x256xbf16>
    %4 = vector.shape_cast %3 : vector<1x256x256xbf16> to vector<256x256xbf16>
    %cst = arith.constant dense<0.000000e+00> : vector<256x256xf32>
    %5 = tpu.matmul %2, %4, %cst {dimension_numbers = #tpu.dot_dimension_numbers<[1], [0], [0], [1], [0, 0, 1, 1], [], []>} : vector<256x256xbf16>, vector<256x256xbf16>, vector<256x256xf32> -> vector<256x256xf32>
    %c0_8 = arith.constant 0 : index
    %c0_9 = arith.constant 0 : index
    %6 = vector.load %arg5[%c0_8, %c0_9] : memref<16x256xf32, #tpu.memory_space<vmem>>, vector<1x256xf32>
    %7 = vector.broadcast %6 : vector<1x256xf32> to vector<256x256xf32>
    %8 = arith.addf %5, %7 : vector<256x256xf32>
    %9 = arith.truncf %8 : vector<256x256xf32> to vector<256x256xbf16>
    %c1 = arith.constant 1 : index
    %c0_10 = arith.constant 0 : index
    %c0_11 = arith.constant 0 : index
    %10 = vector.load %arg4[%c1, %c0_10, %c0_11] : memref<8x256x256xbf16, #tpu.memory_space<vmem>>, vector<1x256x256xbf16>
    %11 = vector.shape_cast %10 : vector<1x256x256xbf16> to vector<256x256xbf16>
    %cst_12 = arith.constant dense<0.000000e+00> : vector<256x256xf32>
    %12 = tpu.matmul %9, %11, %cst_12 {dimension_numbers = #tpu.dot_dimension_numbers<[1], [0], [0], [1], [0, 0, 1, 1], [], []>} : vector<256x256xbf16>, vector<256x256xbf16>, vector<256x256xf32> -> vector<256x256xf32>
    %13 = arith.truncf %12 : vector<256x256xf32> to vector<256x256xbf16>
    %cst_13 = arith.constant dense<0.000000e+00> : vector<256x256xf32>
    %14 = tpu.matmul %0, %13, %cst_13 {dimension_numbers = #tpu.dot_dimension_numbers<[1], [0], [0], [1], [0, 0, 1, 1], [], []>} : vector<256x256xbf16>, vector<256x256xbf16>, vector<256x256xf32> -> vector<256x256xf32>
    %c1_14 = arith.constant 1 : index
    %c0_15 = arith.constant 0 : index
    %15 = vector.load %arg5[%c1_14, %c0_15] : memref<16x256xf32, #tpu.memory_space<vmem>>, vector<1x256xf32>
    %16 = vector.broadcast %15 : vector<1x256xf32> to vector<256x256xf32>
    %17 = arith.addf %14, %16 : vector<256x256xf32>
    %18 = vector.broadcast %1 : vector<256x1xf32> to vector<256x256xf32>
    %19 = arith.mulf %17, %18 : vector<256x256xf32>
    %cst_16 = arith.constant dense<0.000000e+00> : vector<256xf32>
    %20 = vector.multi_reduction <add>, %19, %cst_16 [0] : vector<256x256xf32> to vector<256xf32>
    %21 = vector.shape_cast %20 : vector<256xf32> to vector<1x256xf32>
    %22 = arith.mulf %19, %19 : vector<256x256xf32>
    %cst_17 = arith.constant dense<0.000000e+00> : vector<256xf32>
    %23 = vector.multi_reduction <add>, %22, %cst_17 [0] : vector<256x256xf32> to vector<256xf32>
    %24 = vector.shape_cast %23 : vector<256xf32> to vector<1x256xf32>
    %cst_18 = arith.constant 3.906250e-03 : f32
    %25 = vector.broadcast %cst_18 : f32 to vector<1x256xf32>
    %26 = arith.mulf %21, %25 : vector<1x256xf32>
    %cst_19 = arith.constant 3.906250e-03 : f32
    %27 = vector.broadcast %cst_19 : f32 to vector<1x256xf32>
    %28 = arith.mulf %24, %27 : vector<1x256xf32>
    %29 = arith.mulf %26, %26 : vector<1x256xf32>
    %30 = arith.subf %28, %29 : vector<1x256xf32>
    %31 = vector.broadcast %26 : vector<1x256xf32> to vector<256x256xf32>
    %32 = arith.subf %19, %31 : vector<256x256xf32>
    %cst_20 = arith.constant 9.99999974E-6 : f32
    %33 = vector.broadcast %cst_20 : f32 to vector<1x256xf32>
    %34 = arith.addf %30, %33 : vector<1x256xf32>
    %35 = math.rsqrt %34 : vector<1x256xf32>
    %36 = vector.broadcast %35 : vector<1x256xf32> to vector<256x256xf32>
    %37 = arith.mulf %32, %36 : vector<256x256xf32>
    %c2 = arith.constant 2 : index
    %c0_21 = arith.constant 0 : index
    %38 = vector.load %arg5[%c2, %c0_21] : memref<16x256xf32, #tpu.memory_space<vmem>>, vector<1x256xf32>
    %39 = vector.broadcast %38 : vector<1x256xf32> to vector<256x256xf32>
    %40 = arith.mulf %37, %39 : vector<256x256xf32>
    %c3 = arith.constant 3 : index
    %c0_22 = arith.constant 0 : index
    %41 = vector.load %arg5[%c3, %c0_22] : memref<16x256xf32, #tpu.memory_space<vmem>>, vector<1x256xf32>
    %42 = vector.broadcast %41 : vector<1x256xf32> to vector<256x256xf32>
    %43 = arith.addf %40, %42 : vector<256x256xf32>
    %cst_23 = arith.constant 0.000000e+00 : f32
    %44 = vector.broadcast %cst_23 : f32 to vector<256x256xf32>
    %45 = arith.maximumf %43, %44 : vector<256x256xf32>
    %46 = arith.addf %8, %45 : vector<256x256xf32>
    %47 = arith.truncf %46 : vector<256x256xf32> to vector<256x256xbf16>
    %c2_24 = arith.constant 2 : index
    %c0_25 = arith.constant 0 : index
    %c0_26 = arith.constant 0 : index
    %48 = vector.load %arg4[%c2_24, %c0_25, %c0_26] : memref<8x256x256xbf16, #tpu.memory_space<vmem>>, vector<1x256x256xbf16>
    %49 = vector.shape_cast %48 : vector<1x256x256xbf16> to vector<256x256xbf16>
    %cst_27 = arith.constant dense<0.000000e+00> : vector<256x256xf32>
    %50 = tpu.matmul %47, %49, %cst_27 {dimension_numbers = #tpu.dot_dimension_numbers<[1], [0], [0], [1], [0, 0, 1, 1], [], []>} : vector<256x256xbf16>, vector<256x256xbf16>, vector<256x256xf32> -> vector<256x256xf32>
    %51 = arith.truncf %50 : vector<256x256xf32> to vector<256x256xbf16>
    %cst_28 = arith.constant dense<0.000000e+00> : vector<256x256xf32>
    %52 = tpu.matmul %0, %51, %cst_28 {dimension_numbers = #tpu.dot_dimension_numbers<[1], [0], [0], [1], [0, 0, 1, 1], [], []>} : vector<256x256xbf16>, vector<256x256xbf16>, vector<256x256xf32> -> vector<256x256xf32>
    %c4 = arith.constant 4 : index
    %c0_29 = arith.constant 0 : index
    %53 = vector.load %arg5[%c4, %c0_29] : memref<16x256xf32, #tpu.memory_space<vmem>>, vector<1x256xf32>
    %54 = vector.broadcast %53 : vector<1x256xf32> to vector<256x256xf32>
    %55 = arith.addf %52, %54 : vector<256x256xf32>
    %56 = vector.broadcast %1 : vector<256x1xf32> to vector<256x256xf32>
    %57 = arith.mulf %55, %56 : vector<256x256xf32>
    %cst_30 = arith.constant dense<0.000000e+00> : vector<256xf32>
    %58 = vector.multi_reduction <add>, %57, %cst_30 [0] : vector<256x256xf32> to vector<256xf32>
    %59 = vector.shape_cast %58 : vector<256xf32> to vector<1x256xf32>
    %60 = arith.mulf %57, %57 : vector<256x256xf32>
    %cst_31 = arith.constant dense<0.000000e+00> : vector<256xf32>
    %61 = vector.multi_reduction <add>, %60, %cst_31 [0] : vector<256x256xf32> to vector<256xf32>
    %62 = vector.shape_cast %61 : vector<256xf32> to vector<1x256xf32>
    %cst_32 = arith.constant 3.906250e-03 : f32
    %63 = vector.broadcast %cst_32 : f32 to vector<1x256xf32>
    %64 = arith.mulf %59, %63 : vector<1x256xf32>
    %cst_33 = arith.constant 3.906250e-03 : f32
    %65 = vector.broadcast %cst_33 : f32 to vector<1x256xf32>
    %66 = arith.mulf %62, %65 : vector<1x256xf32>
    %67 = arith.mulf %64, %64 : vector<1x256xf32>
    %68 = arith.subf %66, %67 : vector<1x256xf32>
    %69 = vector.broadcast %64 : vector<1x256xf32> to vector<256x256xf32>
    %70 = arith.subf %57, %69 : vector<256x256xf32>
    %cst_34 = arith.constant 9.99999974E-6 : f32
    %71 = vector.broadcast %cst_34 : f32 to vector<1x256xf32>
    %72 = arith.addf %68, %71 : vector<1x256xf32>
    %73 = math.rsqrt %72 : vector<1x256xf32>
    %74 = vector.broadcast %73 : vector<1x256xf32> to vector<256x256xf32>
    %75 = arith.mulf %70, %74 : vector<256x256xf32>
    %c5 = arith.constant 5 : index
    %c0_35 = arith.constant 0 : index
    %76 = vector.load %arg5[%c5, %c0_35] : memref<16x256xf32, #tpu.memory_space<vmem>>, vector<1x256xf32>
    %77 = vector.broadcast %76 : vector<1x256xf32> to vector<256x256xf32>
    %78 = arith.mulf %75, %77 : vector<256x256xf32>
    %c6 = arith.constant 6 : index
    %c0_36 = arith.constant 0 : index
    %79 = vector.load %arg5[%c6, %c0_36] : memref<16x256xf32, #tpu.memory_space<vmem>>, vector<1x256xf32>
    %80 = vector.broadcast %79 : vector<1x256xf32> to vector<256x256xf32>
    %81 = arith.addf %78, %80 : vector<256x256xf32>
    %cst_37 = arith.constant 0.000000e+00 : f32
    %82 = vector.broadcast %cst_37 : f32 to vector<256x256xf32>
    %83 = arith.maximumf %81, %82 : vector<256x256xf32>
    %84 = arith.addf %46, %83 : vector<256x256xf32>
    %85 = arith.truncf %84 : vector<256x256xf32> to vector<256x256xbf16>
    %c3_38 = arith.constant 3 : index
    %c0_39 = arith.constant 0 : index
    %c0_40 = arith.constant 0 : index
    %86 = vector.load %arg4[%c3_38, %c0_39, %c0_40] : memref<8x256x256xbf16, #tpu.memory_space<vmem>>, vector<1x256x256xbf16>
    %87 = vector.shape_cast %86 : vector<1x256x256xbf16> to vector<256x256xbf16>
    %cst_41 = arith.constant dense<0.000000e+00> : vector<256x256xf32>
    %88 = tpu.matmul %85, %87, %cst_41 {dimension_numbers = #tpu.dot_dimension_numbers<[1], [0], [0], [1], [0, 0, 1, 1], [], []>} : vector<256x256xbf16>, vector<256x256xbf16>, vector<256x256xf32> -> vector<256x256xf32>
    %89 = arith.truncf %88 : vector<256x256xf32> to vector<256x256xbf16>
    %cst_42 = arith.constant dense<0.000000e+00> : vector<256x256xf32>
    %90 = tpu.matmul %0, %89, %cst_42 {dimension_numbers = #tpu.dot_dimension_numbers<[1], [0], [0], [1], [0, 0, 1, 1], [], []>} : vector<256x256xbf16>, vector<256x256xbf16>, vector<256x256xf32> -> vector<256x256xf32>
    %c7 = arith.constant 7 : index
    %c0_43 = arith.constant 0 : index
    %91 = vector.load %arg5[%c7, %c0_43] : memref<16x256xf32, #tpu.memory_space<vmem>>, vector<1x256xf32>
    %92 = vector.broadcast %91 : vector<1x256xf32> to vector<256x256xf32>
    %93 = arith.addf %90, %92 : vector<256x256xf32>
    %94 = vector.broadcast %1 : vector<256x1xf32> to vector<256x256xf32>
    %95 = arith.mulf %93, %94 : vector<256x256xf32>
    %cst_44 = arith.constant dense<0.000000e+00> : vector<256xf32>
    %96 = vector.multi_reduction <add>, %95, %cst_44 [0] : vector<256x256xf32> to vector<256xf32>
    %97 = vector.shape_cast %96 : vector<256xf32> to vector<1x256xf32>
    %98 = arith.mulf %95, %95 : vector<256x256xf32>
    %cst_45 = arith.constant dense<0.000000e+00> : vector<256xf32>
    %99 = vector.multi_reduction <add>, %98, %cst_45 [0] : vector<256x256xf32> to vector<256xf32>
    %100 = vector.shape_cast %99 : vector<256xf32> to vector<1x256xf32>
    %cst_46 = arith.constant 3.906250e-03 : f32
    %101 = vector.broadcast %cst_46 : f32 to vector<1x256xf32>
    %102 = arith.mulf %97, %101 : vector<1x256xf32>
    %cst_47 = arith.constant 3.906250e-03 : f32
    %103 = vector.broadcast %cst_47 : f32 to vector<1x256xf32>
    %104 = arith.mulf %100, %103 : vector<1x256xf32>
    %105 = arith.mulf %102, %102 : vector<1x256xf32>
    %106 = arith.subf %104, %105 : vector<1x256xf32>
    %107 = vector.broadcast %102 : vector<1x256xf32> to vector<256x256xf32>
    %108 = arith.subf %95, %107 : vector<256x256xf32>
    %cst_48 = arith.constant 9.99999974E-6 : f32
    %109 = vector.broadcast %cst_48 : f32 to vector<1x256xf32>
    %110 = arith.addf %106, %109 : vector<1x256xf32>
    %111 = math.rsqrt %110 : vector<1x256xf32>
    %112 = vector.broadcast %111 : vector<1x256xf32> to vector<256x256xf32>
    %113 = arith.mulf %108, %112 : vector<256x256xf32>
    %c8 = arith.constant 8 : index
    %c0_49 = arith.constant 0 : index
    %114 = vector.load %arg5[%c8, %c0_49] : memref<16x256xf32, #tpu.memory_space<vmem>>, vector<1x256xf32>
    %115 = vector.broadcast %114 : vector<1x256xf32> to vector<256x256xf32>
    %116 = arith.mulf %113, %115 : vector<256x256xf32>
    %c9 = arith.constant 9 : index
    %c0_50 = arith.constant 0 : index
    %117 = vector.load %arg5[%c9, %c0_50] : memref<16x256xf32, #tpu.memory_space<vmem>>, vector<1x256xf32>
    %118 = vector.broadcast %117 : vector<1x256xf32> to vector<256x256xf32>
    %119 = arith.addf %116, %118 : vector<256x256xf32>
    %cst_51 = arith.constant 0.000000e+00 : f32
    %120 = vector.broadcast %cst_51 : f32 to vector<256x256xf32>
    %121 = arith.maximumf %119, %120 : vector<256x256xf32>
    %122 = arith.addf %84, %121 : vector<256x256xf32>
    %123 = arith.truncf %122 : vector<256x256xf32> to vector<256x256xbf16>
    %c4_52 = arith.constant 4 : index
    %c0_53 = arith.constant 0 : index
    %c0_54 = arith.constant 0 : index
    %124 = vector.load %arg4[%c4_52, %c0_53, %c0_54] : memref<8x256x256xbf16, #tpu.memory_space<vmem>>, vector<1x256x256xbf16>
    %125 = vector.shape_cast %124 : vector<1x256x256xbf16> to vector<256x256xbf16>
    %cst_55 = arith.constant dense<0.000000e+00> : vector<256x256xf32>
    %126 = tpu.matmul %123, %125, %cst_55 {dimension_numbers = #tpu.dot_dimension_numbers<[1], [0], [0], [1], [0, 0, 1, 1], [], []>} : vector<256x256xbf16>, vector<256x256xbf16>, vector<256x256xf32> -> vector<256x256xf32>
    %127 = arith.truncf %126 : vector<256x256xf32> to vector<256x256xbf16>
    %cst_56 = arith.constant dense<0.000000e+00> : vector<256x256xf32>
    %128 = tpu.matmul %0, %127, %cst_56 {dimension_numbers = #tpu.dot_dimension_numbers<[1], [0], [0], [1], [0, 0, 1, 1], [], []>} : vector<256x256xbf16>, vector<256x256xbf16>, vector<256x256xf32> -> vector<256x256xf32>
    %c10 = arith.constant 10 : index
    %c0_57 = arith.constant 0 : index
    %129 = vector.load %arg5[%c10, %c0_57] : memref<16x256xf32, #tpu.memory_space<vmem>>, vector<1x256xf32>
    %130 = vector.broadcast %129 : vector<1x256xf32> to vector<256x256xf32>
    %131 = arith.addf %128, %130 : vector<256x256xf32>
    %132 = vector.broadcast %1 : vector<256x1xf32> to vector<256x256xf32>
    %133 = arith.mulf %131, %132 : vector<256x256xf32>
    %cst_58 = arith.constant dense<0.000000e+00> : vector<256xf32>
    %134 = vector.multi_reduction <add>, %133, %cst_58 [0] : vector<256x256xf32> to vector<256xf32>
    %135 = vector.shape_cast %134 : vector<256xf32> to vector<1x256xf32>
    %136 = arith.mulf %133, %133 : vector<256x256xf32>
    %cst_59 = arith.constant dense<0.000000e+00> : vector<256xf32>
    %137 = vector.multi_reduction <add>, %136, %cst_59 [0] : vector<256x256xf32> to vector<256xf32>
    %138 = vector.shape_cast %137 : vector<256xf32> to vector<1x256xf32>
    %cst_60 = arith.constant 3.906250e-03 : f32
    %139 = vector.broadcast %cst_60 : f32 to vector<1x256xf32>
    %140 = arith.mulf %135, %139 : vector<1x256xf32>
    %cst_61 = arith.constant 3.906250e-03 : f32
    %141 = vector.broadcast %cst_61 : f32 to vector<1x256xf32>
    %142 = arith.mulf %138, %141 : vector<1x256xf32>
    %143 = arith.mulf %140, %140 : vector<1x256xf32>
    %144 = arith.subf %142, %143 : vector<1x256xf32>
    %145 = vector.broadcast %140 : vector<1x256xf32> to vector<256x256xf32>
    %146 = arith.subf %133, %145 : vector<256x256xf32>
    %cst_62 = arith.constant 9.99999974E-6 : f32
    %147 = vector.broadcast %cst_62 : f32 to vector<1x256xf32>
    %148 = arith.addf %144, %147 : vector<1x256xf32>
    %149 = math.rsqrt %148 : vector<1x256xf32>
    %150 = vector.broadcast %149 : vector<1x256xf32> to vector<256x256xf32>
    %151 = arith.mulf %146, %150 : vector<256x256xf32>
    %c11 = arith.constant 11 : index
    %c0_63 = arith.constant 0 : index
    %152 = vector.load %arg5[%c11, %c0_63] : memref<16x256xf32, #tpu.memory_space<vmem>>, vector<1x256xf32>
    %153 = vector.broadcast %152 : vector<1x256xf32> to vector<256x256xf32>
    %154 = arith.mulf %151, %153 : vector<256x256xf32>
    %c12 = arith.constant 12 : index
    %c0_64 = arith.constant 0 : index
    %155 = vector.load %arg5[%c12, %c0_64] : memref<16x256xf32, #tpu.memory_space<vmem>>, vector<1x256xf32>
    %156 = vector.broadcast %155 : vector<1x256xf32> to vector<256x256xf32>
    %157 = arith.addf %154, %156 : vector<256x256xf32>
    %cst_65 = arith.constant 0.000000e+00 : f32
    %158 = vector.broadcast %cst_65 : f32 to vector<256x256xf32>
    %159 = arith.maximumf %157, %158 : vector<256x256xf32>
    %160 = arith.addf %122, %159 : vector<256x256xf32>
    %c0_66 = arith.constant 0 : index
    %c0_67 = arith.constant 0 : index
    %161 = vector.load %arg3[%c0_66, %c0_67] : memref<16x256xbf16, #tpu.memory_space<vmem>>, vector<16x256xbf16>
    %162 = arith.truncf %160 : vector<256x256xf32> to vector<256x256xbf16>
    %cst_68 = arith.constant dense<0.000000e+00> : vector<16x256xf32>
    %163 = tpu.matmul %161, %162, %cst_68 {dimension_numbers = #tpu.dot_dimension_numbers<[1], [0], [0], [1], [0, 0, 1, 1], [], []>} : vector<16x256xbf16>, vector<256x256xbf16>, vector<16x256xf32> -> vector<16x256xf32>
    %164 = arith.truncf %163 : vector<16x256xf32> to vector<16x256xbf16>
    %c5_69 = arith.constant 5 : index
    %c0_70 = arith.constant 0 : index
    %c0_71 = arith.constant 0 : index
    %165 = vector.load %arg4[%c5_69, %c0_70, %c0_71] : memref<8x256x256xbf16, #tpu.memory_space<vmem>>, vector<1x256x256xbf16>
    %166 = vector.shape_cast %165 : vector<1x256x256xbf16> to vector<256x256xbf16>
    %cst_72 = arith.constant dense<0.000000e+00> : vector<16x256xf32>
    %167 = tpu.matmul %164, %166, %cst_72 {dimension_numbers = #tpu.dot_dimension_numbers<[1], [0], [0], [1], [0, 0, 1, 1], [], []>} : vector<16x256xbf16>, vector<256x256xbf16>, vector<16x256xf32> -> vector<16x256xf32>
    %c13 = arith.constant 13 : index
    %c0_73 = arith.constant 0 : index
    %168 = vector.load %arg5[%c13, %c0_73] : memref<16x256xf32, #tpu.memory_space<vmem>>, vector<1x256xf32>
    %169 = vector.broadcast %168 : vector<1x256xf32> to vector<16x256xf32>
    %170 = arith.addf %167, %169 : vector<16x256xf32>
    %cst_74 = arith.constant 0.000000e+00 : f32
    %171 = vector.broadcast %cst_74 : f32 to vector<16x256xf32>
    %172 = arith.maximumf %170, %171 : vector<16x256xf32>
    %173 = arith.truncf %172 : vector<16x256xf32> to vector<16x256xbf16>
    %c6_75 = arith.constant 6 : index
    %c0_76 = arith.constant 0 : index
    %c0_77 = arith.constant 0 : index
    %174 = vector.load %arg4[%c6_75, %c0_76, %c0_77] : memref<8x256x256xbf16, #tpu.memory_space<vmem>>, vector<1x256x256xbf16>
    %175 = vector.shape_cast %174 : vector<1x256x256xbf16> to vector<256x256xbf16>
    %cst_78 = arith.constant dense<0.000000e+00> : vector<16x256xf32>
    %176 = tpu.matmul %173, %175, %cst_78 {dimension_numbers = #tpu.dot_dimension_numbers<[1], [0], [0], [1], [0, 0, 1, 1], [], []>} : vector<16x256xbf16>, vector<256x256xbf16>, vector<16x256xf32> -> vector<16x256xf32>
    %c14 = arith.constant 14 : index
    %c0_79 = arith.constant 0 : index
    %177 = vector.load %arg5[%c14, %c0_79] : memref<16x256xf32, #tpu.memory_space<vmem>>, vector<1x256xf32>
    %178 = vector.broadcast %177 : vector<1x256xf32> to vector<16x256xf32>
    %179 = arith.addf %176, %178 : vector<16x256xf32>
    %cst_80 = arith.constant 0.000000e+00 : f32
    %180 = vector.broadcast %cst_80 : f32 to vector<16x256xf32>
    %181 = arith.maximumf %179, %180 : vector<16x256xf32>
    %182 = arith.truncf %181 : vector<16x256xf32> to vector<16x256xbf16>
    %c7_81 = arith.constant 7 : index
    %c0_82 = arith.constant 0 : index
    %c0_83 = arith.constant 0 : index
    %183 = vector.load %arg4[%c7_81, %c0_82, %c0_83] : memref<8x256x256xbf16, #tpu.memory_space<vmem>>, vector<1x256x256xbf16>
    %184 = vector.shape_cast %183 : vector<1x256x256xbf16> to vector<256x256xbf16>
    %cst_84 = arith.constant dense<0.000000e+00> : vector<16x256xf32>
    %185 = tpu.matmul %182, %184, %cst_84 {dimension_numbers = #tpu.dot_dimension_numbers<[1], [0], [0], [1], [0, 0, 1, 1], [], []>} : vector<16x256xbf16>, vector<256x256xbf16>, vector<16x256xf32> -> vector<16x256xf32>
    %c15 = arith.constant 15 : index
    %c0_85 = arith.constant 0 : index
    %186 = vector.load %arg5[%c15, %c0_85] : memref<16x256xf32, #tpu.memory_space<vmem>>, vector<1x256xf32>
    %187 = vector.broadcast %186 : vector<1x256xf32> to vector<16x256xf32>
    %188 = arith.addf %185, %187 : vector<16x256xf32>
    %c0_86 = arith.constant 0 : index
    %c0_87 = arith.constant 0 : index
    %189 = vector.load %arg6[%c0_86, %c0_87] : memref<16x256xf32, #tpu.memory_space<vmem>>, vector<16x256xf32>
    tpu.vector_store %arg6[%c0_86, %c0_87], %188 {strides = array<i32>} : memref<16x256xf32, #tpu.memory_space<vmem>>, vector<16x256xf32>,
    return
  }
}

</mosaic_0001>

<llo_original>
// kernel: tpu_custom_call.1
$region0: #{tpu_custom_call.1}
  #allocation0 [shape = 'u32[]', space=smem, size = 0x4, offset = 0x4, fixed_abs, tag = 'smem constant byte address 0x4 - core index']
  #allocation1 [shape = 'u32[144,128]{1,0:T(1,128)}', space=vmem, size = 0x12000, scoped, tag = 'internal scratch']
  %s0 = inlined_call_operand.vmem [shape: bf16[256,256], index: 0, kind: input, shape index: {}]
  %s1 = inlined_call_operand.hbm [shape: bf16[256,256], index: 1, kind: input, shape index: {}]
  %s2 = inlined_call_operand.vmem [shape: f32[256,1], index: 2, kind: input, shape index: {}]
  %s3 = inlined_call_operand.hbm [shape: bf16[16,256], index: 3, kind: input, shape index: {}]
  %s4 = inlined_call_operand.hbm [shape: bf16[8,256,256], index: 4, kind: input, shape index: {}]
  %s5 = inlined_call_operand.hbm [shape: f32[16,256], index: 5, kind: input, shape index: {}]
  %s6 = inlined_call_operand.hbm [shape: f32[16,256], index: 6, kind: output, shape index: {}]
  %s7 = sld [smem:[#allocation0]]
  $region50: #{tpu_custom_call.1} parent=0
    _
  %s9 = ssub.s32 1, %s7
  %s10 = scalar_select 0, %s9, %s7
  $region1: #{tpu_custom_call.1} parent=0
    #allocation2 [shape = 'u8[131072]{0}', space=vmem, size = 0x20000, scoped, tag = 'input window, operand 1, single buffered']
    #allocation3 [shape = 's32[1]{0}', space=sflag, size = 0x4, scoped, tag = 'scoped memory for tpu_custom_call.1']
    #allocation4 [shape = 's32[1]{0}', space=sflag, size = 0x4, scoped, tag = 'scoped memory for tpu_custom_call.1']
    #allocation5 [shape = 'u8[8192]{0}', space=vmem, size = 0x2000, scoped, tag = 'input window, operand 3, single buffered']
    #allocation6 [shape = 's32[1]{0}', space=sflag, size = 0x4, scoped, tag = 'scoped memory for tpu_custom_call.1']
    #allocation7 [shape = 'u8[1048576]{0}', space=vmem, size = 0x100000, scoped, tag = 'input window, operand 4, single buffered']
    #allocation8 [shape = 'u8[16384]{0}', space=vmem, size = 0x4000, scoped, tag = 'input window, operand 5, single buffered']
    #allocation9 [shape = 's32[1]{0}', space=sflag, size = 0x4, scoped, tag = 'scoped memory for tpu_custom_call.1']
    #allocation10 [shape = 'u8[16384]{0}', space=vmem, size = 0x4000, scoped, tag = 'output window, operand 0, single buffered']
    %11 = vsyncpa [#allocation3], 0
    %12 = vsyncpa [#allocation6], 0
    %13 = vsyncpa [#allocation9], 0
    %14 = vsyncpa [#allocation4], 0
    // Predicated region
    $region2: #{tpu_custom_call.1} parent=1 // pred_check
      _
    $region3: #{tpu_custom_call.1} parent=1 // pred_check_branch
      %16 = sbr.rel (0) target = $region5
    $region4: #{tpu_custom_call.1} parent=1 // pred_region
      _
    $region5: #{tpu_custom_call.1} parent=1 // pred_fallthru
      _
    // Predicated region
    $region6: #{tpu_custom_call.1} parent=1 // pred_check
      _
    $region7: #{tpu_custom_call.1} parent=1 // pred_check_branch
      %18 = sbr.rel (0) target = $region9
    $region8: #{tpu_custom_call.1} parent=1 // pred_region
      %s20 = ssub.s32 4096, 4096
      %21 = vsyncadd [#allocation3], %s20
      %s22 = sshll.u32 [#allocation2], 4
      %s23 = int_to_ptr.vmem [resolvable:$true] %s22
      %28 = dma.hbm_to_vmem [thread:$0]  %s1, 4096, %s23, [#allocation3], 128, 128, 8
    $region9: #{tpu_custom_call.1} parent=1 // pred_fallthru
      _
    // Predicated region
    $region10: #{tpu_custom_call.1} parent=1 // pred_check
      _
    $region11: #{tpu_custom_call.1} parent=1 // pred_check_branch
      %30 = sbr.rel (0) target = $region13
    $region12: #{tpu_custom_call.1} parent=1 // pred_region
      _
    $region13: #{tpu_custom_call.1} parent=1 // pred_fallthru
      _
    // Predicated region
    $region14: #{tpu_custom_call.1} parent=1 // pred_check
      _
    $region15: #{tpu_custom_call.1} parent=1 // pred_check_branch
      %32 = sbr.rel (0) target = $region17
    $region16: #{tpu_custom_call.1} parent=1 // pred_region
      %s34 = ssub.s32 256, 256
      %35 = vsyncadd [#allocation6], %s34
      %s36 = sshll.u32 [#allocation5], 4
      %s37 = int_to_ptr.vmem [resolvable:$true] %s36
      %42 = dma.hbm_to_vmem [thread:$0]  %s3, 256, %s37, [#allocation6], 128, 128, 8
    $region17: #{tpu_custom_call.1} parent=1 // pred_fallthru
      _
    // Predicated region
    $region18: #{tpu_custom_call.1} parent=1 // pred_check
      _
    $region19: #{tpu_custom_call.1} parent=1 // pred_check_branch
      %44 = sbr.rel (0) target = $region21
    $region20: #{tpu_custom_call.1} parent=1 // pred_region
      %s46 = ssub.s32 32768, 32768
      %47 = vsyncadd [#allocation6], %s46
      %s48 = sshll.u32 [#allocation7], 4
      %s49 = int_to_ptr.vmem [resolvable:$true] %s48
      %54 = dma.hbm_to_vmem [thread:$0]  %s4, 32768, %s49, [#allocation6], 128, 128, 8
    $region21: #{tpu_custom_call.1} parent=1 // pred_fallthru
      _
    // Predicated region
    $region22: #{tpu_custom_call.1} parent=1 // pred_check
      _
    $region23: #{tpu_custom_call.1} parent=1 // pred_check_branch
      %56 = sbr.rel (0) target = $region25
    $region24: #{tpu_custom_call.1} parent=1 // pred_region
      %s58 = ssub.s32 512, 512
      %59 = vsyncadd [#allocation9], %s58
      %s60 = sshll.u32 [#allocation8], 4
      %s61 = int_to_ptr.vmem [resolvable:$true] %s60
      %66 = dma.hbm_to_vmem [thread:$0]  %s5, 512, %s61, [#allocation9], 256, 256, 16
    $region25: #{tpu_custom_call.1} parent=1 // pred_fallthru
      _
    // Predicated region
    $region26: #{tpu_custom_call.1} parent=1 // pred_check
      _
    $region27: #{tpu_custom_call.1} parent=1 // pred_check_branch
      %68 = sbr.rel (0) target = $region29
    $region28: #{tpu_custom_call.1} parent=1 // pred_region
      %69 = dma.done [#allocation3], 4096
    $region29: #{tpu_custom_call.1} parent=1 // pred_fallthru
      _
    // Predicated region
    $region30: #{tpu_custom_call.1} parent=1 // pred_check
      _
    $region31: #{tpu_custom_call.1} parent=1 // pred_check_branch
      %71 = sbr.rel (0) target = $region33
    $region32: #{tpu_custom_call.1} parent=1 // pred_region
      %72 = dma.done [#allocation6], 256
    $region33: #{tpu_custom_call.1} parent=1 // pred_fallthru
      _
    // Predicated region
    $region34: #{tpu_custom_call.1} parent=1 // pred_check
      _
    $region35: #{tpu_custom_call.1} parent=1 // pred_check_branch
      %74 = sbr.rel (0) target = $region37
    $region36: #{tpu_custom_call.1} parent=1 // pred_region
      %75 = dma.done [#allocation6], 32768
    $region37: #{tpu_custom_call.1} parent=1 // pred_fallthru
      _
    // Predicated region
    $region38: #{tpu_custom_call.1} parent=1 // pred_check
      _
    $region39: #{tpu_custom_call.1} parent=1 // pred_check_branch
      %77 = sbr.rel (0) target = $region41
    $region40: #{tpu_custom_call.1} parent=1 // pred_region
      %78 = dma.done [#allocation9], 512
    $region41: #{tpu_custom_call.1} parent=1 // pred_fallthru
      _
    %v79 = vld [vmem:[#allocation2] sm:$0xff]
    %v80 = vld [vmem:[#allocation2 + $0x8] sm:$0xff]
    %v81 = vld [vmem:[#allocation2 + $0x10] sm:$0xff]
    %v82 = vld [vmem:[#allocation2 + $0x18] sm:$0xff]
    %v83 = vld [vmem:[#allocation2 + $0x20] sm:$0xff]
    %v84 = vld [vmem:[#allocation2 + $0x28] sm:$0xff]
    %v85 = vld [vmem:[#allocation2 + $0x30] sm:$0xff]
    %v86 = vld [vmem:[#allocation2 + $0x38] sm:$0xff]
    %v87 = vld [vmem:[#allocation2 + $0x40] sm:$0xff]
    %v88 = vld [vmem:[#allocation2 + $0x48] sm:$0xff]
    %v89 = vld [vmem:[#allocation2 + $0x50] sm:$0xff]
    %v90 = vld [vmem:[#allocation2 + $0x58] sm:$0xff]
    %v91 = vld [vmem:[#allocation2 + $0x60] sm:$0xff]
    %v92 = vld [vmem:[#allocation2 + $0x68] sm:$0xff]
    %v93 = vld [vmem:[#allocation2 + $0x70] sm:$0xff]
    %v94 = vld [vmem:[#allocation2 + $0x78] sm:$0xff]
    %v95 = vld [vmem:[#allocation2 + $0x80] sm:$0xff]
    %v96 = vld [vmem:[#allocation2 + $0x88] sm:$0xff]
    %v97 = vld [vmem:[#allocation2 + $0x90] sm:$0xff]
    %v98 = vld [vmem:[#allocation2 + $0x98] sm:$0xff]
    %v99 = vld [vmem:[#allocation2 + $0xa0] sm:$0xff]
    %v100 = vld [vmem:[#allocation2 + $0xa8] sm:$0xff]
    %v101 = vld [vmem:[#allocation2 + $0xb0] sm:$0xff]
    %v102 = vld [vmem:[#allocation2 + $0xb8] sm:$0xff]
    %v103 = vld [vmem:[#allocation2 + $0xc0] sm:$0xff]
    %v104 = vld [vmem:[#allocation2 + $0xc8] sm:$0xff]
    %v105 = vld [vmem:[#allocation2 + $0xd0] sm:$0xff]
    %v106 = vld [vmem:[#allocation2 + $0xd8] sm:$0xff]
    %v107 = vld [vmem:[#allocation2 + $0xe0] sm:$0xff]
    %v108 = vld [vmem:[#allocation2 + $0xe8] sm:$0xff]
    %v109 = vld [vmem:[#allocation2 + $0xf0] sm:$0xff]
    %v110 = vld [vmem:[#allocation2 + $0xf8] sm:$0xff]
    %v111 = vld [vmem:[%s2] sm:$0xff]
    %v112 = vld [vmem:[%s2 + $0x8] sm:$0xff]
    %v113 = vld [vmem:[%s2 + $0x10] sm:$0xff]
    %v114 = vld [vmem:[%s2 + $0x18] sm:$0xff]
    %v115 = vld [vmem:[%s2 + $0x20] sm:$0xff]
    %v116 = vld [vmem:[%s2 + $0x28] sm:$0xff]
    %v117 = vld [vmem:[%s2 + $0x30] sm:$0xff]
    %v118 = vld [vmem:[%s2 + $0x38] sm:$0xff]
    %v119 = vld [vmem:[%s2 + $0x40] sm:$0xff]
    %v120 = vld [vmem:[%s2 + $0x48] sm:$0xff]
    %v121 = vld [vmem:[%s2 + $0x50] sm:$0xff]
    %v122 = vld [vmem:[%s2 + $0x58] sm:$0xff]
    %v123 = vld [vmem:[%s2 + $0x60] sm:$0xff]
    %v124 = vld [vmem:[%s2 + $0x68] sm:$0xff]
    %v125 = vld [vmem:[%s2 + $0x70] sm:$0xff]
    %v126 = vld [vmem:[%s2 + $0x78] sm:$0xff]
    %v127 = vld [vmem:[%s2 + $0x80] sm:$0xff]
    %v128 = vld [vmem:[%s2 + $0x88] sm:$0xff]
    %v129 = vld [vmem:[%s2 + $0x90] sm:$0xff]
    %v130 = vld [vmem:[%s2 + $0x98] sm:$0xff]
    %v131 = vld [vmem:[%s2 + $0xa0] sm:$0xff]
    %v132 = vld [vmem:[%s2 + $0xa8] sm:$0xff]
    %v133 = vld [vmem:[%s2 + $0xb0] sm:$0xff]
    %v134 = vld [vmem:[%s2 + $0xb8] sm:$0xff]
    %v135 = vld [vmem:[%s2 + $0xc0] sm:$0xff]
    %v136 = vld [vmem:[%s2 + $0xc8] sm:$0xff]
    %v137 = vld [vmem:[%s2 + $0xd0] sm:$0xff]
    %v138 = vld [vmem:[%s2 + $0xd8] sm:$0xff]
    %v139 = vld [vmem:[%s2 + $0xe0] sm:$0xff]
    %v140 = vld [vmem:[%s2 + $0xe8] sm:$0xff]
    %v141 = vld [vmem:[%s2 + $0xf0] sm:$0xff]
    %v142 = vld [vmem:[%s2 + $0xf8] sm:$0xff]
    %v143 = vld [vmem:[%s0] sm:$0xff]
    %v144 = vld [vmem:[%s0 + $0x8] sm:$0xff]
    %v145 = vld [vmem:[%s0 + $0x10] sm:$0xff]
    %v146 = vld [vmem:[%s0 + $0x18] sm:$0xff]
    %v147 = vld [vmem:[%s0 + $0x20] sm:$0xff]
    %v148 = vld [vmem:[%s0 + $0x28] sm:$0xff]
    %v149 = vld [vmem:[%s0 + $0x30] sm:$0xff]
    %v150 = vld [vmem:[%s0 + $0x38] sm:$0xff]
    %v151 = vld [vmem:[%s0 + $0x40] sm:$0xff]
    %v152 = vld [vmem:[%s0 + $0x48] sm:$0xff]
    %v153 = vld [vmem:[%s0 + $0x50] sm:$0xff]
    %v154 = vld [vmem:[%s0 + $0x58] sm:$0xff]
    %v155 = vld [vmem:[%s0 + $0x60] sm:$0xff]
    %v156 = vld [vmem:[%s0 + $0x68] sm:$0xff]
    %v157 = vld [vmem:[%s0 + $0x70] sm:$0xff]
    %v158 = vld [vmem:[%s0 + $0x78] sm:$0xff]
    %v159 = vld [vmem:[%s0 + $0x80] sm:$0xff]
    %v160 = vld [vmem:[%s0 + $0x88] sm:$0xff]
    %v161 = vld [vmem:[%s0 + $0x90] sm:$0xff]
    %v162 = vld [vmem:[%s0 + $0x98] sm:$0xff]
    %v163 = vld [vmem:[%s0 + $0xa0] sm:$0xff]
    %v164 = vld [vmem:[%s0 + $0xa8] sm:$0xff]
    %v165 = vld [vmem:[%s0 + $0xb0] sm:$0xff]
    %v166 = vld [vmem:[%s0 + $0xb8] sm:$0xff]
    %v167 = vld [vmem:[%s0 + $0xc0] sm:$0xff]
    %v168 = vld [vmem:[%s0 + $0xc8] sm:$0xff]
    %v169 = vld [vmem:[%s0 + $0xd0] sm:$0xff]
    %v170 = vld [vmem:[%s0 + $0xd8] sm:$0xff]
    %v171 = vld [vmem:[%s0 + $0xe0] sm:$0xff]
    %v172 = vld [vmem:[%s0 + $0xe8] sm:$0xff]
    %v173 = vld [vmem:[%s0 + $0xf0] sm:$0xff]
    %v174 = vld [vmem:[%s0 + $0xf8] sm:$0xff]
    %v175 = vld [vmem:[#allocation7] sm:$0xff]
    %v176 = vld [vmem:[#allocation7 + $0x8] sm:$0xff]
    %v177 = vld [vmem:[#allocation7 + $0x10] sm:$0xff]
    %v178 = vld [vmem:[#allocation7 + $0x18] sm:$0xff]
    %v179 = vld [vmem:[#allocation7 + $0x20] sm:$0xff]
    %v180 = vld [vmem:[#allocation7 + $0x28] sm:$0xff]
    %v181 = vld [vmem:[#allocation7 + $0x30] sm:$0xff]
    %v182 = vld [vmem:[#allocation7 + $0x38] sm:$0xff]
    %v183 = vld [vmem:[#allocation7 + $0x40] sm:$0xff]
    %v184 = vld [vmem:[#allocation7 + $0x48] sm:$0xff]
    %v185 = vld [vmem:[#allocation7 + $0x50] sm:$0xff]
    %v186 = vld [vmem:[#allocation7 + $0x58] sm:$0xff]
    %v187 = vld [vmem:[#allocation7 + $0x60] sm:$0xff]
    %v188 = vld [vmem:[#allocation7 + $0x68] sm:$0xff]
    %v189 = vld [vmem:[#allocation7 + $0x70] sm:$0xff]
    %v190 = vld [vmem:[#allocation7 + $0x78] sm:$0xff]
    %v191 = vld [vmem:[#allocation7 + $0x80] sm:$0xff]
    %v192 = vld [vmem:[#allocation7 + $0x88] sm:$0xff]
    %v193 = vld [vmem:[#allocation7 + $0x90] sm:$0xff]
    %v194 = vld [vmem:[#allocation7 + $0x98] sm:$0xff]
    %v195 = vld [vmem:[#allocation7 + $0xa0] sm:$0xff]
    %v196 = vld [vmem:[#allocation7 + $0xa8] sm:$0xff]
    %v197 = vld [vmem:[#allocation7 + $0xb0] sm:$0xff]
    %v198 = vld [vmem:[#allocation7 + $0xb8] sm:$0xff]
    %v199 = vld [vmem:[#allocation7 + $0xc0] sm:$0xff]
    %v200 = vld [vmem:[#allocation7 + $0xc8] sm:$0xff]
    %v201 = vld [vmem:[#allocation7 + $0xd0] sm:$0xff]
    %v202 = vld [vmem:[#allocation7 + $0xd8] sm:$0xff]
    %v203 = vld [vmem:[#allocation7 + $0xe0] sm:$0xff]
    %v204 = vld [vmem:[#allocation7 + $0xe8] sm:$0xff]
    %v205 = vld [vmem:[#allocation7 + $0xf0] sm:$0xff]
    %v206 = vld [vmem:[#allocation7 + $0xf8] sm:$0xff]
    %v207 = vld [vmem:[#allocation8] ss:$8 sm:$0x3]
    %v209 = vlaneseq
    %v210 = vshrl.u32 %v209, 7
    %v211 = vsub.s32 0, %v210
    %v212 = vrot.slane %v207, %v211
    %v213 = vlaneseq
    %v214 = vshrl.u32 %v213, 7
    %v215 = vsub.s32 1, %v214
    %v216 = vrot.slane %v207, %v215
    %v251 = vunpack.c.l.b16 %v143
    %v252 = vunpack.c.h.b16 %v143
    %v253 = vunpack.c.l.b16 %v144
    %v254 = vunpack.c.h.b16 %v144
    %v255 = vunpack.c.l.b16 %v145
    %v256 = vunpack.c.h.b16 %v145
    %v257 = vunpack.c.l.b16 %v146
    %v258 = vunpack.c.h.b16 %v146
    %v259 = vunpack.c.l.b16 %v147
    %v260 = vunpack.c.h.b16 %v147
    %v261 = vunpack.c.l.b16 %v148
    %v262 = vunpack.c.h.b16 %v148
    %v263 = vunpack.c.l.b16 %v149
    %v264 = vunpack.c.h.b16 %v149
    %v265 = vunpack.c.l.b16 %v150
    %v266 = vunpack.c.h.b16 %v150
    %v267 = vunpack.c.l.b16 %v151
    %v268 = vunpack.c.h.b16 %v151
    %v269 = vunpack.c.l.b16 %v152
    %v270 = vunpack.c.h.b16 %v152
    %v271 = vunpack.c.l.b16 %v153
    %v272 = vunpack.c.h.b16 %v153
    %v273 = vunpack.c.l.b16 %v154
    %v274 = vunpack.c.h.b16 %v154
    %v275 = vunpack.c.l.b16 %v155
    %v276 = vunpack.c.h.b16 %v155
    %v277 = vunpack.c.l.b16 %v156
    %v278 = vunpack.c.h.b16 %v156
    %v279 = vunpack.c.l.b16 %v157
    %v280 = vunpack.c.h.b16 %v157
    %v281 = vunpack.c.l.b16 %v158
    %v282 = vunpack.c.h.b16 %v158
    %v283 = vunpack.c.l.b16 %v159
    %v284 = vunpack.c.h.b16 %v159
    %v285 = vunpack.c.l.b16 %v160
    %v286 = vunpack.c.h.b16 %v160
    %v287 = vunpack.c.l.b16 %v161
    %v288 = vunpack.c.h.b16 %v161
    %v289 = vunpack.c.l.b16 %v162
    %v290 = vunpack.c.h.b16 %v162
    %v291 = vunpack.c.l.b16 %v163
    %v292 = vunpack.c.h.b16 %v163
    %v293 = vunpack.c.l.b16 %v164
    %v294 = vunpack.c.h.b16 %v164
    %v295 = vunpack.c.l.b16 %v165
    %v296 = vunpack.c.h.b16 %v165
    %v297 = vunpack.c.l.b16 %v166
    %v298 = vunpack.c.h.b16 %v166
    %v299 = vunpack.c.l.b16 %v167
    %v300 = vunpack.c.h.b16 %v167
    %v301 = vunpack.c.l.b16 %v168
    %v302 = vunpack.c.h.b16 %v168
    %v303 = vunpack.c.l.b16 %v169
    %v304 = vunpack.c.h.b16 %v169
    %v305 = vunpack.c.l.b16 %v170
    %v306 = vunpack.c.h.b16 %v170
    %v307 = vunpack.c.l.b16 %v171
    %v308 = vunpack.c.h.b16 %v171
    %v309 = vunpack.c.l.b16 %v172
    %v310 = vunpack.c.h.b16 %v172
    %v311 = vunpack.c.l.b16 %v173
    %v312 = vunpack.c.h.b16 %v173
    %v313 = vunpack.c.l.b16 %v174
    %v314 = vunpack.c.h.b16 %v174
    %v315 = vpack.c.b16 %v253, %v251
    %v316 = vpack.c.b16 %v254, %v252
    %v317 = vpack.c.b16 %v257, %v255
    %v318 = vpack.c.b16 %v258, %v256
    %v319 = vpack.c.b16 %v261, %v259
    %v320 = vpack.c.b16 %v262, %v260
    %v321 = vpack.c.b16 %v265, %v263
    %v322 = vpack.c.b16 %v266, %v264
    %v323 = vpack.c.b16 %v269, %v267
    %v324 = vpack.c.b16 %v270, %v268
    %v325 = vpack.c.b16 %v273, %v271
    %v326 = vpack.c.b16 %v274, %v272
    %v327 = vpack.c.b16 %v277, %v275
    %v328 = vpack.c.b16 %v278, %v276
    %v329 = vpack.c.b16 %v281, %v279
    %v330 = vpack.c.b16 %v282, %v280
    %v331 = vpack.c.b16 %v285, %v283
    %v332 = vpack.c.b16 %v286, %v284
    %v333 = vpack.c.b16 %v289, %v287
    %v334 = vpack.c.b16 %v290, %v288
    %v335 = vpack.c.b16 %v293, %v291
    %v336 = vpack.c.b16 %v294, %v292
    %v337 = vpack.c.b16 %v297, %v295
    %v338 = vpack.c.b16 %v298, %v296
    %v339 = vpack.c.b16 %v301, %v299
    %v340 = vpack.c.b16 %v302, %v300
    %v341 = vpack.c.b16 %v305, %v303
    %v342 = vpack.c.b16 %v306, %v304
    %v343 = vpack.c.b16 %v309, %v307
    %v344 = vpack.c.b16 %v310, %v308
    %v345 = vpack.c.b16 %v313, %v311
    %v346 = vpack.c.b16 %v314, %v312
    %v411 = vunpack.c.l.b16 %v175
    %v412 = vunpack.c.h.b16 %v175
    %v413 = vunpack.c.l.b16 %v176
    %v414 = vunpack.c.h.b16 %v176
    %v415 = vunpack.c.l.b16 %v177
    %v416 = vunpack.c.h.b16 %v177
    %v417 = vunpack.c.l.b16 %v178
    %v418 = vunpack.c.h.b16 %v178
    %v419 = vunpack.c.l.b16 %v179
    %v420 = vunpack.c.h.b16 %v179
    %v421 = vunpack.c.l.b16 %v180
    %v422 = vunpack.c.h.b16 %v180
    %v423 = vunpack.c.l.b16 %v181
    %v424 = vunpack.c.h.b16 %v181
    %v425 = vunpack.c.l.b16 %v182
    %v426 = vunpack.c.h.b16 %v182
    %v427 = vunpack.c.l.b16 %v183
    %v428 = vunpack.c.h.b16 %v183
    %v429 = vunpack.c.l.b16 %v184
    %v430 = vunpack.c.h.b16 %v184
    %v431 = vunpack.c.l.b16 %v185
    %v432 = vunpack.c.h.b16 %v185
    %v433 = vunpack.c.l.b16 %v186
    %v434 = vunpack.c.h.b16 %v186
    %v435 = vunpack.c.l.b16 %v187
    %v436 = vunpack.c.h.b16 %v187
    %v437 = vunpack.c.l.b16 %v188
    %v438 = vunpack.c.h.b16 %v188
    %v439 = vunpack.c.l.b16 %v189
    %v440 = vunpack.c.h.b16 %v189
    %v441 = vunpack.c.l.b16 %v190
    %v442 = vunpack.c.h.b16 %v190
    %v443 = vunpack.c.l.b16 %v191
    %v444 = vunpack.c.h.b16 %v191
    %v445 = vunpack.c.l.b16 %v192
    %v446 = vunpack.c.h.b16 %v192
    %v447 = vunpack.c.l.b16 %v193
    %v448 = vunpack.c.h.b16 %v193
    %v449 = vunpack.c.l.b16 %v194
    %v450 = vunpack.c.h.b16 %v194
    %v451 = vunpack.c.l.b16 %v195
    %v452 = vunpack.c.h.b16 %v195
    %v453 = vunpack.c.l.b16 %v196
    %v454 = vunpack.c.h.b16 %v196
    %v455 = vunpack.c.l.b16 %v197
    %v456 = vunpack.c.h.b16 %v197
    %v457 = vunpack.c.l.b16 %v198
    %v458 = vunpack.c.h.b16 %v198
    %v459 = vunpack.c.l.b16 %v199
    %v460 = vunpack.c.h.b16 %v199
    %v461 = vunpack.c.l.b16 %v200
    %v462 = vunpack.c.h.b16 %v200
    %v463 = vunpack.c.l.b16 %v201
    %v464 = vunpack.c.h.b16 %v201
    %v465 = vunpack.c.l.b16 %v202
    %v466 = vunpack.c.h.b16 %v202
    %v467 = vunpack.c.l.b16 %v203
    %v468 = vunpack.c.h.b16 %v203
    %v469 = vunpack.c.l.b16 %v204
    %v470 = vunpack.c.h.b16 %v204
    %v471 = vunpack.c.l.b16 %v205
    %v472 = vunpack.c.h.b16 %v205
    %v473 = vunpack.c.l.b16 %v206
    %v474 = vunpack.c.h.b16 %v206
    %v475 = vpack.c.b16 %v413, %v411
    %v476 = vpack.c.b16 %v414, %v412
    %v477 = vpack.c.b16 %v417, %v415
    %v478 = vpack.c.b16 %v418, %v416
    %v479 = vpack.c.b16 %v421, %v419
    %v480 = vpack.c.b16 %v422, %v420
    %v481 = vpack.c.b16 %v425, %v423
    %v482 = vpack.c.b16 %v426, %v424
    %v483 = vpack.c.b16 %v429, %v427
    %v484 = vpack.c.b16 %v430, %v428
    %v485 = vpack.c.b16 %v433, %v431
    %v486 = vpack.c.b16 %v434, %v432
    %v487 = vpack.c.b16 %v437, %v435
    %v488 = vpack.c.b16 %v438, %v436
    %v489 = vpack.c.b16 %v441, %v439
    %v490 = vpack.c.b16 %v442, %v440
    %v491 = vpack.c.b16 %v445, %v443
    %v492 = vpack.c.b16 %v446, %v444
    %v493 = vpack.c.b16 %v449, %v447
    %v494 = vpack.c.b16 %v450, %v448
    %v495 = vpack.c.b16 %v453, %v451
    %v496 = vpack.c.b16 %v454, %v452
    %v497 = vpack.c.b16 %v457, %v455
    %v498 = vpack.c.b16 %v458, %v456
    %v499 = vpack.c.b16 %v461, %v459
    %v500 = vpack.c.b16 %v462, %v460
    %v501 = vpack.c.b16 %v465, %v463
    %v502 = vpack.c.b16 %v466, %v464
    %v503 = vpack.c.b16 %v469, %v467
    %v504 = vpack.c.b16 %v470, %v468
    %v505 = vpack.c.b16 %v473, %v471
    %v506 = vpack.c.b16 %v474, %v472
    %539 = vmatprep.subr.bf16.mxu0 %v476
    %540 = vmatpush1.bf16.msra.mxu0 %v475
    %541 = vmatprep.subr.bf16.mxu0 %v478
    %542 = vmatpush1.bf16.msra.mxu0 %v477
    %543 = vmatprep.subr.bf16.mxu0 %v480
    %544 = vmatpush1.bf16.msra.mxu0 %v479
    %545 = vmatprep.subr.bf16.mxu0 %v482
    %546 = vmatpush1.bf16.msra.mxu0 %v481
    %547 = vmatprep.subr.bf16.mxu0 %v484
    %548 = vmatpush1.bf16.msra.mxu0 %v483
    %549 = vmatprep.subr.bf16.mxu0 %v486
    %550 = vmatpush1.bf16.msra.mxu0 %v485
    %551 = vmatprep.subr.bf16.mxu0 %v488
    %552 = vmatpush1.bf16.msra.mxu0 %v487
    %553 = vmatprep.subr.bf16.mxu0 %v490
    %554 = vmatpush1.bf16.msra.mxu0 %v489
    %555 = vmatprep.subr.bf16.mxu0 %v492
    %556 = vmatpush1.bf16.msra.mxu0 %v491
    %557 = vmatprep.subr.bf16.mxu0 %v494
    %558 = vmatpush1.bf16.msra.mxu0 %v493
    %559 = vmatprep.subr.bf16.mxu0 %v496
    %560 = vmatpush1.bf16.msra.mxu0 %v495
    %561 = vmatprep.subr.bf16.mxu0 %v498
    %562 = vmatpush1.bf16.msra.mxu0 %v497
    %563 = vmatprep.subr.bf16.mxu0 %v500
    %564 = vmatpush1.bf16.msra.mxu0 %v499
    %565 = vmatprep.subr.bf16.mxu0 %v502
    %566 = vmatpush1.bf16.msra.mxu0 %v501
    %567 = vmatprep.subr.bf16.mxu0 %v504
    %568 = vmatpush1.bf16.msra.mxu0 %v503
    %569 = vmatprep.subr.bf16.mxu0 %v506
    %570 = vmatpush1.bf16.msra.mxu0 %v505
    %571 = vmatprep.mubr.bf16.mxu0 %v316
    %572 = vmatmul.mubr.bf16.gmra.mrb[0].mxu0 %v315
    %v573 = vpop.f32.mrb[0].mxu0
    %v574 = vadd.f32 %v212, %v573
    %v575 = vpop.f32.mrb[0].mxu0
    %v576 = vadd.f32 %v216, %v575
    %v577 = vpop.f32.mrb[0].mxu0
    %v578 = vadd.f32 %v212, %v577
    %v579 = vpop.f32.mrb[0].mxu0
    %v580 = vadd.f32 %v216, %v579
    %581 = vmatprep.mubr.bf16.mxu0 %v318
    %582 = vmatmul.mubr.bf16.gmra.mrb[0].mxu0 %v317
    %v583 = vpop.f32.mrb[0].mxu0
    %v584 = vadd.f32 %v212, %v583
    %v585 = vpop.f32.mrb[0].mxu0
    %v586 = vadd.f32 %v216, %v585
    %v587 = vpop.f32.mrb[0].mxu0
    %v588 = vadd.f32 %v212, %v587
    %v589 = vpop.f32.mrb[0].mxu0
    %v590 = vadd.f32 %v216, %v589
    %591 = vmatprep.mubr.bf16.mxu0 %v320
    %592 = vmatmul.mubr.bf16.gmra.mrb[0].mxu0 %v319
    %v593 = vpop.f32.mrb[0].mxu0
    %v594 = vadd.f32 %v212, %v593
    %v595 = vpop.f32.mrb[0].mxu0
    %v596 = vadd.f32 %v216, %v595
    %v597 = vpop.f32.mrb[0].mxu0
    %v598 = vadd.f32 %v212, %v597
    %v599 = vpop.f32.mrb[0].mxu0
    %v600 = vadd.f32 %v216, %v599
    %601 = vmatprep.mubr.bf16.mxu0 %v322
    %602 = vmatmul.mubr.bf16.gmra.mrb[0].mxu0 %v321
    %v603 = vpop.f32.mrb[0].mxu0
    %v604 = vadd.f32 %v212, %v603
    %v605 = vpop.f32.mrb[0].mxu0
    %v606 = vadd.f32 %v216, %v605
    %v607 = vpop.f32.mrb[0].mxu0
    %v608 = vadd.f32 %v212, %v607
    %v609 = vpop.f32.mrb[0].mxu0
    %v610 = vadd.f32 %v216, %v609
    %611 = vmatprep.mubr.bf16.mxu0 %v324
    %612 = vmatmul.mubr.bf16.gmra.mrb[0].mxu0 %v323
    %v613 = vpop.f32.mrb[0].mxu0
    %v614 = vadd.f32 %v212, %v613
    %v615 = vpop.f32.mrb[0].mxu0
    %v616 = vadd.f32 %v216, %v615
    %v617 = vpop.f32.mrb[0].mxu0
    %v618 = vadd.f32 %v212, %v617
    %v619 = vpop.f32.mrb[0].mxu0
    %v620 = vadd.f32 %v216, %v619
    %621 = vmatprep.mubr.bf16.mxu0 %v326
    %622 = vmatmul.mubr.bf16.gmra.mrb[0].mxu0 %v325
    %v623 = vpop.f32.mrb[0].mxu0
    %v624 = vadd.f32 %v212, %v623
    %v625 = vpop.f32.mrb[0].mxu0
    %v626 = vadd.f32 %v216, %v625
    %v627 = vpop.f32.mrb[0].mxu0
    %v628 = vadd.f32 %v212, %v627
    %v629 = vpop.f32.mrb[0].mxu0
    %v630 = vadd.f32 %v216, %v629
    %631 = vmatprep.mubr.bf16.mxu0 %v328
    %632 = vmatmul.mubr.bf16.gmra.mrb[0].mxu0 %v327
    %v633 = vpop.f32.mrb[0].mxu0
    %v634 = vadd.f32 %v212, %v633
    %v635 = vpop.f32.mrb[0].mxu0
    %v636 = vadd.f32 %v216, %v635
    %v637 = vpop.f32.mrb[0].mxu0
    %v638 = vadd.f32 %v212, %v637
    %v639 = vpop.f32.mrb[0].mxu0
    %v640 = vadd.f32 %v216, %v639
    %641 = vmatprep.mubr.bf16.mxu0 %v330
    %642 = vmatmul.mubr.bf16.gmra.mrb[0].mxu0 %v329
    %v643 = vpop.f32.mrb[0].mxu0
    %v644 = vadd.f32 %v212, %v643
    %v645 = vpop.f32.mrb[0].mxu0
    %v646 = vadd.f32 %v216, %v645
    %v647 = vpop.f32.mrb[0].mxu0
    %v648 = vadd.f32 %v212, %v647
    %v649 = vpop.f32.mrb[0].mxu0
    %v650 = vadd.f32 %v216, %v649
    %651 = vmatprep.mubr.bf16.mxu0 %v332
    %652 = vmatmul.mubr.bf16.gmra.mrb[0].mxu0 %v331
    %v653 = vpop.f32.mrb[0].mxu0
    %v654 = vadd.f32 %v212, %v653
    %v655 = vpop.f32.mrb[0].mxu0
    %v656 = vadd.f32 %v216, %v655
    %v657 = vpop.f32.mrb[0].mxu0
    %v658 = vadd.f32 %v212, %v657
    %v659 = vpop.f32.mrb[0].mxu0
    %v660 = vadd.f32 %v216, %v659
    %661 = vmatprep.mubr.bf16.mxu0 %v334
    %662 = vmatmul.mubr.bf16.gmra.mrb[0].mxu0 %v333
    %v663 = vpop.f32.mrb[0].mxu0
    %v664 = vadd.f32 %v212, %v663
    %v665 = vpop.f32.mrb[0].mxu0
    %v666 = vadd.f32 %v216, %v665
    %v667 = vpop.f32.mrb[0].mxu0
    %v668 = vadd.f32 %v212, %v667
    %v669 = vpop.f32.mrb[0].mxu0
    %v670 = vadd.f32 %v216, %v669
    %671 = vmatprep.mubr.bf16.mxu0 %v336
    %672 = vmatmul.mubr.bf16.gmra.mrb[0].mxu0 %v335
    %v673 = vpop.f32.mrb[0].mxu0
    %v674 = vadd.f32 %v212, %v673
    %v675 = vpop.f32.mrb[0].mxu0
    %v676 = vadd.f32 %v216, %v675
    %v677 = vpop.f32.mrb[0].mxu0
    %v678 = vadd.f32 %v212, %v677
    %v679 = vpop.f32.mrb[0].mxu0
    %v680 = vadd.f32 %v216, %v679
    %681 = vmatprep.mubr.bf16.mxu0 %v338
    %682 = vmatmul.mubr.bf16.gmra.mrb[0].mxu0 %v337
    %v683 = vpop.f32.mrb[0].mxu0
    %v684 = vadd.f32 %v212, %v683
    %v685 = vpop.f32.mrb[0].mxu0
    %v686 = vadd.f32 %v216, %v685
    %v687 = vpop.f32.mrb[0].mxu0
    %v688 = vadd.f32 %v212, %v687
    %v689 = vpop.f32.mrb[0].mxu0
    %v690 = vadd.f32 %v216, %v689
    %691 = vmatprep.mubr.bf16.mxu0 %v340
    %692 = vmatmul.mubr.bf16.gmra.mrb[0].mxu0 %v339
    %v693 = vpop.f32.mrb[0].mxu0
    %v694 = vadd.f32 %v212, %v693
    %v695 = vpop.f32.mrb[0].mxu0
    %v696 = vadd.f32 %v216, %v695
    %v697 = vpop.f32.mrb[0].mxu0
    %v698 = vadd.f32 %v212, %v697
    %v699 = vpop.f32.mrb[0].mxu0
    %v700 = vadd.f32 %v216, %v699
    %701 = vmatprep.mubr.bf16.mxu0 %v342
    %702 = vmatmul.mubr.bf16.gmra.mrb[0].mxu0 %v341
    %v703 = vpop.f32.mrb[0].mxu0
    %v704 = vadd.f32 %v212, %v703
    %v705 = vpop.f32.mrb[0].mxu0
    %v706 = vadd.f32 %v216, %v705
    %v707 = vpop.f32.mrb[0].mxu0
    %v708 = vadd.f32 %v212, %v707
    %v709 = vpop.f32.mrb[0].mxu0
    %v710 = vadd.f32 %v216, %v709
    %711 = vmatprep.mubr.bf16.mxu0 %v344
    %712 = vmatmul.mubr.bf16.gmra.mrb[0].mxu0 %v343
    %v713 = vpop.f32.mrb[0].mxu0
    %v714 = vadd.f32 %v212, %v713
    %v715 = vpop.f32.mrb[0].mxu0
    %v716 = vadd.f32 %v216, %v715
    %v717 = vpop.f32.mrb[0].mxu0
    %v718 = vadd.f32 %v212, %v717
    %v719 = vpop.f32.mrb[0].mxu0
    %v720 = vadd.f32 %v216, %v719
    %721 = vmatprep.mubr.bf16.mxu0 %v346
    %722 = vmatmul.mubr.bf16.gmra.mrb[0].mxu0 %v345
    %v723 = vpop.f32.mrb[0].mxu0
    %v724 = vadd.f32 %v212, %v723
    %v725 = vpop.f32.mrb[0].mxu0
    %v726 = vadd.f32 %v216, %v725
    %v727 = vpop.f32.mrb[0].mxu0
    %v728 = vadd.f32 %v212, %v727
    %v729 = vpop.f32.mrb[0].mxu0
    %v730 = vadd.f32 %v216, %v729
    %731 = vdwg.mxu0
    %v732 = vpack.c.bf16 %v578, %v574
    %v733 = vpack.c.bf16 %v580, %v576
    %v734 = vpack.c.bf16 %v588, %v584
    %v735 = vpack.c.bf16 %v590, %v586
    %v736 = vpack.c.bf16 %v598, %v594
    %v737 = vpack.c.bf16 %v600, %v596
    %v738 = vpack.c.bf16 %v608, %v604
    %v739 = vpack.c.bf16 %v610, %v606
    %v740 = vpack.c.bf16 %v618, %v614
    %v741 = vpack.c.bf16 %v620, %v616
    %v742 = vpack.c.bf16 %v628, %v624
    %v743 = vpack.c.bf16 %v630, %v626
    %v744 = vpack.c.bf16 %v638, %v634
    %v745 = vpack.c.bf16 %v640, %v636
    %v746 = vpack.c.bf16 %v648, %v644
    %v747 = vpack.c.bf16 %v650, %v646
    %v748 = vpack.c.bf16 %v658, %v654
    %v749 = vpack.c.bf16 %v660, %v656
    %v750 = vpack.c.bf16 %v668, %v664
    %v751 = vpack.c.bf16 %v670, %v666
    %v752 = vpack.c.bf16 %v678, %v674
    %v753 = vpack.c.bf16 %v680, %v676
    %v754 = vpack.c.bf16 %v688, %v684
    %v755 = vpack.c.bf16 %v690, %v686
    %v756 = vpack.c.bf16 %v698, %v694
    %v757 = vpack.c.bf16 %v700, %v696
    %v758 = vpack.c.bf16 %v708, %v704
    %v759 = vpack.c.bf16 %v710, %v706
    %v760 = vpack.c.bf16 %v718, %v714
    %v761 = vpack.c.bf16 %v720, %v716
    %v762 = vpack.c.bf16 %v728, %v724
    %v763 = vpack.c.bf16 %v730, %v726
    %s764 = scalar_lea.vmem [#allocation7], 256
    %v765 = vld [vmem:[%s764] sm:$0xff]
    %v766 = vld [vmem:[%s764 + $0x8] sm:$0xff]
    %v767 = vld [vmem:[%s764 + $0x10] sm:$0xff]
    %v768 = vld [vmem:[%s764 + $0x18] sm:$0xff]
    %v769 = vld [vmem:[%s764 + $0x20] sm:$0xff]
    %v770 = vld [vmem:[%s764 + $0x28] sm:$0xff]
    %v771 = vld [vmem:[%s764 + $0x30] sm:$0xff]
    %v772 = vld [vmem:[%s764 + $0x38] sm:$0xff]
    %v773 = vld [vmem:[%s764 + $0x40] sm:$0xff]
    %v774 = vld [vmem:[%s764 + $0x48] sm:$0xff]
    %v775 = vld [vmem:[%s764 + $0x50] sm:$0xff]
    %v776 = vld [vmem:[%s764 + $0x58] sm:$0xff]
    %v777 = vld [vmem:[%s764 + $0x60] sm:$0xff]
    %v778 = vld [vmem:[%s764 + $0x68] sm:$0xff]
    %v779 = vld [vmem:[%s764 + $0x70] sm:$0xff]
    %v780 = vld [vmem:[%s764 + $0x78] sm:$0xff]
    %v781 = vld [vmem:[%s764 + $0x80] sm:$0xff]
    %v782 = vld [vmem:[%s764 + $0x88] sm:$0xff]
    %v783 = vld [vmem:[%s764 + $0x90] sm:$0xff]
    %v784 = vld [vmem:[%s764 + $0x98] sm:$0xff]
    %v785 = vld [vmem:[%s764 + $0xa0] sm:$0xff]
    %v786 = vld [vmem:[%s764 + $0xa8] sm:$0xff]
    %v787 = vld [vmem:[%s764 + $0xb0] sm:$0xff]
    %v788 = vld [vmem:[%s764 + $0xb8] sm:$0xff]
    %v789 = vld [vmem:[%s764 + $0xc0] sm:$0xff]
    %v790 = vld [vmem:[%s764 + $0xc8] sm:$0xff]
    %v791 = vld [vmem:[%s764 + $0xd0] sm:$0xff]
    %v792 = vld [vmem:[%s764 + $0xd8] sm:$0xff]
    %v793 = vld [vmem:[%s764 + $0xe0] sm:$0xff]
    %v794 = vld [vmem:[%s764 + $0xe8] sm:$0xff]
    %v795 = vld [vmem:[%s764 + $0xf0] sm:$0xff]
    %v796 = vld [vmem:[%s764 + $0xf8] sm:$0xff]
    %v829 = vunpack.c.l.b16 %v765
    %v830 = vunpack.c.h.b16 %v765
    %v831 = vunpack.c.l.b16 %v766
    %v832 = vunpack.c.h.b16 %v766
    %v833 = vunpack.c.l.b16 %v767
    %v834 = vunpack.c.h.b16 %v767
    %v835 = vunpack.c.l.b16 %v768
    %v836 = vunpack.c.h.b16 %v768
    %v837 = vunpack.c.l.b16 %v769
    %v838 = vunpack.c.h.b16 %v769
    %v839 = vunpack.c.l.b16 %v770
    %v840 = vunpack.c.h.b16 %v770
    %v841 = vunpack.c.l.b16 %v771
    %v842 = vunpack.c.h.b16 %v771
    %v843 = vunpack.c.l.b16 %v772
    %v844 = vunpack.c.h.b16 %v772
    %v845 = vunpack.c.l.b16 %v773
    %v846 = vunpack.c.h.b16 %v773
    %v847 = vunpack.c.l.b16 %v774
    %v848 = vunpack.c.h.b16 %v774
    %v849 = vunpack.c.l.b16 %v775
    %v850 = vunpack.c.h.b16 %v775
    %v851 = vunpack.c.l.b16 %v776
    %v852 = vunpack.c.h.b16 %v776
    %v853 = vunpack.c.l.b16 %v777
    %v854 = vunpack.c.h.b16 %v777
    %v855 = vunpack.c.l.b16 %v778
    %v856 = vunpack.c.h.b16 %v778
    %v857 = vunpack.c.l.b16 %v779
    %v858 = vunpack.c.h.b16 %v779
    %v859 = vunpack.c.l.b16 %v780
    %v860 = vunpack.c.h.b16 %v780
    %v861 = vunpack.c.l.b16 %v781
    %v862 = vunpack.c.h.b16 %v781
    %v863 = vunpack.c.l.b16 %v782
    %v864 = vunpack.c.h.b16 %v782
    %v865 = vunpack.c.l.b16 %v783
    %v866 = vunpack.c.h.b16 %v783
    %v867 = vunpack.c.l.b16 %v784
    %v868 = vunpack.c.h.b16 %v784
    %v869 = vunpack.c.l.b16 %v785
    %v870 = vunpack.c.h.b16 %v785
    %v871 = vunpack.c.l.b16 %v786
    %v872 = vunpack.c.h.b16 %v786
    %v873 = vunpack.c.l.b16 %v787
    %v874 = vunpack.c.h.b16 %v787
    %v875 = vunpack.c.l.b16 %v788
    %v876 = vunpack.c.h.b16 %v788
    %v877 = vunpack.c.l.b16 %v789
    %v878 = vunpack.c.h.b16 %v789
    %v879 = vunpack.c.l.b16 %v790
    %v880 = vunpack.c.h.b16 %v790
    %v881 = vunpack.c.l.b16 %v791
    %v882 = vunpack.c.h.b16 %v791
    %v883 = vunpack.c.l.b16 %v792
    %v884 = vunpack.c.h.b16 %v792
    %v885 = vunpack.c.l.b16 %v793
    %v886 = vunpack.c.h.b16 %v793
    %v887 = vunpack.c.l.b16 %v794
    %v888 = vunpack.c.h.b16 %v794
    %v889 = vunpack.c.l.b16 %v795
    %v890 = vunpack.c.h.b16 %v795
    %v891 = vunpack.c.l.b16 %v796
    %v892 = vunpack.c.h.b16 %v796
    %v893 = vpack.c.b16 %v831, %v829
    %v894 = vpack.c.b16 %v832, %v830
    %v895 = vpack.c.b16 %v835, %v833
    %v896 = vpack.c.b16 %v836, %v834
    %v897 = vpack.c.b16 %v839, %v837
    %v898 = vpack.c.b16 %v840, %v838
    %v899 = vpack.c.b16 %v843, %v841
    %v900 = vpack.c.b16 %v844, %v842
    %v901 = vpack.c.b16 %v847, %v845
    %v902 = vpack.c.b16 %v848, %v846
    %v903 = vpack.c.b16 %v851, %v849
    %v904 = vpack.c.b16 %v852, %v850
    %v905 = vpack.c.b16 %v855, %v853
    %v906 = vpack.c.b16 %v856, %v854
    %v907 = vpack.c.b16 %v859, %v857
    %v908 = vpack.c.b16 %v860, %v858
    %v909 = vpack.c.b16 %v863, %v861
    %v910 = vpack.c.b16 %v864, %v862
    %v911 = vpack.c.b16 %v867, %v865
    %v912 = vpack.c.b16 %v868, %v866
    %v913 = vpack.c.b16 %v871, %v869
    %v914 = vpack.c.b16 %v872, %v870
    %v915 = vpack.c.b16 %v875, %v873
    %v916 = vpack.c.b16 %v876, %v874
    %v917 = vpack.c.b16 %v879, %v877
    %v918 = vpack.c.b16 %v880, %v878
    %v919 = vpack.c.b16 %v883, %v881
    %v920 = vpack.c.b16 %v884, %v882
    %v921 = vpack.c.b16 %v887, %v885
    %v922 = vpack.c.b16 %v888, %v886
    %v923 = vpack.c.b16 %v891, %v889
    %v924 = vpack.c.b16 %v892, %v890
    %957 = vmatprep.subr.bf16.mxu0 %v894
    %958 = vmatpush1.bf16.msra.mxu0 %v893
    %959 = vmatprep.subr.bf16.mxu0 %v896
    %960 = vmatpush1.bf16.msra.mxu0 %v895
    %961 = vmatprep.subr.bf16.mxu0 %v898
    %962 = vmatpush1.bf16.msra.mxu0 %v897
    %963 = vmatprep.subr.bf16.mxu0 %v900
    %964 = vmatpush1.bf16.msra.mxu0 %v899
    %965 = vmatprep.subr.bf16.mxu0 %v902
    %966 = vmatpush1.bf16.msra.mxu0 %v901
    %967 = vmatprep.subr.bf16.mxu0 %v904
    %968 = vmatpush1.bf16.msra.mxu0 %v903
    %969 = vmatprep.subr.bf16.mxu0 %v906
    %970 = vmatpush1.bf16.msra.mxu0 %v905
    %971 = vmatprep.subr.bf16.mxu0 %v908
    %972 = vmatpush1.bf16.msra.mxu0 %v907
    %973 = vmatprep.subr.bf16.mxu0 %v910
    %974 = vmatpush1.bf16.msra.mxu0 %v909
    %975 = vmatprep.subr.bf16.mxu0 %v912
    %976 = vmatpush1.bf16.msra.mxu0 %v911
    %977 = vmatprep.subr.bf16.mxu0 %v914
    %978 = vmatpush1.bf16.msra.mxu0 %v913
    %979 = vmatprep.subr.bf16.mxu0 %v916
    %980 = vmatpush1.bf16.msra.mxu0 %v915
    %981 = vmatprep.subr.bf16.mxu0 %v918
    %982 = vmatpush1.bf16.msra.mxu0 %v917
    %983 = vmatprep.subr.bf16.mxu0 %v920
    %984 = vmatpush1.bf16.msra.mxu0 %v919
    %985 = vmatprep.subr.bf16.mxu0 %v922
    %986 = vmatpush1.bf16.msra.mxu0 %v921
    %987 = vmatprep.subr.bf16.mxu0 %v924
    %988 = vmatpush1.bf16.msra.mxu0 %v923
    %989 = vmatprep.mubr.bf16.mxu0 %v733
    %990 = vmatmul.mubr.bf16.gmra.mrb[0].mxu0 %v732
    %v991 = vpop.f32.mrb[0].mxu0
    %v992 = vadd.f32 0.0, %v991
    %v993 = vpop.f32.mrb[0].mxu0
    %v994 = vadd.f32 0.0, %v993
    %v995 = vpop.f32.mrb[0].mxu0
    %v996 = vadd.f32 0.0, %v995
    %v997 = vpop.f32.mrb[0].mxu0
    %v998 = vadd.f32 0.0, %v997
    %999 = vmatprep.mubr.bf16.mxu0 %v735
    %1000 = vmatmul.mubr.bf16.gmra.mrb[0].mxu0 %v734
    %v1001 = vpop.f32.mrb[0].mxu0
    %v1002 = vadd.f32 0.0, %v1001
    %v1003 = vpop.f32.mrb[0].mxu0
    %v1004 = vadd.f32 0.0, %v1003
    %v1005 = vpop.f32.mrb[0].mxu0
    %v1006 = vadd.f32 0.0, %v1005
    %v1007 = vpop.f32.mrb[0].mxu0
    %v1008 = vadd.f32 0.0, %v1007
    %1009 = vmatprep.mubr.bf16.mxu0 %v737
    %1010 = vmatmul.mubr.bf16.gmra.mrb[0].mxu0 %v736
    %v1011 = vpop.f32.mrb[0].mxu0
    %v1012 = vadd.f32 0.0, %v1011
    %v1013 = vpop.f32.mrb[0].mxu0
    %v1014 = vadd.f32 0.0, %v1013
    %v1015 = vpop.f32.mrb[0].mxu0
    %v1016 = vadd.f32 0.0, %v1015
    %v1017 = vpop.f32.mrb[0].mxu0
    %v1018 = vadd.f32 0.0, %v1017
    %1019 = vmatprep.mubr.bf16.mxu0 %v739
    %1020 = vmatmul.mubr.bf16.gmra.mrb[0].mxu0 %v738
    %v1021 = vpop.f32.mrb[0].mxu0
    %v1022 = vadd.f32 0.0, %v1021
    %v1023 = vpop.f32.mrb[0].mxu0
    %v1024 = vadd.f32 0.0, %v1023
    %v1025 = vpop.f32.mrb[0].mxu0
    %v1026 = vadd.f32 0.0, %v1025
    %v1027 = vpop.f32.mrb[0].mxu0
    %v1028 = vadd.f32 0.0, %v1027
    %1029 = vmatprep.mubr.bf16.mxu0 %v741
    %1030 = vmatmul.mubr.bf16.gmra.mrb[0].mxu0 %v740
    %v1031 = vpop.f32.mrb[0].mxu0
    %v1032 = vadd.f32 0.0, %v1031
    %v1033 = vpop.f32.mrb[0].mxu0
    %v1034 = vadd.f32 0.0, %v1033
    %v1035 = vpop.f32.mrb[0].mxu0
    %v1036 = vadd.f32 0.0, %v1035
    %v1037 = vpop.f32.mrb[0].mxu0
    %v1038 = vadd.f32 0.0, %v1037
    %1039 = vmatprep.mubr.bf16.mxu0 %v743
    %1040 = vmatmul.mubr.bf16.gmra.mrb[0].mxu0 %v742
    %v1041 = vpop.f32.mrb[0].mxu0
    %v1042 = vadd.f32 0.0, %v1041
    %v1043 = vpop.f32.mrb[0].mxu0
    %v1044 = vadd.f32 0.0, %v1043
    %v1045 = vpop.f32.mrb[0].mxu0
    %v1046 = vadd.f32 0.0, %v1045
    %v1047 = vpop.f32.mrb[0].mxu0
    %v1048 = vadd.f32 0.0, %v1047
    %1049 = vmatprep.mubr.bf16.mxu0 %v745
    %1050 = vmatmul.mubr.bf16.gmra.mrb[0].mxu0 %v744
    %v1051 = vpop.f32.mrb[0].mxu0
    %v1052 = vadd.f32 0.0, %v1051
    %v1053 = vpop.f32.mrb[0].mxu0
    %v1054 = vadd.f32 0.0, %v1053
    %v1055 = vpop.f32.mrb[0].mxu0
    %v1056 = vadd.f32 0.0, %v1055
    %v1057 = vpop.f32.mrb[0].mxu0
    %v1058 = vadd.f32 0.0, %v1057
    %1059 = vmatprep.mubr.bf16.mxu0 %v747
    %1060 = vmatmul.mubr.bf16.gmra.mrb[0].mxu0 %v746
    %v1061 = vpop.f32.mrb[0].mxu0
    %v1062 = vadd.f32 0.0, %v1061
    %v1063 = vpop.f32.mrb[0].mxu0
    %v1064 = vadd.f32 0.0, %v1063
    %v1065 = vpop.f32.mrb[0].mxu0
    %v1066 = vadd.f32 0.0, %v1065
    %v1067 = vpop.f32.mrb[0].mxu0
    %v1068 = vadd.f32 0.0, %v1067
    %1069 = vmatprep.mubr.bf16.mxu0 %v749
    %1070 = vmatmul.mubr.bf16.gmra.mrb[0].mxu0 %v748
    %v1071 = vpop.f32.mrb[0].mxu0
    %v1072 = vadd.f32 0.0, %v1071
    %v1073 = vpop.f32.mrb[0].mxu0
    %v1074 = vadd.f32 0.0, %v1073
    %v1075 = vpop.f32.mrb[0].mxu0
    %v1076 = vadd.f32 0.0, %v1075
    %v1077 = vpop.f32.mrb[0].mxu0
    %v1078 = vadd.f32 0.0, %v1077
    %1079 = vmatprep.mubr.bf16.mxu0 %v751
    %1080 = vmatmul.mubr.bf16.gmra.mrb[0].mxu0 %v750
    %v1081 = vpop.f32.mrb[0].mxu0
    %v1082 = vadd.f32 0.0, %v1081
    %v1083 = vpop.f32.mrb[0].mxu0
    %v1084 = vadd.f32 0.0, %v1083
    %v1085 = vpop.f32.mrb[0].mxu0
    %v1086 = vadd.f32 0.0, %v1085
    %v1087 = vpop.f32.mrb[0].mxu0
    %v1088 = vadd.f32 0.0, %v1087
    %1089 = vmatprep.mubr.bf16.mxu0 %v753
    %1090 = vmatmul.mubr.bf16.gmra.mrb[0].mxu0 %v752
    %v1091 = vpop.f32.mrb[0].mxu0
    %v1092 = vadd.f32 0.0, %v1091
    %v1093 = vpop.f32.mrb[0].mxu0
    %v1094 = vadd.f32 0.0, %v1093
    %v1095 = vpop.f32.mrb[0].mxu0
    %v1096 = vadd.f32 0.0, %v1095
    %v1097 = vpop.f32.mrb[0].mxu0
    %v1098 = vadd.f32 0.0, %v1097
    %1099 = vmatprep.mubr.bf16.mxu0 %v755
    %1100 = vmatmul.mubr.bf16.gmra.mrb[0].mxu0 %v754
    %v1101 = vpop.f32.mrb[0].mxu0
    %v1102 = vadd.f32 0.0, %v1101
    %v1103 = vpop.f32.mrb[0].mxu0
    %v1104 = vadd.f32 0.0, %v1103
    %v1105 = vpop.f32.mrb[0].mxu0
    %v1106 = vadd.f32 0.0, %v1105
    %v1107 = vpop.f32.mrb[0].mxu0
    %v1108 = vadd.f32 0.0, %v1107
    %1109 = vmatprep.mubr.bf16.mxu0 %v757
    %1110 = vmatmul.mubr.bf16.gmra.mrb[0].mxu0 %v756
    %v1111 = vpop.f32.mrb[0].mxu0
    %v1112 = vadd.f32 0.0, %v1111
    %v1113 = vpop.f32.mrb[0].mxu0
    %v1114 = vadd.f32 0.0, %v1113
    %v1115 = vpop.f32.mrb[0].mxu0
    %v1116 = vadd.f32 0.0, %v1115
    %v1117 = vpop.f32.mrb[0].mxu0
    %v1118 = vadd.f32 0.0, %v1117
    %1119 = vmatprep.mubr.bf16.mxu0 %v759
    %1120 = vmatmul.mubr.bf16.gmra.mrb[0].mxu0 %v758
    %v1121 = vpop.f32.mrb[0].mxu0
    %v1122 = vadd.f32 0.0, %v1121
    %v1123 = vpop.f32.mrb[0].mxu0
    %v1124 = vadd.f32 0.0, %v1123
    %v1125 = vpop.f32.mrb[0].mxu0
    %v1126 = vadd.f32 0.0, %v1125
    %v1127 = vpop.f32.mrb[0].mxu0
    %v1128 = vadd.f32 0.0, %v1127
    %1129 = vmatprep.mubr.bf16.mxu0 %v761
    %1130 = vmatmul.mubr.bf16.gmra.mrb[0].mxu0 %v760
    %v1131 = vpop.f32.mrb[0].mxu0
    %v1132 = vadd.f32 0.0, %v1131
    %v1133 = vpop.f32.mrb[0].mxu0
    %v1134 = vadd.f32 0.0, %v1133
    %v1135 = vpop.f32.mrb[0].mxu0
    %v1136 = vadd.f32 0.0, %v1135
    %v1137 = vpop.f32.mrb[0].mxu0
    %v1138 = vadd.f32 0.0, %v1137
    %1139 = vmatprep.mubr.bf16.mxu0 %v763
    %1140 = vmatmul.mubr.bf16.gmra.mrb[0].mxu0 %v762
    %v1141 = vpop.f32.mrb[0].mxu0
    %v1142 = vadd.f32 0.0, %v1141
    %v1143 = vpop.f32.mrb[0].mxu0
    %v1144 = vadd.f32 0.0, %v1143
    %v1145 = vpop.f32.mrb[0].mxu0
    %v1146 = vadd.f32 0.0, %v1145
    %v1147 = vpop.f32.mrb[0].mxu0
    %v1148 = vadd.f32 0.0, %v1147
    %1149 = vdwg.mxu0
    %v1150 = vpack.c.bf16 %v996, %v992
    %v1151 = vpack.c.bf16 %v998, %v994
    %v1152 = vpack.c.bf16 %v1006, %v1002
    %v1153 = vpack.c.bf16 %v1008, %v1004
    %v1154 = vpack.c.bf16 %v1016, %v1012
    %v1155 = vpack.c.bf16 %v1018, %v1014
    %v1156 = vpack.c.bf16 %v1026, %v1022
    %v1157 = vpack.c.bf16 %v1028, %v1024
    %v1158 = vpack.c.bf16 %v1036, %v1032
    %v1159 = vpack.c.bf16 %v1038, %v1034
    %v1160 = vpack.c.bf16 %v1046, %v1042
    %v1161 = vpack.c.bf16 %v1048, %v1044
    %v1162 = vpack.c.bf16 %v1056, %v1052
    %v1163 = vpack.c.bf16 %v1058, %v1054
    %v1164 = vpack.c.bf16 %v1066, %v1062
    %v1165 = vpack.c.bf16 %v1068, %v1064
    %v1166 = vpack.c.bf16 %v1076, %v1072
    %v1167 = vpack.c.bf16 %v1078, %v1074
    %v1168 = vpack.c.bf16 %v1086, %v1082
    %v1169 = vpack.c.bf16 %v1088, %v1084
    %v1170 = vpack.c.bf16 %v1096, %v1092
    %v1171 = vpack.c.bf16 %v1098, %v1094
    %v1172 = vpack.c.bf16 %v1106, %v1102
    %v1173 = vpack.c.bf16 %v1108, %v1104
    %v1174 = vpack.c.bf16 %v1116, %v1112
    %v1175 = vpack.c.bf16 %v1118, %v1114
    %v1176 = vpack.c.bf16 %v1126, %v1122
    %v1177 = vpack.c.bf16 %v1128, %v1124
    %v1178 = vpack.c.bf16 %v1136, %v1132
    %v1179 = vpack.c.bf16 %v1138, %v1134
    %v1180 = vpack.c.bf16 %v1146, %v1142
    %v1181 = vpack.c.bf16 %v1148, %v1144
    %s1182 = scalar_lea.vmem [#allocation8], 1
    %v1183 = vld [vmem:[%s1182] ss:$8 sm:$0x3]
    %v1185 = vlaneseq
    %v1186 = vshrl.u32 %v1185, 7
    %v1187 = vsub.s32 0, %v1186
    %v1188 = vrot.slane %v1183, %v1187
    %v1189 = vlaneseq
    %v1190 = vshrl.u32 %v1189, 7
    %v1191 = vsub.s32 1, %v1190
    %v1192 = vrot.slane %v1183, %v1191
    %v1227 = vunpack.c.l.b16 %v79
    %v1228 = vunpack.c.h.b16 %v79
    %v1229 = vunpack.c.l.b16 %v80
    %v1230 = vunpack.c.h.b16 %v80
    %v1231 = vunpack.c.l.b16 %v81
    %v1232 = vunpack.c.h.b16 %v81
    %v1233 = vunpack.c.l.b16 %v82
    %v1234 = vunpack.c.h.b16 %v82
    %v1235 = vunpack.c.l.b16 %v83
    %v1236 = vunpack.c.h.b16 %v83
    %v1237 = vunpack.c.l.b16 %v84
    %v1238 = vunpack.c.h.b16 %v84
    %v1239 = vunpack.c.l.b16 %v85
    %v1240 = vunpack.c.h.b16 %v85
    %v1241 = vunpack.c.l.b16 %v86
    %v1242 = vunpack.c.h.b16 %v86
    %v1243 = vunpack.c.l.b16 %v87
    %v1244 = vunpack.c.h.b16 %v87
    %v1245 = vunpack.c.l.b16 %v88
    %v1246 = vunpack.c.h.b16 %v88
    %v1247 = vunpack.c.l.b16 %v89
    %v1248 = vunpack.c.h.b16 %v89
    %v1249 = vunpack.c.l.b16 %v90
    %v1250 = vunpack.c.h.b16 %v90
    %v1251 = vunpack.c.l.b16 %v91
    %v1252 = vunpack.c.h.b16 %v91
    %v1253 = vunpack.c.l.b16 %v92
    %v1254 = vunpack.c.h.b16 %v92
    %v1255 = vunpack.c.l.b16 %v93
    %v1256 = vunpack.c.h.b16 %v93
    %v1257 = vunpack.c.l.b16 %v94
    %v1258 = vunpack.c.h.b16 %v94
    %v1259 = vunpack.c.l.b16 %v95
    %v1260 = vunpack.c.h.b16 %v95
    %v1261 = vunpack.c.l.b16 %v96
    %v1262 = vunpack.c.h.b16 %v96
    %v1263 = vunpack.c.l.b16 %v97
    %v1264 = vunpack.c.h.b16 %v97
    %v1265 = vunpack.c.l.b16 %v98
    %v1266 = vunpack.c.h.b16 %v98
    %v1267 = vunpack.c.l.b16 %v99
    %v1268 = vunpack.c.h.b16 %v99
    %v1269 = vunpack.c.l.b16 %v100
    %v1270 = vunpack.c.h.b16 %v100
    %v1271 = vunpack.c.l.b16 %v101
    %v1272 = vunpack.c.h.b16 %v101
    %v1273 = vunpack.c.l.b16 %v102
    %v1274 = vunpack.c.h.b16 %v102
    %v1275 = vunpack.c.l.b16 %v103
    %v1276 = vunpack.c.h.b16 %v103
    %v1277 = vunpack.c.l.b16 %v104
    %v1278 = vunpack.c.h.b16 %v104
    %v1279 = vunpack.c.l.b16 %v105
    %v1280 = vunpack.c.h.b16 %v105
    %v1281 = vunpack.c.l.b16 %v106
    %v1282 = vunpack.c.h.b16 %v106
    %v1283 = vunpack.c.l.b16 %v107
    %v1284 = vunpack.c.h.b16 %v107
    %v1285 = vunpack.c.l.b16 %v108
    %v1286 = vunpack.c.h.b16 %v108
    %v1287 = vunpack.c.l.b16 %v109
    %v1288 = vunpack.c.h.b16 %v109
    %v1289 = vunpack.c.l.b16 %v110
    %v1290 = vunpack.c.h.b16 %v110
    %v1291 = vpack.c.b16 %v1229, %v1227
    %v1292 = vpack.c.b16 %v1230, %v1228
    %v1293 = vpack.c.b16 %v1233, %v1231
    %v1294 = vpack.c.b16 %v1234, %v1232
    %v1295 = vpack.c.b16 %v1237, %v1235
    %v1296 = vpack.c.b16 %v1238, %v1236
    %v1297 = vpack.c.b16 %v1241, %v1239
    %v1298 = vpack.c.b16 %v1242, %v1240
    %v1299 = vpack.c.b16 %v1245, %v1243
    %v1300 = vpack.c.b16 %v1246, %v1244
    %v1301 = vpack.c.b16 %v1249, %v1247
    %v1302 = vpack.c.b16 %v1250, %v1248
    %v1303 = vpack.c.b16 %v1253, %v1251
    %v1304 = vpack.c.b16 %v1254, %v1252
    %v1305 = vpack.c.b16 %v1257, %v1255
    %v1306 = vpack.c.b16 %v1258, %v1256
    %v1307 = vpack.c.b16 %v1261, %v1259
    %v1308 = vpack.c.b16 %v1262, %v1260
    %v1309 = vpack.c.b16 %v1265, %v1263
    %v1310 = vpack.c.b16 %v1266, %v1264
    %v1311 = vpack.c.b16 %v1269, %v1267
    %v1312 = vpack.c.b16 %v1270, %v1268
    %v1313 = vpack.c.b16 %v1273, %v1271
    %v1314 = vpack.c.b16 %v1274, %v1272
    %v1315 = vpack.c.b16 %v1277, %v1275
    %v1316 = vpack.c.b16 %v1278, %v1276
    %v1317 = vpack.c.b16 %v1281, %v1279
    %v1318 = vpack.c.b16 %v1282, %v1280
    %v1319 = vpack.c.b16 %v1285, %v1283
    %v1320 = vpack.c.b16 %v1286, %v1284
    %v1321 = vpack.c.b16 %v1289, %v1287
    %v1322 = vpack.c.b16 %v1290, %v1288
    %1355 = vmatprep.subr.bf16.mxu0 %v1151
    %1356 = vmatpush1.bf16.msra.mxu0 %v1150
    %1357 = vmatprep.subr.bf16.mxu0 %v1153
    %1358 = vmatpush1.bf16.msra.mxu0 %v1152
    %1359 = vmatprep.subr.bf16.mxu0 %v1155
    %1360 = vmatpush1.bf16.msra.mxu0 %v1154
    %1361 = vmatprep.subr.bf16.mxu0 %v1157
    %1362 = vmatpush1.bf16.msra.mxu0 %v1156
    %1363 = vmatprep.subr.bf16.mxu0 %v1159
    %1364 = vmatpush1.bf16.msra.mxu0 %v1158
    %1365 = vmatprep.subr.bf16.mxu0 %v1161
    %1366 = vmatpush1.bf16.msra.mxu0 %v1160
    %1367 = vmatprep.subr.bf16.mxu0 %v1163
    %1368 = vmatpush1.bf16.msra.mxu0 %v1162
    %1369 = vmatprep.subr.bf16.mxu0 %v1165
    %1370 = vmatpush1.bf16.msra.mxu0 %v1164
    %1371 = vmatprep.subr.bf16.mxu0 %v1167
    %1372 = vmatpush1.bf16.msra.mxu0 %v1166
    %1373 = vmatprep.subr.bf16.mxu0 %v1169
    %1374 = vmatpush1.bf16.msra.mxu0 %v1168
    %1375 = vmatprep.subr.bf16.mxu0 %v1171
    %1376 = vmatpush1.bf16.msra.mxu0 %v1170
    %1377 = vmatprep.subr.bf16.mxu0 %v1173
    %1378 = vmatpush1.bf16.msra.mxu0 %v1172
    %1379 = vmatprep.subr.bf16.mxu0 %v1175
    %1380 = vmatpush1.bf16.msra.mxu0 %v1174
    %1381 = vmatprep.subr.bf16.mxu0 %v1177
    %1382 = vmatpush1.bf16.msra.mxu0 %v1176
    %1383 = vmatprep.subr.bf16.mxu0 %v1179
    %1384 = vmatpush1.bf16.msra.mxu0 %v1178
    %1385 = vmatprep.subr.bf16.mxu0 %v1181
    %1386 = vmatpush1.bf16.msra.mxu0 %v1180
    %1387 = vmatprep.mubr.bf16.mxu0 %v1292
    %1388 = vmatmul.mubr.bf16.gmra.mrb[0].mxu0 %v1291
    %v1389 = vpop.f32.mrb[0].mxu0
    %v1390 = vadd.f32 %v1188, %v1389
    %v1391 = vpop.f32.mrb[0].mxu0
    %v1392 = vadd.f32 %v1192, %v1391
    %v1393 = vpop.f32.mrb[0].mxu0
    %v1394 = vadd.f32 %v1188, %v1393
    %v1395 = vpop.f32.mrb[0].mxu0
    %v1396 = vadd.f32 %v1192, %v1395
    %1397 = vmatprep.mubr.bf16.mxu0 %v1294
    %1398 = vmatmul.mubr.bf16.gmra.mrb[0].mxu0 %v1293
    %v1399 = vpop.f32.mrb[0].mxu0
    %v1400 = vadd.f32 %v1188, %v1399
    %v1401 = vpop.f32.mrb[0].mxu0
    %v1402 = vadd.f32 %v1192, %v1401
    %v1403 = vpop.f32.mrb[0].mxu0
    %v1404 = vadd.f32 %v1188, %v1403
    %v1405 = vpop.f32.mrb[0].mxu0
    %v1406 = vadd.f32 %v1192, %v1405
    %1407 = vmatprep.mubr.bf16.mxu0 %v1296
    %1408 = vmatmul.mubr.bf16.gmra.mrb[0].mxu0 %v1295
    %v1409 = vpop.f32.mrb[0].mxu0
    %v1410 = vadd.f32 %v1188, %v1409
    %v1411 = vpop.f32.mrb[0].mxu0
    %v1412 = vadd.f32 %v1192, %v1411
    %v1413 = vpop.f32.mrb[0].mxu0
    %v1414 = vadd.f32 %v1188, %v1413
    %v1415 = vpop.f32.mrb[0].mxu0
    %v1416 = vadd.f32 %v1192, %v1415
    %1417 = vmatprep.mubr.bf16.mxu0 %v1298
    %1418 = vmatmul.mubr.bf16.gmra.mrb[0].mxu0 %v1297
    %v1419 = vpop.f32.mrb[0].mxu0
    %v1420 = vadd.f32 %v1188, %v1419
    %v1421 = vpop.f32.mrb[0].mxu0
    %v1422 = vadd.f32 %v1192, %v1421
    %v1423 = vpop.f32.mrb[0].mxu0
    %v1424 = vadd.f32 %v1188, %v1423
    %v1425 = vpop.f32.mrb[0].mxu0
    %v1426 = vadd.f32 %v1192, %v1425
    %1427 = vmatprep.mubr.bf16.mxu0 %v1300
    %1428 = vmatmul.mubr.bf16.gmra.mrb[0].mxu0 %v1299
    %v1429 = vpop.f32.mrb[0].mxu0
    %v1430 = vadd.f32 %v1188, %v1429
    %v1431 = vpop.f32.mrb[0].mxu0
    %v1432 = vadd.f32 %v1192, %v1431
    %v1433 = vpop.f32.mrb[0].mxu0
    %v1434 = vadd.f32 %v1188, %v1433
    %v1435 = vpop.f32.mrb[0].mxu0
    %v1436 = vadd.f32 %v1192, %v1435
    %1437 = vmatprep.mubr.bf16.mxu0 %v1302
    %1438 = vmatmul.mubr.bf16.gmra.mrb[0].mxu0 %v1301
    %v1439 = vpop.f32.mrb[0].mxu0
    %v1440 = vadd.f32 %v1188, %v1439
    %v1441 = vpop.f32.mrb[0].mxu0
    %v1442 = vadd.f32 %v1192, %v1441
    %v1443 = vpop.f32.mrb[0].mxu0
    %v1444 = vadd.f32 %v1188, %v1443
    %v1445 = vpop.f32.mrb[0].mxu0
    %v1446 = vadd.f32 %v1192, %v1445
    %1447 = vmatprep.mubr.bf16.mxu0 %v1304
    %1448 = vmatmul.mubr.bf16.gmra.mrb[0].mxu0 %v1303
    %v1449 = vpop.f32.mrb[0].mxu0
    %v1450 = vadd.f32 %v1188, %v1449
    %v1451 = vpop.f32.mrb[0].mxu0
    %v1452 = vadd.f32 %v1192, %v1451
    %v1453 = vpop.f32.mrb[0].mxu0
    %v1454 = vadd.f32 %v1188, %v1453
    %v1455 = vpop.f32.mrb[0].mxu0
    %v1456 = vadd.f32 %v1192, %v1455
    %1457 = vmatprep.mubr.bf16.mxu0 %v1306
    %1458 = vmatmul.mubr.bf16.gmra.mrb[0].mxu0 %v1305
    %v1459 = vpop.f32.mrb[0].mxu0
    %v1460 = vadd.f32 %v1188, %v1459
    %v1461 = vpop.f32.mrb[0].mxu0
    %v1462 = vadd.f32 %v1192, %v1461
    %v1463 = vpop.f32.mrb[0].mxu0
    %v1464 = vadd.f32 %v1188, %v1463
    %v1465 = vpop.f32.mrb[0].mxu0
    %v1466 = vadd.f32 %v1192, %v1465
    %1467 = vmatprep.mubr.bf16.mxu0 %v1308
    %1468 = vmatmul.mubr.bf16.gmra.mrb[0].mxu0 %v1307
    %v1469 = vpop.f32.mrb[0].mxu0
    %v1470 = vadd.f32 %v1188, %v1469
    %v1471 = vpop.f32.mrb[0].mxu0
    %v1472 = vadd.f32 %v1192, %v1471
    %v1473 = vpop.f32.mrb[0].mxu0
    %v1474 = vadd.f32 %v1188, %v1473
    %v1475 = vpop.f32.mrb[0].mxu0
    %v1476 = vadd.f32 %v1192, %v1475
    %1477 = vmatprep.mubr.bf16.mxu0 %v1310
    %1478 = vmatmul.mubr.bf16.gmra.mrb[0].mxu0 %v1309
    %v1479 = vpop.f32.mrb[0].mxu0
    %v1480 = vadd.f32 %v1188, %v1479
    %v1481 = vpop.f32.mrb[0].mxu0
    %v1482 = vadd.f32 %v1192, %v1481
    %v1483 = vpop.f32.mrb[0].mxu0
    %v1484 = vadd.f32 %v1188, %v1483
    %v1485 = vpop.f32.mrb[0].mxu0
    %v1486 = vadd.f32 %v1192, %v1485
    %1487 = vmatprep.mubr.bf16.mxu0 %v1312
    %1488 = vmatmul.mubr.bf16.gmra.mrb[0].mxu0 %v1311
    %v1489 = vpop.f32.mrb[0].mxu0
    %v1490 = vadd.f32 %v1188, %v1489
    %v1491 = vpop.f32.mrb[0].mxu0
    %v1492 = vadd.f32 %v1192, %v1491
    %v1493 = vpop.f32.mrb[0].mxu0
    %v1494 = vadd.f32 %v1188, %v1493
    %v1495 = vpop.f32.mrb[0].mxu0
    %v1496 = vadd.f32 %v1192, %v1495
    %1497 = vmatprep.mubr.bf16.mxu0 %v1314
    %1498 = vmatmul.mubr.bf16.gmra.mrb[0].mxu0 %v1313
    %v1499 = vpop.f32.mrb[0].mxu0
    %v1500 = vadd.f32 %v1188, %v1499
    %v1501 = vpop.f32.mrb[0].mxu0
    %v1502 = vadd.f32 %v1192, %v1501
    %v1503 = vpop.f32.mrb[0].mxu0
    %v1504 = vadd.f32 %v1188, %v1503
    %v1505 = vpop.f32.mrb[0].mxu0
    %v1506 = vadd.f32 %v1192, %v1505
    %1507 = vmatprep.mubr.bf16.mxu0 %v1316
    %1508 = vmatmul.mubr.bf16.gmra.mrb[0].mxu0 %v1315
    %v1509 = vpop.f32.mrb[0].mxu0
    %v1510 = vadd.f32 %v1188, %v1509
    %v1511 = vpop.f32.mrb[0].mxu0
    %v1512 = vadd.f32 %v1192, %v1511
    %v1513 = vpop.f32.mrb[0].mxu0
    %v1514 = vadd.f32 %v1188, %v1513
    %v1515 = vpop.f32.mrb[0].mxu0
    %v1516 = vadd.f32 %v1192, %v1515
    %1517 = vmatprep.mubr.bf16.mxu0 %v1318
    %1518 = vmatmul.mubr.bf16.gmra.mrb[0].mxu0 %v1317
    %v1519 = vpop.f32.mrb[0].mxu0
    %v1520 = vadd.f32 %v1188, %v1519
    %v1521 = vpop.f32.mrb[0].mxu0
    %v1522 = vadd.f32 %v1192, %v1521
    %v1523 = vpop.f32.mrb[0].mxu0
    %v1524 = vadd.f32 %v1188, %v1523
    %v1525 = vpop.f32.mrb[0].mxu0
    %v1526 = vadd.f32 %v1192, %v1525
    %1527 = vmatprep.mubr.bf16.mxu0 %v1320
    %1528 = vmatmul.mubr.bf16.gmra.mrb[0].mxu0 %v1319
    %v1529 = vpop.f32.mrb[0].mxu0
    %v1530 = vadd.f32 %v1188, %v1529
    %v1531 = vpop.f32.mrb[0].mxu0
    %v1532 = vadd.f32 %v1192, %v1531
    %v1533 = vpop.f32.mrb[0].mxu0
    %v1534 = vadd.f32 %v1188, %v1533
    %v1535 = vpop.f32.mrb[0].mxu0
    %v1536 = vadd.f32 %v1192, %v1535
    %1537 = vmatprep.mubr.bf16.mxu0 %v1322
    %1538 = vmatmul.mubr.bf16.gmra.mrb[0].mxu0 %v1321
    %v1539 = vpop.f32.mrb[0].mxu0
    %v1540 = vadd.f32 %v1188, %v1539
    %v1541 = vpop.f32.mrb[0].mxu0
    %v1542 = vadd.f32 %v1192, %v1541
    %v1543 = vpop.f32.mrb[0].mxu0
    %v1544 = vadd.f32 %v1188, %v1543
    %v1545 = vpop.f32.mrb[0].mxu0
    %v1546 = vadd.f32 %v1192, %v1545
    %1547 = vdwg.mxu0
    %1549 = vset.pattern.permute.xlu0 0
    %1550 = vperm.xlu0 %1549, %v111
    %v1551 = vpop.permute.xlu0 %1550
    %1554 = vset.pattern.permute.xlu0 0
    %1555 = vperm.xlu0 %1554, %v112
    %v1556 = vpop.permute.xlu0 %1555
    %1559 = vset.pattern.permute.xlu0 0
    %1560 = vperm.xlu0 %1559, %v113
    %v1561 = vpop.permute.xlu0 %1560
    %1564 = vset.pattern.permute.xlu0 0
    %1565 = vperm.xlu0 %1564, %v114
    %v1566 = vpop.permute.xlu0 %1565
    %1569 = vset.pattern.permute.xlu0 0
    %1570 = vperm.xlu0 %1569, %v115
    %v1571 = vpop.permute.xlu0 %1570
    %1574 = vset.pattern.permute.xlu0 0
    %1575 = vperm.xlu0 %1574, %v116
    %v1576 = vpop.permute.xlu0 %1575
    %1579 = vset.pattern.permute.xlu0 0
    %1580 = vperm.xlu0 %1579, %v117
    %v1581 = vpop.permute.xlu0 %1580
    %1584 = vset.pattern.permute.xlu0 0
    %1585 = vperm.xlu0 %1584, %v118
    %v1586 = vpop.permute.xlu0 %1585
    %1589 = vset.pattern.permute.xlu0 0
    %1590 = vperm.xlu0 %1589, %v119
    %v1591 = vpop.permute.xlu0 %1590
    %1594 = vset.pattern.permute.xlu0 0
    %1595 = vperm.xlu0 %1594, %v120
    %v1596 = vpop.permute.xlu0 %1595
    %1599 = vset.pattern.permute.xlu0 0
    %1600 = vperm.xlu0 %1599, %v121
    %v1601 = vpop.permute.xlu0 %1600
    %1604 = vset.pattern.permute.xlu0 0
    %1605 = vperm.xlu0 %1604, %v122
    %v1606 = vpop.permute.xlu0 %1605
    %1609 = vset.pattern.permute.xlu0 0
    %1610 = vperm.xlu0 %1609, %v123
    %v1611 = vpop.permute.xlu0 %1610
    %1614 = vset.pattern.permute.xlu0 0
    %1615 = vperm.xlu0 %1614, %v124
    %v1616 = vpop.permute.xlu0 %1615
    %1619 = vset.pattern.permute.xlu0 0
    %1620 = vperm.xlu0 %1619, %v125
    %v1621 = vpop.permute.xlu0 %1620
    %1624 = vset.pattern.permute.xlu0 0
    %1625 = vperm.xlu0 %1624, %v126
    %v1626 = vpop.permute.xlu0 %1625
    %1629 = vset.pattern.permute.xlu0 0
    %1630 = vperm.xlu0 %1629, %v127
    %v1631 = vpop.permute.xlu0 %1630
    %1634 = vset.pattern.permute.xlu0 0
    %1635 = vperm.xlu0 %1634, %v128
    %v1636 = vpop.permute.xlu0 %1635
    %1639 = vset.pattern.permute.xlu0 0
    %1640 = vperm.xlu0 %1639, %v129
    %v1641 = vpop.permute.xlu0 %1640
    %1644 = vset.pattern.permute.xlu0 0
    %1645 = vperm.xlu0 %1644, %v130
    %v1646 = vpop.permute.xlu0 %1645
    %1649 = vset.pattern.permute.xlu0 0
    %1650 = vperm.xlu0 %1649, %v131
    %v1651 = vpop.permute.xlu0 %1650
    %1654 = vset.pattern.permute.xlu0 0
    %1655 = vperm.xlu0 %1654, %v132
    %v1656 = vpop.permute.xlu0 %1655
    %1659 = vset.pattern.permute.xlu0 0
    %1660 = vperm.xlu0 %1659, %v133
    %v1661 = vpop.permute.xlu0 %1660
    %1664 = vset.pattern.permute.xlu0 0
    %1665 = vperm.xlu0 %1664, %v134
    %v1666 = vpop.permute.xlu0 %1665
    %1669 = vset.pattern.permute.xlu0 0
    %1670 = vperm.xlu0 %1669, %v135
    %v1671 = vpop.permute.xlu0 %1670
    %1674 = vset.pattern.permute.xlu0 0
    %1675 = vperm.xlu0 %1674, %v136
    %v1676 = vpop.permute.xlu0 %1675
    %1679 = vset.pattern.permute.xlu0 0
    %1680 = vperm.xlu0 %1679, %v137
    %v1681 = vpop.permute.xlu0 %1680
    %1684 = vset.pattern.permute.xlu0 0
    %1685 = vperm.xlu0 %1684, %v138
    %v1686 = vpop.permute.xlu0 %1685
    %1689 = vset.pattern.permute.xlu0 0
    %1690 = vperm.xlu0 %1689, %v139
    %v1691 = vpop.permute.xlu0 %1690
    %1694 = vset.pattern.permute.xlu0 0
    %1695 = vperm.xlu0 %1694, %v140
    %v1696 = vpop.permute.xlu0 %1695
    %1699 = vset.pattern.permute.xlu0 0
    %1700 = vperm.xlu0 %1699, %v141
    %v1701 = vpop.permute.xlu0 %1700
    %1704 = vset.pattern.permute.xlu0 0
    %1705 = vperm.xlu0 %1704, %v142
    %v1706 = vpop.permute.xlu0 %1705
    %v1708 = vmul.f32 %v1390, %v1551
    %v1709 = vmul.f32 %v1392, %v1551
    %v1710 = vmul.f32 %v1394, %v1556
    %v1711 = vmul.f32 %v1396, %v1556
    %v1712 = vmul.f32 %v1400, %v1561
    %v1713 = vmul.f32 %v1402, %v1561
    %v1714 = vmul.f32 %v1404, %v1566
    %v1715 = vmul.f32 %v1406, %v1566
    %v1716 = vmul.f32 %v1410, %v1571
    %v1717 = vmul.f32 %v1412, %v1571
    %v1718 = vmul.f32 %v1414, %v1576
    %v1719 = vmul.f32 %v1416, %v1576
    %v1720 = vmul.f32 %v1420, %v1581
    %v1721 = vmul.f32 %v1422, %v1581
    %v1722 = vmul.f32 %v1424, %v1586
    %v1723 = vmul.f32 %v1426, %v1586
    %v1724 = vmul.f32 %v1430, %v1591
    %v1725 = vmul.f32 %v1432, %v1591
    %v1726 = vmul.f32 %v1434, %v1596
    %v1727 = vmul.f32 %v1436, %v1596
    %v1728 = vmul.f32 %v1440, %v1601
    %v1729 = vmul.f32 %v1442, %v1601
    %v1730 = vmul.f32 %v1444, %v1606
    %v1731 = vmul.f32 %v1446, %v1606
    %v1732 = vmul.f32 %v1450, %v1611
    %v1733 = vmul.f32 %v1452, %v1611
    %v1734 = vmul.f32 %v1454, %v1616
    %v1735 = vmul.f32 %v1456, %v1616
    %v1736 = vmul.f32 %v1460, %v1621
    %v1737 = vmul.f32 %v1462, %v1621
    %v1738 = vmul.f32 %v1464, %v1626
    %v1739 = vmul.f32 %v1466, %v1626
    %v1740 = vmul.f32 %v1470, %v1631
    %v1741 = vmul.f32 %v1472, %v1631
    %v1742 = vmul.f32 %v1474, %v1636
    %v1743 = vmul.f32 %v1476, %v1636
    %v1744 = vmul.f32 %v1480, %v1641
    %v1745 = vmul.f32 %v1482, %v1641
    %v1746 = vmul.f32 %v1484, %v1646
    %v1747 = vmul.f32 %v1486, %v1646
    %v1748 = vmul.f32 %v1490, %v1651
    %v1749 = vmul.f32 %v1492, %v1651
    %v1750 = vmul.f32 %v1494, %v1656
    %v1751 = vmul.f32 %v1496, %v1656
    %v1752 = vmul.f32 %v1500, %v1661
    %v1753 = vmul.f32 %v1502, %v1661
    %v1754 = vmul.f32 %v1504, %v1666
    %v1755 = vmul.f32 %v1506, %v1666
    %v1756 = vmul.f32 %v1510, %v1671
    %v1757 = vmul.f32 %v1512, %v1671
    %v1758 = vmul.f32 %v1514, %v1676
    %v1759 = vmul.f32 %v1516, %v1676
    %v1760 = vmul.f32 %v1520, %v1681
    %v1761 = vmul.f32 %v1522, %v1681
    %v1762 = vmul.f32 %v1524, %v1686
    %v1763 = vmul.f32 %v1526, %v1686
    %v1764 = vmul.f32 %v1530, %v1691
    %v1765 = vmul.f32 %v1532, %v1691
    %v1766 = vmul.f32 %v1534, %v1696
    %v1767 = vmul.f32 %v1536, %v1696
    %v1768 = vmul.f32 %v1540, %v1701
    %v1769 = vmul.f32 %v1542, %v1701
    %v1770 = vmul.f32 %v1544, %v1706
    %v1771 = vmul.f32 %v1546, %v1706
    %v1772 = vadd.f32 %v1708, %v1710
    %v1773 = vadd.f32 %v1772, %v1712
    %v1774 = vadd.f32 %v1773, %v1714
    %v1775 = vadd.f32 %v1774, %v1716
    %v1776 = vadd.f32 %v1775, %v1718
    %v1777 = vadd.f32 %v1776, %v1720
    %v1778 = vadd.f32 %v1777, %v1722
    %v1779 = vadd.f32 %v1778, %v1724
    %v1780 = vadd.f32 %v1779, %v1726
    %v1781 = vadd.f32 %v1780, %v1728
    %v1782 = vadd.f32 %v1781, %v1730
    %v1783 = vadd.f32 %v1782, %v1732
    %v1784 = vadd.f32 %v1783, %v1734
    %v1785 = vadd.f32 %v1784, %v1736
    %v1786 = vadd.f32 %v1785, %v1738
    %v1787 = vadd.f32 %v1786, %v1740
    %v1788 = vadd.f32 %v1787, %v1742
    %v1789 = vadd.f32 %v1788, %v1744
    %v1790 = vadd.f32 %v1789, %v1746
    %v1791 = vadd.f32 %v1790, %v1748
    %v1792 = vadd.f32 %v1791, %v1750
    %v1793 = vadd.f32 %v1792, %v1752
    %v1794 = vadd.f32 %v1793, %v1754
    %v1795 = vadd.f32 %v1794, %v1756
    %v1796 = vadd.f32 %v1795, %v1758
    %v1797 = vadd.f32 %v1796, %v1760
    %v1798 = vadd.f32 %v1797, %v1762
    %v1799 = vadd.f32 %v1798, %v1764
    %v1800 = vadd.f32 %v1799, %v1766
    %v1801 = vadd.f32 %v1800, %v1768
    %v1802 = vadd.f32 %v1801, %v1770
    %v1803 = vrot.slane %v1802, 4
    %v1804 = vadd.f32 %v1802, %v1803
    %v1805 = vrot.slane %v1804, 2
    %v1806 = vadd.f32 %v1804, %v1805
    %v1807 = vrot.slane %v1806, 1
    %v1808 = vadd.f32 %v1806, %v1807
    %v1809 = vadd.f32 %v1709, %v1711
    %v1810 = vadd.f32 %v1809, %v1713
    %v1811 = vadd.f32 %v1810, %v1715
    %v1812 = vadd.f32 %v1811, %v1717
    %v1813 = vadd.f32 %v1812, %v1719
    %v1814 = vadd.f32 %v1813, %v1721
    %v1815 = vadd.f32 %v1814, %v1723
    %v1816 = vadd.f32 %v1815, %v1725
    %v1817 = vadd.f32 %v1816, %v1727
    %v1818 = vadd.f32 %v1817, %v1729
    %v1819 = vadd.f32 %v1818, %v1731
    %v1820 = vadd.f32 %v1819, %v1733
    %v1821 = vadd.f32 %v1820, %v1735
    %v1822 = vadd.f32 %v1821, %v1737
    %v1823 = vadd.f32 %v1822, %v1739
    %v1824 = vadd.f32 %v1823, %v1741
    %v1825 = vadd.f32 %v1824, %v1743
    %v1826 = vadd.f32 %v1825, %v1745
    %v1827 = vadd.f32 %v1826, %v1747
    %v1828 = vadd.f32 %v1827, %v1749
    %v1829 = vadd.f32 %v1828, %v1751
    %v1830 = vadd.f32 %v1829, %v1753
    %v1831 = vadd.f32 %v1830, %v1755
    %v1832 = vadd.f32 %v1831, %v1757
    %v1833 = vadd.f32 %v1832, %v1759
    %v1834 = vadd.f32 %v1833, %v1761
    %v1835 = vadd.f32 %v1834, %v1763
    %v1836 = vadd.f32 %v1835, %v1765
    %v1837 = vadd.f32 %v1836, %v1767
    %v1838 = vadd.f32 %v1837, %v1769
    %v1839 = vadd.f32 %v1838, %v1771
    %v1840 = vrot.slane %v1839, 4
    %v1841 = vadd.f32 %v1839, %v1840
    %v1842 = vrot.slane %v1841, 2
    %v1843 = vadd.f32 %v1841, %v1842
    %v1844 = vrot.slane %v1843, 1
    %v1845 = vadd.f32 %v1843, %v1844
    %v1846 = vmul.f32 %v1708, %v1708
    %v1847 = vmul.f32 %v1709, %v1709
    %v1848 = vmul.f32 %v1710, %v1710
    %v1849 = vmul.f32 %v1711, %v1711
    %v1850 = vmul.f32 %v1712, %v1712
    %v1851 = vmul.f32 %v1713, %v1713
    %v1852 = vmul.f32 %v1714, %v1714
    %v1853 = vmul.f32 %v1715, %v1715
    %v1854 = vmul.f32 %v1716, %v1716
    %v1855 = vmul.f32 %v1717, %v1717
    %v1856 = vmul.f32 %v1718, %v1718
    %v1857 = vmul.f32 %v1719, %v1719
    %v1858 = vmul.f32 %v1720, %v1720
    %v1859 = vmul.f32 %v1721, %v1721
    %v1860 = vmul.f32 %v1722, %v1722
    %v1861 = vmul.f32 %v1723, %v1723
    %v1862 = vmul.f32 %v1724, %v1724
    %v1863 = vmul.f32 %v1725, %v1725
    %v1864 = vmul.f32 %v1726, %v1726
    %v1865 = vmul.f32 %v1727, %v1727
    %v1866 = vmul.f32 %v1728, %v1728
    %v1867 = vmul.f32 %v1729, %v1729
    %v1868 = vmul.f32 %v1730, %v1730
    %v1869 = vmul.f32 %v1731, %v1731
    %v1870 = vmul.f32 %v1732, %v1732
    %v1871 = vmul.f32 %v1733, %v1733
    %v1872 = vmul.f32 %v1734, %v1734
    %v1873 = vmul.f32 %v1735, %v1735
    %v1874 = vmul.f32 %v1736, %v1736
    %v1875 = vmul.f32 %v1737, %v1737
    %v1876 = vmul.f32 %v1738, %v1738
    %v1877 = vmul.f32 %v1739, %v1739
    %v1878 = vmul.f32 %v1740, %v1740
    %v1879 = vmul.f32 %v1741, %v1741
    %v1880 = vmul.f32 %v1742, %v1742
    %v1881 = vmul.f32 %v1743, %v1743
    %v1882 = vmul.f32 %v1744, %v1744
    %v1883 = vmul.f32 %v1745, %v1745
    %v1884 = vmul.f32 %v1746, %v1746
    %v1885 = vmul.f32 %v1747, %v1747
    %v1886 = vmul.f32 %v1748, %v1748
    %v1887 = vmul.f32 %v1749, %v1749
    %v1888 = vmul.f32 %v1750, %v1750
    %v1889 = vmul.f32 %v1751, %v1751
    %v1890 = vmul.f32 %v1752, %v1752
    %v1891 = vmul.f32 %v1753, %v1753
    %v1892 = vmul.f32 %v1754, %v1754
    %v1893 = vmul.f32 %v1755, %v1755
    %v1894 = vmul.f32 %v1756, %v1756
    %v1895 = vmul.f32 %v1757, %v1757
    %v1896 = vmul.f32 %v1758, %v1758
    %v1897 = vmul.f32 %v1759, %v1759
    %v1898 = vmul.f32 %v1760, %v1760
    %v1899 = vmul.f32 %v1761, %v1761
    %v1900 = vmul.f32 %v1762, %v1762
    %v1901 = vmul.f32 %v1763, %v1763
    %v1902 = vmul.f32 %v1764, %v1764
    %v1903 = vmul.f32 %v1765, %v1765
    %v1904 = vmul.f32 %v1766, %v1766
    %v1905 = vmul.f32 %v1767, %v1767
    %v1906 = vmul.f32 %v1768, %v1768
    %v1907 = vmul.f32 %v1769, %v1769
    %v1908 = vmul.f32 %v1770, %v1770
    %v1909 = vmul.f32 %v1771, %v1771
    %v1910 = vadd.f32 %v1846, %v1848
    %v1911 = vadd.f32 %v1910, %v1850
    %v1912 = vadd.f32 %v1911, %v1852
    %v1913 = vadd.f32 %v1912, %v1854
    %v1914 = vadd.f32 %v1913, %v1856
    %v1915 = vadd.f32 %v1914, %v1858
    %v1916 = vadd.f32 %v1915, %v1860
    %v1917 = vadd.f32 %v1916, %v1862
    %v1918 = vadd.f32 %v1917, %v1864
    %v1919 = vadd.f32 %v1918, %v1866
    %v1920 = vadd.f32 %v1919, %v1868
    %v1921 = vadd.f32 %v1920, %v1870
    %v1922 = vadd.f32 %v1921, %v1872
    %v1923 = vadd.f32 %v1922, %v1874
    %v1924 = vadd.f32 %v1923, %v1876
    %v1925 = vadd.f32 %v1924, %v1878
    %v1926 = vadd.f32 %v1925, %v1880
    %v1927 = vadd.f32 %v1926, %v1882
    %v1928 = vadd.f32 %v1927, %v1884
    %v1929 = vadd.f32 %v1928, %v1886
    %v1930 = vadd.f32 %v1929, %v1888
    %v1931 = vadd.f32 %v1930, %v1890
    %v1932 = vadd.f32 %v1931, %v1892
    %v1933 = vadd.f32 %v1932, %v1894
    %v1934 = vadd.f32 %v1933, %v1896
    %v1935 = vadd.f32 %v1934, %v1898
    %v1936 = vadd.f32 %v1935, %v1900
    %v1937 = vadd.f32 %v1936, %v1902
    %v1938 = vadd.f32 %v1937, %v1904
    %v1939 = vadd.f32 %v1938, %v1906
    %v1940 = vadd.f32 %v1939, %v1908
    %v1941 = vrot.slane %v1940, 4
    %v1942 = vadd.f32 %v1940, %v1941
    %v1943 = vrot.slane %v1942, 2
    %v1944 = vadd.f32 %v1942, %v1943
    %v1945 = vrot.slane %v1944, 1
    %v1946 = vadd.f32 %v1944, %v1945
    %v1947 = vadd.f32 %v1847, %v1849
    %v1948 = vadd.f32 %v1947, %v1851
    %v1949 = vadd.f32 %v1948, %v1853
    %v1950 = vadd.f32 %v1949, %v1855
    %v1951 = vadd.f32 %v1950, %v1857
    %v1952 = vadd.f32 %v1951, %v1859
    %v1953 = vadd.f32 %v1952, %v1861
    %v1954 = vadd.f32 %v1953, %v1863
    %v1955 = vadd.f32 %v1954, %v1865
    %v1956 = vadd.f32 %v1955, %v1867
    %v1957 = vadd.f32 %v1956, %v1869
    %v1958 = vadd.f32 %v1957, %v1871
    %v1959 = vadd.f32 %v1958, %v1873
    %v1960 = vadd.f32 %v1959, %v1875
    %v1961 = vadd.f32 %v1960, %v1877
    %v1962 = vadd.f32 %v1961, %v1879
    %v1963 = vadd.f32 %v1962, %v1881
    %v1964 = vadd.f32 %v1963, %v1883
    %v1965 = vadd.f32 %v1964, %v1885
    %v1966 = vadd.f32 %v1965, %v1887
    %v1967 = vadd.f32 %v1966, %v1889
    %v1968 = vadd.f32 %v1967, %v1891
    %v1969 = vadd.f32 %v1968, %v1893
    %v1970 = vadd.f32 %v1969, %v1895
    %v1971 = vadd.f32 %v1970, %v1897
    %v1972 = vadd.f32 %v1971, %v1899
    %v1973 = vadd.f32 %v1972, %v1901
    %v1974 = vadd.f32 %v1973, %v1903
    %v1975 = vadd.f32 %v1974, %v1905
    %v1976 = vadd.f32 %v1975, %v1907
    %v1977 = vadd.f32 %v1976, %v1909
    %v1978 = vrot.slane %v1977, 4
    %v1979 = vadd.f32 %v1977, %v1978
    %v1980 = vrot.slane %v1979, 2
    %v1981 = vadd.f32 %v1979, %v1980
    %v1982 = vrot.slane %v1981, 1
    %v1983 = vadd.f32 %v1981, %v1982
    %v1984 = vmul.f32 %v1808, 0.00390625
    %v1985 = vmul.f32 %v1845, 0.00390625
    %v1986 = vmul.f32 %v1946, 0.00390625
    %v1987 = vmul.f32 %v1983, 0.00390625
    %v1988 = vmul.f32 %v1984, %v1984
    %v1989 = vmul.f32 %v1985, %v1985
    %v1990 = vsub.f32 %v1986, %v1988
    %v1991 = vsub.f32 %v1987, %v1989
    %v1992 = vsub.f32 %v1708, %v1984
    %v1993 = vsub.f32 %v1709, %v1985
    %v1994 = vsub.f32 %v1710, %v1984
    %v1995 = vsub.f32 %v1711, %v1985
    %v1996 = vsub.f32 %v1712, %v1984
    %v1997 = vsub.f32 %v1713, %v1985
    %v1998 = vsub.f32 %v1714, %v1984
    %v1999 = vsub.f32 %v1715, %v1985
    %v2000 = vsub.f32 %v1716, %v1984
    %v2001 = vsub.f32 %v1717, %v1985
    %v2002 = vsub.f32 %v1718, %v1984
    %v2003 = vsub.f32 %v1719, %v1985
    %v2004 = vsub.f32 %v1720, %v1984
    %v2005 = vsub.f32 %v1721, %v1985
    %v2006 = vsub.f32 %v1722, %v1984
    %v2007 = vsub.f32 %v1723, %v1985
    %v2008 = vsub.f32 %v1724, %v1984
    %v2009 = vsub.f32 %v1725, %v1985
    %v2010 = vsub.f32 %v1726, %v1984
    %v2011 = vsub.f32 %v1727, %v1985
    %v2012 = vsub.f32 %v1728, %v1984
    %v2013 = vsub.f32 %v1729, %v1985
    %v2014 = vsub.f32 %v1730, %v1984
    %v2015 = vsub.f32 %v1731, %v1985
    %v2016 = vsub.f32 %v1732, %v1984
    %v2017 = vsub.f32 %v1733, %v1985
    %v2018 = vsub.f32 %v1734, %v1984
    %v2019 = vsub.f32 %v1735, %v1985
    %v2020 = vsub.f32 %v1736, %v1984
    %v2021 = vsub.f32 %v1737, %v1985
    %v2022 = vsub.f32 %v1738, %v1984
    %v2023 = vsub.f32 %v1739, %v1985
    %v2024 = vsub.f32 %v1740, %v1984
    %v2025 = vsub.f32 %v1741, %v1985
    %v2026 = vsub.f32 %v1742, %v1984
    %v2027 = vsub.f32 %v1743, %v1985
    %v2028 = vsub.f32 %v1744, %v1984
    %v2029 = vsub.f32 %v1745, %v1985
    %v2030 = vsub.f32 %v1746, %v1984
    %v2031 = vsub.f32 %v1747, %v1985
    %v2032 = vsub.f32 %v1748, %v1984
    %v2033 = vsub.f32 %v1749, %v1985
    %v2034 = vsub.f32 %v1750, %v1984
    %v2035 = vsub.f32 %v1751, %v1985
    %v2036 = vsub.f32 %v1752, %v1984
    %v2037 = vsub.f32 %v1753, %v1985
    %v2038 = vsub.f32 %v1754, %v1984
    %v2039 = vsub.f32 %v1755, %v1985
    %v2040 = vsub.f32 %v1756, %v1984
    %v2041 = vsub.f32 %v1757, %v1985
    %v2042 = vsub.f32 %v1758, %v1984
    %v2043 = vsub.f32 %v1759, %v1985
    %v2044 = vsub.f32 %v1760, %v1984
    %v2045 = vsub.f32 %v1761, %v1985
    %v2046 = vsub.f32 %v1762, %v1984
    %v2047 = vsub.f32 %v1763, %v1985
    %v2048 = vsub.f32 %v1764, %v1984
    %v2049 = vsub.f32 %v1765, %v1985
    %v2050 = vsub.f32 %v1766, %v1984
    %v2051 = vsub.f32 %v1767, %v1985
    %v2052 = vsub.f32 %v1768, %v1984
    %v2053 = vsub.f32 %v1769, %v1985
    %v2054 = vsub.f32 %v1770, %v1984
    %v2055 = vsub.f32 %v1771, %v1985
    %v2056 = vadd.f32 %v1990, 1e-05
    %v2057 = vadd.f32 %v1991, 1e-05
    %v2058 = vrsqrt.pop %v2056
    %v2059 = vrsqrt.pop %v2057
    %v2060 = vmul.f32 %v1992, %v2058
    %v2061 = vmul.f32 %v1993, %v2059
    %v2062 = vmul.f32 %v1994, %v2058
    %v2063 = vmul.f32 %v1995, %v2059
    %v2064 = vmul.f32 %v1996, %v2058
    %v2065 = vmul.f32 %v1997, %v2059
    %v2066 = vmul.f32 %v1998, %v2058
    %v2067 = vmul.f32 %v1999, %v2059
    %v2068 = vmul.f32 %v2000, %v2058
    %v2069 = vmul.f32 %v2001, %v2059
    %v2070 = vmul.f32 %v2002, %v2058
    %v2071 = vmul.f32 %v2003, %v2059
    %v2072 = vmul.f32 %v2004, %v2058
    %v2073 = vmul.f32 %v2005, %v2059
    %v2074 = vmul.f32 %v2006, %v2058
    %v2075 = vmul.f32 %v2007, %v2059
    %v2076 = vmul.f32 %v2008, %v2058
    %v2077 = vmul.f32 %v2009, %v2059
    %v2078 = vmul.f32 %v2010, %v2058
    %v2079 = vmul.f32 %v2011, %v2059
    %v2080 = vmul.f32 %v2012, %v2058
    %v2081 = vmul.f32 %v2013, %v2059
    %v2082 = vmul.f32 %v2014, %v2058
    %v2083 = vmul.f32 %v2015, %v2059
    %v2084 = vmul.f32 %v2016, %v2058
    %v2085 = vmul.f32 %v2017, %v2059
    %v2086 = vmul.f32 %v2018, %v2058
    %v2087 = vmul.f32 %v2019, %v2059
    %v2088 = vmul.f32 %v2020, %v2058
    %v2089 = vmul.f32 %v2021, %v2059
    %v2090 = vmul.f32 %v2022, %v2058
    %v2091 = vmul.f32 %v2023, %v2059
    %v2092 = vmul.f32 %v2024, %v2058
    %v2093 = vmul.f32 %v2025, %v2059
    %v2094 = vmul.f32 %v2026, %v2058
    %v2095 = vmul.f32 %v2027, %v2059
    %v2096 = vmul.f32 %v2028, %v2058
    %v2097 = vmul.f32 %v2029, %v2059
    %v2098 = vmul.f32 %v2030, %v2058
    %v2099 = vmul.f32 %v2031, %v2059
    %v2100 = vmul.f32 %v2032, %v2058
    %v2101 = vmul.f32 %v2033, %v2059
    %v2102 = vmul.f32 %v2034, %v2058
    %v2103 = vmul.f32 %v2035, %v2059
    %v2104 = vmul.f32 %v2036, %v2058
    %v2105 = vmul.f32 %v2037, %v2059
    %v2106 = vmul.f32 %v2038, %v2058
    %v2107 = vmul.f32 %v2039, %v2059
    %v2108 = vmul.f32 %v2040, %v2058
    %v2109 = vmul.f32 %v2041, %v2059
    %v2110 = vmul.f32 %v2042, %v2058
    %v2111 = vmul.f32 %v2043, %v2059
    %v2112 = vmul.f32 %v2044, %v2058
    %v2113 = vmul.f32 %v2045, %v2059
    %v2114 = vmul.f32 %v2046, %v2058
    %v2115 = vmul.f32 %v2047, %v2059
    %v2116 = vmul.f32 %v2048, %v2058
    %v2117 = vmul.f32 %v2049, %v2059
    %v2118 = vmul.f32 %v2050, %v2058
    %v2119 = vmul.f32 %v2051, %v2059
    %v2120 = vmul.f32 %v2052, %v2058
    %v2121 = vmul.f32 %v2053, %v2059
    %v2122 = vmul.f32 %v2054, %v2058
    %v2123 = vmul.f32 %v2055, %v2059
    %s2124 = scalar_lea.vmem [#allocation8], 2
    %v2125 = vld [vmem:[%s2124] ss:$8 sm:$0x3]
    %v2127 = vlaneseq
    %v2128 = vshrl.u32 %v2127, 7
    %v2129 = vsub.s32 0, %v2128
    %v2130 = vrot.slane %v2125, %v2129
    %v2131 = vlaneseq
    %v2132 = vshrl.u32 %v2131, 7
    %v2133 = vsub.s32 1, %v2132
    %v2134 = vrot.slane %v2125, %v2133
    %v2137 = vmul.f32 %v2060, %v2130
    %v2138 = vmul.f32 %v2061, %v2134
    %v2139 = vmul.f32 %v2062, %v2130
    %v2140 = vmul.f32 %v2063, %v2134
    %v2141 = vmul.f32 %v2064, %v2130
    %v2142 = vmul.f32 %v2065, %v2134
    %v2143 = vmul.f32 %v2066, %v2130
    %v2144 = vmul.f32 %v2067, %v2134
    %v2145 = vmul.f32 %v2068, %v2130
    %v2146 = vmul.f32 %v2069, %v2134
    %v2147 = vmul.f32 %v2070, %v2130
    %v2148 = vmul.f32 %v2071, %v2134
    %v2149 = vmul.f32 %v2072, %v2130
    %v2150 = vmul.f32 %v2073, %v2134
    %v2151 = vmul.f32 %v2074, %v2130
    %v2152 = vmul.f32 %v2075, %v2134
    %v2153 = vmul.f32 %v2076, %v2130
    %v2154 = vmul.f32 %v2077, %v2134
    %v2155 = vmul.f32 %v2078, %v2130
    %v2156 = vmul.f32 %v2079, %v2134
    %v2157 = vmul.f32 %v2080, %v2130
    %v2158 = vmul.f32 %v2081, %v2134
    %v2159 = vmul.f32 %v2082, %v2130
    %v2160 = vmul.f32 %v2083, %v2134
    %v2161 = vmul.f32 %v2084, %v2130
    %v2162 = vmul.f32 %v2085, %v2134
    %v2163 = vmul.f32 %v2086, %v2130
    %v2164 = vmul.f32 %v2087, %v2134
    %v2165 = vmul.f32 %v2088, %v2130
    %v2166 = vmul.f32 %v2089, %v2134
    %v2167 = vmul.f32 %v2090, %v2130
    %v2168 = vmul.f32 %v2091, %v2134
    %v2169 = vmul.f32 %v2092, %v2130
    %v2170 = vmul.f32 %v2093, %v2134
    %v2171 = vmul.f32 %v2094, %v2130
    %v2172 = vmul.f32 %v2095, %v2134
    %v2173 = vmul.f32 %v2096, %v2130
    %v2174 = vmul.f32 %v2097, %v2134
    %v2175 = vmul.f32 %v2098, %v2130
    %v2176 = vmul.f32 %v2099, %v2134
    %v2177 = vmul.f32 %v2100, %v2130
    %v2178 = vmul.f32 %v2101, %v2134
    %v2179 = vmul.f32 %v2102, %v2130
    %v2180 = vmul.f32 %v2103, %v2134
    %v2181 = vmul.f32 %v2104, %v2130
    %v2182 = vmul.f32 %v2105, %v2134
    %v2183 = vmul.f32 %v2106, %v2130
    %v2184 = vmul.f32 %v2107, %v2134
    %v2185 = vmul.f32 %v2108, %v2130
    %v2186 = vmul.f32 %v2109, %v2134
    %v2187 = vmul.f32 %v2110, %v2130
    %v2188 = vmul.f32 %v2111, %v2134
    %v2189 = vmul.f32 %v2112, %v2130
    %v2190 = vmul.f32 %v2113, %v2134
    %v2191 = vmul.f32 %v2114, %v2130
    %v2192 = vmul.f32 %v2115, %v2134
    %v2193 = vmul.f32 %v2116, %v2130
    %v2194 = vmul.f32 %v2117, %v2134
    %v2195 = vmul.f32 %v2118, %v2130
    %v2196 = vmul.f32 %v2119, %v2134
    %v2197 = vmul.f32 %v2120, %v2130
    %v2198 = vmul.f32 %v2121, %v2134
    %v2199 = vmul.f32 %v2122, %v2130
    %v2200 = vmul.f32 %v2123, %v2134
    %s2201 = scalar_lea.vmem [#allocation8], 3
    %v2202 = vld [vmem:[%s2201] ss:$8 sm:$0x3]
    %v2204 = vlaneseq
    %v2205 = vshrl.u32 %v2204, 7
    %v2206 = vsub.s32 0, %v2205
    %v2207 = vrot.slane %v2202, %v2206
    %v2208 = vlaneseq
    %v2209 = vshrl.u32 %v2208, 7
    %v2210 = vsub.s32 1, %v2209
    %v2211 = vrot.slane %v2202, %v2210
    %v2214 = vadd.f32 %v2137, %v2207
    %v2215 = vadd.f32 %v2138, %v2211
    %v2216 = vadd.f32 %v2139, %v2207
    %v2217 = vadd.f32 %v2140, %v2211
    %v2218 = vadd.f32 %v2141, %v2207
    %v2219 = vadd.f32 %v2142, %v2211
    %v2220 = vadd.f32 %v2143, %v2207
    %v2221 = vadd.f32 %v2144, %v2211
    %v2222 = vadd.f32 %v2145, %v2207
    %v2223 = vadd.f32 %v2146, %v2211
    %v2224 = vadd.f32 %v2147, %v2207
    %v2225 = vadd.f32 %v2148, %v2211
    %v2226 = vadd.f32 %v2149, %v2207
    %v2227 = vadd.f32 %v2150, %v2211
    %v2228 = vadd.f32 %v2151, %v2207
    %v2229 = vadd.f32 %v2152, %v2211
    %v2230 = vadd.f32 %v2153, %v2207
    %v2231 = vadd.f32 %v2154, %v2211
    %v2232 = vadd.f32 %v2155, %v2207
    %v2233 = vadd.f32 %v2156, %v2211
    %v2234 = vadd.f32 %v2157, %v2207
    %v2235 = vadd.f32 %v2158, %v2211
    %v2236 = vadd.f32 %v2159, %v2207
    %v2237 = vadd.f32 %v2160, %v2211
    %v2238 = vadd.f32 %v2161, %v2207
    %v2239 = vadd.f32 %v2162, %v2211
    %v2240 = vadd.f32 %v2163, %v2207
    %v2241 = vadd.f32 %v2164, %v2211
    %v2242 = vadd.f32 %v2165, %v2207
    %v2243 = vadd.f32 %v2166, %v2211
    %v2244 = vadd.f32 %v2167, %v2207
    %v2245 = vadd.f32 %v2168, %v2211
    %v2246 = vadd.f32 %v2169, %v2207
    %v2247 = vadd.f32 %v2170, %v2211
    %v2248 = vadd.f32 %v2171, %v2207
    %v2249 = vadd.f32 %v2172, %v2211
    %v2250 = vadd.f32 %v2173, %v2207
    %v2251 = vadd.f32 %v2174, %v2211
    %v2252 = vadd.f32 %v2175, %v2207
    %v2253 = vadd.f32 %v2176, %v2211
    %v2254 = vadd.f32 %v2177, %v2207
    %v2255 = vadd.f32 %v2178, %v2211
    %v2256 = vadd.f32 %v2179, %v2207
    %v2257 = vadd.f32 %v2180, %v2211
    %v2258 = vadd.f32 %v2181, %v2207
    %v2259 = vadd.f32 %v2182, %v2211
    %v2260 = vadd.f32 %v2183, %v2207
    %v2261 = vadd.f32 %v2184, %v2211
    %v2262 = vadd.f32 %v2185, %v2207
    %v2263 = vadd.f32 %v2186, %v2211
    %v2264 = vadd.f32 %v2187, %v2207
    %v2265 = vadd.f32 %v2188, %v2211
    %v2266 = vadd.f32 %v2189, %v2207
    %v2267 = vadd.f32 %v2190, %v2211
    %v2268 = vadd.f32 %v2191, %v2207
    %v2269 = vadd.f32 %v2192, %v2211
    %v2270 = vadd.f32 %v2193, %v2207
    %v2271 = vadd.f32 %v2194, %v2211
    %v2272 = vadd.f32 %v2195, %v2207
    %v2273 = vadd.f32 %v2196, %v2211
    %v2274 = vadd.f32 %v2197, %v2207
    %v2275 = vadd.f32 %v2198, %v2211
    %v2276 = vadd.f32 %v2199, %v2207
    %v2277 = vadd.f32 %v2200, %v2211
    %v2278 = vmax.f32 %v2214, 0.0
    %v2279 = vmax.f32 %v2215, 0.0
    %v2280 = vmax.f32 %v2216, 0.0
    %v2281 = vmax.f32 %v2217, 0.0
    %v2282 = vmax.f32 %v2218, 0.0
    %v2283 = vmax.f32 %v2219, 0.0
    %v2284 = vmax.f32 %v2220, 0.0
    %v2285 = vmax.f32 %v2221, 0.0
    %v2286 = vmax.f32 %v2222, 0.0
    %v2287 = vmax.f32 %v2223, 0.0
    %v2288 = vmax.f32 %v2224, 0.0
    %v2289 = vmax.f32 %v2225, 0.0
    %v2290 = vmax.f32 %v2226, 0.0
    %v2291 = vmax.f32 %v2227, 0.0
    %v2292 = vmax.f32 %v2228, 0.0
    %v2293 = vmax.f32 %v2229, 0.0
    %v2294 = vmax.f32 %v2230, 0.0
    %v2295 = vmax.f32 %v2231, 0.0
    %v2296 = vmax.f32 %v2232, 0.0
    %v2297 = vmax.f32 %v2233, 0.0
    %v2298 = vmax.f32 %v2234, 0.0
    %v2299 = vmax.f32 %v2235, 0.0
    %v2300 = vmax.f32 %v2236, 0.0
    %v2301 = vmax.f32 %v2237, 0.0
    %v2302 = vmax.f32 %v2238, 0.0
    %v2303 = vmax.f32 %v2239, 0.0
    %v2304 = vmax.f32 %v2240, 0.0
    %v2305 = vmax.f32 %v2241, 0.0
    %v2306 = vmax.f32 %v2242, 0.0
    %v2307 = vmax.f32 %v2243, 0.0
    %v2308 = vmax.f32 %v2244, 0.0
    %v2309 = vmax.f32 %v2245, 0.0
    %v2310 = vmax.f32 %v2246, 0.0
    %v2311 = vmax.f32 %v2247, 0.0
    %v2312 = vmax.f32 %v2248, 0.0
    %v2313 = vmax.f32 %v2249, 0.0
    %v2314 = vmax.f32 %v2250, 0.0
    %v2315 = vmax.f32 %v2251, 0.0
    %v2316 = vmax.f32 %v2252, 0.0
    %v2317 = vmax.f32 %v2253, 0.0
    %v2318 = vmax.f32 %v2254, 0.0
    %v2319 = vmax.f32 %v2255, 0.0
    %v2320 = vmax.f32 %v2256, 0.0
    %v2321 = vmax.f32 %v2257, 0.0
    %v2322 = vmax.f32 %v2258, 0.0
    %v2323 = vmax.f32 %v2259, 0.0
    %v2324 = vmax.f32 %v2260, 0.0
    %v2325 = vmax.f32 %v2261, 0.0
    %v2326 = vmax.f32 %v2262, 0.0
    %v2327 = vmax.f32 %v2263, 0.0
    %v2328 = vmax.f32 %v2264, 0.0
    %v2329 = vmax.f32 %v2265, 0.0
    %v2330 = vmax.f32 %v2266, 0.0
    %v2331 = vmax.f32 %v2267, 0.0
    %v2332 = vmax.f32 %v2268, 0.0
    %v2333 = vmax.f32 %v2269, 0.0
    %v2334 = vmax.f32 %v2270, 0.0
    %v2335 = vmax.f32 %v2271, 0.0
    %v2336 = vmax.f32 %v2272, 0.0
    %v2337 = vmax.f32 %v2273, 0.0
    %v2338 = vmax.f32 %v2274, 0.0
    %v2339 = vmax.f32 %v2275, 0.0
    %v2340 = vmax.f32 %v2276, 0.0
    %v2341 = vmax.f32 %v2277, 0.0
    %v2342 = vadd.f32 %v574, %v2278
    %v2343 = vadd.f32 %v576, %v2279
    %v2344 = vadd.f32 %v578, %v2280
    %v2345 = vadd.f32 %v580, %v2281
    %v2346 = vadd.f32 %v584, %v2282
    %v2347 = vadd.f32 %v586, %v2283
    %v2348 = vadd.f32 %v588, %v2284
    %v2349 = vadd.f32 %v590, %v2285
    %v2350 = vadd.f32 %v594, %v2286
    %v2351 = vadd.f32 %v596, %v2287
    %v2352 = vadd.f32 %v598, %v2288
    %v2353 = vadd.f32 %v600, %v2289
    %v2354 = vadd.f32 %v604, %v2290
    %v2355 = vadd.f32 %v606, %v2291
    %v2356 = vadd.f32 %v608, %v2292
    %v2357 = vadd.f32 %v610, %v2293
    %v2358 = vadd.f32 %v614, %v2294
    %v2359 = vadd.f32 %v616, %v2295
    %v2360 = vadd.f32 %v618, %v2296
    %v2361 = vadd.f32 %v620, %v2297
    %v2362 = vadd.f32 %v624, %v2298
    %v2363 = vadd.f32 %v626, %v2299
    %v2364 = vadd.f32 %v628, %v2300
    %v2365 = vadd.f32 %v630, %v2301
    %v2366 = vadd.f32 %v634, %v2302
    %v2367 = vadd.f32 %v636, %v2303
    %v2368 = vadd.f32 %v638, %v2304
    %v2369 = vadd.f32 %v640, %v2305
    %v2370 = vadd.f32 %v644, %v2306
    %v2371 = vadd.f32 %v646, %v2307
    %v2372 = vadd.f32 %v648, %v2308
    %v2373 = vadd.f32 %v650, %v2309
    %v2374 = vadd.f32 %v654, %v2310
    %v2375 = vadd.f32 %v656, %v2311
    %v2376 = vadd.f32 %v658, %v2312
    %v2377 = vadd.f32 %v660, %v2313
    %v2378 = vadd.f32 %v664, %v2314
    %v2379 = vadd.f32 %v666, %v2315
    %v2380 = vadd.f32 %v668, %v2316
    %v2381 = vadd.f32 %v670, %v2317
    %v2382 = vadd.f32 %v674, %v2318
    %v2383 = vadd.f32 %v676, %v2319
    %v2384 = vadd.f32 %v678, %v2320
    %v2385 = vadd.f32 %v680, %v2321
    %v2386 = vadd.f32 %v684, %v2322
    %v2387 = vadd.f32 %v686, %v2323
    %v2388 = vadd.f32 %v688, %v2324
    %v2389 = vadd.f32 %v690, %v2325
    %v2390 = vadd.f32 %v694, %v2326
    %v2391 = vadd.f32 %v696, %v2327
    %v2392 = vadd.f32 %v698, %v2328
    %v2393 = vadd.f32 %v700, %v2329
    %v2394 = vadd.f32 %v704, %v2330
    %v2395 = vadd.f32 %v706, %v2331
    %v2396 = vadd.f32 %v708, %v2332
    %v2397 = vadd.f32 %v710, %v2333
    %v2398 = vadd.f32 %v714, %v2334
    %v2399 = vadd.f32 %v716, %v2335
    %v2400 = vadd.f32 %v718, %v2336
    %v2401 = vadd.f32 %v720, %v2337
    %v2402 = vadd.f32 %v724, %v2338
    %v2403 = vadd.f32 %v726, %v2339
    %v2404 = vadd.f32 %v728, %v2340
    %v2405 = vadd.f32 %v730, %v2341
    %v2406 = vpack.c.bf16 %v2344, %v2342
    %v2407 = vpack.c.bf16 %v2345, %v2343
    %v2408 = vpack.c.bf16 %v2348, %v2346
    %v2409 = vpack.c.bf16 %v2349, %v2347
    %v2410 = vpack.c.bf16 %v2352, %v2350
    %v2411 = vpack.c.bf16 %v2353, %v2351
    %v2412 = vpack.c.bf16 %v2356, %v2354
    %v2413 = vpack.c.bf16 %v2357, %v2355
    %v2414 = vpack.c.bf16 %v2360, %v2358
    %v2415 = vpack.c.bf16 %v2361, %v2359
    %v2416 = vpack.c.bf16 %v2364, %v2362
    %v2417 = vpack.c.bf16 %v2365, %v2363
    %v2418 = vpack.c.bf16 %v2368, %v2366
    %v2419 = vpack.c.bf16 %v2369, %v2367
    %v2420 = vpack.c.bf16 %v2372, %v2370
    %v2421 = vpack.c.bf16 %v2373, %v2371
    %v2422 = vpack.c.bf16 %v2376, %v2374
    %v2423 = vpack.c.bf16 %v2377, %v2375
    %v2424 = vpack.c.bf16 %v2380, %v2378
    %v2425 = vpack.c.bf16 %v2381, %v2379
    %v2426 = vpack.c.bf16 %v2384, %v2382
    %v2427 = vpack.c.bf16 %v2385, %v2383
    %v2428 = vpack.c.bf16 %v2388, %v2386
    %v2429 = vpack.c.bf16 %v2389, %v2387
    %v2430 = vpack.c.bf16 %v2392, %v2390
    %v2431 = vpack.c.bf16 %v2393, %v2391
    %v2432 = vpack.c.bf16 %v2396, %v2394
    %v2433 = vpack.c.bf16 %v2397, %v2395
    %v2434 = vpack.c.bf16 %v2400, %v2398
    %v2435 = vpack.c.bf16 %v2401, %v2399
    %v2436 = vpack.c.bf16 %v2404, %v2402
    %v2437 = vpack.c.bf16 %v2405, %v2403
    %s2438 = scalar_lea.vmem [#allocation7], 512
    %v2439 = vld [vmem:[%s2438] sm:$0xff]
    %v2440 = vld [vmem:[%s2438 + $0x8] sm:$0xff]
    %v2441 = vld [vmem:[%s2438 + $0x10] sm:$0xff]
    %v2442 = vld [vmem:[%s2438 + $0x18] sm:$0xff]
    %v2443 = vld [vmem:[%s2438 + $0x20] sm:$0xff]
    %v2444 = vld [vmem:[%s2438 + $0x28] sm:$0xff]
    %v2445 = vld [vmem:[%s2438 + $0x30] sm:$0xff]
    %v2446 = vld [vmem:[%s2438 + $0x38] sm:$0xff]
    %v2447 = vld [vmem:[%s2438 + $0x40] sm:$0xff]
    %v2448 = vld [vmem:[%s2438 + $0x48] sm:$0xff]
    %v2449 = vld [vmem:[%s2438 + $0x50] sm:$0xff]
    %v2450 = vld [vmem:[%s2438 + $0x58] sm:$0xff]
    %v2451 = vld [vmem:[%s2438 + $0x60] sm:$0xff]
    %v2452 = vld [vmem:[%s2438 + $0x68] sm:$0xff]
    %v2453 = vld [vmem:[%s2438 + $0x70] sm:$0xff]
    %v2454 = vld [vmem:[%s2438 + $0x78] sm:$0xff]
    %v2455 = vld [vmem:[%s2438 + $0x80] sm:$0xff]
    %v2456 = vld [vmem:[%s2438 + $0x88] sm:$0xff]
    %v2457 = vld [vmem:[%s2438 + $0x90] sm:$0xff]
    %v2458 = vld [vmem:[%s2438 + $0x98] sm:$0xff]
    %v2459 = vld [vmem:[%s2438 + $0xa0] sm:$0xff]
    %v2460 = vld [vmem:[%s2438 + $0xa8] sm:$0xff]
    %v2461 = vld [vmem:[%s2438 + $0xb0] sm:$0xff]
    %v2462 = vld [vmem:[%s2438 + $0xb8] sm:$0xff]
    %v2463 = vld [vmem:[%s2438 + $0xc0] sm:$0xff]
    %v2464 = vld [vmem:[%s2438 + $0xc8] sm:$0xff]
    %v2465 = vld [vmem:[%s2438 + $0xd0] sm:$0xff]
    %v2466 = vld [vmem:[%s2438 + $0xd8] sm:$0xff]
    %v2467 = vld [vmem:[%s2438 + $0xe0] sm:$0xff]
    %v2468 = vld [vmem:[%s2438 + $0xe8] sm:$0xff]
    %v2469 = vld [vmem:[%s2438 + $0xf0] sm:$0xff]
    %v2470 = vld [vmem:[%s2438 + $0xf8] sm:$0xff]
    %v2503 = vunpack.c.l.b16 %v2439
    %v2504 = vunpack.c.h.b16 %v2439
    %v2505 = vunpack.c.l.b16 %v2440
    %v2506 = vunpack.c.h.b16 %v2440
    %v2507 = vunpack.c.l.b16 %v2441
    %v2508 = vunpack.c.h.b16 %v2441
    %v2509 = vunpack.c.l.b16 %v2442
    %v2510 = vunpack.c.h.b16 %v2442
    %v2511 = vunpack.c.l.b16 %v2443
    %v2512 = vunpack.c.h.b16 %v2443
    %v2513 = vunpack.c.l.b16 %v2444
    %v2514 = vunpack.c.h.b16 %v2444
    %v2515 = vunpack.c.l.b16 %v2445
    %v2516 = vunpack.c.h.b16 %v2445
    %v2517 = vunpack.c.l.b16 %v2446
    %v2518 = vunpack.c.h.b16 %v2446
    %v2519 = vunpack.c.l.b16 %v2447
    %v2520 = vunpack.c.h.b16 %v2447
    %v2521 = vunpack.c.l.b16 %v2448
    %v2522 = vunpack.c.h.b16 %v2448
    %v2523 = vunpack.c.l.b16 %v2449
    %v2524 = vunpack.c.h.b16 %v2449
    %v2525 = vunpack.c.l.b16 %v2450
    %v2526 = vunpack.c.h.b16 %v2450
    %v2527 = vunpack.c.l.b16 %v2451
    %v2528 = vunpack.c.h.b16 %v2451
    %v2529 = vunpack.c.l.b16 %v2452
    %v2530 = vunpack.c.h.b16 %v2452
    %v2531 = vunpack.c.l.b16 %v2453
    %v2532 = vunpack.c.h.b16 %v2453
    %v2533 = vunpack.c.l.b16 %v2454
    %v2534 = vunpack.c.h.b16 %v2454
    %v2535 = vunpack.c.l.b16 %v2455
    %v2536 = vunpack.c.h.b16 %v2455
    %v2537 = vunpack.c.l.b16 %v2456
    %v2538 = vunpack.c.h.b16 %v2456
    %v2539 = vunpack.c.l.b16 %v2457
    %v2540 = vunpack.c.h.b16 %v2457
    %v2541 = vunpack.c.l.b16 %v2458
    %v2542 = vunpack.c.h.b16 %v2458
    %v2543 = vunpack.c.l.b16 %v2459
    %v2544 = vunpack.c.h.b16 %v2459
    %v2545 = vunpack.c.l.b16 %v2460
    %v2546 = vunpack.c.h.b16 %v2460
    %v2547 = vunpack.c.l.b16 %v2461
    %v2548 = vunpack.c.h.b16 %v2461
    %v2549 = vunpack.c.l.b16 %v2462
    %v2550 = vunpack.c.h.b16 %v2462
    %v2551 = vunpack.c.l.b16 %v2463
    %v2552 = vunpack.c.h.b16 %v2463
    %v2553 = vunpack.c.l.b16 %v2464
    %v2554 = vunpack.c.h.b16 %v2464
    %v2555 = vunpack.c.l.b16 %v2465
    %v2556 = vunpack.c.h.b16 %v2465
    %v2557 = vunpack.c.l.b16 %v2466
    %v2558 = vunpack.c.h.b16 %v2466
    %v2559 = vunpack.c.l.b16 %v2467
    %v2560 = vunpack.c.h.b16 %v2467
    %v2561 = vunpack.c.l.b16 %v2468
    %v2562 = vunpack.c.h.b16 %v2468
    %v2563 = vunpack.c.l.b16 %v2469
    %v2564 = vunpack.c.h.b16 %v2469
    %v2565 = vunpack.c.l.b16 %v2470
    %v2566 = vunpack.c.h.b16 %v2470
    %v2567 = vpack.c.b16 %v2505, %v2503
    %v2568 = vpack.c.b16 %v2506, %v2504
    %v2569 = vpack.c.b16 %v2509, %v2507
    %v2570 = vpack.c.b16 %v2510, %v2508
    %v2571 = vpack.c.b16 %v2513, %v2511
    %v2572 = vpack.c.b16 %v2514, %v2512
    %v2573 = vpack.c.b16 %v2517, %v2515
    %v2574 = vpack.c.b16 %v2518, %v2516
    %v2575 = vpack.c.b16 %v2521, %v2519
    %v2576 = vpack.c.b16 %v2522, %v2520
    %v2577 = vpack.c.b16 %v2525, %v2523
    %v2578 = vpack.c.b16 %v2526, %v2524
    %v2579 = vpack.c.b16 %v2529, %v2527
    %v2580 = vpack.c.b16 %v2530, %v2528
    %v2581 = vpack.c.b16 %v2533, %v2531
    %v2582 = vpack.c.b16 %v2534, %v2532
    %v2583 = vpack.c.b16 %v2537, %v2535
    %v2584 = vpack.c.b16 %v2538, %v2536
    %v2585 = vpack.c.b16 %v2541, %v2539
    %v2586 = vpack.c.b16 %v2542, %v2540
    %v2587 = vpack.c.b16 %v2545, %v2543
    %v2588 = vpack.c.b16 %v2546, %v2544
    %v2589 = vpack.c.b16 %v2549, %v2547
    %v2590 = vpack.c.b16 %v2550, %v2548
    %v2591 = vpack.c.b16 %v2553, %v2551
    %v2592 = vpack.c.b16 %v2554, %v2552
    %v2593 = vpack.c.b16 %v2557, %v2555
    %v2594 = vpack.c.b16 %v2558, %v2556
    %v2595 = vpack.c.b16 %v2561, %v2559
    %v2596 = vpack.c.b16 %v2562, %v2560
    %v2597 = vpack.c.b16 %v2565, %v2563
    %v2598 = vpack.c.b16 %v2566, %v2564
    %2631 = vmatprep.subr.bf16.mxu0 %v2568
    %2632 = vmatpush1.bf16.msra.mxu0 %v2567
    %2633 = vmatprep.subr.bf16.mxu0 %v2570
    %2634 = vmatpush1.bf16.msra.mxu0 %v2569
    %2635 = vmatprep.subr.bf16.mxu0 %v2572
    %2636 = vmatpush1.bf16.msra.mxu0 %v2571
    %2637 = vmatprep.subr.bf16.mxu0 %v2574
    %2638 = vmatpush1.bf16.msra.mxu0 %v2573
    %2639 = vmatprep.subr.bf16.mxu0 %v2576
    %2640 = vmatpush1.bf16.msra.mxu0 %v2575
    %2641 = vmatprep.subr.bf16.mxu0 %v2578
    %2642 = vmatpush1.bf16.msra.mxu0 %v2577
    %2643 = vmatprep.subr.bf16.mxu0 %v2580
    %2644 = vmatpush1.bf16.msra.mxu0 %v2579
    %2645 = vmatprep.subr.bf16.mxu0 %v2582
    %2646 = vmatpush1.bf16.msra.mxu0 %v2581
    %2647 = vmatprep.subr.bf16.mxu0 %v2584
    %2648 = vmatpush1.bf16.msra.mxu0 %v2583
    %2649 = vmatprep.subr.bf16.mxu0 %v2586
    %2650 = vmatpush1.bf16.msra.mxu0 %v2585
    %2651 = vmatprep.subr.bf16.mxu0 %v2588
    %2652 = vmatpush1.bf16.msra.mxu0 %v2587
    %2653 = vmatprep.subr.bf16.mxu0 %v2590
    %2654 = vmatpush1.bf16.msra.mxu0 %v2589
    %2655 = vmatprep.subr.bf16.mxu0 %v2592
    %2656 = vmatpush1.bf16.msra.mxu0 %v2591
    %2657 = vmatprep.subr.bf16.mxu0 %v2594
    %2658 = vmatpush1.bf16.msra.mxu0 %v2593
    %2659 = vmatprep.subr.bf16.mxu0 %v2596
    %2660 = vmatpush1.bf16.msra.mxu0 %v2595
    %2661 = vmatprep.subr.bf16.mxu0 %v2598
    %2662 = vmatpush1.bf16.msra.mxu0 %v2597
    %2663 = vmatprep.mubr.bf16.mxu0 %v2407
    %2664 = vmatmul.mubr.bf16.gmra.mrb[0].mxu0 %v2406
    %v2665 = vpop.f32.mrb[0].mxu0
    %v2666 = vadd.f32 0.0, %v2665
    %v2667 = vpop.f32.mrb[0].mxu0
    %v2668 = vadd.f32 0.0, %v2667
    %v2669 = vpop.f32.mrb[0].mxu0
    %v2670 = vadd.f32 0.0, %v2669
    %v2671 = vpop.f32.mrb[0].mxu0
    %v2672 = vadd.f32 0.0, %v2671
    %2673 = vmatprep.mubr.bf16.mxu0 %v2409
    %2674 = vmatmul.mubr.bf16.gmra.mrb[0].mxu0 %v2408
    %v2675 = vpop.f32.mrb[0].mxu0
    %v2676 = vadd.f32 0.0, %v2675
    %v2677 = vpop.f32.mrb[0].mxu0
    %v2678 = vadd.f32 0.0, %v2677
    %v2679 = vpop.f32.mrb[0].mxu0
    %v2680 = vadd.f32 0.0, %v2679
    %v2681 = vpop.f32.mrb[0].mxu0
    %v2682 = vadd.f32 0.0, %v2681
    %2683 = vmatprep.mubr.bf16.mxu0 %v2411
    %2684 = vmatmul.mubr.bf16.gmra.mrb[0].mxu0 %v2410
    %v2685 = vpop.f32.mrb[0].mxu0
    %v2686 = vadd.f32 0.0, %v2685
    %v2687 = vpop.f32.mrb[0].mxu0
    %v2688 = vadd.f32 0.0, %v2687
    %v2689 = vpop.f32.mrb[0].mxu0
    %v2690 = vadd.f32 0.0, %v2689
    %v2691 = vpop.f32.mrb[0].mxu0
    %v2692 = vadd.f32 0.0, %v2691
    %2693 = vmatprep.mubr.bf16.mxu0 %v2413
    %2694 = vmatmul.mubr.bf16.gmra.mrb[0].mxu0 %v2412
    %v2695 = vpop.f32.mrb[0].mxu0
    %v2696 = vadd.f32 0.0, %v2695
    %v2697 = vpop.f32.mrb[0].mxu0
    %v2698 = vadd.f32 0.0, %v2697
    %v2699 = vpop.f32.mrb[0].mxu0
    %v2700 = vadd.f32 0.0, %v2699
    %v2701 = vpop.f32.mrb[0].mxu0
    %v2702 = vadd.f32 0.0, %v2701
    %2703 = vmatprep.mubr.bf16.mxu0 %v2415
    %2704 = vmatmul.mubr.bf16.gmra.mrb[0].mxu0 %v2414
    %v2705 = vpop.f32.mrb[0].mxu0
    %v2706 = vadd.f32 0.0, %v2705
    %v2707 = vpop.f32.mrb[0].mxu0
    %v2708 = vadd.f32 0.0, %v2707
    %v2709 = vpop.f32.mrb[0].mxu0
    %v2710 = vadd.f32 0.0, %v2709
    %v2711 = vpop.f32.mrb[0].mxu0
    %v2712 = vadd.f32 0.0, %v2711
    %2713 = vmatprep.mubr.bf16.mxu0 %v2417
    %2714 = vmatmul.mubr.bf16.gmra.mrb[0].mxu0 %v2416
    %v2715 = vpop.f32.mrb[0].mxu0
    %v2716 = vadd.f32 0.0, %v2715
    %v2717 = vpop.f32.mrb[0].mxu0
    %v2718 = vadd.f32 0.0, %v2717
    %v2719 = vpop.f32.mrb[0].mxu0
    %v2720 = vadd.f32 0.0, %v2719
    %v2721 = vpop.f32.mrb[0].mxu0
    %v2722 = vadd.f32 0.0, %v2721
    %2723 = vmatprep.mubr.bf16.mxu0 %v2419
    %2724 = vmatmul.mubr.bf16.gmra.mrb[0].mxu0 %v2418
    %v2725 = vpop.f32.mrb[0].mxu0
    %v2726 = vadd.f32 0.0, %v2725
    %v2727 = vpop.f32.mrb[0].mxu0
    %v2728 = vadd.f32 0.0, %v2727
    %v2729 = vpop.f32.mrb[0].mxu0
    %v2730 = vadd.f32 0.0, %v2729
    %v2731 = vpop.f32.mrb[0].mxu0
    %v2732 = vadd.f32 0.0, %v2731
    %2733 = vmatprep.mubr.bf16.mxu0 %v2421
    %2734 = vmatmul.mubr.bf16.gmra.mrb[0].mxu0 %v2420
    %v2735 = vpop.f32.mrb[0].mxu0
    %v2736 = vadd.f32 0.0, %v2735
    %v2737 = vpop.f32.mrb[0].mxu0
    %v2738 = vadd.f32 0.0, %v2737
    %v2739 = vpop.f32.mrb[0].mxu0
    %v2740 = vadd.f32 0.0, %v2739
    %v2741 = vpop.f32.mrb[0].mxu0
    %v2742 = vadd.f32 0.0, %v2741
    %2743 = vmatprep.mubr.bf16.mxu0 %v2423
    %2744 = vmatmul.mubr.bf16.gmra.mrb[0].mxu0 %v2422
    %v2745 = vpop.f32.mrb[0].mxu0
    %v2746 = vadd.f32 0.0, %v2745
    %v2747 = vpop.f32.mrb[0].mxu0
    %v2748 = vadd.f32 0.0, %v2747
    %v2749 = vpop.f32.mrb[0].mxu0
    %v2750 = vadd.f32 0.0, %v2749
    %v2751 = vpop.f32.mrb[0].mxu0
    %v2752 = vadd.f32 0.0, %v2751
    %2753 = vmatprep.mubr.bf16.mxu0 %v2425
    %2754 = vmatmul.mubr.bf16.gmra.mrb[0].mxu0 %v2424
    %v2755 = vpop.f32.mrb[0].mxu0
    %v2756 = vadd.f32 0.0, %v2755
    %v2757 = vpop.f32.mrb[0].mxu0
    %v2758 = vadd.f32 0.0, %v2757
    %v2759 = vpop.f32.mrb[0].mxu0
    %v2760 = vadd.f32 0.0, %v2759
    %v2761 = vpop.f32.mrb[0].mxu0
    %v2762 = vadd.f32 0.0, %v2761
    %2763 = vmatprep.mubr.bf16.mxu0 %v2427
    %2764 = vmatmul.mubr.bf16.gmra.mrb[0].mxu0 %v2426
    %v2765 = vpop.f32.mrb[0].mxu0
    %v2766 = vadd.f32 0.0, %v2765
    %v2767 = vpop.f32.mrb[0].mxu0
    %v2768 = vadd.f32 0.0, %v2767
    %v2769 = vpop.f32.mrb[0].mxu0
    %v2770 = vadd.f32 0.0, %v2769
    %v2771 = vpop.f32.mrb[0].mxu0
    %v2772 = vadd.f32 0.0, %v2771
    %2773 = vmatprep.mubr.bf16.mxu0 %v2429
    %2774 = vmatmul.mubr.bf16.gmra.mrb[0].mxu0 %v2428
    %v2775 = vpop.f32.mrb[0].mxu0
    %v2776 = vadd.f32 0.0, %v2775
    %v2777 = vpop.f32.mrb[0].mxu0
    %v2778 = vadd.f32 0.0, %v2777
    %v2779 = vpop.f32.mrb[0].mxu0
    %v2780 = vadd.f32 0.0, %v2779
    %v2781 = vpop.f32.mrb[0].mxu0
    %v2782 = vadd.f32 0.0, %v2781
    %2783 = vmatprep.mubr.bf16.mxu0 %v2431
    %2784 = vmatmul.mubr.bf16.gmra.mrb[0].mxu0 %v2430
    %v2785 = vpop.f32.mrb[0].mxu0
    %v2786 = vadd.f32 0.0, %v2785
    %v2787 = vpop.f32.mrb[0].mxu0
    %v2788 = vadd.f32 0.0, %v2787
    %v2789 = vpop.f32.mrb[0].mxu0
    %v2790 = vadd.f32 0.0, %v2789
    %v2791 = vpop.f32.mrb[0].mxu0
    %v2792 = vadd.f32 0.0, %v2791
    %2793 = vmatprep.mubr.bf16.mxu0 %v2433
    %2794 = vmatmul.mubr.bf16.gmra.mrb[0].mxu0 %v2432
    %v2795 = vpop.f32.mrb[0].mxu0
    %v2796 = vadd.f32 0.0, %v2795
    %v2797 = vpop.f32.mrb[0].mxu0
    %v2798 = vadd.f32 0.0, %v2797
    %v2799 = vpop.f32.mrb[0].mxu0
    %v2800 = vadd.f32 0.0, %v2799
    %v2801 = vpop.f32.mrb[0].mxu0
    %v2802 = vadd.f32 0.0, %v2801
    %2803 = vmatprep.mubr.bf16.mxu0 %v2435
    %2804 = vmatmul.mubr.bf16.gmra.mrb[0].mxu0 %v2434
    %v2805 = vpop.f32.mrb[0].mxu0
    %v2806 = vadd.f32 0.0, %v2805
    %v2807 = vpop.f32.mrb[0].mxu0
    %v2808 = vadd.f32 0.0, %v2807
    %v2809 = vpop.f32.mrb[0].mxu0
    %v2810 = vadd.f32 0.0, %v2809
    %v2811 = vpop.f32.mrb[0].mxu0
    %v2812 = vadd.f32 0.0, %v2811
    %2813 = vmatprep.mubr.bf16.mxu0 %v2437
    %2814 = vmatmul.mubr.bf16.gmra.mrb[0].mxu0 %v2436
    %v2815 = vpop.f32.mrb[0].mxu0
    %v2816 = vadd.f32 0.0, %v2815
    %v2817 = vpop.f32.mrb[0].mxu0
    %v2818 = vadd.f32 0.0, %v2817
    %v2819 = vpop.f32.mrb[0].mxu0
    %v2820 = vadd.f32 0.0, %v2819
    %v2821 = vpop.f32.mrb[0].mxu0
    %v2822 = vadd.f32 0.0, %v2821
    %2823 = vdwg.mxu0
    %v2824 = vpack.c.bf16 %v2670, %v2666
    %v2825 = vpack.c.bf16 %v2672, %v2668
    %v2826 = vpack.c.bf16 %v2680, %v2676
    %v2827 = vpack.c.bf16 %v2682, %v2678
    %v2828 = vpack.c.bf16 %v2690, %v2686
    %v2829 = vpack.c.bf16 %v2692, %v2688
    %v2830 = vpack.c.bf16 %v2700, %v2696
    %v2831 = vpack.c.bf16 %v2702, %v2698
    %v2832 = vpack.c.bf16 %v2710, %v2706
    %v2833 = vpack.c.bf16 %v2712, %v2708
    %v2834 = vpack.c.bf16 %v2720, %v2716
    %v2835 = vpack.c.bf16 %v2722, %v2718
    %v2836 = vpack.c.bf16 %v2730, %v2726
    %v2837 = vpack.c.bf16 %v2732, %v2728
    %v2838 = vpack.c.bf16 %v2740, %v2736
    %v2839 = vpack.c.bf16 %v2742, %v2738
    %v2840 = vpack.c.bf16 %v2750, %v2746
    %v2841 = vpack.c.bf16 %v2752, %v2748
    %v2842 = vpack.c.bf16 %v2760, %v2756
    %v2843 = vpack.c.bf16 %v2762, %v2758
    %v2844 = vpack.c.bf16 %v2770, %v2766
    %v2845 = vpack.c.bf16 %v2772, %v2768
    %v2846 = vpack.c.bf16 %v2780, %v2776
    %v2847 = vpack.c.bf16 %v2782, %v2778
    %v2848 = vpack.c.bf16 %v2790, %v2786
    %v2849 = vpack.c.bf16 %v2792, %v2788
    %v2850 = vpack.c.bf16 %v2800, %v2796
    %v2851 = vpack.c.bf16 %v2802, %v2798
    %v2852 = vpack.c.bf16 %v2810, %v2806
    %v2853 = vpack.c.bf16 %v2812, %v2808
    %v2854 = vpack.c.bf16 %v2820, %v2816
    %v2855 = vpack.c.bf16 %v2822, %v2818
    %s2856 = scalar_lea.vmem [#allocation8], 4
    %v2857 = vld [vmem:[%s2856] ss:$8 sm:$0x3]
    %v2859 = vlaneseq
    %v2860 = vshrl.u32 %v2859, 7
    %v2861 = vsub.s32 0, %v2860
    %v2862 = vrot.slane %v2857, %v2861
    %v2863 = vlaneseq
    %v2864 = vshrl.u32 %v2863, 7
    %v2865 = vsub.s32 1, %v2864
    %v2866 = vrot.slane %v2857, %v2865
    %2869 = vmatprep.subr.bf16.mxu0 %v2825
    %2870 = vmatpush1.bf16.msra.mxu0 %v2824
    %2871 = vmatprep.subr.bf16.mxu0 %v2827
    %2872 = vmatpush1.bf16.msra.mxu0 %v2826
    %2873 = vmatprep.subr.bf16.mxu0 %v2829
    %2874 = vmatpush1.bf16.msra.mxu0 %v2828
    %2875 = vmatprep.subr.bf16.mxu0 %v2831
    %2876 = vmatpush1.bf16.msra.mxu0 %v2830
    %2877 = vmatprep.subr.bf16.mxu0 %v2833
    %2878 = vmatpush1.bf16.msra.mxu0 %v2832
    %2879 = vmatprep.subr.bf16.mxu0 %v2835
    %2880 = vmatpush1.bf16.msra.mxu0 %v2834
    %2881 = vmatprep.subr.bf16.mxu0 %v2837
    %2882 = vmatpush1.bf16.msra.mxu0 %v2836
    %2883 = vmatprep.subr.bf16.mxu0 %v2839
    %2884 = vmatpush1.bf16.msra.mxu0 %v2838
    %2885 = vmatprep.subr.bf16.mxu0 %v2841
    %2886 = vmatpush1.bf16.msra.mxu0 %v2840
    %2887 = vmatprep.subr.bf16.mxu0 %v2843
    %2888 = vmatpush1.bf16.msra.mxu0 %v2842
    %2889 = vmatprep.subr.bf16.mxu0 %v2845
    %2890 = vmatpush1.bf16.msra.mxu0 %v2844
    %2891 = vmatprep.subr.bf16.mxu0 %v2847
    %2892 = vmatpush1.bf16.msra.mxu0 %v2846
    %2893 = vmatprep.subr.bf16.mxu0 %v2849
    %2894 = vmatpush1.bf16.msra.mxu0 %v2848
    %2895 = vmatprep.subr.bf16.mxu0 %v2851
    %2896 = vmatpush1.bf16.msra.mxu0 %v2850
    %2897 = vmatprep.subr.bf16.mxu0 %v2853
    %2898 = vmatpush1.bf16.msra.mxu0 %v2852
    %2899 = vmatprep.subr.bf16.mxu0 %v2855
    %2900 = vmatpush1.bf16.msra.mxu0 %v2854
    %2901 = vmatprep.mubr.bf16.mxu0 %v1292
    %2902 = vmatmul.mubr.bf16.gmra.mrb[0].mxu0 %v1291
    %v2903 = vpop.f32.mrb[0].mxu0
    %v2904 = vadd.f32 %v2862, %v2903
    %v2905 = vpop.f32.mrb[0].mxu0
    %v2906 = vadd.f32 %v2866, %v2905
    %v2907 = vpop.f32.mrb[0].mxu0
    %v2908 = vadd.f32 %v2862, %v2907
    %v2909 = vpop.f32.mrb[0].mxu0
    %v2910 = vadd.f32 %v2866, %v2909
    %2911 = vmatprep.mubr.bf16.mxu0 %v1294
    %2912 = vmatmul.mubr.bf16.gmra.mrb[0].mxu0 %v1293
    %v2913 = vpop.f32.mrb[0].mxu0
    %v2914 = vadd.f32 %v2862, %v2913
    %v2915 = vpop.f32.mrb[0].mxu0
    %v2916 = vadd.f32 %v2866, %v2915
    %v2917 = vpop.f32.mrb[0].mxu0
    %v2918 = vadd.f32 %v2862, %v2917
    %v2919 = vpop.f32.mrb[0].mxu0
    %v2920 = vadd.f32 %v2866, %v2919
    %2921 = vmatprep.mubr.bf16.mxu0 %v1296
    %2922 = vmatmul.mubr.bf16.gmra.mrb[0].mxu0 %v1295
    %v2923 = vpop.f32.mrb[0].mxu0
    %v2924 = vadd.f32 %v2862, %v2923
    %v2925 = vpop.f32.mrb[0].mxu0
    %v2926 = vadd.f32 %v2866, %v2925
    %v2927 = vpop.f32.mrb[0].mxu0
    %v2928 = vadd.f32 %v2862, %v2927
    %v2929 = vpop.f32.mrb[0].mxu0
    %v2930 = vadd.f32 %v2866, %v2929
    %2931 = vmatprep.mubr.bf16.mxu0 %v1298
    %2932 = vmatmul.mubr.bf16.gmra.mrb[0].mxu0 %v1297
    %v2933 = vpop.f32.mrb[0].mxu0
    %v2934 = vadd.f32 %v2862, %v2933
    %v2935 = vpop.f32.mrb[0].mxu0
    %v2936 = vadd.f32 %v2866, %v2935
    %v2937 = vpop.f32.mrb[0].mxu0
    %v2938 = vadd.f32 %v2862, %v2937
    %v2939 = vpop.f32.mrb[0].mxu0
    %v2940 = vadd.f32 %v2866, %v2939
    %2941 = vmatprep.mubr.bf16.mxu0 %v1300
    %2942 = vmatmul.mubr.bf16.gmra.mrb[0].mxu0 %v1299
    %v2943 = vpop.f32.mrb[0].mxu0
    %v2944 = vadd.f32 %v2862, %v2943
    %v2945 = vpop.f32.mrb[0].mxu0
    %v2946 = vadd.f32 %v2866, %v2945
    %v2947 = vpop.f32.mrb[0].mxu0
    %v2948 = vadd.f32 %v2862, %v2947
    %v2949 = vpop.f32.mrb[0].mxu0
    %v2950 = vadd.f32 %v2866, %v2949
    %2951 = vmatprep.mubr.bf16.mxu0 %v1302
    %2952 = vmatmul.mubr.bf16.gmra.mrb[0].mxu0 %v1301
    %v2953 = vpop.f32.mrb[0].mxu0
    %v2954 = vadd.f32 %v2862, %v2953
    %v2955 = vpop.f32.mrb[0].mxu0
    %v2956 = vadd.f32 %v2866, %v2955
    %v2957 = vpop.f32.mrb[0].mxu0
    %v2958 = vadd.f32 %v2862, %v2957
    %v2959 = vpop.f32.mrb[0].mxu0
    %v2960 = vadd.f32 %v2866, %v2959
    %2961 = vmatprep.mubr.bf16.mxu0 %v1304
    %2962 = vmatmul.mubr.bf16.gmra.mrb[0].mxu0 %v1303
    %v2963 = vpop.f32.mrb[0].mxu0
    %v2964 = vadd.f32 %v2862, %v2963
    %v2965 = vpop.f32.mrb[0].mxu0
    %v2966 = vadd.f32 %v2866, %v2965
    %v2967 = vpop.f32.mrb[0].mxu0
    %v2968 = vadd.f32 %v2862, %v2967
    %v2969 = vpop.f32.mrb[0].mxu0
    %v2970 = vadd.f32 %v2866, %v2969
    %2971 = vmatprep.mubr.bf16.mxu0 %v1306
    %2972 = vmatmul.mubr.bf16.gmra.mrb[0].mxu0 %v1305
    %v2973 = vpop.f32.mrb[0].mxu0
    %v2974 = vadd.f32 %v2862, %v2973
    %v2975 = vpop.f32.mrb[0].mxu0
    %v2976 = vadd.f32 %v2866, %v2975
    %v2977 = vpop.f32.mrb[0].mxu0
    %v2978 = vadd.f32 %v2862, %v2977
    %v2979 = vpop.f32.mrb[0].mxu0
    %v2980 = vadd.f32 %v2866, %v2979
    %2981 = vmatprep.mubr.bf16.mxu0 %v1308
    %2982 = vmatmul.mubr.bf16.gmra.mrb[0].mxu0 %v1307
    %v2983 = vpop.f32.mrb[0].mxu0
    %v2984 = vadd.f32 %v2862, %v2983
    %v2985 = vpop.f32.mrb[0].mxu0
    %v2986 = vadd.f32 %v2866, %v2985
    %v2987 = vpop.f32.mrb[0].mxu0
    %v2988 = vadd.f32 %v2862, %v2987
    %v2989 = vpop.f32.mrb[0].mxu0
    %v2990 = vadd.f32 %v2866, %v2989
    %2991 = vmatprep.mubr.bf16.mxu0 %v1310
    %2992 = vmatmul.mubr.bf16.gmra.mrb[0].mxu0 %v1309
    %v2993 = vpop.f32.mrb[0].mxu0
    %v2994 = vadd.f32 %v2862, %v2993
    %v2995 = vpop.f32.mrb[0].mxu0
    %v2996 = vadd.f32 %v2866, %v2995
    %v2997 = vpop.f32.mrb[0].mxu0
    %v2998 = vadd.f32 %v2862, %v2997
    %v2999 = vpop.f32.mrb[0].mxu0
    %v3000 = vadd.f32 %v2866, %v2999
    %3001 = vmatprep.mubr.bf16.mxu0 %v1312
    %3002 = vmatmul.mubr.bf16.gmra.mrb[0].mxu0 %v1311
    %v3003 = vpop.f32.mrb[0].mxu0
    %v3004 = vadd.f32 %v2862, %v3003
    %v3005 = vpop.f32.mrb[0].mxu0
    %v3006 = vadd.f32 %v2866, %v3005
    %v3007 = vpop.f32.mrb[0].mxu0
    %v3008 = vadd.f32 %v2862, %v3007
    %v3009 = vpop.f32.mrb[0].mxu0
    %v3010 = vadd.f32 %v2866, %v3009
    %3011 = vmatprep.mubr.bf16.mxu0 %v1314
    %3012 = vmatmul.mubr.bf16.gmra.mrb[0].mxu0 %v1313
    %v3013 = vpop.f32.mrb[0].mxu0
    %v3014 = vadd.f32 %v2862, %v3013
    %v3015 = vpop.f32.mrb[0].mxu0
    %v3016 = vadd.f32 %v2866, %v3015
    %v3017 = vpop.f32.mrb[0].mxu0
    %v3018 = vadd.f32 %v2862, %v3017
    %v3019 = vpop.f32.mrb[0].mxu0
    %v3020 = vadd.f32 %v2866, %v3019
    %3021 = vmatprep.mubr.bf16.mxu0 %v1316
    %3022 = vmatmul.mubr.bf16.gmra.mrb[0].mxu0 %v1315
    %v3023 = vpop.f32.mrb[0].mxu0
    %v3024 = vadd.f32 %v2862, %v3023
    %v3025 = vpop.f32.mrb[0].mxu0
    %v3026 = vadd.f32 %v2866, %v3025
    %v3027 = vpop.f32.mrb[0].mxu0
    %v3028 = vadd.f32 %v2862, %v3027
    %v3029 = vpop.f32.mrb[0].mxu0
    %v3030 = vadd.f32 %v2866, %v3029
    %3031 = vmatprep.mubr.bf16.mxu0 %v1318
    %3032 = vmatmul.mubr.bf16.gmra.mrb[0].mxu0 %v1317
    %v3033 = vpop.f32.mrb[0].mxu0
    %v3034 = vadd.f32 %v2862, %v3033
    %v3035 = vpop.f32.mrb[0].mxu0
    %v3036 = vadd.f32 %v2866, %v3035
    %v3037 = vpop.f32.mrb[0].mxu0
    %v3038 = vadd.f32 %v2862, %v3037
    %v3039 = vpop.f32.mrb[0].mxu0
    %v3040 = vadd.f32 %v2866, %v3039
    %3041 = vmatprep.mubr.bf16.mxu0 %v1320
    %3042 = vmatmul.mubr.bf16.gmra.mrb[0].mxu0 %v1319
    %v3043 = vpop.f32.mrb[0].mxu0
    %v3044 = vadd.f32 %v2862, %v3043
    %v3045 = vpop.f32.mrb[0].mxu0
    %v3046 = vadd.f32 %v2866, %v3045
    %v3047 = vpop.f32.mrb[0].mxu0
    %v3048 = vadd.f32 %v2862, %v3047
    %v3049 = vpop.f32.mrb[0].mxu0
    %v3050 = vadd.f32 %v2866, %v3049
    %3051 = vmatprep.mubr.bf16.mxu0 %v1322
    %3052 = vmatmul.mubr.bf16.gmra.mrb[0].mxu0 %v1321
    %v3053 = vpop.f32.mrb[0].mxu0
    %v3054 = vadd.f32 %v2862, %v3053
    %v3055 = vpop.f32.mrb[0].mxu0
    %v3056 = vadd.f32 %v2866, %v3055
    %v3057 = vpop.f32.mrb[0].mxu0
    %v3058 = vadd.f32 %v2862, %v3057
    %v3059 = vpop.f32.mrb[0].mxu0
    %v3060 = vadd.f32 %v2866, %v3059
    %3061 = vdwg.mxu0
    %v3062 = vmul.f32 %v2904, %v1551
    %v3063 = vmul.f32 %v2906, %v1551
    %v3064 = vmul.f32 %v2908, %v1556
    %v3065 = vmul.f32 %v2910, %v1556
    %v3066 = vmul.f32 %v2914, %v1561
    %v3067 = vmul.f32 %v2916, %v1561
    %v3068 = vmul.f32 %v2918, %v1566
    %v3069 = vmul.f32 %v2920, %v1566
    %v3070 = vmul.f32 %v2924, %v1571
    %v3071 = vmul.f32 %v2926, %v1571
    %v3072 = vmul.f32 %v2928, %v1576
    %v3073 = vmul.f32 %v2930, %v1576
    %v3074 = vmul.f32 %v2934, %v1581
    %v3075 = vmul.f32 %v2936, %v1581
    %v3076 = vmul.f32 %v2938, %v1586
    %v3077 = vmul.f32 %v2940, %v1586
    %v3078 = vmul.f32 %v2944, %v1591
    %v3079 = vmul.f32 %v2946, %v1591
    %v3080 = vmul.f32 %v2948, %v1596
    %v3081 = vmul.f32 %v2950, %v1596
    %v3082 = vmul.f32 %v2954, %v1601
    %v3083 = vmul.f32 %v2956, %v1601
    %v3084 = vmul.f32 %v2958, %v1606
    %v3085 = vmul.f32 %v2960, %v1606
    %v3086 = vmul.f32 %v2964, %v1611
    %v3087 = vmul.f32 %v2966, %v1611
    %v3088 = vmul.f32 %v2968, %v1616
    %v3089 = vmul.f32 %v2970, %v1616
    %v3090 = vmul.f32 %v2974, %v1621
    %v3091 = vmul.f32 %v2976, %v1621
    %v3092 = vmul.f32 %v2978, %v1626
    %v3093 = vmul.f32 %v2980, %v1626
    %v3094 = vmul.f32 %v2984, %v1631
    %v3095 = vmul.f32 %v2986, %v1631
    %v3096 = vmul.f32 %v2988, %v1636
    %v3097 = vmul.f32 %v2990, %v1636
    %v3098 = vmul.f32 %v2994, %v1641
    %v3099 = vmul.f32 %v2996, %v1641
    %v3100 = vmul.f32 %v2998, %v1646
    %v3101 = vmul.f32 %v3000, %v1646
    %v3102 = vmul.f32 %v3004, %v1651
    %v3103 = vmul.f32 %v3006, %v1651
    %v3104 = vmul.f32 %v3008, %v1656
    %v3105 = vmul.f32 %v3010, %v1656
    %v3106 = vmul.f32 %v3014, %v1661
    %v3107 = vmul.f32 %v3016, %v1661
    %v3108 = vmul.f32 %v3018, %v1666
    %v3109 = vmul.f32 %v3020, %v1666
    %v3110 = vmul.f32 %v3024, %v1671
    %v3111 = vmul.f32 %v3026, %v1671
    %v3112 = vmul.f32 %v3028, %v1676
    %v3113 = vmul.f32 %v3030, %v1676
    %v3114 = vmul.f32 %v3034, %v1681
    %v3115 = vmul.f32 %v3036, %v1681
    %v3116 = vmul.f32 %v3038, %v1686
    %v3117 = vmul.f32 %v3040, %v1686
    %v3118 = vmul.f32 %v3044, %v1691
    %v3119 = vmul.f32 %v3046, %v1691
    %v3120 = vmul.f32 %v3048, %v1696
    %v3121 = vmul.f32 %v3050, %v1696
    %v3122 = vmul.f32 %v3054, %v1701
    %v3123 = vmul.f32 %v3056, %v1701
    %v3124 = vmul.f32 %v3058, %v1706
    %v3125 = vmul.f32 %v3060, %v1706
    %v3126 = vadd.f32 %v3062, %v3064
    %v3127 = vadd.f32 %v3126, %v3066
    %v3128 = vadd.f32 %v3127, %v3068
    %v3129 = vadd.f32 %v3128, %v3070
    %v3130 = vadd.f32 %v3129, %v3072
    %v3131 = vadd.f32 %v3130, %v3074
    %v3132 = vadd.f32 %v3131, %v3076
    %v3133 = vadd.f32 %v3132, %v3078
    %v3134 = vadd.f32 %v3133, %v3080
    %v3135 = vadd.f32 %v3134, %v3082
    %v3136 = vadd.f32 %v3135, %v3084
    %v3137 = vadd.f32 %v3136, %v3086
    %v3138 = vadd.f32 %v3137, %v3088
    %v3139 = vadd.f32 %v3138, %v3090
    %v3140 = vadd.f32 %v3139, %v3092
    %v3141 = vadd.f32 %v3140, %v3094
    %v3142 = vadd.f32 %v3141, %v3096
    %v3143 = vadd.f32 %v3142, %v3098
    %v3144 = vadd.f32 %v3143, %v3100
    %v3145 = vadd.f32 %v3144, %v3102
    %v3146 = vadd.f32 %v3145, %v3104
    %v3147 = vadd.f32 %v3146, %v3106
    %v3148 = vadd.f32 %v3147, %v3108
    %v3149 = vadd.f32 %v3148, %v3110
    %v3150 = vadd.f32 %v3149, %v3112
    %v3151 = vadd.f32 %v3150, %v3114
    %v3152 = vadd.f32 %v3151, %v3116
    %v3153 = vadd.f32 %v3152, %v3118
    %v3154 = vadd.f32 %v3153, %v3120
    %v3155 = vadd.f32 %v3154, %v3122
    %v3156 = vadd.f32 %v3155, %v3124
    %v3157 = vrot.slane %v3156, 4
    %v3158 = vadd.f32 %v3156, %v3157
    %v3159 = vrot.slane %v3158, 2
    %v3160 = vadd.f32 %v3158, %v3159
    %v3161 = vrot.slane %v3160, 1
    %v3162 = vadd.f32 %v3160, %v3161
    %v3163 = vadd.f32 %v3063, %v3065
    %v3164 = vadd.f32 %v3163, %v3067
    %v3165 = vadd.f32 %v3164, %v3069
    %v3166 = vadd.f32 %v3165, %v3071
    %v3167 = vadd.f32 %v3166, %v3073
    %v3168 = vadd.f32 %v3167, %v3075
    %v3169 = vadd.f32 %v3168, %v3077
    %v3170 = vadd.f32 %v3169, %v3079
    %v3171 = vadd.f32 %v3170, %v3081
    %v3172 = vadd.f32 %v3171, %v3083
    %v3173 = vadd.f32 %v3172, %v3085
    %v3174 = vadd.f32 %v3173, %v3087
    %v3175 = vadd.f32 %v3174, %v3089
    %v3176 = vadd.f32 %v3175, %v3091
    %v3177 = vadd.f32 %v3176, %v3093
    %v3178 = vadd.f32 %v3177, %v3095
    %v3179 = vadd.f32 %v3178, %v3097
    %v3180 = vadd.f32 %v3179, %v3099
    %v3181 = vadd.f32 %v3180, %v3101
    %v3182 = vadd.f32 %v3181, %v3103
    %v3183 = vadd.f32 %v3182, %v3105
    %v3184 = vadd.f32 %v3183, %v3107
    %v3185 = vadd.f32 %v3184, %v3109
    %v3186 = vadd.f32 %v3185, %v3111
    %v3187 = vadd.f32 %v3186, %v3113
    %v3188 = vadd.f32 %v3187, %v3115
    %v3189 = vadd.f32 %v3188, %v3117
    %v3190 = vadd.f32 %v3189, %v3119
    %v3191 = vadd.f32 %v3190, %v3121
    %v3192 = vadd.f32 %v3191, %v3123
    %v3193 = vadd.f32 %v3192, %v3125
    %v3194 = vrot.slane %v3193, 4
    %v3195 = vadd.f32 %v3193, %v3194
    %v3196 = vrot.slane %v3195, 2
    %v3197 = vadd.f32 %v3195, %v3196
    %v3198 = vrot.slane %v3197, 1
    %v3199 = vadd.f32 %v3197, %v3198
    %v3200 = vmul.f32 %v3062, %v3062
    %v3201 = vmul.f32 %v3063, %v3063
    %v3202 = vmul.f32 %v3064, %v3064
    %v3203 = vmul.f32 %v3065, %v3065
    %v3204 = vmul.f32 %v3066, %v3066
    %v3205 = vmul.f32 %v3067, %v3067
    %v3206 = vmul.f32 %v3068, %v3068
    %v3207 = vmul.f32 %v3069, %v3069
    %v3208 = vmul.f32 %v3070, %v3070
    %v3209 = vmul.f32 %v3071, %v3071
    %v3210 = vmul.f32 %v3072, %v3072
    %v3211 = vmul.f32 %v3073, %v3073
    %v3212 = vmul.f32 %v3074, %v3074
    %v3213 = vmul.f32 %v3075, %v3075
    %v3214 = vmul.f32 %v3076, %v3076
    %v3215 = vmul.f32 %v3077, %v3077
    %v3216 = vmul.f32 %v3078, %v3078
    %v3217 = vmul.f32 %v3079, %v3079
    %v3218 = vmul.f32 %v3080, %v3080
    %v3219 = vmul.f32 %v3081, %v3081
    %v3220 = vmul.f32 %v3082, %v3082
    %v3221 = vmul.f32 %v3083, %v3083
    %v3222 = vmul.f32 %v3084, %v3084
    %v3223 = vmul.f32 %v3085, %v3085
    %v3224 = vmul.f32 %v3086, %v3086
    %v3225 = vmul.f32 %v3087, %v3087
    %v3226 = vmul.f32 %v3088, %v3088
    %v3227 = vmul.f32 %v3089, %v3089
    %v3228 = vmul.f32 %v3090, %v3090
    %v3229 = vmul.f32 %v3091, %v3091
    %v3230 = vmul.f32 %v3092, %v3092
    %v3231 = vmul.f32 %v3093, %v3093
    %v3232 = vmul.f32 %v3094, %v3094
    %v3233 = vmul.f32 %v3095, %v3095
    %v3234 = vmul.f32 %v3096, %v3096
    %v3235 = vmul.f32 %v3097, %v3097
    %v3236 = vmul.f32 %v3098, %v3098
    %v3237 = vmul.f32 %v3099, %v3099
    %v3238 = vmul.f32 %v3100, %v3100
    %v3239 = vmul.f32 %v3101, %v3101
    %v3240 = vmul.f32 %v3102, %v3102
    %v3241 = vmul.f32 %v3103, %v3103
    %v3242 = vmul.f32 %v3104, %v3104
    %v3243 = vmul.f32 %v3105, %v3105
    %v3244 = vmul.f32 %v3106, %v3106
    %v3245 = vmul.f32 %v3107, %v3107
    %v3246 = vmul.f32 %v3108, %v3108
    %v3247 = vmul.f32 %v3109, %v3109
    %v3248 = vmul.f32 %v3110, %v3110
    %v3249 = vmul.f32 %v3111, %v3111
    %v3250 = vmul.f32 %v3112, %v3112
    %v3251 = vmul.f32 %v3113, %v3113
    %v3252 = vmul.f32 %v3114, %v3114
    %v3253 = vmul.f32 %v3115, %v3115
    %v3254 = vmul.f32 %v3116, %v3116
    %v3255 = vmul.f32 %v3117, %v3117
    %v3256 = vmul.f32 %v3118, %v3118
    %v3257 = vmul.f32 %v3119, %v3119
    %v3258 = vmul.f32 %v3120, %v3120
    %v3259 = vmul.f32 %v3121, %v3121
    %v3260 = vmul.f32 %v3122, %v3122
    %v3261 = vmul.f32 %v3123, %v3123
    %v3262 = vmul.f32 %v3124, %v3124
    %v3263 = vmul.f32 %v3125, %v3125
    %v3264 = vadd.f32 %v3200, %v3202
    %v3265 = vadd.f32 %v3264, %v3204
    %v3266 = vadd.f32 %v3265, %v3206
    %v3267 = vadd.f32 %v3266, %v3208
    %v3268 = vadd.f32 %v3267, %v3210
    %v3269 = vadd.f32 %v3268, %v3212
    %v3270 = vadd.f32 %v3269, %v3214
    %v3271 = vadd.f32 %v3270, %v3216
    %v3272 = vadd.f32 %v3271, %v3218
    %v3273 = vadd.f32 %v3272, %v3220
    %v3274 = vadd.f32 %v3273, %v3222
    %v3275 = vadd.f32 %v3274, %v3224
    %v3276 = vadd.f32 %v3275, %v3226
    %v3277 = vadd.f32 %v3276, %v3228
    %v3278 = vadd.f32 %v3277, %v3230
    %v3279 = vadd.f32 %v3278, %v3232
    %v3280 = vadd.f32 %v3279, %v3234
    %v3281 = vadd.f32 %v3280, %v3236
    %v3282 = vadd.f32 %v3281, %v3238
    %v3283 = vadd.f32 %v3282, %v3240
    %v3284 = vadd.f32 %v3283, %v3242
    %v3285 = vadd.f32 %v3284, %v3244
    %v3286 = vadd.f32 %v3285, %v3246
    %v3287 = vadd.f32 %v3286, %v3248
    %v3288 = vadd.f32 %v3287, %v3250
    %v3289 = vadd.f32 %v3288, %v3252
    %v3290 = vadd.f32 %v3289, %v3254
    %v3291 = vadd.f32 %v3290, %v3256
    %v3292 = vadd.f32 %v3291, %v3258
    %v3293 = vadd.f32 %v3292, %v3260
    %v3294 = vadd.f32 %v3293, %v3262
    %v3295 = vrot.slane %v3294, 4
    %v3296 = vadd.f32 %v3294, %v3295
    %v3297 = vrot.slane %v3296, 2
    %v3298 = vadd.f32 %v3296, %v3297
    %v3299 = vrot.slane %v3298, 1
    %v3300 = vadd.f32 %v3298, %v3299
    %v3301 = vadd.f32 %v3201, %v3203
    %v3302 = vadd.f32 %v3301, %v3205
    %v3303 = vadd.f32 %v3302, %v3207
    %v3304 = vadd.f32 %v3303, %v3209
    %v3305 = vadd.f32 %v3304, %v3211
    %v3306 = vadd.f32 %v3305, %v3213
    %v3307 = vadd.f32 %v3306, %v3215
    %v3308 = vadd.f32 %v3307, %v3217
    %v3309 = vadd.f32 %v3308, %v3219
    %v3310 = vadd.f32 %v3309, %v3221
    %v3311 = vadd.f32 %v3310, %v3223
    %v3312 = vadd.f32 %v3311, %v3225
    %v3313 = vadd.f32 %v3312, %v3227
    %v3314 = vadd.f32 %v3313, %v3229
    %v3315 = vadd.f32 %v3314, %v3231
    %v3316 = vadd.f32 %v3315, %v3233
    %v3317 = vadd.f32 %v3316, %v3235
    %v3318 = vadd.f32 %v3317, %v3237
    %v3319 = vadd.f32 %v3318, %v3239
    %v3320 = vadd.f32 %v3319, %v3241
    %v3321 = vadd.f32 %v3320, %v3243
    %v3322 = vadd.f32 %v3321, %v3245
    %v3323 = vadd.f32 %v3322, %v3247
    %v3324 = vadd.f32 %v3323, %v3249
    %v3325 = vadd.f32 %v3324, %v3251
    %v3326 = vadd.f32 %v3325, %v3253
    %v3327 = vadd.f32 %v3326, %v3255
    %v3328 = vadd.f32 %v3327, %v3257
    %v3329 = vadd.f32 %v3328, %v3259
    %v3330 = vadd.f32 %v3329, %v3261
    %v3331 = vadd.f32 %v3330, %v3263
    %v3332 = vrot.slane %v3331, 4
    %v3333 = vadd.f32 %v3331, %v3332
    %v3334 = vrot.slane %v3333, 2
    %v3335 = vadd.f32 %v3333, %v3334
    %v3336 = vrot.slane %v3335, 1
    %v3337 = vadd.f32 %v3335, %v3336
    %v3338 = vmul.f32 %v3162, 0.00390625
    %v3339 = vmul.f32 %v3199, 0.00390625
    %v3340 = vmul.f32 %v3300, 0.00390625
    %v3341 = vmul.f32 %v3337, 0.00390625
    %v3342 = vmul.f32 %v3338, %v3338
    %v3343 = vmul.f32 %v3339, %v3339
    %v3344 = vsub.f32 %v3340, %v3342
    %v3345 = vsub.f32 %v3341, %v3343
    %v3346 = vsub.f32 %v3062, %v3338
    %v3347 = vsub.f32 %v3063, %v3339
    %v3348 = vsub.f32 %v3064, %v3338
    %v3349 = vsub.f32 %v3065, %v3339
    %v3350 = vsub.f32 %v3066, %v3338
    %v3351 = vsub.f32 %v3067, %v3339
    %v3352 = vsub.f32 %v3068, %v3338
    %v3353 = vsub.f32 %v3069, %v3339
    %v3354 = vsub.f32 %v3070, %v3338
    %v3355 = vsub.f32 %v3071, %v3339
    %v3356 = vsub.f32 %v3072, %v3338
    %v3357 = vsub.f32 %v3073, %v3339
    %v3358 = vsub.f32 %v3074, %v3338
    %v3359 = vsub.f32 %v3075, %v3339
    %v3360 = vsub.f32 %v3076, %v3338
    %v3361 = vsub.f32 %v3077, %v3339
    %v3362 = vsub.f32 %v3078, %v3338
    %v3363 = vsub.f32 %v3079, %v3339
    %v3364 = vsub.f32 %v3080, %v3338
    %v3365 = vsub.f32 %v3081, %v3339
    %v3366 = vsub.f32 %v3082, %v3338
    %v3367 = vsub.f32 %v3083, %v3339
    %v3368 = vsub.f32 %v3084, %v3338
    %v3369 = vsub.f32 %v3085, %v3339
    %v3370 = vsub.f32 %v3086, %v3338
    %v3371 = vsub.f32 %v3087, %v3339
    %v3372 = vsub.f32 %v3088, %v3338
    %v3373 = vsub.f32 %v3089, %v3339
    %v3374 = vsub.f32 %v3090, %v3338
    %v3375 = vsub.f32 %v3091, %v3339
    %v3376 = vsub.f32 %v3092, %v3338
    %v3377 = vsub.f32 %v3093, %v3339
    %v3378 = vsub.f32 %v3094, %v3338
    %v3379 = vsub.f32 %v3095, %v3339
    %v3380 = vsub.f32 %v3096, %v3338
    %v3381 = vsub.f32 %v3097, %v3339
    %v3382 = vsub.f32 %v3098, %v3338
    %v3383 = vsub.f32 %v3099, %v3339
    %v3384 = vsub.f32 %v3100, %v3338
    %v3385 = vsub.f32 %v3101, %v3339
    %v3386 = vsub.f32 %v3102, %v3338
    %v3387 = vsub.f32 %v3103, %v3339
    %v3388 = vsub.f32 %v3104, %v3338
    %v3389 = vsub.f32 %v3105, %v3339
    %v3390 = vsub.f32 %v3106, %v3338
    %v3391 = vsub.f32 %v3107, %v3339
    %v3392 = vsub.f32 %v3108, %v3338
    %v3393 = vsub.f32 %v3109, %v3339
    %v3394 = vsub.f32 %v3110, %v3338
    %v3395 = vsub.f32 %v3111, %v3339
    %v3396 = vsub.f32 %v3112, %v3338
    %v3397 = vsub.f32 %v3113, %v3339
    %v3398 = vsub.f32 %v3114, %v3338
    %v3399 = vsub.f32 %v3115, %v3339
    %v3400 = vsub.f32 %v3116, %v3338
    %v3401 = vsub.f32 %v3117, %v3339
    %v3402 = vsub.f32 %v3118, %v3338
    %v3403 = vsub.f32 %v3119, %v3339
    %v3404 = vsub.f32 %v3120, %v3338
    %v3405 = vsub.f32 %v3121, %v3339
    %v3406 = vsub.f32 %v3122, %v3338
    %v3407 = vsub.f32 %v3123, %v3339
    %v3408 = vsub.f32 %v3124, %v3338
    %v3409 = vsub.f32 %v3125, %v3339
    %v3410 = vadd.f32 %v3344, 1e-05
    %v3411 = vadd.f32 %v3345, 1e-05
    %v3412 = vrsqrt.pop %v3410
    %v3413 = vrsqrt.pop %v3411
    %v3414 = vmul.f32 %v3346, %v3412
    %v3415 = vmul.f32 %v3347, %v3413
    %v3416 = vmul.f32 %v3348, %v3412
    %v3417 = vmul.f32 %v3349, %v3413
    %v3418 = vmul.f32 %v3350, %v3412
    %v3419 = vmul.f32 %v3351, %v3413
    %v3420 = vmul.f32 %v3352, %v3412
    %v3421 = vmul.f32 %v3353, %v3413
    %v3422 = vmul.f32 %v3354, %v3412
    %v3423 = vmul.f32 %v3355, %v3413
    %v3424 = vmul.f32 %v3356, %v3412
    %v3425 = vmul.f32 %v3357, %v3413
    %v3426 = vmul.f32 %v3358, %v3412
    %v3427 = vmul.f32 %v3359, %v3413
    %v3428 = vmul.f32 %v3360, %v3412
    %v3429 = vmul.f32 %v3361, %v3413
    %v3430 = vmul.f32 %v3362, %v3412
    %v3431 = vmul.f32 %v3363, %v3413
    %v3432 = vmul.f32 %v3364, %v3412
    %v3433 = vmul.f32 %v3365, %v3413
    %v3434 = vmul.f32 %v3366, %v3412
    %v3435 = vmul.f32 %v3367, %v3413
    %v3436 = vmul.f32 %v3368, %v3412
    %v3437 = vmul.f32 %v3369, %v3413
    %v3438 = vmul.f32 %v3370, %v3412
    %v3439 = vmul.f32 %v3371, %v3413
    %v3440 = vmul.f32 %v3372, %v3412
    %v3441 = vmul.f32 %v3373, %v3413
    %v3442 = vmul.f32 %v3374, %v3412
    %v3443 = vmul.f32 %v3375, %v3413
    %v3444 = vmul.f32 %v3376, %v3412
    %v3445 = vmul.f32 %v3377, %v3413
    %v3446 = vmul.f32 %v3378, %v3412
    %v3447 = vmul.f32 %v3379, %v3413
    %v3448 = vmul.f32 %v3380, %v3412
    %v3449 = vmul.f32 %v3381, %v3413
    %v3450 = vmul.f32 %v3382, %v3412
    %v3451 = vmul.f32 %v3383, %v3413
    %v3452 = vmul.f32 %v3384, %v3412
    %v3453 = vmul.f32 %v3385, %v3413
    %v3454 = vmul.f32 %v3386, %v3412
    %v3455 = vmul.f32 %v3387, %v3413
    %v3456 = vmul.f32 %v3388, %v3412
    %v3457 = vmul.f32 %v3389, %v3413
    %v3458 = vmul.f32 %v3390, %v3412
    %v3459 = vmul.f32 %v3391, %v3413
    %v3460 = vmul.f32 %v3392, %v3412
    %v3461 = vmul.f32 %v3393, %v3413
    %v3462 = vmul.f32 %v3394, %v3412
    %v3463 = vmul.f32 %v3395, %v3413
    %v3464 = vmul.f32 %v3396, %v3412
    %v3465 = vmul.f32 %v3397, %v3413
    %v3466 = vmul.f32 %v3398, %v3412
    %v3467 = vmul.f32 %v3399, %v3413
    %v3468 = vmul.f32 %v3400, %v3412
    %v3469 = vmul.f32 %v3401, %v3413
    %v3470 = vmul.f32 %v3402, %v3412
    %v3471 = vmul.f32 %v3403, %v3413
    %v3472 = vmul.f32 %v3404, %v3412
    %v3473 = vmul.f32 %v3405, %v3413
    %v3474 = vmul.f32 %v3406, %v3412
    %v3475 = vmul.f32 %v3407, %v3413
    %v3476 = vmul.f32 %v3408, %v3412
    %v3477 = vmul.f32 %v3409, %v3413
    %s3478 = scalar_lea.vmem [#allocation8], 5
    %v3479 = vld [vmem:[%s3478] ss:$8 sm:$0x3]
    %v3481 = vlaneseq
    %v3482 = vshrl.u32 %v3481, 7
    %v3483 = vsub.s32 0, %v3482
    %v3484 = vrot.slane %v3479, %v3483
    %v3485 = vlaneseq
    %v3486 = vshrl.u32 %v3485, 7
    %v3487 = vsub.s32 1, %v3486
    %v3488 = vrot.slane %v3479, %v3487
    %v3491 = vmul.f32 %v3414, %v3484
    %v3492 = vmul.f32 %v3415, %v3488
    %v3493 = vmul.f32 %v3416, %v3484
    %v3494 = vmul.f32 %v3417, %v3488
    %v3495 = vmul.f32 %v3418, %v3484
    %v3496 = vmul.f32 %v3419, %v3488
    %v3497 = vmul.f32 %v3420, %v3484
    %v3498 = vmul.f32 %v3421, %v3488
    %v3499 = vmul.f32 %v3422, %v3484
    %v3500 = vmul.f32 %v3423, %v3488
    %v3501 = vmul.f32 %v3424, %v3484
    %v3502 = vmul.f32 %v3425, %v3488
    %v3503 = vmul.f32 %v3426, %v3484
    %v3504 = vmul.f32 %v3427, %v3488
    %v3505 = vmul.f32 %v3428, %v3484
    %v3506 = vmul.f32 %v3429, %v3488
    %v3507 = vmul.f32 %v3430, %v3484
    %v3508 = vmul.f32 %v3431, %v3488
    %v3509 = vmul.f32 %v3432, %v3484
    %v3510 = vmul.f32 %v3433, %v3488
    %v3511 = vmul.f32 %v3434, %v3484
    %v3512 = vmul.f32 %v3435, %v3488
    %v3513 = vmul.f32 %v3436, %v3484
    %v3514 = vmul.f32 %v3437, %v3488
    %v3515 = vmul.f32 %v3438, %v3484
    %v3516 = vmul.f32 %v3439, %v3488
    %v3517 = vmul.f32 %v3440, %v3484
    %v3518 = vmul.f32 %v3441, %v3488
    %v3519 = vmul.f32 %v3442, %v3484
    %v3520 = vmul.f32 %v3443, %v3488
    %v3521 = vmul.f32 %v3444, %v3484
    %v3522 = vmul.f32 %v3445, %v3488
    %v3523 = vmul.f32 %v3446, %v3484
    %v3524 = vmul.f32 %v3447, %v3488
    %v3525 = vmul.f32 %v3448, %v3484
    %v3526 = vmul.f32 %v3449, %v3488
    %v3527 = vmul.f32 %v3450, %v3484
    %v3528 = vmul.f32 %v3451, %v3488
    %v3529 = vmul.f32 %v3452, %v3484
    %v3530 = vmul.f32 %v3453, %v3488
    %v3531 = vmul.f32 %v3454, %v3484
    %v3532 = vmul.f32 %v3455, %v3488
    %v3533 = vmul.f32 %v3456, %v3484
    %v3534 = vmul.f32 %v3457, %v3488
    %v3535 = vmul.f32 %v3458, %v3484
    %v3536 = vmul.f32 %v3459, %v3488
    %v3537 = vmul.f32 %v3460, %v3484
    %v3538 = vmul.f32 %v3461, %v3488
    %v3539 = vmul.f32 %v3462, %v3484
    %v3540 = vmul.f32 %v3463, %v3488
    %v3541 = vmul.f32 %v3464, %v3484
    %v3542 = vmul.f32 %v3465, %v3488
    %v3543 = vmul.f32 %v3466, %v3484
    %v3544 = vmul.f32 %v3467, %v3488
    %v3545 = vmul.f32 %v3468, %v3484
    %v3546 = vmul.f32 %v3469, %v3488
    %v3547 = vmul.f32 %v3470, %v3484
    %v3548 = vmul.f32 %v3471, %v3488
    %v3549 = vmul.f32 %v3472, %v3484
    %v3550 = vmul.f32 %v3473, %v3488
    %v3551 = vmul.f32 %v3474, %v3484
    %v3552 = vmul.f32 %v3475, %v3488
    %v3553 = vmul.f32 %v3476, %v3484
    %v3554 = vmul.f32 %v3477, %v3488
    %s3555 = scalar_lea.vmem [#allocation8], 6
    %v3556 = vld [vmem:[%s3555] ss:$8 sm:$0x3]
    %v3558 = vlaneseq
    %v3559 = vshrl.u32 %v3558, 7
    %v3560 = vsub.s32 0, %v3559
    %v3561 = vrot.slane %v3556, %v3560
    %v3562 = vlaneseq
    %v3563 = vshrl.u32 %v3562, 7
    %v3564 = vsub.s32 1, %v3563
    %v3565 = vrot.slane %v3556, %v3564
    %v3568 = vadd.f32 %v3491, %v3561
    %v3569 = vadd.f32 %v3492, %v3565
    %v3570 = vadd.f32 %v3493, %v3561
    %v3571 = vadd.f32 %v3494, %v3565
    %v3572 = vadd.f32 %v3495, %v3561
    %v3573 = vadd.f32 %v3496, %v3565
    %v3574 = vadd.f32 %v3497, %v3561
    %v3575 = vadd.f32 %v3498, %v3565
    %v3576 = vadd.f32 %v3499, %v3561
    %v3577 = vadd.f32 %v3500, %v3565
    %v3578 = vadd.f32 %v3501, %v3561
    %v3579 = vadd.f32 %v3502, %v3565
    %v3580 = vadd.f32 %v3503, %v3561
    %v3581 = vadd.f32 %v3504, %v3565
    %v3582 = vadd.f32 %v3505, %v3561
    %v3583 = vadd.f32 %v3506, %v3565
    %v3584 = vadd.f32 %v3507, %v3561
    %v3585 = vadd.f32 %v3508, %v3565
    %v3586 = vadd.f32 %v3509, %v3561
    %v3587 = vadd.f32 %v3510, %v3565
    %v3588 = vadd.f32 %v3511, %v3561
    %v3589 = vadd.f32 %v3512, %v3565
    %v3590 = vadd.f32 %v3513, %v3561
    %v3591 = vadd.f32 %v3514, %v3565
    %v3592 = vadd.f32 %v3515, %v3561
    %v3593 = vadd.f32 %v3516, %v3565
    %v3594 = vadd.f32 %v3517, %v3561
    %v3595 = vadd.f32 %v3518, %v3565
    %v3596 = vadd.f32 %v3519, %v3561
    %v3597 = vadd.f32 %v3520, %v3565
    %v3598 = vadd.f32 %v3521, %v3561
    %v3599 = vadd.f32 %v3522, %v3565
    %v3600 = vadd.f32 %v3523, %v3561
    %v3601 = vadd.f32 %v3524, %v3565
    %v3602 = vadd.f32 %v3525, %v3561
    %v3603 = vadd.f32 %v3526, %v3565
    %v3604 = vadd.f32 %v3527, %v3561
    %v3605 = vadd.f32 %v3528, %v3565
    %v3606 = vadd.f32 %v3529, %v3561
    %v3607 = vadd.f32 %v3530, %v3565
    %v3608 = vadd.f32 %v3531, %v3561
    %v3609 = vadd.f32 %v3532, %v3565
    %v3610 = vadd.f32 %v3533, %v3561
    %v3611 = vadd.f32 %v3534, %v3565
    %v3612 = vadd.f32 %v3535, %v3561
    %v3613 = vadd.f32 %v3536, %v3565
    %v3614 = vadd.f32 %v3537, %v3561
    %v3615 = vadd.f32 %v3538, %v3565
    %v3616 = vadd.f32 %v3539, %v3561
    %v3617 = vadd.f32 %v3540, %v3565
    %v3618 = vadd.f32 %v3541, %v3561
    %v3619 = vadd.f32 %v3542, %v3565
    %v3620 = vadd.f32 %v3543, %v3561
    %v3621 = vadd.f32 %v3544, %v3565
    %v3622 = vadd.f32 %v3545, %v3561
    %v3623 = vadd.f32 %v3546, %v3565
    %v3624 = vadd.f32 %v3547, %v3561
    %v3625 = vadd.f32 %v3548, %v3565
    %v3626 = vadd.f32 %v3549, %v3561
    %v3627 = vadd.f32 %v3550, %v3565
    %v3628 = vadd.f32 %v3551, %v3561
    %v3629 = vadd.f32 %v3552, %v3565
    %v3630 = vadd.f32 %v3553, %v3561
    %v3631 = vadd.f32 %v3554, %v3565
    %v3632 = vmax.f32 %v3568, 0.0
    %v3633 = vmax.f32 %v3569, 0.0
    %v3634 = vmax.f32 %v3570, 0.0
    %v3635 = vmax.f32 %v3571, 0.0
    %v3636 = vmax.f32 %v3572, 0.0
    %v3637 = vmax.f32 %v3573, 0.0
    %v3638 = vmax.f32 %v3574, 0.0
    %v3639 = vmax.f32 %v3575, 0.0
    %v3640 = vmax.f32 %v3576, 0.0
    %v3641 = vmax.f32 %v3577, 0.0
    %v3642 = vmax.f32 %v3578, 0.0
    %v3643 = vmax.f32 %v3579, 0.0
    %v3644 = vmax.f32 %v3580, 0.0
    %v3645 = vmax.f32 %v3581, 0.0
    %v3646 = vmax.f32 %v3582, 0.0
    %v3647 = vmax.f32 %v3583, 0.0
    %v3648 = vmax.f32 %v3584, 0.0
    %v3649 = vmax.f32 %v3585, 0.0
    %v3650 = vmax.f32 %v3586, 0.0
    %v3651 = vmax.f32 %v3587, 0.0
    %v3652 = vmax.f32 %v3588, 0.0
    %v3653 = vmax.f32 %v3589, 0.0
    %v3654 = vmax.f32 %v3590, 0.0
    %v3655 = vmax.f32 %v3591, 0.0
    %v3656 = vmax.f32 %v3592, 0.0
    %v3657 = vmax.f32 %v3593, 0.0
    %v3658 = vmax.f32 %v3594, 0.0
    %v3659 = vmax.f32 %v3595, 0.0
    %v3660 = vmax.f32 %v3596, 0.0
    %v3661 = vmax.f32 %v3597, 0.0
    %v3662 = vmax.f32 %v3598, 0.0
    %v3663 = vmax.f32 %v3599, 0.0
    %v3664 = vmax.f32 %v3600, 0.0
    %v3665 = vmax.f32 %v3601, 0.0
    %v3666 = vmax.f32 %v3602, 0.0
    %v3667 = vmax.f32 %v3603, 0.0
    %v3668 = vmax.f32 %v3604, 0.0
    %v3669 = vmax.f32 %v3605, 0.0
    %v3670 = vmax.f32 %v3606, 0.0
    %v3671 = vmax.f32 %v3607, 0.0
    %v3672 = vmax.f32 %v3608, 0.0
    %v3673 = vmax.f32 %v3609, 0.0
    %v3674 = vmax.f32 %v3610, 0.0
    %v3675 = vmax.f32 %v3611, 0.0
    %v3676 = vmax.f32 %v3612, 0.0
    %v3677 = vmax.f32 %v3613, 0.0
    %v3678 = vmax.f32 %v3614, 0.0
    %v3679 = vmax.f32 %v3615, 0.0
    %v3680 = vmax.f32 %v3616, 0.0
    %v3681 = vmax.f32 %v3617, 0.0
    %v3682 = vmax.f32 %v3618, 0.0
    %v3683 = vmax.f32 %v3619, 0.0
    %v3684 = vmax.f32 %v3620, 0.0
    %v3685 = vmax.f32 %v3621, 0.0
    %v3686 = vmax.f32 %v3622, 0.0
    %v3687 = vmax.f32 %v3623, 0.0
    %v3688 = vmax.f32 %v3624, 0.0
    %v3689 = vmax.f32 %v3625, 0.0
    %v3690 = vmax.f32 %v3626, 0.0
    %v3691 = vmax.f32 %v3627, 0.0
    %v3692 = vmax.f32 %v3628, 0.0
    %v3693 = vmax.f32 %v3629, 0.0
    %v3694 = vmax.f32 %v3630, 0.0
    %v3695 = vmax.f32 %v3631, 0.0
    %v3696 = vadd.f32 %v2342, %v3632
    %v3697 = vadd.f32 %v2343, %v3633
    %v3698 = vadd.f32 %v2344, %v3634
    %v3699 = vadd.f32 %v2345, %v3635
    %v3700 = vadd.f32 %v2346, %v3636
    %v3701 = vadd.f32 %v2347, %v3637
    %v3702 = vadd.f32 %v2348, %v3638
    %v3703 = vadd.f32 %v2349, %v3639
    %v3704 = vadd.f32 %v2350, %v3640
    %v3705 = vadd.f32 %v2351, %v3641
    %v3706 = vadd.f32 %v2352, %v3642
    %v3707 = vadd.f32 %v2353, %v3643
    %v3708 = vadd.f32 %v2354, %v3644
    %v3709 = vadd.f32 %v2355, %v3645
    %v3710 = vadd.f32 %v2356, %v3646
    %v3711 = vadd.f32 %v2357, %v3647
    %v3712 = vadd.f32 %v2358, %v3648
    %v3713 = vadd.f32 %v2359, %v3649
    %v3714 = vadd.f32 %v2360, %v3650
    %v3715 = vadd.f32 %v2361, %v3651
    %v3716 = vadd.f32 %v2362, %v3652
    %v3717 = vadd.f32 %v2363, %v3653
    %v3718 = vadd.f32 %v2364, %v3654
    %v3719 = vadd.f32 %v2365, %v3655
    %v3720 = vadd.f32 %v2366, %v3656
    %v3721 = vadd.f32 %v2367, %v3657
    %v3722 = vadd.f32 %v2368, %v3658
    %v3723 = vadd.f32 %v2369, %v3659
    %v3724 = vadd.f32 %v2370, %v3660
    %v3725 = vadd.f32 %v2371, %v3661
    %v3726 = vadd.f32 %v2372, %v3662
    %v3727 = vadd.f32 %v2373, %v3663
    %v3728 = vadd.f32 %v2374, %v3664
    %v3729 = vadd.f32 %v2375, %v3665
    %v3730 = vadd.f32 %v2376, %v3666
    %v3731 = vadd.f32 %v2377, %v3667
    %v3732 = vadd.f32 %v2378, %v3668
    %v3733 = vadd.f32 %v2379, %v3669
    %v3734 = vadd.f32 %v2380, %v3670
    %v3735 = vadd.f32 %v2381, %v3671
    %v3736 = vadd.f32 %v2382, %v3672
    %v3737 = vadd.f32 %v2383, %v3673
    %v3738 = vadd.f32 %v2384, %v3674
    %v3739 = vadd.f32 %v2385, %v3675
    %v3740 = vadd.f32 %v2386, %v3676
    %v3741 = vadd.f32 %v2387, %v3677
    %v3742 = vadd.f32 %v2388, %v3678
    %v3743 = vadd.f32 %v2389, %v3679
    %v3744 = vadd.f32 %v2390, %v3680
    %v3745 = vadd.f32 %v2391, %v3681
    %v3746 = vadd.f32 %v2392, %v3682
    %v3747 = vadd.f32 %v2393, %v3683
    %v3748 = vadd.f32 %v2394, %v3684
    %v3749 = vadd.f32 %v2395, %v3685
    %v3750 = vadd.f32 %v2396, %v3686
    %v3751 = vadd.f32 %v2397, %v3687
    %v3752 = vadd.f32 %v2398, %v3688
    %v3753 = vadd.f32 %v2399, %v3689
    %v3754 = vadd.f32 %v2400, %v3690
    %v3755 = vadd.f32 %v2401, %v3691
    %v3756 = vadd.f32 %v2402, %v3692
    %v3757 = vadd.f32 %v2403, %v3693
    %v3758 = vadd.f32 %v2404, %v3694
    %v3759 = vadd.f32 %v2405, %v3695
    %v3760 = vpack.c.bf16 %v3698, %v3696
    %v3761 = vpack.c.bf16 %v3699, %v3697
    %v3762 = vpack.c.bf16 %v3702, %v3700
    %v3763 = vpack.c.bf16 %v3703, %v3701
    %v3764 = vpack.c.bf16 %v3706, %v3704
    %v3765 = vpack.c.bf16 %v3707, %v3705
    %v3766 = vpack.c.bf16 %v3710, %v3708
    %v3767 = vpack.c.bf16 %v3711, %v3709
    %v3768 = vpack.c.bf16 %v3714, %v3712
    %v3769 = vpack.c.bf16 %v3715, %v3713
    %v3770 = vpack.c.bf16 %v3718, %v3716
    %v3771 = vpack.c.bf16 %v3719, %v3717
    %v3772 = vpack.c.bf16 %v3722, %v3720
    %v3773 = vpack.c.bf16 %v3723, %v3721
    %v3774 = vpack.c.bf16 %v3726, %v3724
    %v3775 = vpack.c.bf16 %v3727, %v3725
    %v3776 = vpack.c.bf16 %v3730, %v3728
    %v3777 = vpack.c.bf16 %v3731, %v3729
    %v3778 = vpack.c.bf16 %v3734, %v3732
    %v3779 = vpack.c.bf16 %v3735, %v3733
    %v3780 = vpack.c.bf16 %v3738, %v3736
    %v3781 = vpack.c.bf16 %v3739, %v3737
    %v3782 = vpack.c.bf16 %v3742, %v3740
    %v3783 = vpack.c.bf16 %v3743, %v3741
    %v3784 = vpack.c.bf16 %v3746, %v3744
    %v3785 = vpack.c.bf16 %v3747, %v3745
    %v3786 = vpack.c.bf16 %v3750, %v3748
    %v3787 = vpack.c.bf16 %v3751, %v3749
    %v3788 = vpack.c.bf16 %v3754, %v3752
    %v3789 = vpack.c.bf16 %v3755, %v3753
    %v3790 = vpack.c.bf16 %v3758, %v3756
    %v3791 = vpack.c.bf16 %v3759, %v3757
    %s3792 = scalar_lea.vmem [#allocation7], 768
    %v3793 = vld [vmem:[%s3792] sm:$0xff]
    %v3794 = vld [vmem:[%s3792 + $0x8] sm:$0xff]
    %v3795 = vld [vmem:[%s3792 + $0x10] sm:$0xff]
    %v3796 = vld [vmem:[%s3792 + $0x18] sm:$0xff]
    %v3797 = vld [vmem:[%s3792 + $0x20] sm:$0xff]
    %v3798 = vld [vmem:[%s3792 + $0x28] sm:$0xff]
    %v3799 = vld [vmem:[%s3792 + $0x30] sm:$0xff]
    %v3800 = vld [vmem:[%s3792 + $0x38] sm:$0xff]
    %v3801 = vld [vmem:[%s3792 + $0x40] sm:$0xff]
    %v3802 = vld [vmem:[%s3792 + $0x48] sm:$0xff]
    %v3803 = vld [vmem:[%s3792 + $0x50] sm:$0xff]
    %v3804 = vld [vmem:[%s3792 + $0x58] sm:$0xff]
    %v3805 = vld [vmem:[%s3792 + $0x60] sm:$0xff]
    %v3806 = vld [vmem:[%s3792 + $0x68] sm:$0xff]
    %v3807 = vld [vmem:[%s3792 + $0x70] sm:$0xff]
    %v3808 = vld [vmem:[%s3792 + $0x78] sm:$0xff]
    %v3809 = vld [vmem:[%s3792 + $0x80] sm:$0xff]
    %v3810 = vld [vmem:[%s3792 + $0x88] sm:$0xff]
    %v3811 = vld [vmem:[%s3792 + $0x90] sm:$0xff]
    %v3812 = vld [vmem:[%s3792 + $0x98] sm:$0xff]
    %v3813 = vld [vmem:[%s3792 + $0xa0] sm:$0xff]
    %v3814 = vld [vmem:[%s3792 + $0xa8] sm:$0xff]
    %v3815 = vld [vmem:[%s3792 + $0xb0] sm:$0xff]
    %v3816 = vld [vmem:[%s3792 + $0xb8] sm:$0xff]
    %v3817 = vld [vmem:[%s3792 + $0xc0] sm:$0xff]
    %v3818 = vld [vmem:[%s3792 + $0xc8] sm:$0xff]
    %v3819 = vld [vmem:[%s3792 + $0xd0] sm:$0xff]
    %v3820 = vld [vmem:[%s3792 + $0xd8] sm:$0xff]
    %v3821 = vld [vmem:[%s3792 + $0xe0] sm:$0xff]
    %v3822 = vld [vmem:[%s3792 + $0xe8] sm:$0xff]
    %v3823 = vld [vmem:[%s3792 + $0xf0] sm:$0xff]
    %v3824 = vld [vmem:[%s3792 + $0xf8] sm:$0xff]
    %v3857 = vunpack.c.l.b16 %v3793
    %v3858 = vunpack.c.h.b16 %v3793
    %v3859 = vunpack.c.l.b16 %v3794
    %v3860 = vunpack.c.h.b16 %v3794
    %v3861 = vunpack.c.l.b16 %v3795
    %v3862 = vunpack.c.h.b16 %v3795
    %v3863 = vunpack.c.l.b16 %v3796
    %v3864 = vunpack.c.h.b16 %v3796
    %v3865 = vunpack.c.l.b16 %v3797
    %v3866 = vunpack.c.h.b16 %v3797
    %v3867 = vunpack.c.l.b16 %v3798
    %v3868 = vunpack.c.h.b16 %v3798
    %v3869 = vunpack.c.l.b16 %v3799
    %v3870 = vunpack.c.h.b16 %v3799
    %v3871 = vunpack.c.l.b16 %v3800
    %v3872 = vunpack.c.h.b16 %v3800
    %v3873 = vunpack.c.l.b16 %v3801
    %v3874 = vunpack.c.h.b16 %v3801
    %v3875 = vunpack.c.l.b16 %v3802
    %v3876 = vunpack.c.h.b16 %v3802
    %v3877 = vunpack.c.l.b16 %v3803
    %v3878 = vunpack.c.h.b16 %v3803
    %v3879 = vunpack.c.l.b16 %v3804
    %v3880 = vunpack.c.h.b16 %v3804
    %v3881 = vunpack.c.l.b16 %v3805
    %v3882 = vunpack.c.h.b16 %v3805
    %v3883 = vunpack.c.l.b16 %v3806
    %v3884 = vunpack.c.h.b16 %v3806
    %v3885 = vunpack.c.l.b16 %v3807
    %v3886 = vunpack.c.h.b16 %v3807
    %v3887 = vunpack.c.l.b16 %v3808
    %v3888 = vunpack.c.h.b16 %v3808
    %v3889 = vunpack.c.l.b16 %v3809
    %v3890 = vunpack.c.h.b16 %v3809
    %v3891 = vunpack.c.l.b16 %v3810
    %v3892 = vunpack.c.h.b16 %v3810
    %v3893 = vunpack.c.l.b16 %v3811
    %v3894 = vunpack.c.h.b16 %v3811
    %v3895 = vunpack.c.l.b16 %v3812
    %v3896 = vunpack.c.h.b16 %v3812
    %v3897 = vunpack.c.l.b16 %v3813
    %v3898 = vunpack.c.h.b16 %v3813
    %v3899 = vunpack.c.l.b16 %v3814
    %v3900 = vunpack.c.h.b16 %v3814
    %v3901 = vunpack.c.l.b16 %v3815
    %v3902 = vunpack.c.h.b16 %v3815
    %v3903 = vunpack.c.l.b16 %v3816
    %v3904 = vunpack.c.h.b16 %v3816
    %v3905 = vunpack.c.l.b16 %v3817
    %v3906 = vunpack.c.h.b16 %v3817
    %v3907 = vunpack.c.l.b16 %v3818
    %v3908 = vunpack.c.h.b16 %v3818
    %v3909 = vunpack.c.l.b16 %v3819
    %v3910 = vunpack.c.h.b16 %v3819
    %v3911 = vunpack.c.l.b16 %v3820
    %v3912 = vunpack.c.h.b16 %v3820
    %v3913 = vunpack.c.l.b16 %v3821
    %v3914 = vunpack.c.h.b16 %v3821
    %v3915 = vunpack.c.l.b16 %v3822
    %v3916 = vunpack.c.h.b16 %v3822
    %v3917 = vunpack.c.l.b16 %v3823
    %v3918 = vunpack.c.h.b16 %v3823
    %v3919 = vunpack.c.l.b16 %v3824
    %v3920 = vunpack.c.h.b16 %v3824
    %v3921 = vpack.c.b16 %v3859, %v3857
    %v3922 = vpack.c.b16 %v3860, %v3858
    %v3923 = vpack.c.b16 %v3863, %v3861
    %v3924 = vpack.c.b16 %v3864, %v3862
    %v3925 = vpack.c.b16 %v3867, %v3865
    %v3926 = vpack.c.b16 %v3868, %v3866
    %v3927 = vpack.c.b16 %v3871, %v3869
    %v3928 = vpack.c.b16 %v3872, %v3870
    %v3929 = vpack.c.b16 %v3875, %v3873
    %v3930 = vpack.c.b16 %v3876, %v3874
    %v3931 = vpack.c.b16 %v3879, %v3877
    %v3932 = vpack.c.b16 %v3880, %v3878
    %v3933 = vpack.c.b16 %v3883, %v3881
    %v3934 = vpack.c.b16 %v3884, %v3882
    %v3935 = vpack.c.b16 %v3887, %v3885
    %v3936 = vpack.c.b16 %v3888, %v3886
    %v3937 = vpack.c.b16 %v3891, %v3889
    %v3938 = vpack.c.b16 %v3892, %v3890
    %v3939 = vpack.c.b16 %v3895, %v3893
    %v3940 = vpack.c.b16 %v3896, %v3894
    %v3941 = vpack.c.b16 %v3899, %v3897
    %v3942 = vpack.c.b16 %v3900, %v3898
    %v3943 = vpack.c.b16 %v3903, %v3901
    %v3944 = vpack.c.b16 %v3904, %v3902
    %v3945 = vpack.c.b16 %v3907, %v3905
    %v3946 = vpack.c.b16 %v3908, %v3906
    %v3947 = vpack.c.b16 %v3911, %v3909
    %v3948 = vpack.c.b16 %v3912, %v3910
    %v3949 = vpack.c.b16 %v3915, %v3913
    %v3950 = vpack.c.b16 %v3916, %v3914
    %v3951 = vpack.c.b16 %v3919, %v3917
    %v3952 = vpack.c.b16 %v3920, %v3918
    %3985 = vmatprep.subr.bf16.mxu0 %v3922
    %3986 = vmatpush1.bf16.msra.mxu0 %v3921
    %3987 = vmatprep.subr.bf16.mxu0 %v3924
    %3988 = vmatpush1.bf16.msra.mxu0 %v3923
    %3989 = vmatprep.subr.bf16.mxu0 %v3926
    %3990 = vmatpush1.bf16.msra.mxu0 %v3925
    %3991 = vmatprep.subr.bf16.mxu0 %v3928
    %3992 = vmatpush1.bf16.msra.mxu0 %v3927
    %3993 = vmatprep.subr.bf16.mxu0 %v3930
    %3994 = vmatpush1.bf16.msra.mxu0 %v3929
    %3995 = vmatprep.subr.bf16.mxu0 %v3932
    %3996 = vmatpush1.bf16.msra.mxu0 %v3931
    %3997 = vmatprep.subr.bf16.mxu0 %v3934
    %3998 = vmatpush1.bf16.msra.mxu0 %v3933
    %3999 = vmatprep.subr.bf16.mxu0 %v3936
    %4000 = vmatpush1.bf16.msra.mxu0 %v3935
    %4001 = vmatprep.subr.bf16.mxu0 %v3938
    %4002 = vmatpush1.bf16.msra.mxu0 %v3937
    %4003 = vmatprep.subr.bf16.mxu0 %v3940
    %4004 = vmatpush1.bf16.msra.mxu0 %v3939
    %4005 = vmatprep.subr.bf16.mxu0 %v3942
    %4006 = vmatpush1.bf16.msra.mxu0 %v3941
    %4007 = vmatprep.subr.bf16.mxu0 %v3944
    %4008 = vmatpush1.bf16.msra.mxu0 %v3943
    %4009 = vmatprep.subr.bf16.mxu0 %v3946
    %4010 = vmatpush1.bf16.msra.mxu0 %v3945
    %4011 = vmatprep.subr.bf16.mxu0 %v3948
    %4012 = vmatpush1.bf16.msra.mxu0 %v3947
    %4013 = vmatprep.subr.bf16.mxu0 %v3950
    %4014 = vmatpush1.bf16.msra.mxu0 %v3949
    %4015 = vmatprep.subr.bf16.mxu0 %v3952
    %4016 = vmatpush1.bf16.msra.mxu0 %v3951
    %4017 = vmatprep.mubr.bf16.mxu0 %v3761
    %4018 = vmatmul.mubr.bf16.gmra.mrb[0].mxu0 %v3760
    %v4019 = vpop.f32.mrb[0].mxu0
    %v4020 = vadd.f32 0.0, %v4019
    %v4021 = vpop.f32.mrb[0].mxu0
    %v4022 = vadd.f32 0.0, %v4021
    %v4023 = vpop.f32.mrb[0].mxu0
    %v4024 = vadd.f32 0.0, %v4023
    %v4025 = vpop.f32.mrb[0].mxu0
    %v4026 = vadd.f32 0.0, %v4025
    %4027 = vmatprep.mubr.bf16.mxu0 %v3763
    %4028 = vmatmul.mubr.bf16.gmra.mrb[0].mxu0 %v3762
    %v4029 = vpop.f32.mrb[0].mxu0
    %v4030 = vadd.f32 0.0, %v4029
    %v4031 = vpop.f32.mrb[0].mxu0
    %v4032 = vadd.f32 0.0, %v4031
    %v4033 = vpop.f32.mrb[0].mxu0
    %v4034 = vadd.f32 0.0, %v4033
    %v4035 = vpop.f32.mrb[0].mxu0
    %v4036 = vadd.f32 0.0, %v4035
    %4037 = vmatprep.mubr.bf16.mxu0 %v3765
    %4038 = vmatmul.mubr.bf16.gmra.mrb[0].mxu0 %v3764
    %v4039 = vpop.f32.mrb[0].mxu0
    %v4040 = vadd.f32 0.0, %v4039
    %v4041 = vpop.f32.mrb[0].mxu0
    %v4042 = vadd.f32 0.0, %v4041
    %v4043 = vpop.f32.mrb[0].mxu0
    %v4044 = vadd.f32 0.0, %v4043
    %v4045 = vpop.f32.mrb[0].mxu0
    %v4046 = vadd.f32 0.0, %v4045
    %4047 = vmatprep.mubr.bf16.mxu0 %v3767
    %4048 = vmatmul.mubr.bf16.gmra.mrb[0].mxu0 %v3766
    %v4049 = vpop.f32.mrb[0].mxu0
    %v4050 = vadd.f32 0.0, %v4049
    %v4051 = vpop.f32.mrb[0].mxu0
    %v4052 = vadd.f32 0.0, %v4051
    %v4053 = vpop.f32.mrb[0].mxu0
    %v4054 = vadd.f32 0.0, %v4053
    %v4055 = vpop.f32.mrb[0].mxu0
    %v4056 = vadd.f32 0.0, %v4055
    %4057 = vmatprep.mubr.bf16.mxu0 %v3769
    %4058 = vmatmul.mubr.bf16.gmra.mrb[0].mxu0 %v3768
    %v4059 = vpop.f32.mrb[0].mxu0
    %v4060 = vadd.f32 0.0, %v4059
    %v4061 = vpop.f32.mrb[0].mxu0
    %v4062 = vadd.f32 0.0, %v4061
    %v4063 = vpop.f32.mrb[0].mxu0
    %v4064 = vadd.f32 0.0, %v4063
    %v4065 = vpop.f32.mrb[0].mxu0
    %v4066 = vadd.f32 0.0, %v4065
    %4067 = vmatprep.mubr.bf16.mxu0 %v3771
    %4068 = vmatmul.mubr.bf16.gmra.mrb[0].mxu0 %v3770
    %v4069 = vpop.f32.mrb[0].mxu0
    %v4070 = vadd.f32 0.0, %v4069
    %v4071 = vpop.f32.mrb[0].mxu0
    %v4072 = vadd.f32 0.0, %v4071
    %v4073 = vpop.f32.mrb[0].mxu0
    %v4074 = vadd.f32 0.0, %v4073
    %v4075 = vpop.f32.mrb[0].mxu0
    %v4076 = vadd.f32 0.0, %v4075
    %4077 = vmatprep.mubr.bf16.mxu0 %v3773
    %4078 = vmatmul.mubr.bf16.gmra.mrb[0].mxu0 %v3772
    %v4079 = vpop.f32.mrb[0].mxu0
    %v4080 = vadd.f32 0.0, %v4079
    %v4081 = vpop.f32.mrb[0].mxu0
    %v4082 = vadd.f32 0.0, %v4081
    %v4083 = vpop.f32.mrb[0].mxu0
    %v4084 = vadd.f32 0.0, %v4083
    %v4085 = vpop.f32.mrb[0].mxu0
    %v4086 = vadd.f32 0.0, %v4085
    %4087 = vmatprep.mubr.bf16.mxu0 %v3775
    %4088 = vmatmul.mubr.bf16.gmra.mrb[0].mxu0 %v3774
    %v4089 = vpop.f32.mrb[0].mxu0
    %v4090 = vadd.f32 0.0, %v4089
    %v4091 = vpop.f32.mrb[0].mxu0
    %v4092 = vadd.f32 0.0, %v4091
    %v4093 = vpop.f32.mrb[0].mxu0
    %v4094 = vadd.f32 0.0, %v4093
    %v4095 = vpop.f32.mrb[0].mxu0
    %v4096 = vadd.f32 0.0, %v4095
    %4097 = vmatprep.mubr.bf16.mxu0 %v3777
    %4098 = vmatmul.mubr.bf16.gmra.mrb[0].mxu0 %v3776
    %v4099 = vpop.f32.mrb[0].mxu0
    %v4100 = vadd.f32 0.0, %v4099
    %v4101 = vpop.f32.mrb[0].mxu0
    %v4102 = vadd.f32 0.0, %v4101
    %v4103 = vpop.f32.mrb[0].mxu0
    %v4104 = vadd.f32 0.0, %v4103
    %v4105 = vpop.f32.mrb[0].mxu0
    %v4106 = vadd.f32 0.0, %v4105
    %4107 = vmatprep.mubr.bf16.mxu0 %v3779
    %4108 = vmatmul.mubr.bf16.gmra.mrb[0].mxu0 %v3778
    %v4109 = vpop.f32.mrb[0].mxu0
    %v4110 = vadd.f32 0.0, %v4109
    %v4111 = vpop.f32.mrb[0].mxu0
    %v4112 = vadd.f32 0.0, %v4111
    %v4113 = vpop.f32.mrb[0].mxu0
    %v4114 = vadd.f32 0.0, %v4113
    %v4115 = vpop.f32.mrb[0].mxu0
    %v4116 = vadd.f32 0.0, %v4115
    %4117 = vmatprep.mubr.bf16.mxu0 %v3781
    %4118 = vmatmul.mubr.bf16.gmra.mrb[0].mxu0 %v3780
    %v4119 = vpop.f32.mrb[0].mxu0
    %v4120 = vadd.f32 0.0, %v4119
    %v4121 = vpop.f32.mrb[0].mxu0
    %v4122 = vadd.f32 0.0, %v4121
    %v4123 = vpop.f32.mrb[0].mxu0
    %v4124 = vadd.f32 0.0, %v4123
    %v4125 = vpop.f32.mrb[0].mxu0
    %v4126 = vadd.f32 0.0, %v4125
    %4127 = vmatprep.mubr.bf16.mxu0 %v3783
    %4128 = vmatmul.mubr.bf16.gmra.mrb[0].mxu0 %v3782
    %v4129 = vpop.f32.mrb[0].mxu0
    %v4130 = vadd.f32 0.0, %v4129
    %v4131 = vpop.f32.mrb[0].mxu0
    %v4132 = vadd.f32 0.0, %v4131
    %v4133 = vpop.f32.mrb[0].mxu0
    %v4134 = vadd.f32 0.0, %v4133
    %v4135 = vpop.f32.mrb[0].mxu0
    %v4136 = vadd.f32 0.0, %v4135
    %4137 = vmatprep.mubr.bf16.mxu0 %v3785
    %4138 = vmatmul.mubr.bf16.gmra.mrb[0].mxu0 %v3784
    %v4139 = vpop.f32.mrb[0].mxu0
    %v4140 = vadd.f32 0.0, %v4139
    %v4141 = vpop.f32.mrb[0].mxu0
    %v4142 = vadd.f32 0.0, %v4141
    %v4143 = vpop.f32.mrb[0].mxu0
    %v4144 = vadd.f32 0.0, %v4143
    %v4145 = vpop.f32.mrb[0].mxu0
    %v4146 = vadd.f32 0.0, %v4145
    %4147 = vmatprep.mubr.bf16.mxu0 %v3787
    %4148 = vmatmul.mubr.bf16.gmra.mrb[0].mxu0 %v3786
    %v4149 = vpop.f32.mrb[0].mxu0
    %v4150 = vadd.f32 0.0, %v4149
    %v4151 = vpop.f32.mrb[0].mxu0
    %v4152 = vadd.f32 0.0, %v4151
    %v4153 = vpop.f32.mrb[0].mxu0
    %v4154 = vadd.f32 0.0, %v4153
    %v4155 = vpop.f32.mrb[0].mxu0
    %v4156 = vadd.f32 0.0, %v4155
    %4157 = vmatprep.mubr.bf16.mxu0 %v3789
    %4158 = vmatmul.mubr.bf16.gmra.mrb[0].mxu0 %v3788
    %v4159 = vpop.f32.mrb[0].mxu0
    %v4160 = vadd.f32 0.0, %v4159
    %v4161 = vpop.f32.mrb[0].mxu0
    %v4162 = vadd.f32 0.0, %v4161
    %v4163 = vpop.f32.mrb[0].mxu0
    %v4164 = vadd.f32 0.0, %v4163
    %v4165 = vpop.f32.mrb[0].mxu0
    %v4166 = vadd.f32 0.0, %v4165
    %4167 = vmatprep.mubr.bf16.mxu0 %v3791
    %4168 = vmatmul.mubr.bf16.gmra.mrb[0].mxu0 %v3790
    %v4169 = vpop.f32.mrb[0].mxu0
    %v4170 = vadd.f32 0.0, %v4169
    %v4171 = vpop.f32.mrb[0].mxu0
    %v4172 = vadd.f32 0.0, %v4171
    %v4173 = vpop.f32.mrb[0].mxu0
    %v4174 = vadd.f32 0.0, %v4173
    %v4175 = vpop.f32.mrb[0].mxu0
    %v4176 = vadd.f32 0.0, %v4175
    %4177 = vdwg.mxu0
    %v4178 = vpack.c.bf16 %v4024, %v4020
    %v4179 = vpack.c.bf16 %v4026, %v4022
    %v4180 = vpack.c.bf16 %v4034, %v4030
    %v4181 = vpack.c.bf16 %v4036, %v4032
    %v4182 = vpack.c.bf16 %v4044, %v4040
    %v4183 = vpack.c.bf16 %v4046, %v4042
    %v4184 = vpack.c.bf16 %v4054, %v4050
    %v4185 = vpack.c.bf16 %v4056, %v4052
    %v4186 = vpack.c.bf16 %v4064, %v4060
    %v4187 = vpack.c.bf16 %v4066, %v4062
    %v4188 = vpack.c.bf16 %v4074, %v4070
    %v4189 = vpack.c.bf16 %v4076, %v4072
    %v4190 = vpack.c.bf16 %v4084, %v4080
    %v4191 = vpack.c.bf16 %v4086, %v4082
    %v4192 = vpack.c.bf16 %v4094, %v4090
    %v4193 = vpack.c.bf16 %v4096, %v4092
    %v4194 = vpack.c.bf16 %v4104, %v4100
    %v4195 = vpack.c.bf16 %v4106, %v4102
    %v4196 = vpack.c.bf16 %v4114, %v4110
    %v4197 = vpack.c.bf16 %v4116, %v4112
    %v4198 = vpack.c.bf16 %v4124, %v4120
    %v4199 = vpack.c.bf16 %v4126, %v4122
    %v4200 = vpack.c.bf16 %v4134, %v4130
    %v4201 = vpack.c.bf16 %v4136, %v4132
    %v4202 = vpack.c.bf16 %v4144, %v4140
    %v4203 = vpack.c.bf16 %v4146, %v4142
    %v4204 = vpack.c.bf16 %v4154, %v4150
    %v4205 = vpack.c.bf16 %v4156, %v4152
    %v4206 = vpack.c.bf16 %v4164, %v4160
    %v4207 = vpack.c.bf16 %v4166, %v4162
    %v4208 = vpack.c.bf16 %v4174, %v4170
    %v4209 = vpack.c.bf16 %v4176, %v4172
    %s4210 = scalar_lea.vmem [#allocation8], 7
    %v4211 = vld [vmem:[%s4210] ss:$8 sm:$0x3]
    %v4213 = vlaneseq
    %v4214 = vshrl.u32 %v4213, 7
    %v4215 = vsub.s32 0, %v4214
    %v4216 = vrot.slane %v4211, %v4215
    %v4217 = vlaneseq
    %v4218 = vshrl.u32 %v4217, 7
    %v4219 = vsub.s32 1, %v4218
    %v4220 = vrot.slane %v4211, %v4219
    %4223 = vmatprep.subr.bf16.mxu0 %v4179
    %4224 = vmatpush1.bf16.msra.mxu0 %v4178
    %4225 = vmatprep.subr.bf16.mxu0 %v4181
    %4226 = vmatpush1.bf16.msra.mxu0 %v4180
    %4227 = vmatprep.subr.bf16.mxu0 %v4183
    %4228 = vmatpush1.bf16.msra.mxu0 %v4182
    %4229 = vmatprep.subr.bf16.mxu0 %v4185
    %4230 = vmatpush1.bf16.msra.mxu0 %v4184
    %4231 = vmatprep.subr.bf16.mxu0 %v4187
    %4232 = vmatpush1.bf16.msra.mxu0 %v4186
    %4233 = vmatprep.subr.bf16.mxu0 %v4189
    %4234 = vmatpush1.bf16.msra.mxu0 %v4188
    %4235 = vmatprep.subr.bf16.mxu0 %v4191
    %4236 = vmatpush1.bf16.msra.mxu0 %v4190
    %4237 = vmatprep.subr.bf16.mxu0 %v4193
    %4238 = vmatpush1.bf16.msra.mxu0 %v4192
    %4239 = vmatprep.subr.bf16.mxu0 %v4195
    %4240 = vmatpush1.bf16.msra.mxu0 %v4194
    %4241 = vmatprep.subr.bf16.mxu0 %v4197
    %4242 = vmatpush1.bf16.msra.mxu0 %v4196
    %4243 = vmatprep.subr.bf16.mxu0 %v4199
    %4244 = vmatpush1.bf16.msra.mxu0 %v4198
    %4245 = vmatprep.subr.bf16.mxu0 %v4201
    %4246 = vmatpush1.bf16.msra.mxu0 %v4200
    %4247 = vmatprep.subr.bf16.mxu0 %v4203
    %4248 = vmatpush1.bf16.msra.mxu0 %v4202
    %4249 = vmatprep.subr.bf16.mxu0 %v4205
    %4250 = vmatpush1.bf16.msra.mxu0 %v4204
    %4251 = vmatprep.subr.bf16.mxu0 %v4207
    %4252 = vmatpush1.bf16.msra.mxu0 %v4206
    %4253 = vmatprep.subr.bf16.mxu0 %v4209
    %4254 = vmatpush1.bf16.msra.mxu0 %v4208
    %4255 = vmatprep.mubr.bf16.mxu0 %v1292
    %4256 = vmatmul.mubr.bf16.gmra.mrb[0].mxu0 %v1291
    %v4257 = vpop.f32.mrb[0].mxu0
    %v4258 = vadd.f32 %v4216, %v4257
    %v4259 = vpop.f32.mrb[0].mxu0
    %v4260 = vadd.f32 %v4220, %v4259
    %v4261 = vpop.f32.mrb[0].mxu0
    %v4262 = vadd.f32 %v4216, %v4261
    %v4263 = vpop.f32.mrb[0].mxu0
    %v4264 = vadd.f32 %v4220, %v4263
    %4265 = vmatprep.mubr.bf16.mxu0 %v1294
    %4266 = vmatmul.mubr.bf16.gmra.mrb[0].mxu0 %v1293
    %v4267 = vpop.f32.mrb[0].mxu0
    %v4268 = vadd.f32 %v4216, %v4267
    %v4269 = vpop.f32.mrb[0].mxu0
    %v4270 = vadd.f32 %v4220, %v4269
    %v4271 = vpop.f32.mrb[0].mxu0
    %v4272 = vadd.f32 %v4216, %v4271
    %v4273 = vpop.f32.mrb[0].mxu0
    %v4274 = vadd.f32 %v4220, %v4273
    %4275 = vmatprep.mubr.bf16.mxu0 %v1296
    %4276 = vmatmul.mubr.bf16.gmra.mrb[0].mxu0 %v1295
    %v4277 = vpop.f32.mrb[0].mxu0
    %v4278 = vadd.f32 %v4216, %v4277
    %v4279 = vpop.f32.mrb[0].mxu0
    %v4280 = vadd.f32 %v4220, %v4279
    %v4281 = vpop.f32.mrb[0].mxu0
    %v4282 = vadd.f32 %v4216, %v4281
    %v4283 = vpop.f32.mrb[0].mxu0
    %v4284 = vadd.f32 %v4220, %v4283
    %4285 = vmatprep.mubr.bf16.mxu0 %v1298
    %4286 = vmatmul.mubr.bf16.gmra.mrb[0].mxu0 %v1297
    %v4287 = vpop.f32.mrb[0].mxu0
    %v4288 = vadd.f32 %v4216, %v4287
    %v4289 = vpop.f32.mrb[0].mxu0
    %v4290 = vadd.f32 %v4220, %v4289
    %v4291 = vpop.f32.mrb[0].mxu0
    %v4292 = vadd.f32 %v4216, %v4291
    %v4293 = vpop.f32.mrb[0].mxu0
    %v4294 = vadd.f32 %v4220, %v4293
    %4295 = vmatprep.mubr.bf16.mxu0 %v1300
    %4296 = vmatmul.mubr.bf16.gmra.mrb[0].mxu0 %v1299
    %v4297 = vpop.f32.mrb[0].mxu0
    %v4298 = vadd.f32 %v4216, %v4297
    %v4299 = vpop.f32.mrb[0].mxu0
    %v4300 = vadd.f32 %v4220, %v4299
    %v4301 = vpop.f32.mrb[0].mxu0
    %v4302 = vadd.f32 %v4216, %v4301
    %v4303 = vpop.f32.mrb[0].mxu0
    %v4304 = vadd.f32 %v4220, %v4303
    %4305 = vmatprep.mubr.bf16.mxu0 %v1302
    %4306 = vmatmul.mubr.bf16.gmra.mrb[0].mxu0 %v1301
    %v4307 = vpop.f32.mrb[0].mxu0
    %v4308 = vadd.f32 %v4216, %v4307
    %v4309 = vpop.f32.mrb[0].mxu0
    %v4310 = vadd.f32 %v4220, %v4309
    %v4311 = vpop.f32.mrb[0].mxu0
    %v4312 = vadd.f32 %v4216, %v4311
    %v4313 = vpop.f32.mrb[0].mxu0
    %v4314 = vadd.f32 %v4220, %v4313
    %4315 = vmatprep.mubr.bf16.mxu0 %v1304
    %4316 = vmatmul.mubr.bf16.gmra.mrb[0].mxu0 %v1303
    %v4317 = vpop.f32.mrb[0].mxu0
    %v4318 = vadd.f32 %v4216, %v4317
    %v4319 = vpop.f32.mrb[0].mxu0
    %v4320 = vadd.f32 %v4220, %v4319
    %v4321 = vpop.f32.mrb[0].mxu0
    %v4322 = vadd.f32 %v4216, %v4321
    %v4323 = vpop.f32.mrb[0].mxu0
    %v4324 = vadd.f32 %v4220, %v4323
    %4325 = vmatprep.mubr.bf16.mxu0 %v1306
    %4326 = vmatmul.mubr.bf16.gmra.mrb[0].mxu0 %v1305
    %v4327 = vpop.f32.mrb[0].mxu0
    %v4328 = vadd.f32 %v4216, %v4327
    %v4329 = vpop.f32.mrb[0].mxu0
    %v4330 = vadd.f32 %v4220, %v4329
    %v4331 = vpop.f32.mrb[0].mxu0
    %v4332 = vadd.f32 %v4216, %v4331
    %v4333 = vpop.f32.mrb[0].mxu0
    %v4334 = vadd.f32 %v4220, %v4333
    %4335 = vmatprep.mubr.bf16.mxu0 %v1308
    %4336 = vmatmul.mubr.bf16.gmra.mrb[0].mxu0 %v1307
    %v4337 = vpop.f32.mrb[0].mxu0
    %v4338 = vadd.f32 %v4216, %v4337
    %v4339 = vpop.f32.mrb[0].mxu0
    %v4340 = vadd.f32 %v4220, %v4339
    %v4341 = vpop.f32.mrb[0].mxu0
    %v4342 = vadd.f32 %v4216, %v4341
    %v4343 = vpop.f32.mrb[0].mxu0
    %v4344 = vadd.f32 %v4220, %v4343
    %4345 = vmatprep.mubr.bf16.mxu0 %v1310
    %4346 = vmatmul.mubr.bf16.gmra.mrb[0].mxu0 %v1309
    %v4347 = vpop.f32.mrb[0].mxu0
    %v4348 = vadd.f32 %v4216, %v4347
    %v4349 = vpop.f32.mrb[0].mxu0
    %v4350 = vadd.f32 %v4220, %v4349
    %v4351 = vpop.f32.mrb[0].mxu0
    %v4352 = vadd.f32 %v4216, %v4351
    %v4353 = vpop.f32.mrb[0].mxu0
    %v4354 = vadd.f32 %v4220, %v4353
    %4355 = vmatprep.mubr.bf16.mxu0 %v1312
    %4356 = vmatmul.mubr.bf16.gmra.mrb[0].mxu0 %v1311
    %v4357 = vpop.f32.mrb[0].mxu0
    %v4358 = vadd.f32 %v4216, %v4357
    %v4359 = vpop.f32.mrb[0].mxu0
    %v4360 = vadd.f32 %v4220, %v4359
    %v4361 = vpop.f32.mrb[0].mxu0
    %v4362 = vadd.f32 %v4216, %v4361
    %v4363 = vpop.f32.mrb[0].mxu0
    %v4364 = vadd.f32 %v4220, %v4363
    %4365 = vmatprep.mubr.bf16.mxu0 %v1314
    %4366 = vmatmul.mubr.bf16.gmra.mrb[0].mxu0 %v1313
    %v4367 = vpop.f32.mrb[0].mxu0
    %v4368 = vadd.f32 %v4216, %v4367
    %v4369 = vpop.f32.mrb[0].mxu0
    %v4370 = vadd.f32 %v4220, %v4369
    %v4371 = vpop.f32.mrb[0].mxu0
    %v4372 = vadd.f32 %v4216, %v4371
    %v4373 = vpop.f32.mrb[0].mxu0
    %v4374 = vadd.f32 %v4220, %v4373
    %4375 = vmatprep.mubr.bf16.mxu0 %v1316
    %4376 = vmatmul.mubr.bf16.gmra.mrb[0].mxu0 %v1315
    %v4377 = vpop.f32.mrb[0].mxu0
    %v4378 = vadd.f32 %v4216, %v4377
    %v4379 = vpop.f32.mrb[0].mxu0
    %v4380 = vadd.f32 %v4220, %v4379
    %v4381 = vpop.f32.mrb[0].mxu0
    %v4382 = vadd.f32 %v4216, %v4381
    %v4383 = vpop.f32.mrb[0].mxu0
    %v4384 = vadd.f32 %v4220, %v4383
    %4385 = vmatprep.mubr.bf16.mxu0 %v1318
    %4386 = vmatmul.mubr.bf16.gmra.mrb[0].mxu0 %v1317
    %v4387 = vpop.f32.mrb[0].mxu0
    %v4388 = vadd.f32 %v4216, %v4387
    %v4389 = vpop.f32.mrb[0].mxu0
    %v4390 = vadd.f32 %v4220, %v4389
    %v4391 = vpop.f32.mrb[0].mxu0
    %v4392 = vadd.f32 %v4216, %v4391
    %v4393 = vpop.f32.mrb[0].mxu0
    %v4394 = vadd.f32 %v4220, %v4393
    %4395 = vmatprep.mubr.bf16.mxu0 %v1320
    %4396 = vmatmul.mubr.bf16.gmra.mrb[0].mxu0 %v1319
    %v4397 = vpop.f32.mrb[0].mxu0
    %v4398 = vadd.f32 %v4216, %v4397
    %v4399 = vpop.f32.mrb[0].mxu0
    %v4400 = vadd.f32 %v4220, %v4399
    %v4401 = vpop.f32.mrb[0].mxu0
    %v4402 = vadd.f32 %v4216, %v4401
    %v4403 = vpop.f32.mrb[0].mxu0
    %v4404 = vadd.f32 %v4220, %v4403
    %4405 = vmatprep.mubr.bf16.mxu0 %v1322
    %4406 = vmatmul.mubr.bf16.gmra.mrb[0].mxu0 %v1321
    %v4407 = vpop.f32.mrb[0].mxu0
    %v4408 = vadd.f32 %v4216, %v4407
    %v4409 = vpop.f32.mrb[0].mxu0
    %v4410 = vadd.f32 %v4220, %v4409
    %v4411 = vpop.f32.mrb[0].mxu0
    %v4412 = vadd.f32 %v4216, %v4411
    %v4413 = vpop.f32.mrb[0].mxu0
    %v4414 = vadd.f32 %v4220, %v4413
    %4415 = vdwg.mxu0
    %v4416 = vmul.f32 %v4258, %v1551
    %v4417 = vmul.f32 %v4260, %v1551
    %v4418 = vmul.f32 %v4262, %v1556
    %v4419 = vmul.f32 %v4264, %v1556
    %v4420 = vmul.f32 %v4268, %v1561
    %v4421 = vmul.f32 %v4270, %v1561
    %v4422 = vmul.f32 %v4272, %v1566
    %v4423 = vmul.f32 %v4274, %v1566
    %v4424 = vmul.f32 %v4278, %v1571
    %v4425 = vmul.f32 %v4280, %v1571
    %v4426 = vmul.f32 %v4282, %v1576
    %v4427 = vmul.f32 %v4284, %v1576
    %v4428 = vmul.f32 %v4288, %v1581
    %v4429 = vmul.f32 %v4290, %v1581
    %v4430 = vmul.f32 %v4292, %v1586
    %v4431 = vmul.f32 %v4294, %v1586
    %v4432 = vmul.f32 %v4298, %v1591
    %v4433 = vmul.f32 %v4300, %v1591
    %v4434 = vmul.f32 %v4302, %v1596
    %v4435 = vmul.f32 %v4304, %v1596
    %v4436 = vmul.f32 %v4308, %v1601
    %v4437 = vmul.f32 %v4310, %v1601
    %v4438 = vmul.f32 %v4312, %v1606
    %v4439 = vmul.f32 %v4314, %v1606
    %v4440 = vmul.f32 %v4318, %v1611
    %v4441 = vmul.f32 %v4320, %v1611
    %v4442 = vmul.f32 %v4322, %v1616
    %v4443 = vmul.f32 %v4324, %v1616
    %v4444 = vmul.f32 %v4328, %v1621
    %v4445 = vmul.f32 %v4330, %v1621
    %v4446 = vmul.f32 %v4332, %v1626
    %v4447 = vmul.f32 %v4334, %v1626
    %v4448 = vmul.f32 %v4338, %v1631
    %v4449 = vmul.f32 %v4340, %v1631
    %v4450 = vmul.f32 %v4342, %v1636
    %v4451 = vmul.f32 %v4344, %v1636
    %v4452 = vmul.f32 %v4348, %v1641
    %v4453 = vmul.f32 %v4350, %v1641
    %v4454 = vmul.f32 %v4352, %v1646
    %v4455 = vmul.f32 %v4354, %v1646
    %v4456 = vmul.f32 %v4358, %v1651
    %v4457 = vmul.f32 %v4360, %v1651
    %v4458 = vmul.f32 %v4362, %v1656
    %v4459 = vmul.f32 %v4364, %v1656
    %v4460 = vmul.f32 %v4368, %v1661
    %v4461 = vmul.f32 %v4370, %v1661
    %v4462 = vmul.f32 %v4372, %v1666
    %v4463 = vmul.f32 %v4374, %v1666
    %v4464 = vmul.f32 %v4378, %v1671
    %v4465 = vmul.f32 %v4380, %v1671
    %v4466 = vmul.f32 %v4382, %v1676
    %v4467 = vmul.f32 %v4384, %v1676
    %v4468 = vmul.f32 %v4388, %v1681
    %v4469 = vmul.f32 %v4390, %v1681
    %v4470 = vmul.f32 %v4392, %v1686
    %v4471 = vmul.f32 %v4394, %v1686
    %v4472 = vmul.f32 %v4398, %v1691
    %v4473 = vmul.f32 %v4400, %v1691
    %v4474 = vmul.f32 %v4402, %v1696
    %v4475 = vmul.f32 %v4404, %v1696
    %v4476 = vmul.f32 %v4408, %v1701
    %v4477 = vmul.f32 %v4410, %v1701
    %v4478 = vmul.f32 %v4412, %v1706
    %v4479 = vmul.f32 %v4414, %v1706
    %v4480 = vadd.f32 %v4416, %v4418
    %v4481 = vadd.f32 %v4480, %v4420
    %v4482 = vadd.f32 %v4481, %v4422
    %v4483 = vadd.f32 %v4482, %v4424
    %v4484 = vadd.f32 %v4483, %v4426
    %v4485 = vadd.f32 %v4484, %v4428
    %v4486 = vadd.f32 %v4485, %v4430
    %v4487 = vadd.f32 %v4486, %v4432
    %v4488 = vadd.f32 %v4487, %v4434
    %v4489 = vadd.f32 %v4488, %v4436
    %v4490 = vadd.f32 %v4489, %v4438
    %v4491 = vadd.f32 %v4490, %v4440
    %v4492 = vadd.f32 %v4491, %v4442
    %v4493 = vadd.f32 %v4492, %v4444
    %v4494 = vadd.f32 %v4493, %v4446
    %v4495 = vadd.f32 %v4494, %v4448
    %v4496 = vadd.f32 %v4495, %v4450
    %v4497 = vadd.f32 %v4496, %v4452
    %v4498 = vadd.f32 %v4497, %v4454
    %v4499 = vadd.f32 %v4498, %v4456
    %v4500 = vadd.f32 %v4499, %v4458
    %v4501 = vadd.f32 %v4500, %v4460
    %v4502 = vadd.f32 %v4501, %v4462
    %v4503 = vadd.f32 %v4502, %v4464
    %v4504 = vadd.f32 %v4503, %v4466
    %v4505 = vadd.f32 %v4504, %v4468
    %v4506 = vadd.f32 %v4505, %v4470
    %v4507 = vadd.f32 %v4506, %v4472
    %v4508 = vadd.f32 %v4507, %v4474
    %v4509 = vadd.f32 %v4508, %v4476
    %v4510 = vadd.f32 %v4509, %v4478
    %v4511 = vrot.slane %v4510, 4
    %v4512 = vadd.f32 %v4510, %v4511
    %v4513 = vrot.slane %v4512, 2
    %v4514 = vadd.f32 %v4512, %v4513
    %v4515 = vrot.slane %v4514, 1
    %v4516 = vadd.f32 %v4514, %v4515
    %v4517 = vadd.f32 %v4417, %v4419
    %v4518 = vadd.f32 %v4517, %v4421
    %v4519 = vadd.f32 %v4518, %v4423
    %v4520 = vadd.f32 %v4519, %v4425
    %v4521 = vadd.f32 %v4520, %v4427
    %v4522 = vadd.f32 %v4521, %v4429
    %v4523 = vadd.f32 %v4522, %v4431
    %v4524 = vadd.f32 %v4523, %v4433
    %v4525 = vadd.f32 %v4524, %v4435
    %v4526 = vadd.f32 %v4525, %v4437
    %v4527 = vadd.f32 %v4526, %v4439
    %v4528 = vadd.f32 %v4527, %v4441
    %v4529 = vadd.f32 %v4528, %v4443
    %v4530 = vadd.f32 %v4529, %v4445
    %v4531 = vadd.f32 %v4530, %v4447
    %v4532 = vadd.f32 %v4531, %v4449
    %v4533 = vadd.f32 %v4532, %v4451
    %v4534 = vadd.f32 %v4533, %v4453
    %v4535 = vadd.f32 %v4534, %v4455
    %v4536 = vadd.f32 %v4535, %v4457
    %v4537 = vadd.f32 %v4536, %v4459
    %v4538 = vadd.f32 %v4537, %v4461
    %v4539 = vadd.f32 %v4538, %v4463
    %v4540 = vadd.f32 %v4539, %v4465
    %v4541 = vadd.f32 %v4540, %v4467
    %v4542 = vadd.f32 %v4541, %v4469
    %v4543 = vadd.f32 %v4542, %v4471
    %v4544 = vadd.f32 %v4543, %v4473
    %v4545 = vadd.f32 %v4544, %v4475
    %v4546 = vadd.f32 %v4545, %v4477
    %v4547 = vadd.f32 %v4546, %v4479
    %v4548 = vrot.slane %v4547, 4
    %v4549 = vadd.f32 %v4547, %v4548
    %v4550 = vrot.slane %v4549, 2
    %v4551 = vadd.f32 %v4549, %v4550
    %v4552 = vrot.slane %v4551, 1
    %v4553 = vadd.f32 %v4551, %v4552
    %v4554 = vmul.f32 %v4416, %v4416
    %v4555 = vmul.f32 %v4417, %v4417
    %v4556 = vmul.f32 %v4418, %v4418
    %v4557 = vmul.f32 %v4419, %v4419
    %v4558 = vmul.f32 %v4420, %v4420
    %v4559 = vmul.f32 %v4421, %v4421
    %v4560 = vmul.f32 %v4422, %v4422
    %v4561 = vmul.f32 %v4423, %v4423
    %v4562 = vmul.f32 %v4424, %v4424
    %v4563 = vmul.f32 %v4425, %v4425
    %v4564 = vmul.f32 %v4426, %v4426
    %v4565 = vmul.f32 %v4427, %v4427
    %v4566 = vmul.f32 %v4428, %v4428
    %v4567 = vmul.f32 %v4429, %v4429
    %v4568 = vmul.f32 %v4430, %v4430
    %v4569 = vmul.f32 %v4431, %v4431
    %v4570 = vmul.f32 %v4432, %v4432
    %v4571 = vmul.f32 %v4433, %v4433
    %v4572 = vmul.f32 %v4434, %v4434
    %v4573 = vmul.f32 %v4435, %v4435
    %v4574 = vmul.f32 %v4436, %v4436
    %v4575 = vmul.f32 %v4437, %v4437
    %v4576 = vmul.f32 %v4438, %v4438
    %v4577 = vmul.f32 %v4439, %v4439
    %v4578 = vmul.f32 %v4440, %v4440
    %v4579 = vmul.f32 %v4441, %v4441
    %v4580 = vmul.f32 %v4442, %v4442
    %v4581 = vmul.f32 %v4443, %v4443
    %v4582 = vmul.f32 %v4444, %v4444
    %v4583 = vmul.f32 %v4445, %v4445
    %v4584 = vmul.f32 %v4446, %v4446
    %v4585 = vmul.f32 %v4447, %v4447
    %v4586 = vmul.f32 %v4448, %v4448
    %v4587 = vmul.f32 %v4449, %v4449
    %v4588 = vmul.f32 %v4450, %v4450
    %v4589 = vmul.f32 %v4451, %v4451
    %v4590 = vmul.f32 %v4452, %v4452
    %v4591 = vmul.f32 %v4453, %v4453
    %v4592 = vmul.f32 %v4454, %v4454
    %v4593 = vmul.f32 %v4455, %v4455
    %v4594 = vmul.f32 %v4456, %v4456
    %v4595 = vmul.f32 %v4457, %v4457
    %v4596 = vmul.f32 %v4458, %v4458
    %v4597 = vmul.f32 %v4459, %v4459
    %v4598 = vmul.f32 %v4460, %v4460
    %v4599 = vmul.f32 %v4461, %v4461
    %v4600 = vmul.f32 %v4462, %v4462
    %v4601 = vmul.f32 %v4463, %v4463
    %v4602 = vmul.f32 %v4464, %v4464
    %v4603 = vmul.f32 %v4465, %v4465
    %v4604 = vmul.f32 %v4466, %v4466
    %v4605 = vmul.f32 %v4467, %v4467
    %v4606 = vmul.f32 %v4468, %v4468
    %v4607 = vmul.f32 %v4469, %v4469
    %v4608 = vmul.f32 %v4470, %v4470
    %v4609 = vmul.f32 %v4471, %v4471
    %v4610 = vmul.f32 %v4472, %v4472
    %v4611 = vmul.f32 %v4473, %v4473
    %v4612 = vmul.f32 %v4474, %v4474
    %v4613 = vmul.f32 %v4475, %v4475
    %v4614 = vmul.f32 %v4476, %v4476
    %v4615 = vmul.f32 %v4477, %v4477
    %v4616 = vmul.f32 %v4478, %v4478
    %v4617 = vmul.f32 %v4479, %v4479
    %v4618 = vadd.f32 %v4554, %v4556
    %v4619 = vadd.f32 %v4618, %v4558
    %v4620 = vadd.f32 %v4619, %v4560
    %v4621 = vadd.f32 %v4620, %v4562
    %v4622 = vadd.f32 %v4621, %v4564
    %v4623 = vadd.f32 %v4622, %v4566
    %v4624 = vadd.f32 %v4623, %v4568
    %v4625 = vadd.f32 %v4624, %v4570
    %v4626 = vadd.f32 %v4625, %v4572
    %v4627 = vadd.f32 %v4626, %v4574
    %v4628 = vadd.f32 %v4627, %v4576
    %v4629 = vadd.f32 %v4628, %v4578
    %v4630 = vadd.f32 %v4629, %v4580
    %v4631 = vadd.f32 %v4630, %v4582
    %v4632 = vadd.f32 %v4631, %v4584
    %v4633 = vadd.f32 %v4632, %v4586
    %v4634 = vadd.f32 %v4633, %v4588
    %v4635 = vadd.f32 %v4634, %v4590
    %v4636 = vadd.f32 %v4635, %v4592
    %v4637 = vadd.f32 %v4636, %v4594
    %v4638 = vadd.f32 %v4637, %v4596
    %v4639 = vadd.f32 %v4638, %v4598
    %v4640 = vadd.f32 %v4639, %v4600
    %v4641 = vadd.f32 %v4640, %v4602
    %v4642 = vadd.f32 %v4641, %v4604
    %v4643 = vadd.f32 %v4642, %v4606
    %v4644 = vadd.f32 %v4643, %v4608
    %v4645 = vadd.f32 %v4644, %v4610
    %v4646 = vadd.f32 %v4645, %v4612
    %v4647 = vadd.f32 %v4646, %v4614
    %v4648 = vadd.f32 %v4647, %v4616
    %v4649 = vrot.slane %v4648, 4
    %v4650 = vadd.f32 %v4648, %v4649
    %v4651 = vrot.slane %v4650, 2
    %v4652 = vadd.f32 %v4650, %v4651
    %v4653 = vrot.slane %v4652, 1
    %v4654 = vadd.f32 %v4652, %v4653
    %v4655 = vadd.f32 %v4555, %v4557
    %v4656 = vadd.f32 %v4655, %v4559
    %v4657 = vadd.f32 %v4656, %v4561
    %v4658 = vadd.f32 %v4657, %v4563
    %v4659 = vadd.f32 %v4658, %v4565
    %v4660 = vadd.f32 %v4659, %v4567
    %v4661 = vadd.f32 %v4660, %v4569
    %v4662 = vadd.f32 %v4661, %v4571
    %v4663 = vadd.f32 %v4662, %v4573
    %v4664 = vadd.f32 %v4663, %v4575
    %v4665 = vadd.f32 %v4664, %v4577
    %v4666 = vadd.f32 %v4665, %v4579
    %v4667 = vadd.f32 %v4666, %v4581
    %v4668 = vadd.f32 %v4667, %v4583
    %v4669 = vadd.f32 %v4668, %v4585
    %v4670 = vadd.f32 %v4669, %v4587
    %v4671 = vadd.f32 %v4670, %v4589
    %v4672 = vadd.f32 %v4671, %v4591
    %v4673 = vadd.f32 %v4672, %v4593
    %v4674 = vadd.f32 %v4673, %v4595
    %v4675 = vadd.f32 %v4674, %v4597
    %v4676 = vadd.f32 %v4675, %v4599
    %v4677 = vadd.f32 %v4676, %v4601
    %v4678 = vadd.f32 %v4677, %v4603
    %v4679 = vadd.f32 %v4678, %v4605
    %v4680 = vadd.f32 %v4679, %v4607
    %v4681 = vadd.f32 %v4680, %v4609
    %v4682 = vadd.f32 %v4681, %v4611
    %v4683 = vadd.f32 %v4682, %v4613
    %v4684 = vadd.f32 %v4683, %v4615
    %v4685 = vadd.f32 %v4684, %v4617
    %v4686 = vrot.slane %v4685, 4
    %v4687 = vadd.f32 %v4685, %v4686
    %v4688 = vrot.slane %v4687, 2
    %v4689 = vadd.f32 %v4687, %v4688
    %v4690 = vrot.slane %v4689, 1
    %v4691 = vadd.f32 %v4689, %v4690
    %v4692 = vmul.f32 %v4516, 0.00390625
    %v4693 = vmul.f32 %v4553, 0.00390625
    %v4694 = vmul.f32 %v4654, 0.00390625
    %v4695 = vmul.f32 %v4691, 0.00390625
    %v4696 = vmul.f32 %v4692, %v4692
    %v4697 = vmul.f32 %v4693, %v4693
    %v4698 = vsub.f32 %v4694, %v4696
    %v4699 = vsub.f32 %v4695, %v4697
    %v4700 = vsub.f32 %v4416, %v4692
    %v4701 = vsub.f32 %v4417, %v4693
    %v4702 = vsub.f32 %v4418, %v4692
    %v4703 = vsub.f32 %v4419, %v4693
    %v4704 = vsub.f32 %v4420, %v4692
    %v4705 = vsub.f32 %v4421, %v4693
    %v4706 = vsub.f32 %v4422, %v4692
    %v4707 = vsub.f32 %v4423, %v4693
    %v4708 = vsub.f32 %v4424, %v4692
    %v4709 = vsub.f32 %v4425, %v4693
    %v4710 = vsub.f32 %v4426, %v4692
    %v4711 = vsub.f32 %v4427, %v4693
    %v4712 = vsub.f32 %v4428, %v4692
    %v4713 = vsub.f32 %v4429, %v4693
    %v4714 = vsub.f32 %v4430, %v4692
    %v4715 = vsub.f32 %v4431, %v4693
    %v4716 = vsub.f32 %v4432, %v4692
    %v4717 = vsub.f32 %v4433, %v4693
    %v4718 = vsub.f32 %v4434, %v4692
    %v4719 = vsub.f32 %v4435, %v4693
    %v4720 = vsub.f32 %v4436, %v4692
    %v4721 = vsub.f32 %v4437, %v4693
    %v4722 = vsub.f32 %v4438, %v4692
    %v4723 = vsub.f32 %v4439, %v4693
    %v4724 = vsub.f32 %v4440, %v4692
    %v4725 = vsub.f32 %v4441, %v4693
    %v4726 = vsub.f32 %v4442, %v4692
    %v4727 = vsub.f32 %v4443, %v4693
    %v4728 = vsub.f32 %v4444, %v4692
    %v4729 = vsub.f32 %v4445, %v4693
    %v4730 = vsub.f32 %v4446, %v4692
    %v4731 = vsub.f32 %v4447, %v4693
    %v4732 = vsub.f32 %v4448, %v4692
    %v4733 = vsub.f32 %v4449, %v4693
    %v4734 = vsub.f32 %v4450, %v4692
    %v4735 = vsub.f32 %v4451, %v4693
    %v4736 = vsub.f32 %v4452, %v4692
    %v4737 = vsub.f32 %v4453, %v4693
    %v4738 = vsub.f32 %v4454, %v4692
    %v4739 = vsub.f32 %v4455, %v4693
    %v4740 = vsub.f32 %v4456, %v4692
    %v4741 = vsub.f32 %v4457, %v4693
    %v4742 = vsub.f32 %v4458, %v4692
    %v4743 = vsub.f32 %v4459, %v4693
    %v4744 = vsub.f32 %v4460, %v4692
    %v4745 = vsub.f32 %v4461, %v4693
    %v4746 = vsub.f32 %v4462, %v4692
    %v4747 = vsub.f32 %v4463, %v4693
    %v4748 = vsub.f32 %v4464, %v4692
    %v4749 = vsub.f32 %v4465, %v4693
    %v4750 = vsub.f32 %v4466, %v4692
    %v4751 = vsub.f32 %v4467, %v4693
    %v4752 = vsub.f32 %v4468, %v4692
    %v4753 = vsub.f32 %v4469, %v4693
    %v4754 = vsub.f32 %v4470, %v4692
    %v4755 = vsub.f32 %v4471, %v4693
    %v4756 = vsub.f32 %v4472, %v4692
    %v4757 = vsub.f32 %v4473, %v4693
    %v4758 = vsub.f32 %v4474, %v4692
    %v4759 = vsub.f32 %v4475, %v4693
    %v4760 = vsub.f32 %v4476, %v4692
    %v4761 = vsub.f32 %v4477, %v4693
    %v4762 = vsub.f32 %v4478, %v4692
    %v4763 = vsub.f32 %v4479, %v4693
    %v4764 = vadd.f32 %v4698, 1e-05
    %v4765 = vadd.f32 %v4699, 1e-05
    %v4766 = vrsqrt.pop %v4764
    %v4767 = vrsqrt.pop %v4765
    %v4768 = vmul.f32 %v4700, %v4766
    %v4769 = vmul.f32 %v4701, %v4767
    %v4770 = vmul.f32 %v4702, %v4766
    %v4771 = vmul.f32 %v4703, %v4767
    %v4772 = vmul.f32 %v4704, %v4766
    %v4773 = vmul.f32 %v4705, %v4767
    %v4774 = vmul.f32 %v4706, %v4766
    %v4775 = vmul.f32 %v4707, %v4767
    %v4776 = vmul.f32 %v4708, %v4766
    %v4777 = vmul.f32 %v4709, %v4767
    %v4778 = vmul.f32 %v4710, %v4766
    %v4779 = vmul.f32 %v4711, %v4767
    %v4780 = vmul.f32 %v4712, %v4766
    %v4781 = vmul.f32 %v4713, %v4767
    %v4782 = vmul.f32 %v4714, %v4766
    %v4783 = vmul.f32 %v4715, %v4767
    %v4784 = vmul.f32 %v4716, %v4766
    %v4785 = vmul.f32 %v4717, %v4767
    %v4786 = vmul.f32 %v4718, %v4766
    %v4787 = vmul.f32 %v4719, %v4767
    %v4788 = vmul.f32 %v4720, %v4766
    %v4789 = vmul.f32 %v4721, %v4767
    %v4790 = vmul.f32 %v4722, %v4766
    %v4791 = vmul.f32 %v4723, %v4767
    %v4792 = vmul.f32 %v4724, %v4766
    %v4793 = vmul.f32 %v4725, %v4767
    %v4794 = vmul.f32 %v4726, %v4766
    %v4795 = vmul.f32 %v4727, %v4767
    %v4796 = vmul.f32 %v4728, %v4766
    %v4797 = vmul.f32 %v4729, %v4767
    %v4798 = vmul.f32 %v4730, %v4766
    %v4799 = vmul.f32 %v4731, %v4767
    %v4800 = vmul.f32 %v4732, %v4766
    %v4801 = vmul.f32 %v4733, %v4767
    %v4802 = vmul.f32 %v4734, %v4766
    %v4803 = vmul.f32 %v4735, %v4767
    %v4804 = vmul.f32 %v4736, %v4766
    %v4805 = vmul.f32 %v4737, %v4767
    %v4806 = vmul.f32 %v4738, %v4766
    %v4807 = vmul.f32 %v4739, %v4767
    %v4808 = vmul.f32 %v4740, %v4766
    %v4809 = vmul.f32 %v4741, %v4767
    %v4810 = vmul.f32 %v4742, %v4766
    %v4811 = vmul.f32 %v4743, %v4767
    %v4812 = vmul.f32 %v4744, %v4766
    %v4813 = vmul.f32 %v4745, %v4767
    %v4814 = vmul.f32 %v4746, %v4766
    %v4815 = vmul.f32 %v4747, %v4767
    %v4816 = vmul.f32 %v4748, %v4766
    %v4817 = vmul.f32 %v4749, %v4767
    %v4818 = vmul.f32 %v4750, %v4766
    %v4819 = vmul.f32 %v4751, %v4767
    %v4820 = vmul.f32 %v4752, %v4766
    %v4821 = vmul.f32 %v4753, %v4767
    %v4822 = vmul.f32 %v4754, %v4766
    %v4823 = vmul.f32 %v4755, %v4767
    %v4824 = vmul.f32 %v4756, %v4766
    %v4825 = vmul.f32 %v4757, %v4767
    %v4826 = vmul.f32 %v4758, %v4766
    %v4827 = vmul.f32 %v4759, %v4767
    %v4828 = vmul.f32 %v4760, %v4766
    %v4829 = vmul.f32 %v4761, %v4767
    %v4830 = vmul.f32 %v4762, %v4766
    %v4831 = vmul.f32 %v4763, %v4767
    %s4832 = scalar_lea.vmem [#allocation8], 16
    %v4833 = vld [vmem:[%s4832] ss:$8 sm:$0x3]
    %v4835 = vlaneseq
    %v4836 = vshrl.u32 %v4835, 7
    %v4837 = vsub.s32 0, %v4836
    %v4838 = vrot.slane %v4833, %v4837
    %v4839 = vlaneseq
    %v4840 = vshrl.u32 %v4839, 7
    %v4841 = vsub.s32 1, %v4840
    %v4842 = vrot.slane %v4833, %v4841
    %v4845 = vmul.f32 %v4768, %v4838
    %v4846 = vmul.f32 %v4769, %v4842
    %v4847 = vmul.f32 %v4770, %v4838
    %v4848 = vmul.f32 %v4771, %v4842
    %v4849 = vmul.f32 %v4772, %v4838
    %v4850 = vmul.f32 %v4773, %v4842
    %v4851 = vmul.f32 %v4774, %v4838
    %v4852 = vmul.f32 %v4775, %v4842
    %v4853 = vmul.f32 %v4776, %v4838
    %v4854 = vmul.f32 %v4777, %v4842
    %v4855 = vmul.f32 %v4778, %v4838
    %v4856 = vmul.f32 %v4779, %v4842
    %v4857 = vmul.f32 %v4780, %v4838
    %v4858 = vmul.f32 %v4781, %v4842
    %v4859 = vmul.f32 %v4782, %v4838
    %v4860 = vmul.f32 %v4783, %v4842
    %v4861 = vmul.f32 %v4784, %v4838
    %v4862 = vmul.f32 %v4785, %v4842
    %v4863 = vmul.f32 %v4786, %v4838
    %v4864 = vmul.f32 %v4787, %v4842
    %v4865 = vmul.f32 %v4788, %v4838
    %v4866 = vmul.f32 %v4789, %v4842
    %v4867 = vmul.f32 %v4790, %v4838
    %v4868 = vmul.f32 %v4791, %v4842
    %v4869 = vmul.f32 %v4792, %v4838
    %v4870 = vmul.f32 %v4793, %v4842
    %v4871 = vmul.f32 %v4794, %v4838
    %v4872 = vmul.f32 %v4795, %v4842
    %v4873 = vmul.f32 %v4796, %v4838
    %v4874 = vmul.f32 %v4797, %v4842
    %v4875 = vmul.f32 %v4798, %v4838
    %v4876 = vmul.f32 %v4799, %v4842
    %v4877 = vmul.f32 %v4800, %v4838
    %v4878 = vmul.f32 %v4801, %v4842
    %v4879 = vmul.f32 %v4802, %v4838
    %v4880 = vmul.f32 %v4803, %v4842
    %v4881 = vmul.f32 %v4804, %v4838
    %v4882 = vmul.f32 %v4805, %v4842
    %v4883 = vmul.f32 %v4806, %v4838
    %v4884 = vmul.f32 %v4807, %v4842
    %v4885 = vmul.f32 %v4808, %v4838
    %v4886 = vmul.f32 %v4809, %v4842
    %v4887 = vmul.f32 %v4810, %v4838
    %v4888 = vmul.f32 %v4811, %v4842
    %v4889 = vmul.f32 %v4812, %v4838
    %v4890 = vmul.f32 %v4813, %v4842
    %v4891 = vmul.f32 %v4814, %v4838
    %v4892 = vmul.f32 %v4815, %v4842
    %v4893 = vmul.f32 %v4816, %v4838
    %v4894 = vmul.f32 %v4817, %v4842
    %v4895 = vmul.f32 %v4818, %v4838
    %v4896 = vmul.f32 %v4819, %v4842
    %v4897 = vmul.f32 %v4820, %v4838
    %v4898 = vmul.f32 %v4821, %v4842
    %v4899 = vmul.f32 %v4822, %v4838
    %v4900 = vmul.f32 %v4823, %v4842
    %v4901 = vmul.f32 %v4824, %v4838
    %v4902 = vmul.f32 %v4825, %v4842
    %v4903 = vmul.f32 %v4826, %v4838
    %v4904 = vmul.f32 %v4827, %v4842
    %v4905 = vmul.f32 %v4828, %v4838
    %v4906 = vmul.f32 %v4829, %v4842
    %v4907 = vmul.f32 %v4830, %v4838
    %v4908 = vmul.f32 %v4831, %v4842
    %s4909 = scalar_lea.vmem [#allocation8], 17
    %v4910 = vld [vmem:[%s4909] ss:$8 sm:$0x3]
    %v4912 = vlaneseq
    %v4913 = vshrl.u32 %v4912, 7
    %v4914 = vsub.s32 0, %v4913
    %v4915 = vrot.slane %v4910, %v4914
    %v4916 = vlaneseq
    %v4917 = vshrl.u32 %v4916, 7
    %v4918 = vsub.s32 1, %v4917
    %v4919 = vrot.slane %v4910, %v4918
    %v4922 = vadd.f32 %v4845, %v4915
    %v4923 = vadd.f32 %v4846, %v4919
    %v4924 = vadd.f32 %v4847, %v4915
    %v4925 = vadd.f32 %v4848, %v4919
    %v4926 = vadd.f32 %v4849, %v4915
    %v4927 = vadd.f32 %v4850, %v4919
    %v4928 = vadd.f32 %v4851, %v4915
    %v4929 = vadd.f32 %v4852, %v4919
    %v4930 = vadd.f32 %v4853, %v4915
    %v4931 = vadd.f32 %v4854, %v4919
    %v4932 = vadd.f32 %v4855, %v4915
    %v4933 = vadd.f32 %v4856, %v4919
    %v4934 = vadd.f32 %v4857, %v4915
    %v4935 = vadd.f32 %v4858, %v4919
    %v4936 = vadd.f32 %v4859, %v4915
    %v4937 = vadd.f32 %v4860, %v4919
    %v4938 = vadd.f32 %v4861, %v4915
    %v4939 = vadd.f32 %v4862, %v4919
    %v4940 = vadd.f32 %v4863, %v4915
    %v4941 = vadd.f32 %v4864, %v4919
    %v4942 = vadd.f32 %v4865, %v4915
    %v4943 = vadd.f32 %v4866, %v4919
    %v4944 = vadd.f32 %v4867, %v4915
    %v4945 = vadd.f32 %v4868, %v4919
    %v4946 = vadd.f32 %v4869, %v4915
    %v4947 = vadd.f32 %v4870, %v4919
    %v4948 = vadd.f32 %v4871, %v4915
    %v4949 = vadd.f32 %v4872, %v4919
    %v4950 = vadd.f32 %v4873, %v4915
    %v4951 = vadd.f32 %v4874, %v4919
    %v4952 = vadd.f32 %v4875, %v4915
    %v4953 = vadd.f32 %v4876, %v4919
    %v4954 = vadd.f32 %v4877, %v4915
    %v4955 = vadd.f32 %v4878, %v4919
    %v4956 = vadd.f32 %v4879, %v4915
    %v4957 = vadd.f32 %v4880, %v4919
    %v4958 = vadd.f32 %v4881, %v4915
    %v4959 = vadd.f32 %v4882, %v4919
    %v4960 = vadd.f32 %v4883, %v4915
    %v4961 = vadd.f32 %v4884, %v4919
    %v4962 = vadd.f32 %v4885, %v4915
    %v4963 = vadd.f32 %v4886, %v4919
    %v4964 = vadd.f32 %v4887, %v4915
    %v4965 = vadd.f32 %v4888, %v4919
    %v4966 = vadd.f32 %v4889, %v4915
    %v4967 = vadd.f32 %v4890, %v4919
    %v4968 = vadd.f32 %v4891, %v4915
    %v4969 = vadd.f32 %v4892, %v4919
    %v4970 = vadd.f32 %v4893, %v4915
    %v4971 = vadd.f32 %v4894, %v4919
    %v4972 = vadd.f32 %v4895, %v4915
    %v4973 = vadd.f32 %v4896, %v4919
    %v4974 = vadd.f32 %v4897, %v4915
    %v4975 = vadd.f32 %v4898, %v4919
    %v4976 = vadd.f32 %v4899, %v4915
    %v4977 = vadd.f32 %v4900, %v4919
    %v4978 = vadd.f32 %v4901, %v4915
    %v4979 = vadd.f32 %v4902, %v4919
    %v4980 = vadd.f32 %v4903, %v4915
    %v4981 = vadd.f32 %v4904, %v4919
    %v4982 = vadd.f32 %v4905, %v4915
    %v4983 = vadd.f32 %v4906, %v4919
    %v4984 = vadd.f32 %v4907, %v4915
    %v4985 = vadd.f32 %v4908, %v4919
    %v4986 = vmax.f32 %v4922, 0.0
    %v4987 = vmax.f32 %v4923, 0.0
    %v4988 = vmax.f32 %v4924, 0.0
    %v4989 = vmax.f32 %v4925, 0.0
    %v4990 = vmax.f32 %v4926, 0.0
    %v4991 = vmax.f32 %v4927, 0.0
    %v4992 = vmax.f32 %v4928, 0.0
    %v4993 = vmax.f32 %v4929, 0.0
    %v4994 = vmax.f32 %v4930, 0.0
    %v4995 = vmax.f32 %v4931, 0.0
    %v4996 = vmax.f32 %v4932, 0.0
    %v4997 = vmax.f32 %v4933, 0.0
    %v4998 = vmax.f32 %v4934, 0.0
    %v4999 = vmax.f32 %v4935, 0.0
    %v5000 = vmax.f32 %v4936, 0.0
    %v5001 = vmax.f32 %v4937, 0.0
    %v5002 = vmax.f32 %v4938, 0.0
    %v5003 = vmax.f32 %v4939, 0.0
    %v5004 = vmax.f32 %v4940, 0.0
    %v5005 = vmax.f32 %v4941, 0.0
    %v5006 = vmax.f32 %v4942, 0.0
    %v5007 = vmax.f32 %v4943, 0.0
    %v5008 = vmax.f32 %v4944, 0.0
    %v5009 = vmax.f32 %v4945, 0.0
    %v5010 = vmax.f32 %v4946, 0.0
    %v5011 = vmax.f32 %v4947, 0.0
    %v5012 = vmax.f32 %v4948, 0.0
    %v5013 = vmax.f32 %v4949, 0.0
    %v5014 = vmax.f32 %v4950, 0.0
    %v5015 = vmax.f32 %v4951, 0.0
    %v5016 = vmax.f32 %v4952, 0.0
    %v5017 = vmax.f32 %v4953, 0.0
    %v5018 = vmax.f32 %v4954, 0.0
    %v5019 = vmax.f32 %v4955, 0.0
    %v5020 = vmax.f32 %v4956, 0.0
    %v5021 = vmax.f32 %v4957, 0.0
    %v5022 = vmax.f32 %v4958, 0.0
    %v5023 = vmax.f32 %v4959, 0.0
    %v5024 = vmax.f32 %v4960, 0.0
    %v5025 = vmax.f32 %v4961, 0.0
    %v5026 = vmax.f32 %v4962, 0.0
    %v5027 = vmax.f32 %v4963, 0.0
    %v5028 = vmax.f32 %v4964, 0.0
    %v5029 = vmax.f32 %v4965, 0.0
    %v5030 = vmax.f32 %v4966, 0.0
    %v5031 = vmax.f32 %v4967, 0.0
    %v5032 = vmax.f32 %v4968, 0.0
    %v5033 = vmax.f32 %v4969, 0.0
    %v5034 = vmax.f32 %v4970, 0.0
    %v5035 = vmax.f32 %v4971, 0.0
    %v5036 = vmax.f32 %v4972, 0.0
    %v5037 = vmax.f32 %v4973, 0.0
    %v5038 = vmax.f32 %v4974, 0.0
    %v5039 = vmax.f32 %v4975, 0.0
    %v5040 = vmax.f32 %v4976, 0.0
    %v5041 = vmax.f32 %v4977, 0.0
    %v5042 = vmax.f32 %v4978, 0.0
    %v5043 = vmax.f32 %v4979, 0.0
    %v5044 = vmax.f32 %v4980, 0.0
    %v5045 = vmax.f32 %v4981, 0.0
    %v5046 = vmax.f32 %v4982, 0.0
    %v5047 = vmax.f32 %v4983, 0.0
    %v5048 = vmax.f32 %v4984, 0.0
    %v5049 = vmax.f32 %v4985, 0.0
    %v5050 = vadd.f32 %v3696, %v4986
    %v5051 = vadd.f32 %v3697, %v4987
    %v5052 = vadd.f32 %v3698, %v4988
    %v5053 = vadd.f32 %v3699, %v4989
    %v5054 = vadd.f32 %v3700, %v4990
    %v5055 = vadd.f32 %v3701, %v4991
    %v5056 = vadd.f32 %v3702, %v4992
    %v5057 = vadd.f32 %v3703, %v4993
    %v5058 = vadd.f32 %v3704, %v4994
    %v5059 = vadd.f32 %v3705, %v4995
    %v5060 = vadd.f32 %v3706, %v4996
    %v5061 = vadd.f32 %v3707, %v4997
    %v5062 = vadd.f32 %v3708, %v4998
    %v5063 = vadd.f32 %v3709, %v4999
    %v5064 = vadd.f32 %v3710, %v5000
    %v5065 = vadd.f32 %v3711, %v5001
    %v5066 = vadd.f32 %v3712, %v5002
    %v5067 = vadd.f32 %v3713, %v5003
    %v5068 = vadd.f32 %v3714, %v5004
    %v5069 = vadd.f32 %v3715, %v5005
    %v5070 = vadd.f32 %v3716, %v5006
    %v5071 = vadd.f32 %v3717, %v5007
    %v5072 = vadd.f32 %v3718, %v5008
    %v5073 = vadd.f32 %v3719, %v5009
    %v5074 = vadd.f32 %v3720, %v5010
    %v5075 = vadd.f32 %v3721, %v5011
    %v5076 = vadd.f32 %v3722, %v5012
    %v5077 = vadd.f32 %v3723, %v5013
    %v5078 = vadd.f32 %v3724, %v5014
    %v5079 = vadd.f32 %v3725, %v5015
    %v5080 = vadd.f32 %v3726, %v5016
    %v5081 = vadd.f32 %v3727, %v5017
    %v5082 = vadd.f32 %v3728, %v5018
    %v5083 = vadd.f32 %v3729, %v5019
    %v5084 = vadd.f32 %v3730, %v5020
    %v5085 = vadd.f32 %v3731, %v5021
    %v5086 = vadd.f32 %v3732, %v5022
    %v5087 = vadd.f32 %v3733, %v5023
    %v5088 = vadd.f32 %v3734, %v5024
    %v5089 = vadd.f32 %v3735, %v5025
    %v5090 = vadd.f32 %v3736, %v5026
    %v5091 = vadd.f32 %v3737, %v5027
    %v5092 = vadd.f32 %v3738, %v5028
    %v5093 = vadd.f32 %v3739, %v5029
    %v5094 = vadd.f32 %v3740, %v5030
    %v5095 = vadd.f32 %v3741, %v5031
    %v5096 = vadd.f32 %v3742, %v5032
    %v5097 = vadd.f32 %v3743, %v5033
    %v5098 = vadd.f32 %v3744, %v5034
    %v5099 = vadd.f32 %v3745, %v5035
    %v5100 = vadd.f32 %v3746, %v5036
    %v5101 = vadd.f32 %v3747, %v5037
    %v5102 = vadd.f32 %v3748, %v5038
    %v5103 = vadd.f32 %v3749, %v5039
    %v5104 = vadd.f32 %v3750, %v5040
    %v5105 = vadd.f32 %v3751, %v5041
    %v5106 = vadd.f32 %v3752, %v5042
    %v5107 = vadd.f32 %v3753, %v5043
    %v5108 = vadd.f32 %v3754, %v5044
    %v5109 = vadd.f32 %v3755, %v5045
    %v5110 = vadd.f32 %v3756, %v5046
    %v5111 = vadd.f32 %v3757, %v5047
    %v5112 = vadd.f32 %v3758, %v5048
    %v5113 = vadd.f32 %v3759, %v5049
    %v5114 = vpack.c.bf16 %v5052, %v5050
    %v5115 = vpack.c.bf16 %v5053, %v5051
    %v5116 = vpack.c.bf16 %v5056, %v5054
    %v5117 = vpack.c.bf16 %v5057, %v5055
    %v5118 = vpack.c.bf16 %v5060, %v5058
    %v5119 = vpack.c.bf16 %v5061, %v5059
    %v5120 = vpack.c.bf16 %v5064, %v5062
    %v5121 = vpack.c.bf16 %v5065, %v5063
    %v5122 = vpack.c.bf16 %v5068, %v5066
    %v5123 = vpack.c.bf16 %v5069, %v5067
    %v5124 = vpack.c.bf16 %v5072, %v5070
    %v5125 = vpack.c.bf16 %v5073, %v5071
    %v5126 = vpack.c.bf16 %v5076, %v5074
    %v5127 = vpack.c.bf16 %v5077, %v5075
    %v5128 = vpack.c.bf16 %v5080, %v5078
    %v5129 = vpack.c.bf16 %v5081, %v5079
    %v5130 = vpack.c.bf16 %v5084, %v5082
    %v5131 = vpack.c.bf16 %v5085, %v5083
    %v5132 = vpack.c.bf16 %v5088, %v5086
    %v5133 = vpack.c.bf16 %v5089, %v5087
    %v5134 = vpack.c.bf16 %v5092, %v5090
    %v5135 = vpack.c.bf16 %v5093, %v5091
    %v5136 = vpack.c.bf16 %v5096, %v5094
    %v5137 = vpack.c.bf16 %v5097, %v5095
    %v5138 = vpack.c.bf16 %v5100, %v5098
    %v5139 = vpack.c.bf16 %v5101, %v5099
    %v5140 = vpack.c.bf16 %v5104, %v5102
    %v5141 = vpack.c.bf16 %v5105, %v5103
    %v5142 = vpack.c.bf16 %v5108, %v5106
    %v5143 = vpack.c.bf16 %v5109, %v5107
    %v5144 = vpack.c.bf16 %v5112, %v5110
    %v5145 = vpack.c.bf16 %v5113, %v5111
    %s5146 = scalar_lea.vmem [#allocation7], 1024
    %v5147 = vld [vmem:[%s5146] sm:$0xff]
    %v5148 = vld [vmem:[%s5146 + $0x8] sm:$0xff]
    %v5149 = vld [vmem:[%s5146 + $0x10] sm:$0xff]
    %v5150 = vld [vmem:[%s5146 + $0x18] sm:$0xff]
    %v5151 = vld [vmem:[%s5146 + $0x20] sm:$0xff]
    %v5152 = vld [vmem:[%s5146 + $0x28] sm:$0xff]
    %v5153 = vld [vmem:[%s5146 + $0x30] sm:$0xff]
    %v5154 = vld [vmem:[%s5146 + $0x38] sm:$0xff]
    %v5155 = vld [vmem:[%s5146 + $0x40] sm:$0xff]
    %v5156 = vld [vmem:[%s5146 + $0x48] sm:$0xff]
    %v5157 = vld [vmem:[%s5146 + $0x50] sm:$0xff]
    %v5158 = vld [vmem:[%s5146 + $0x58] sm:$0xff]
    %v5159 = vld [vmem:[%s5146 + $0x60] sm:$0xff]
    %v5160 = vld [vmem:[%s5146 + $0x68] sm:$0xff]
    %v5161 = vld [vmem:[%s5146 + $0x70] sm:$0xff]
    %v5162 = vld [vmem:[%s5146 + $0x78] sm:$0xff]
    %v5163 = vld [vmem:[%s5146 + $0x80] sm:$0xff]
    %v5164 = vld [vmem:[%s5146 + $0x88] sm:$0xff]
    %v5165 = vld [vmem:[%s5146 + $0x90] sm:$0xff]
    %v5166 = vld [vmem:[%s5146 + $0x98] sm:$0xff]
    %v5167 = vld [vmem:[%s5146 + $0xa0] sm:$0xff]
    %v5168 = vld [vmem:[%s5146 + $0xa8] sm:$0xff]
    %v5169 = vld [vmem:[%s5146 + $0xb0] sm:$0xff]
    %v5170 = vld [vmem:[%s5146 + $0xb8] sm:$0xff]
    %v5171 = vld [vmem:[%s5146 + $0xc0] sm:$0xff]
    %v5172 = vld [vmem:[%s5146 + $0xc8] sm:$0xff]
    %v5173 = vld [vmem:[%s5146 + $0xd0] sm:$0xff]
    %v5174 = vld [vmem:[%s5146 + $0xd8] sm:$0xff]
    %v5175 = vld [vmem:[%s5146 + $0xe0] sm:$0xff]
    %v5176 = vld [vmem:[%s5146 + $0xe8] sm:$0xff]
    %v5177 = vld [vmem:[%s5146 + $0xf0] sm:$0xff]
    %v5178 = vld [vmem:[%s5146 + $0xf8] sm:$0xff]
    %v5211 = vunpack.c.l.b16 %v5147
    %v5212 = vunpack.c.h.b16 %v5147
    %v5213 = vunpack.c.l.b16 %v5148
    %v5214 = vunpack.c.h.b16 %v5148
    %v5215 = vunpack.c.l.b16 %v5149
    %v5216 = vunpack.c.h.b16 %v5149
    %v5217 = vunpack.c.l.b16 %v5150
    %v5218 = vunpack.c.h.b16 %v5150
    %v5219 = vunpack.c.l.b16 %v5151
    %v5220 = vunpack.c.h.b16 %v5151
    %v5221 = vunpack.c.l.b16 %v5152
    %v5222 = vunpack.c.h.b16 %v5152
    %v5223 = vunpack.c.l.b16 %v5153
    %v5224 = vunpack.c.h.b16 %v5153
    %v5225 = vunpack.c.l.b16 %v5154
    %v5226 = vunpack.c.h.b16 %v5154
    %v5227 = vunpack.c.l.b16 %v5155
    %v5228 = vunpack.c.h.b16 %v5155
    %v5229 = vunpack.c.l.b16 %v5156
    %v5230 = vunpack.c.h.b16 %v5156
    %v5231 = vunpack.c.l.b16 %v5157
    %v5232 = vunpack.c.h.b16 %v5157
    %v5233 = vunpack.c.l.b16 %v5158
    %v5234 = vunpack.c.h.b16 %v5158
    %v5235 = vunpack.c.l.b16 %v5159
    %v5236 = vunpack.c.h.b16 %v5159
    %v5237 = vunpack.c.l.b16 %v5160
    %v5238 = vunpack.c.h.b16 %v5160
    %v5239 = vunpack.c.l.b16 %v5161
    %v5240 = vunpack.c.h.b16 %v5161
    %v5241 = vunpack.c.l.b16 %v5162
    %v5242 = vunpack.c.h.b16 %v5162
    %v5243 = vunpack.c.l.b16 %v5163
    %v5244 = vunpack.c.h.b16 %v5163
    %v5245 = vunpack.c.l.b16 %v5164
    %v5246 = vunpack.c.h.b16 %v5164
    %v5247 = vunpack.c.l.b16 %v5165
    %v5248 = vunpack.c.h.b16 %v5165
    %v5249 = vunpack.c.l.b16 %v5166
    %v5250 = vunpack.c.h.b16 %v5166
    %v5251 = vunpack.c.l.b16 %v5167
    %v5252 = vunpack.c.h.b16 %v5167
    %v5253 = vunpack.c.l.b16 %v5168
    %v5254 = vunpack.c.h.b16 %v5168
    %v5255 = vunpack.c.l.b16 %v5169
    %v5256 = vunpack.c.h.b16 %v5169
    %v5257 = vunpack.c.l.b16 %v5170
    %v5258 = vunpack.c.h.b16 %v5170
    %v5259 = vunpack.c.l.b16 %v5171
    %v5260 = vunpack.c.h.b16 %v5171
    %v5261 = vunpack.c.l.b16 %v5172
    %v5262 = vunpack.c.h.b16 %v5172
    %v5263 = vunpack.c.l.b16 %v5173
    %v5264 = vunpack.c.h.b16 %v5173
    %v5265 = vunpack.c.l.b16 %v5174
    %v5266 = vunpack.c.h.b16 %v5174
    %v5267 = vunpack.c.l.b16 %v5175
    %v5268 = vunpack.c.h.b16 %v5175
    %v5269 = vunpack.c.l.b16 %v5176
    %v5270 = vunpack.c.h.b16 %v5176
    %v5271 = vunpack.c.l.b16 %v5177
    %v5272 = vunpack.c.h.b16 %v5177
    %v5273 = vunpack.c.l.b16 %v5178
    %v5274 = vunpack.c.h.b16 %v5178
    %v5275 = vpack.c.b16 %v5213, %v5211
    %v5276 = vpack.c.b16 %v5214, %v5212
    %v5277 = vpack.c.b16 %v5217, %v5215
    %v5278 = vpack.c.b16 %v5218, %v5216
    %v5279 = vpack.c.b16 %v5221, %v5219
    %v5280 = vpack.c.b16 %v5222, %v5220
    %v5281 = vpack.c.b16 %v5225, %v5223
    %v5282 = vpack.c.b16 %v5226, %v5224
    %v5283 = vpack.c.b16 %v5229, %v5227
    %v5284 = vpack.c.b16 %v5230, %v5228
    %v5285 = vpack.c.b16 %v5233, %v5231
    %v5286 = vpack.c.b16 %v5234, %v5232
    %v5287 = vpack.c.b16 %v5237, %v5235
    %v5288 = vpack.c.b16 %v5238, %v5236
    %v5289 = vpack.c.b16 %v5241, %v5239
    %v5290 = vpack.c.b16 %v5242, %v5240
    %v5291 = vpack.c.b16 %v5245, %v5243
    %v5292 = vpack.c.b16 %v5246, %v5244
    %v5293 = vpack.c.b16 %v5249, %v5247
    %v5294 = vpack.c.b16 %v5250, %v5248
    %v5295 = vpack.c.b16 %v5253, %v5251
    %v5296 = vpack.c.b16 %v5254, %v5252
    %v5297 = vpack.c.b16 %v5257, %v5255
    %v5298 = vpack.c.b16 %v5258, %v5256
    %v5299 = vpack.c.b16 %v5261, %v5259
    %v5300 = vpack.c.b16 %v5262, %v5260
    %v5301 = vpack.c.b16 %v5265, %v5263
    %v5302 = vpack.c.b16 %v5266, %v5264
    %v5303 = vpack.c.b16 %v5269, %v5267
    %v5304 = vpack.c.b16 %v5270, %v5268
    %v5305 = vpack.c.b16 %v5273, %v5271
    %v5306 = vpack.c.b16 %v5274, %v5272
    %5339 = vmatprep.subr.bf16.mxu0 %v5276
    %5340 = vmatpush1.bf16.msra.mxu0 %v5275
    %5341 = vmatprep.subr.bf16.mxu0 %v5278
    %5342 = vmatpush1.bf16.msra.mxu0 %v5277
    %5343 = vmatprep.subr.bf16.mxu0 %v5280
    %5344 = vmatpush1.bf16.msra.mxu0 %v5279
    %5345 = vmatprep.subr.bf16.mxu0 %v5282
    %5346 = vmatpush1.bf16.msra.mxu0 %v5281
    %5347 = vmatprep.subr.bf16.mxu0 %v5284
    %5348 = vmatpush1.bf16.msra.mxu0 %v5283
    %5349 = vmatprep.subr.bf16.mxu0 %v5286
    %5350 = vmatpush1.bf16.msra.mxu0 %v5285
    %5351 = vmatprep.subr.bf16.mxu0 %v5288
    %5352 = vmatpush1.bf16.msra.mxu0 %v5287
    %5353 = vmatprep.subr.bf16.mxu0 %v5290
    %5354 = vmatpush1.bf16.msra.mxu0 %v5289
    %5355 = vmatprep.subr.bf16.mxu0 %v5292
    %5356 = vmatpush1.bf16.msra.mxu0 %v5291
    %5357 = vmatprep.subr.bf16.mxu0 %v5294
    %5358 = vmatpush1.bf16.msra.mxu0 %v5293
    %5359 = vmatprep.subr.bf16.mxu0 %v5296
    %5360 = vmatpush1.bf16.msra.mxu0 %v5295
    %5361 = vmatprep.subr.bf16.mxu0 %v5298
    %5362 = vmatpush1.bf16.msra.mxu0 %v5297
    %5363 = vmatprep.subr.bf16.mxu0 %v5300
    %5364 = vmatpush1.bf16.msra.mxu0 %v5299
    %5365 = vmatprep.subr.bf16.mxu0 %v5302
    %5366 = vmatpush1.bf16.msra.mxu0 %v5301
    %5367 = vmatprep.subr.bf16.mxu0 %v5304
    %5368 = vmatpush1.bf16.msra.mxu0 %v5303
    %5369 = vmatprep.subr.bf16.mxu0 %v5306
    %5370 = vmatpush1.bf16.msra.mxu0 %v5305
    %5371 = vmatprep.mubr.bf16.mxu0 %v5115
    %5372 = vmatmul.mubr.bf16.gmra.mrb[0].mxu0 %v5114
    %v5373 = vpop.f32.mrb[0].mxu0
    %v5374 = vadd.f32 0.0, %v5373
    %v5375 = vpop.f32.mrb[0].mxu0
    %v5376 = vadd.f32 0.0, %v5375
    %v5377 = vpop.f32.mrb[0].mxu0
    %v5378 = vadd.f32 0.0, %v5377
    %v5379 = vpop.f32.mrb[0].mxu0
    %v5380 = vadd.f32 0.0, %v5379
    %5381 = vmatprep.mubr.bf16.mxu0 %v5117
    %5382 = vmatmul.mubr.bf16.gmra.mrb[0].mxu0 %v5116
    %v5383 = vpop.f32.mrb[0].mxu0
    %v5384 = vadd.f32 0.0, %v5383
    %v5385 = vpop.f32.mrb[0].mxu0
    %v5386 = vadd.f32 0.0, %v5385
    %v5387 = vpop.f32.mrb[0].mxu0
    %v5388 = vadd.f32 0.0, %v5387
    %v5389 = vpop.f32.mrb[0].mxu0
    %v5390 = vadd.f32 0.0, %v5389
    %5391 = vmatprep.mubr.bf16.mxu0 %v5119
    %5392 = vmatmul.mubr.bf16.gmra.mrb[0].mxu0 %v5118
    %v5393 = vpop.f32.mrb[0].mxu0
    %v5394 = vadd.f32 0.0, %v5393
    %v5395 = vpop.f32.mrb[0].mxu0
    %v5396 = vadd.f32 0.0, %v5395
    %v5397 = vpop.f32.mrb[0].mxu0
    %v5398 = vadd.f32 0.0, %v5397
    %v5399 = vpop.f32.mrb[0].mxu0
    %v5400 = vadd.f32 0.0, %v5399
    %5401 = vmatprep.mubr.bf16.mxu0 %v5121
    %5402 = vmatmul.mubr.bf16.gmra.mrb[0].mxu0 %v5120
    %v5403 = vpop.f32.mrb[0].mxu0
    %v5404 = vadd.f32 0.0, %v5403
    %v5405 = vpop.f32.mrb[0].mxu0
    %v5406 = vadd.f32 0.0, %v5405
    %v5407 = vpop.f32.mrb[0].mxu0
    %v5408 = vadd.f32 0.0, %v5407
    %v5409 = vpop.f32.mrb[0].mxu0
    %v5410 = vadd.f32 0.0, %v5409
    %5411 = vmatprep.mubr.bf16.mxu0 %v5123
    %5412 = vmatmul.mubr.bf16.gmra.mrb[0].mxu0 %v5122
    %v5413 = vpop.f32.mrb[0].mxu0
    %v5414 = vadd.f32 0.0, %v5413
    %v5415 = vpop.f32.mrb[0].mxu0
    %v5416 = vadd.f32 0.0, %v5415
    %v5417 = vpop.f32.mrb[0].mxu0
    %v5418 = vadd.f32 0.0, %v5417
    %v5419 = vpop.f32.mrb[0].mxu0
    %v5420 = vadd.f32 0.0, %v5419
    %5421 = vmatprep.mubr.bf16.mxu0 %v5125
    %5422 = vmatmul.mubr.bf16.gmra.mrb[0].mxu0 %v5124
    %v5423 = vpop.f32.mrb[0].mxu0
    %v5424 = vadd.f32 0.0, %v5423
    %v5425 = vpop.f32.mrb[0].mxu0
    %v5426 = vadd.f32 0.0, %v5425
    %v5427 = vpop.f32.mrb[0].mxu0
    %v5428 = vadd.f32 0.0, %v5427
    %v5429 = vpop.f32.mrb[0].mxu0
    %v5430 = vadd.f32 0.0, %v5429
    %5431 = vmatprep.mubr.bf16.mxu0 %v5127
    %5432 = vmatmul.mubr.bf16.gmra.mrb[0].mxu0 %v5126
    %v5433 = vpop.f32.mrb[0].mxu0
    %v5434 = vadd.f32 0.0, %v5433
    %v5435 = vpop.f32.mrb[0].mxu0
    %v5436 = vadd.f32 0.0, %v5435
    %v5437 = vpop.f32.mrb[0].mxu0
    %v5438 = vadd.f32 0.0, %v5437
    %v5439 = vpop.f32.mrb[0].mxu0
    %v5440 = vadd.f32 0.0, %v5439
    %5441 = vmatprep.mubr.bf16.mxu0 %v5129
    %5442 = vmatmul.mubr.bf16.gmra.mrb[0].mxu0 %v5128
    %v5443 = vpop.f32.mrb[0].mxu0
    %v5444 = vadd.f32 0.0, %v5443
    %v5445 = vpop.f32.mrb[0].mxu0
    %v5446 = vadd.f32 0.0, %v5445
    %v5447 = vpop.f32.mrb[0].mxu0
    %v5448 = vadd.f32 0.0, %v5447
    %v5449 = vpop.f32.mrb[0].mxu0
    %v5450 = vadd.f32 0.0, %v5449
    %5451 = vmatprep.mubr.bf16.mxu0 %v5131
    %5452 = vmatmul.mubr.bf16.gmra.mrb[0].mxu0 %v5130
    %v5453 = vpop.f32.mrb[0].mxu0
    %v5454 = vadd.f32 0.0, %v5453
    %v5455 = vpop.f32.mrb[0].mxu0
    %v5456 = vadd.f32 0.0, %v5455
    %v5457 = vpop.f32.mrb[0].mxu0
    %v5458 = vadd.f32 0.0, %v5457
    %v5459 = vpop.f32.mrb[0].mxu0
    %v5460 = vadd.f32 0.0, %v5459
    %5461 = vmatprep.mubr.bf16.mxu0 %v5133
    %5462 = vmatmul.mubr.bf16.gmra.mrb[0].mxu0 %v5132
    %v5463 = vpop.f32.mrb[0].mxu0
    %v5464 = vadd.f32 0.0, %v5463
    %v5465 = vpop.f32.mrb[0].mxu0
    %v5466 = vadd.f32 0.0, %v5465
    %v5467 = vpop.f32.mrb[0].mxu0
    %v5468 = vadd.f32 0.0, %v5467
    %v5469 = vpop.f32.mrb[0].mxu0
    %v5470 = vadd.f32 0.0, %v5469
    %5471 = vmatprep.mubr.bf16.mxu0 %v5135
    %5472 = vmatmul.mubr.bf16.gmra.mrb[0].mxu0 %v5134
    %v5473 = vpop.f32.mrb[0].mxu0
    %v5474 = vadd.f32 0.0, %v5473
    %v5475 = vpop.f32.mrb[0].mxu0
    %v5476 = vadd.f32 0.0, %v5475
    %v5477 = vpop.f32.mrb[0].mxu0
    %v5478 = vadd.f32 0.0, %v5477
    %v5479 = vpop.f32.mrb[0].mxu0
    %v5480 = vadd.f32 0.0, %v5479
    %5481 = vmatprep.mubr.bf16.mxu0 %v5137
    %5482 = vmatmul.mubr.bf16.gmra.mrb[0].mxu0 %v5136
    %v5483 = vpop.f32.mrb[0].mxu0
    %v5484 = vadd.f32 0.0, %v5483
    %v5485 = vpop.f32.mrb[0].mxu0
    %v5486 = vadd.f32 0.0, %v5485
    %v5487 = vpop.f32.mrb[0].mxu0
    %v5488 = vadd.f32 0.0, %v5487
    %v5489 = vpop.f32.mrb[0].mxu0
    %v5490 = vadd.f32 0.0, %v5489
    %5491 = vmatprep.mubr.bf16.mxu0 %v5139
    %5492 = vmatmul.mubr.bf16.gmra.mrb[0].mxu0 %v5138
    %v5493 = vpop.f32.mrb[0].mxu0
    %v5494 = vadd.f32 0.0, %v5493
    %v5495 = vpop.f32.mrb[0].mxu0
    %v5496 = vadd.f32 0.0, %v5495
    %v5497 = vpop.f32.mrb[0].mxu0
    %v5498 = vadd.f32 0.0, %v5497
    %v5499 = vpop.f32.mrb[0].mxu0
    %v5500 = vadd.f32 0.0, %v5499
    %5501 = vmatprep.mubr.bf16.mxu0 %v5141
    %5502 = vmatmul.mubr.bf16.gmra.mrb[0].mxu0 %v5140
    %v5503 = vpop.f32.mrb[0].mxu0
    %v5504 = vadd.f32 0.0, %v5503
    %v5505 = vpop.f32.mrb[0].mxu0
    %v5506 = vadd.f32 0.0, %v5505
    %v5507 = vpop.f32.mrb[0].mxu0
    %v5508 = vadd.f32 0.0, %v5507
    %v5509 = vpop.f32.mrb[0].mxu0
    %v5510 = vadd.f32 0.0, %v5509
    %5511 = vmatprep.mubr.bf16.mxu0 %v5143
    %5512 = vmatmul.mubr.bf16.gmra.mrb[0].mxu0 %v5142
    %v5513 = vpop.f32.mrb[0].mxu0
    %v5514 = vadd.f32 0.0, %v5513
    %v5515 = vpop.f32.mrb[0].mxu0
    %v5516 = vadd.f32 0.0, %v5515
    %v5517 = vpop.f32.mrb[0].mxu0
    %v5518 = vadd.f32 0.0, %v5517
    %v5519 = vpop.f32.mrb[0].mxu0
    %v5520 = vadd.f32 0.0, %v5519
    %5521 = vmatprep.mubr.bf16.mxu0 %v5145
    %5522 = vmatmul.mubr.bf16.gmra.mrb[0].mxu0 %v5144
    %v5523 = vpop.f32.mrb[0].mxu0
    %v5524 = vadd.f32 0.0, %v5523
    %v5525 = vpop.f32.mrb[0].mxu0
    %v5526 = vadd.f32 0.0, %v5525
    %v5527 = vpop.f32.mrb[0].mxu0
    %v5528 = vadd.f32 0.0, %v5527
    %v5529 = vpop.f32.mrb[0].mxu0
    %v5530 = vadd.f32 0.0, %v5529
    %5531 = vdwg.mxu0
    %v5532 = vpack.c.bf16 %v5378, %v5374
    %v5533 = vpack.c.bf16 %v5380, %v5376
    %v5534 = vpack.c.bf16 %v5388, %v5384
    %v5535 = vpack.c.bf16 %v5390, %v5386
    %v5536 = vpack.c.bf16 %v5398, %v5394
    %v5537 = vpack.c.bf16 %v5400, %v5396
    %v5538 = vpack.c.bf16 %v5408, %v5404
    %v5539 = vpack.c.bf16 %v5410, %v5406
    %v5540 = vpack.c.bf16 %v5418, %v5414
    %v5541 = vpack.c.bf16 %v5420, %v5416
    %v5542 = vpack.c.bf16 %v5428, %v5424
    %v5543 = vpack.c.bf16 %v5430, %v5426
    %v5544 = vpack.c.bf16 %v5438, %v5434
    %v5545 = vpack.c.bf16 %v5440, %v5436
    %v5546 = vpack.c.bf16 %v5448, %v5444
    %v5547 = vpack.c.bf16 %v5450, %v5446
    %v5548 = vpack.c.bf16 %v5458, %v5454
    %v5549 = vpack.c.bf16 %v5460, %v5456
    %v5550 = vpack.c.bf16 %v5468, %v5464
    %v5551 = vpack.c.bf16 %v5470, %v5466
    %v5552 = vpack.c.bf16 %v5478, %v5474
    %v5553 = vpack.c.bf16 %v5480, %v5476
    %v5554 = vpack.c.bf16 %v5488, %v5484
    %v5555 = vpack.c.bf16 %v5490, %v5486
    %v5556 = vpack.c.bf16 %v5498, %v5494
    %v5557 = vpack.c.bf16 %v5500, %v5496
    %v5558 = vpack.c.bf16 %v5508, %v5504
    %v5559 = vpack.c.bf16 %v5510, %v5506
    %v5560 = vpack.c.bf16 %v5518, %v5514
    %v5561 = vpack.c.bf16 %v5520, %v5516
    %v5562 = vpack.c.bf16 %v5528, %v5524
    %v5563 = vpack.c.bf16 %v5530, %v5526
    %s5564 = scalar_lea.vmem [#allocation8], 18
    %v5565 = vld [vmem:[%s5564] ss:$8 sm:$0x3]
    %v5567 = vlaneseq
    %v5568 = vshrl.u32 %v5567, 7
    %v5569 = vsub.s32 0, %v5568
    %v5570 = vrot.slane %v5565, %v5569
    %v5571 = vlaneseq
    %v5572 = vshrl.u32 %v5571, 7
    %v5573 = vsub.s32 1, %v5572
    %v5574 = vrot.slane %v5565, %v5573
    %5577 = vmatprep.subr.bf16.mxu0 %v5533
    %5578 = vmatpush1.bf16.msra.mxu0 %v5532
    %5579 = vmatprep.subr.bf16.mxu0 %v5535
    %5580 = vmatpush1.bf16.msra.mxu0 %v5534
    %5581 = vmatprep.subr.bf16.mxu0 %v5537
    %5582 = vmatpush1.bf16.msra.mxu0 %v5536
    %5583 = vmatprep.subr.bf16.mxu0 %v5539
    %5584 = vmatpush1.bf16.msra.mxu0 %v5538
    %5585 = vmatprep.subr.bf16.mxu0 %v5541
    %5586 = vmatpush1.bf16.msra.mxu0 %v5540
    %5587 = vmatprep.subr.bf16.mxu0 %v5543
    %5588 = vmatpush1.bf16.msra.mxu0 %v5542
    %5589 = vmatprep.subr.bf16.mxu0 %v5545
    %5590 = vmatpush1.bf16.msra.mxu0 %v5544
    %5591 = vmatprep.subr.bf16.mxu0 %v5547
    %5592 = vmatpush1.bf16.msra.mxu0 %v5546
    %5593 = vmatprep.subr.bf16.mxu0 %v5549
    %5594 = vmatpush1.bf16.msra.mxu0 %v5548
    %5595 = vmatprep.subr.bf16.mxu0 %v5551
    %5596 = vmatpush1.bf16.msra.mxu0 %v5550
    %5597 = vmatprep.subr.bf16.mxu0 %v5553
    %5598 = vmatpush1.bf16.msra.mxu0 %v5552
    %5599 = vmatprep.subr.bf16.mxu0 %v5555
    %5600 = vmatpush1.bf16.msra.mxu0 %v5554
    %5601 = vmatprep.subr.bf16.mxu0 %v5557
    %5602 = vmatpush1.bf16.msra.mxu0 %v5556
    %5603 = vmatprep.subr.bf16.mxu0 %v5559
    %5604 = vmatpush1.bf16.msra.mxu0 %v5558
    %5605 = vmatprep.subr.bf16.mxu0 %v5561
    %5606 = vmatpush1.bf16.msra.mxu0 %v5560
    %5607 = vmatprep.subr.bf16.mxu0 %v5563
    %5608 = vmatpush1.bf16.msra.mxu0 %v5562
    %5609 = vmatprep.mubr.bf16.mxu0 %v1292
    %5610 = vmatmul.mubr.bf16.gmra.mrb[0].mxu0 %v1291
    %v5611 = vpop.f32.mrb[0].mxu0
    %v5612 = vadd.f32 %v5570, %v5611
    %v5613 = vpop.f32.mrb[0].mxu0
    %v5614 = vadd.f32 %v5574, %v5613
    %v5615 = vpop.f32.mrb[0].mxu0
    %v5616 = vadd.f32 %v5570, %v5615
    %v5617 = vpop.f32.mrb[0].mxu0
    %v5618 = vadd.f32 %v5574, %v5617
    %5619 = vmatprep.mubr.bf16.mxu0 %v1294
    %5620 = vmatmul.mubr.bf16.gmra.mrb[0].mxu0 %v1293
    %v5621 = vpop.f32.mrb[0].mxu0
    %v5622 = vadd.f32 %v5570, %v5621
    %v5623 = vpop.f32.mrb[0].mxu0
    %v5624 = vadd.f32 %v5574, %v5623
    %v5625 = vpop.f32.mrb[0].mxu0
    %v5626 = vadd.f32 %v5570, %v5625
    %v5627 = vpop.f32.mrb[0].mxu0
    %v5628 = vadd.f32 %v5574, %v5627
    %5629 = vmatprep.mubr.bf16.mxu0 %v1296
    %5630 = vmatmul.mubr.bf16.gmra.mrb[0].mxu0 %v1295
    %v5631 = vpop.f32.mrb[0].mxu0
    %v5632 = vadd.f32 %v5570, %v5631
    %v5633 = vpop.f32.mrb[0].mxu0
    %v5634 = vadd.f32 %v5574, %v5633
    %v5635 = vpop.f32.mrb[0].mxu0
    %v5636 = vadd.f32 %v5570, %v5635
    %v5637 = vpop.f32.mrb[0].mxu0
    %v5638 = vadd.f32 %v5574, %v5637
    %5639 = vmatprep.mubr.bf16.mxu0 %v1298
    %5640 = vmatmul.mubr.bf16.gmra.mrb[0].mxu0 %v1297
    %v5641 = vpop.f32.mrb[0].mxu0
    %v5642 = vadd.f32 %v5570, %v5641
    %v5643 = vpop.f32.mrb[0].mxu0
    %v5644 = vadd.f32 %v5574, %v5643
    %v5645 = vpop.f32.mrb[0].mxu0
    %v5646 = vadd.f32 %v5570, %v5645
    %v5647 = vpop.f32.mrb[0].mxu0
    %v5648 = vadd.f32 %v5574, %v5647
    %5649 = vmatprep.mubr.bf16.mxu0 %v1300
    %5650 = vmatmul.mubr.bf16.gmra.mrb[0].mxu0 %v1299
    %v5651 = vpop.f32.mrb[0].mxu0
    %v5652 = vadd.f32 %v5570, %v5651
    %v5653 = vpop.f32.mrb[0].mxu0
    %v5654 = vadd.f32 %v5574, %v5653
    %v5655 = vpop.f32.mrb[0].mxu0
    %v5656 = vadd.f32 %v5570, %v5655
    %v5657 = vpop.f32.mrb[0].mxu0
    %v5658 = vadd.f32 %v5574, %v5657
    %5659 = vmatprep.mubr.bf16.mxu0 %v1302
    %5660 = vmatmul.mubr.bf16.gmra.mrb[0].mxu0 %v1301
    %v5661 = vpop.f32.mrb[0].mxu0
    %v5662 = vadd.f32 %v5570, %v5661
    %v5663 = vpop.f32.mrb[0].mxu0
    %v5664 = vadd.f32 %v5574, %v5663
    %v5665 = vpop.f32.mrb[0].mxu0
    %v5666 = vadd.f32 %v5570, %v5665
    %v5667 = vpop.f32.mrb[0].mxu0
    %v5668 = vadd.f32 %v5574, %v5667
    %5669 = vmatprep.mubr.bf16.mxu0 %v1304
    %5670 = vmatmul.mubr.bf16.gmra.mrb[0].mxu0 %v1303
    %v5671 = vpop.f32.mrb[0].mxu0
    %v5672 = vadd.f32 %v5570, %v5671
    %v5673 = vpop.f32.mrb[0].mxu0
    %v5674 = vadd.f32 %v5574, %v5673
    %v5675 = vpop.f32.mrb[0].mxu0
    %v5676 = vadd.f32 %v5570, %v5675
    %v5677 = vpop.f32.mrb[0].mxu0
    %v5678 = vadd.f32 %v5574, %v5677
    %5679 = vmatprep.mubr.bf16.mxu0 %v1306
    %5680 = vmatmul.mubr.bf16.gmra.mrb[0].mxu0 %v1305
    %v5681 = vpop.f32.mrb[0].mxu0
    %v5682 = vadd.f32 %v5570, %v5681
    %v5683 = vpop.f32.mrb[0].mxu0
    %v5684 = vadd.f32 %v5574, %v5683
    %v5685 = vpop.f32.mrb[0].mxu0
    %v5686 = vadd.f32 %v5570, %v5685
    %v5687 = vpop.f32.mrb[0].mxu0
    %v5688 = vadd.f32 %v5574, %v5687
    %5689 = vmatprep.mubr.bf16.mxu0 %v1308
    %5690 = vmatmul.mubr.bf16.gmra.mrb[0].mxu0 %v1307
    %v5691 = vpop.f32.mrb[0].mxu0
    %v5692 = vadd.f32 %v5570, %v5691
    %v5693 = vpop.f32.mrb[0].mxu0
    %v5694 = vadd.f32 %v5574, %v5693
    %v5695 = vpop.f32.mrb[0].mxu0
    %v5696 = vadd.f32 %v5570, %v5695
    %v5697 = vpop.f32.mrb[0].mxu0
    %v5698 = vadd.f32 %v5574, %v5697
    %5699 = vmatprep.mubr.bf16.mxu0 %v1310
    %5700 = vmatmul.mubr.bf16.gmra.mrb[0].mxu0 %v1309
    %v5701 = vpop.f32.mrb[0].mxu0
    %v5702 = vadd.f32 %v5570, %v5701
    %v5703 = vpop.f32.mrb[0].mxu0
    %v5704 = vadd.f32 %v5574, %v5703
    %v5705 = vpop.f32.mrb[0].mxu0
    %v5706 = vadd.f32 %v5570, %v5705
    %v5707 = vpop.f32.mrb[0].mxu0
    %v5708 = vadd.f32 %v5574, %v5707
    %5709 = vmatprep.mubr.bf16.mxu0 %v1312
    %5710 = vmatmul.mubr.bf16.gmra.mrb[0].mxu0 %v1311
    %v5711 = vpop.f32.mrb[0].mxu0
    %v5712 = vadd.f32 %v5570, %v5711
    %v5713 = vpop.f32.mrb[0].mxu0
    %v5714 = vadd.f32 %v5574, %v5713
    %v5715 = vpop.f32.mrb[0].mxu0
    %v5716 = vadd.f32 %v5570, %v5715
    %v5717 = vpop.f32.mrb[0].mxu0
    %v5718 = vadd.f32 %v5574, %v5717
    %5719 = vmatprep.mubr.bf16.mxu0 %v1314
    %5720 = vmatmul.mubr.bf16.gmra.mrb[0].mxu0 %v1313
    %v5721 = vpop.f32.mrb[0].mxu0
    %v5722 = vadd.f32 %v5570, %v5721
    %v5723 = vpop.f32.mrb[0].mxu0
    %v5724 = vadd.f32 %v5574, %v5723
    %v5725 = vpop.f32.mrb[0].mxu0
    %v5726 = vadd.f32 %v5570, %v5725
    %v5727 = vpop.f32.mrb[0].mxu0
    %v5728 = vadd.f32 %v5574, %v5727
    %5729 = vmatprep.mubr.bf16.mxu0 %v1316
    %5730 = vmatmul.mubr.bf16.gmra.mrb[0].mxu0 %v1315
    %v5731 = vpop.f32.mrb[0].mxu0
    %v5732 = vadd.f32 %v5570, %v5731
    %v5733 = vpop.f32.mrb[0].mxu0
    %v5734 = vadd.f32 %v5574, %v5733
    %v5735 = vpop.f32.mrb[0].mxu0
    %v5736 = vadd.f32 %v5570, %v5735
    %v5737 = vpop.f32.mrb[0].mxu0
    %v5738 = vadd.f32 %v5574, %v5737
    %5739 = vmatprep.mubr.bf16.mxu0 %v1318
    %5740 = vmatmul.mubr.bf16.gmra.mrb[0].mxu0 %v1317
    %v5741 = vpop.f32.mrb[0].mxu0
    %v5742 = vadd.f32 %v5570, %v5741
    %v5743 = vpop.f32.mrb[0].mxu0
    %v5744 = vadd.f32 %v5574, %v5743
    %v5745 = vpop.f32.mrb[0].mxu0
    %v5746 = vadd.f32 %v5570, %v5745
    %v5747 = vpop.f32.mrb[0].mxu0
    %v5748 = vadd.f32 %v5574, %v5747
    %5749 = vmatprep.mubr.bf16.mxu0 %v1320
    %5750 = vmatmul.mubr.bf16.gmra.mrb[0].mxu0 %v1319
    %v5751 = vpop.f32.mrb[0].mxu0
    %v5752 = vadd.f32 %v5570, %v5751
    %v5753 = vpop.f32.mrb[0].mxu0
    %v5754 = vadd.f32 %v5574, %v5753
    %v5755 = vpop.f32.mrb[0].mxu0
    %v5756 = vadd.f32 %v5570, %v5755
    %v5757 = vpop.f32.mrb[0].mxu0
    %v5758 = vadd.f32 %v5574, %v5757
    %5759 = vmatprep.mubr.bf16.mxu0 %v1322
    %5760 = vmatmul.mubr.bf16.gmra.mrb[0].mxu0 %v1321
    %v5761 = vpop.f32.mrb[0].mxu0
    %v5762 = vadd.f32 %v5570, %v5761
    %v5763 = vpop.f32.mrb[0].mxu0
    %v5764 = vadd.f32 %v5574, %v5763
    %v5765 = vpop.f32.mrb[0].mxu0
    %v5766 = vadd.f32 %v5570, %v5765
    %v5767 = vpop.f32.mrb[0].mxu0
    %v5768 = vadd.f32 %v5574, %v5767
    %5769 = vdwg.mxu0
    %v5770 = vmul.f32 %v5612, %v1551
    %v5771 = vmul.f32 %v5614, %v1551
    %v5772 = vmul.f32 %v5616, %v1556
    %v5773 = vmul.f32 %v5618, %v1556
    %v5774 = vmul.f32 %v5622, %v1561
    %v5775 = vmul.f32 %v5624, %v1561
    %v5776 = vmul.f32 %v5626, %v1566
    %v5777 = vmul.f32 %v5628, %v1566
    %v5778 = vmul.f32 %v5632, %v1571
    %v5779 = vmul.f32 %v5634, %v1571
    %v5780 = vmul.f32 %v5636, %v1576
    %v5781 = vmul.f32 %v5638, %v1576
    %v5782 = vmul.f32 %v5642, %v1581
    %v5783 = vmul.f32 %v5644, %v1581
    %v5784 = vmul.f32 %v5646, %v1586
    %v5785 = vmul.f32 %v5648, %v1586
    %v5786 = vmul.f32 %v5652, %v1591
    %v5787 = vmul.f32 %v5654, %v1591
    %v5788 = vmul.f32 %v5656, %v1596
    %v5789 = vmul.f32 %v5658, %v1596
    %v5790 = vmul.f32 %v5662, %v1601
    %v5791 = vmul.f32 %v5664, %v1601
    %v5792 = vmul.f32 %v5666, %v1606
    %v5793 = vmul.f32 %v5668, %v1606
    %v5794 = vmul.f32 %v5672, %v1611
    %v5795 = vmul.f32 %v5674, %v1611
    %v5796 = vmul.f32 %v5676, %v1616
    %v5797 = vmul.f32 %v5678, %v1616
    %v5798 = vmul.f32 %v5682, %v1621
    %v5799 = vmul.f32 %v5684, %v1621
    %v5800 = vmul.f32 %v5686, %v1626
    %v5801 = vmul.f32 %v5688, %v1626
    %v5802 = vmul.f32 %v5692, %v1631
    %v5803 = vmul.f32 %v5694, %v1631
    %v5804 = vmul.f32 %v5696, %v1636
    %v5805 = vmul.f32 %v5698, %v1636
    %v5806 = vmul.f32 %v5702, %v1641
    %v5807 = vmul.f32 %v5704, %v1641
    %v5808 = vmul.f32 %v5706, %v1646
    %v5809 = vmul.f32 %v5708, %v1646
    %v5810 = vmul.f32 %v5712, %v1651
    %v5811 = vmul.f32 %v5714, %v1651
    %v5812 = vmul.f32 %v5716, %v1656
    %v5813 = vmul.f32 %v5718, %v1656
    %v5814 = vmul.f32 %v5722, %v1661
    %v5815 = vmul.f32 %v5724, %v1661
    %v5816 = vmul.f32 %v5726, %v1666
    %v5817 = vmul.f32 %v5728, %v1666
    %v5818 = vmul.f32 %v5732, %v1671
    %v5819 = vmul.f32 %v5734, %v1671
    %v5820 = vmul.f32 %v5736, %v1676
    %v5821 = vmul.f32 %v5738, %v1676
    %v5822 = vmul.f32 %v5742, %v1681
    %v5823 = vmul.f32 %v5744, %v1681
    %v5824 = vmul.f32 %v5746, %v1686
    %v5825 = vmul.f32 %v5748, %v1686
    %v5826 = vmul.f32 %v5752, %v1691
    %v5827 = vmul.f32 %v5754, %v1691
    %v5828 = vmul.f32 %v5756, %v1696
    %v5829 = vmul.f32 %v5758, %v1696
    %v5830 = vmul.f32 %v5762, %v1701
    %v5831 = vmul.f32 %v5764, %v1701
    %v5832 = vmul.f32 %v5766, %v1706
    %v5833 = vmul.f32 %v5768, %v1706
    %v5834 = vadd.f32 %v5770, %v5772
    %v5835 = vadd.f32 %v5834, %v5774
    %v5836 = vadd.f32 %v5835, %v5776
    %v5837 = vadd.f32 %v5836, %v5778
    %v5838 = vadd.f32 %v5837, %v5780
    %v5839 = vadd.f32 %v5838, %v5782
    %v5840 = vadd.f32 %v5839, %v5784
    %v5841 = vadd.f32 %v5840, %v5786
    %v5842 = vadd.f32 %v5841, %v5788
    %v5843 = vadd.f32 %v5842, %v5790
    %v5844 = vadd.f32 %v5843, %v5792
    %v5845 = vadd.f32 %v5844, %v5794
    %v5846 = vadd.f32 %v5845, %v5796
    %v5847 = vadd.f32 %v5846, %v5798
    %v5848 = vadd.f32 %v5847, %v5800
    %v5849 = vadd.f32 %v5848, %v5802
    %v5850 = vadd.f32 %v5849, %v5804
    %v5851 = vadd.f32 %v5850, %v5806
    %v5852 = vadd.f32 %v5851, %v5808
    %v5853 = vadd.f32 %v5852, %v5810
    %v5854 = vadd.f32 %v5853, %v5812
    %v5855 = vadd.f32 %v5854, %v5814
    %v5856 = vadd.f32 %v5855, %v5816
    %v5857 = vadd.f32 %v5856, %v5818
    %v5858 = vadd.f32 %v5857, %v5820
    %v5859 = vadd.f32 %v5858, %v5822
    %v5860 = vadd.f32 %v5859, %v5824
    %v5861 = vadd.f32 %v5860, %v5826
    %v5862 = vadd.f32 %v5861, %v5828
    %v5863 = vadd.f32 %v5862, %v5830
    %v5864 = vadd.f32 %v5863, %v5832
    %v5865 = vrot.slane %v5864, 4
    %v5866 = vadd.f32 %v5864, %v5865
    %v5867 = vrot.slane %v5866, 2
    %v5868 = vadd.f32 %v5866, %v5867
    %v5869 = vrot.slane %v5868, 1
    %v5870 = vadd.f32 %v5868, %v5869
    %v5871 = vadd.f32 %v5771, %v5773
    %v5872 = vadd.f32 %v5871, %v5775
    %v5873 = vadd.f32 %v5872, %v5777
    %v5874 = vadd.f32 %v5873, %v5779
    %v5875 = vadd.f32 %v5874, %v5781
    %v5876 = vadd.f32 %v5875, %v5783
    %v5877 = vadd.f32 %v5876, %v5785
    %v5878 = vadd.f32 %v5877, %v5787
    %v5879 = vadd.f32 %v5878, %v5789
    %v5880 = vadd.f32 %v5879, %v5791
    %v5881 = vadd.f32 %v5880, %v5793
    %v5882 = vadd.f32 %v5881, %v5795
    %v5883 = vadd.f32 %v5882, %v5797
    %v5884 = vadd.f32 %v5883, %v5799
    %v5885 = vadd.f32 %v5884, %v5801
    %v5886 = vadd.f32 %v5885, %v5803
    %v5887 = vadd.f32 %v5886, %v5805
    %v5888 = vadd.f32 %v5887, %v5807
    %v5889 = vadd.f32 %v5888, %v5809
    %v5890 = vadd.f32 %v5889, %v5811
    %v5891 = vadd.f32 %v5890, %v5813
    %v5892 = vadd.f32 %v5891, %v5815
    %v5893 = vadd.f32 %v5892, %v5817
    %v5894 = vadd.f32 %v5893, %v5819
    %v5895 = vadd.f32 %v5894, %v5821
    %v5896 = vadd.f32 %v5895, %v5823
    %v5897 = vadd.f32 %v5896, %v5825
    %v5898 = vadd.f32 %v5897, %v5827
    %v5899 = vadd.f32 %v5898, %v5829
    %v5900 = vadd.f32 %v5899, %v5831
    %v5901 = vadd.f32 %v5900, %v5833
    %v5902 = vrot.slane %v5901, 4
    %v5903 = vadd.f32 %v5901, %v5902
    %v5904 = vrot.slane %v5903, 2
    %v5905 = vadd.f32 %v5903, %v5904
    %v5906 = vrot.slane %v5905, 1
    %v5907 = vadd.f32 %v5905, %v5906
    %v5908 = vmul.f32 %v5770, %v5770
    %v5909 = vmul.f32 %v5771, %v5771
    %v5910 = vmul.f32 %v5772, %v5772
    %v5911 = vmul.f32 %v5773, %v5773
    %v5912 = vmul.f32 %v5774, %v5774
    %v5913 = vmul.f32 %v5775, %v5775
    %v5914 = vmul.f32 %v5776, %v5776
    %v5915 = vmul.f32 %v5777, %v5777
    %v5916 = vmul.f32 %v5778, %v5778
    %v5917 = vmul.f32 %v5779, %v5779
    %v5918 = vmul.f32 %v5780, %v5780
    %v5919 = vmul.f32 %v5781, %v5781
    %v5920 = vmul.f32 %v5782, %v5782
    %v5921 = vmul.f32 %v5783, %v5783
    %v5922 = vmul.f32 %v5784, %v5784
    %v5923 = vmul.f32 %v5785, %v5785
    %v5924 = vmul.f32 %v5786, %v5786
    %v5925 = vmul.f32 %v5787, %v5787
    %v5926 = vmul.f32 %v5788, %v5788
    %v5927 = vmul.f32 %v5789, %v5789
    %v5928 = vmul.f32 %v5790, %v5790
    %v5929 = vmul.f32 %v5791, %v5791
    %v5930 = vmul.f32 %v5792, %v5792
    %v5931 = vmul.f32 %v5793, %v5793
    %v5932 = vmul.f32 %v5794, %v5794
    %v5933 = vmul.f32 %v5795, %v5795
    %v5934 = vmul.f32 %v5796, %v5796
    %v5935 = vmul.f32 %v5797, %v5797
    %v5936 = vmul.f32 %v5798, %v5798
    %v5937 = vmul.f32 %v5799, %v5799
    %v5938 = vmul.f32 %v5800, %v5800
    %v5939 = vmul.f32 %v5801, %v5801
    %v5940 = vmul.f32 %v5802, %v5802
    %v5941 = vmul.f32 %v5803, %v5803
    %v5942 = vmul.f32 %v5804, %v5804
    %v5943 = vmul.f32 %v5805, %v5805
    %v5944 = vmul.f32 %v5806, %v5806
    %v5945 = vmul.f32 %v5807, %v5807
    %v5946 = vmul.f32 %v5808, %v5808
    %v5947 = vmul.f32 %v5809, %v5809
    %v5948 = vmul.f32 %v5810, %v5810
    %v5949 = vmul.f32 %v5811, %v5811
    %v5950 = vmul.f32 %v5812, %v5812
    %v5951 = vmul.f32 %v5813, %v5813
    %v5952 = vmul.f32 %v5814, %v5814
    %v5953 = vmul.f32 %v5815, %v5815
    %v5954 = vmul.f32 %v5816, %v5816
    %v5955 = vmul.f32 %v5817, %v5817
    %v5956 = vmul.f32 %v5818, %v5818
    %v5957 = vmul.f32 %v5819, %v5819
    %v5958 = vmul.f32 %v5820, %v5820
    %v5959 = vmul.f32 %v5821, %v5821
    %v5960 = vmul.f32 %v5822, %v5822
    %v5961 = vmul.f32 %v5823, %v5823
    %v5962 = vmul.f32 %v5824, %v5824
    %v5963 = vmul.f32 %v5825, %v5825
    %v5964 = vmul.f32 %v5826, %v5826
    %v5965 = vmul.f32 %v5827, %v5827
    %v5966 = vmul.f32 %v5828, %v5828
    %v5967 = vmul.f32 %v5829, %v5829
    %v5968 = vmul.f32 %v5830, %v5830
    %v5969 = vmul.f32 %v5831, %v5831
    %v5970 = vmul.f32 %v5832, %v5832
    %v5971 = vmul.f32 %v5833, %v5833
    %v5972 = vadd.f32 %v5908, %v5910
    %v5973 = vadd.f32 %v5972, %v5912
    %v5974 = vadd.f32 %v5973, %v5914
    %v5975 = vadd.f32 %v5974, %v5916
    %v5976 = vadd.f32 %v5975, %v5918
    %v5977 = vadd.f32 %v5976, %v5920
    %v5978 = vadd.f32 %v5977, %v5922
    %v5979 = vadd.f32 %v5978, %v5924
    %v5980 = vadd.f32 %v5979, %v5926
    %v5981 = vadd.f32 %v5980, %v5928
    %v5982 = vadd.f32 %v5981, %v5930
    %v5983 = vadd.f32 %v5982, %v5932
    %v5984 = vadd.f32 %v5983, %v5934
    %v5985 = vadd.f32 %v5984, %v5936
    %v5986 = vadd.f32 %v5985, %v5938
    %v5987 = vadd.f32 %v5986, %v5940
    %v5988 = vadd.f32 %v5987, %v5942
    %v5989 = vadd.f32 %v5988, %v5944
    %v5990 = vadd.f32 %v5989, %v5946
    %v5991 = vadd.f32 %v5990, %v5948
    %v5992 = vadd.f32 %v5991, %v5950
    %v5993 = vadd.f32 %v5992, %v5952
    %v5994 = vadd.f32 %v5993, %v5954
    %v5995 = vadd.f32 %v5994, %v5956
    %v5996 = vadd.f32 %v5995, %v5958
    %v5997 = vadd.f32 %v5996, %v5960
    %v5998 = vadd.f32 %v5997, %v5962
    %v5999 = vadd.f32 %v5998, %v5964
    %v6000 = vadd.f32 %v5999, %v5966
    %v6001 = vadd.f32 %v6000, %v5968
    %v6002 = vadd.f32 %v6001, %v5970
    %v6003 = vrot.slane %v6002, 4
    %v6004 = vadd.f32 %v6002, %v6003
    %v6005 = vrot.slane %v6004, 2
    %v6006 = vadd.f32 %v6004, %v6005
    %v6007 = vrot.slane %v6006, 1
    %v6008 = vadd.f32 %v6006, %v6007
    %v6009 = vadd.f32 %v5909, %v5911
    %v6010 = vadd.f32 %v6009, %v5913
    %v6011 = vadd.f32 %v6010, %v5915
    %v6012 = vadd.f32 %v6011, %v5917
    %v6013 = vadd.f32 %v6012, %v5919
    %v6014 = vadd.f32 %v6013, %v5921
    %v6015 = vadd.f32 %v6014, %v5923
    %v6016 = vadd.f32 %v6015, %v5925
    %v6017 = vadd.f32 %v6016, %v5927
    %v6018 = vadd.f32 %v6017, %v5929
    %v6019 = vadd.f32 %v6018, %v5931
    %v6020 = vadd.f32 %v6019, %v5933
    %v6021 = vadd.f32 %v6020, %v5935
    %v6022 = vadd.f32 %v6021, %v5937
    %v6023 = vadd.f32 %v6022, %v5939
    %v6024 = vadd.f32 %v6023, %v5941
    %v6025 = vadd.f32 %v6024, %v5943
    %v6026 = vadd.f32 %v6025, %v5945
    %v6027 = vadd.f32 %v6026, %v5947
    %v6028 = vadd.f32 %v6027, %v5949
    %v6029 = vadd.f32 %v6028, %v5951
    %v6030 = vadd.f32 %v6029, %v5953
    %v6031 = vadd.f32 %v6030, %v5955
    %v6032 = vadd.f32 %v6031, %v5957
    %v6033 = vadd.f32 %v6032, %v5959
    %v6034 = vadd.f32 %v6033, %v5961
    %v6035 = vadd.f32 %v6034, %v5963
    %v6036 = vadd.f32 %v6035, %v5965
    %v6037 = vadd.f32 %v6036, %v5967
    %v6038 = vadd.f32 %v6037, %v5969
    %v6039 = vadd.f32 %v6038, %v5971
    %v6040 = vrot.slane %v6039, 4
    %v6041 = vadd.f32 %v6039, %v6040
    %v6042 = vrot.slane %v6041, 2
    %v6043 = vadd.f32 %v6041, %v6042
    %v6044 = vrot.slane %v6043, 1
    %v6045 = vadd.f32 %v6043, %v6044
    %v6046 = vmul.f32 %v5870, 0.00390625
    %v6047 = vmul.f32 %v5907, 0.00390625
    %v6048 = vmul.f32 %v6008, 0.00390625
    %v6049 = vmul.f32 %v6045, 0.00390625
    %v6050 = vmul.f32 %v6046, %v6046
    %v6051 = vmul.f32 %v6047, %v6047
    %v6052 = vsub.f32 %v6048, %v6050
    %v6053 = vsub.f32 %v6049, %v6051
    %v6054 = vsub.f32 %v5770, %v6046
    %v6055 = vsub.f32 %v5771, %v6047
    %v6056 = vsub.f32 %v5772, %v6046
    %v6057 = vsub.f32 %v5773, %v6047
    %v6058 = vsub.f32 %v5774, %v6046
    %v6059 = vsub.f32 %v5775, %v6047
    %v6060 = vsub.f32 %v5776, %v6046
    %v6061 = vsub.f32 %v5777, %v6047
    %v6062 = vsub.f32 %v5778, %v6046
    %v6063 = vsub.f32 %v5779, %v6047
    %v6064 = vsub.f32 %v5780, %v6046
    %v6065 = vsub.f32 %v5781, %v6047
    %v6066 = vsub.f32 %v5782, %v6046
    %v6067 = vsub.f32 %v5783, %v6047
    %v6068 = vsub.f32 %v5784, %v6046
    %v6069 = vsub.f32 %v5785, %v6047
    %v6070 = vsub.f32 %v5786, %v6046
    %v6071 = vsub.f32 %v5787, %v6047
    %v6072 = vsub.f32 %v5788, %v6046
    %v6073 = vsub.f32 %v5789, %v6047
    %v6074 = vsub.f32 %v5790, %v6046
    %v6075 = vsub.f32 %v5791, %v6047
    %v6076 = vsub.f32 %v5792, %v6046
    %v6077 = vsub.f32 %v5793, %v6047
    %v6078 = vsub.f32 %v5794, %v6046
    %v6079 = vsub.f32 %v5795, %v6047
    %v6080 = vsub.f32 %v5796, %v6046
    %v6081 = vsub.f32 %v5797, %v6047
    %v6082 = vsub.f32 %v5798, %v6046
    %v6083 = vsub.f32 %v5799, %v6047
    %v6084 = vsub.f32 %v5800, %v6046
    %v6085 = vsub.f32 %v5801, %v6047
    %v6086 = vsub.f32 %v5802, %v6046
    %v6087 = vsub.f32 %v5803, %v6047
    %v6088 = vsub.f32 %v5804, %v6046
    %v6089 = vsub.f32 %v5805, %v6047
    %v6090 = vsub.f32 %v5806, %v6046
    %v6091 = vsub.f32 %v5807, %v6047
    %v6092 = vsub.f32 %v5808, %v6046
    %v6093 = vsub.f32 %v5809, %v6047
    %v6094 = vsub.f32 %v5810, %v6046
    %v6095 = vsub.f32 %v5811, %v6047
    %v6096 = vsub.f32 %v5812, %v6046
    %v6097 = vsub.f32 %v5813, %v6047
    %v6098 = vsub.f32 %v5814, %v6046
    %v6099 = vsub.f32 %v5815, %v6047
    %v6100 = vsub.f32 %v5816, %v6046
    %v6101 = vsub.f32 %v5817, %v6047
    %v6102 = vsub.f32 %v5818, %v6046
    %v6103 = vsub.f32 %v5819, %v6047
    %v6104 = vsub.f32 %v5820, %v6046
    %v6105 = vsub.f32 %v5821, %v6047
    %v6106 = vsub.f32 %v5822, %v6046
    %v6107 = vsub.f32 %v5823, %v6047
    %v6108 = vsub.f32 %v5824, %v6046
    %v6109 = vsub.f32 %v5825, %v6047
    %v6110 = vsub.f32 %v5826, %v6046
    %v6111 = vsub.f32 %v5827, %v6047
    %v6112 = vsub.f32 %v5828, %v6046
    %v6113 = vsub.f32 %v5829, %v6047
    %v6114 = vsub.f32 %v5830, %v6046
    %v6115 = vsub.f32 %v5831, %v6047
    %v6116 = vsub.f32 %v5832, %v6046
    %v6117 = vsub.f32 %v5833, %v6047
    %v6118 = vadd.f32 %v6052, 1e-05
    %v6119 = vadd.f32 %v6053, 1e-05
    %v6120 = vrsqrt.pop %v6118
    %v6121 = vrsqrt.pop %v6119
    %v6122 = vmul.f32 %v6054, %v6120
    %v6123 = vmul.f32 %v6055, %v6121
    %v6124 = vmul.f32 %v6056, %v6120
    %v6125 = vmul.f32 %v6057, %v6121
    %v6126 = vmul.f32 %v6058, %v6120
    %v6127 = vmul.f32 %v6059, %v6121
    %v6128 = vmul.f32 %v6060, %v6120
    %v6129 = vmul.f32 %v6061, %v6121
    %v6130 = vmul.f32 %v6062, %v6120
    %v6131 = vmul.f32 %v6063, %v6121
    %v6132 = vmul.f32 %v6064, %v6120
    %v6133 = vmul.f32 %v6065, %v6121
    %v6134 = vmul.f32 %v6066, %v6120
    %v6135 = vmul.f32 %v6067, %v6121
    %v6136 = vmul.f32 %v6068, %v6120
    %v6137 = vmul.f32 %v6069, %v6121
    %v6138 = vmul.f32 %v6070, %v6120
    %v6139 = vmul.f32 %v6071, %v6121
    %v6140 = vmul.f32 %v6072, %v6120
    %v6141 = vmul.f32 %v6073, %v6121
    %v6142 = vmul.f32 %v6074, %v6120
    %v6143 = vmul.f32 %v6075, %v6121
    %v6144 = vmul.f32 %v6076, %v6120
    %v6145 = vmul.f32 %v6077, %v6121
    %v6146 = vmul.f32 %v6078, %v6120
    %v6147 = vmul.f32 %v6079, %v6121
    %v6148 = vmul.f32 %v6080, %v6120
    %v6149 = vmul.f32 %v6081, %v6121
    %v6150 = vmul.f32 %v6082, %v6120
    %v6151 = vmul.f32 %v6083, %v6121
    %v6152 = vmul.f32 %v6084, %v6120
    %v6153 = vmul.f32 %v6085, %v6121
    %v6154 = vmul.f32 %v6086, %v6120
    %v6155 = vmul.f32 %v6087, %v6121
    %v6156 = vmul.f32 %v6088, %v6120
    %v6157 = vmul.f32 %v6089, %v6121
    %v6158 = vmul.f32 %v6090, %v6120
    %v6159 = vmul.f32 %v6091, %v6121
    %v6160 = vmul.f32 %v6092, %v6120
    %v6161 = vmul.f32 %v6093, %v6121
    %v6162 = vmul.f32 %v6094, %v6120
    %v6163 = vmul.f32 %v6095, %v6121
    %v6164 = vmul.f32 %v6096, %v6120
    %v6165 = vmul.f32 %v6097, %v6121
    %v6166 = vmul.f32 %v6098, %v6120
    %v6167 = vmul.f32 %v6099, %v6121
    %v6168 = vmul.f32 %v6100, %v6120
    %v6169 = vmul.f32 %v6101, %v6121
    %v6170 = vmul.f32 %v6102, %v6120
    %v6171 = vmul.f32 %v6103, %v6121
    %v6172 = vmul.f32 %v6104, %v6120
    %v6173 = vmul.f32 %v6105, %v6121
    %v6174 = vmul.f32 %v6106, %v6120
    %v6175 = vmul.f32 %v6107, %v6121
    %v6176 = vmul.f32 %v6108, %v6120
    %v6177 = vmul.f32 %v6109, %v6121
    %v6178 = vmul.f32 %v6110, %v6120
    %v6179 = vmul.f32 %v6111, %v6121
    %v6180 = vmul.f32 %v6112, %v6120
    %v6181 = vmul.f32 %v6113, %v6121
    %v6182 = vmul.f32 %v6114, %v6120
    %v6183 = vmul.f32 %v6115, %v6121
    %v6184 = vmul.f32 %v6116, %v6120
    %v6185 = vmul.f32 %v6117, %v6121
    %s6186 = scalar_lea.vmem [#allocation8], 19
    %v6187 = vld [vmem:[%s6186] ss:$8 sm:$0x3]
    %v6189 = vlaneseq
    %v6190 = vshrl.u32 %v6189, 7
    %v6191 = vsub.s32 0, %v6190
    %v6192 = vrot.slane %v6187, %v6191
    %v6193 = vlaneseq
    %v6194 = vshrl.u32 %v6193, 7
    %v6195 = vsub.s32 1, %v6194
    %v6196 = vrot.slane %v6187, %v6195
    %v6199 = vmul.f32 %v6122, %v6192
    %v6200 = vmul.f32 %v6123, %v6196
    %v6201 = vmul.f32 %v6124, %v6192
    %v6202 = vmul.f32 %v6125, %v6196
    %v6203 = vmul.f32 %v6126, %v6192
    %v6204 = vmul.f32 %v6127, %v6196
    %v6205 = vmul.f32 %v6128, %v6192
    %v6206 = vmul.f32 %v6129, %v6196
    %v6207 = vmul.f32 %v6130, %v6192
    %v6208 = vmul.f32 %v6131, %v6196
    %v6209 = vmul.f32 %v6132, %v6192
    %v6210 = vmul.f32 %v6133, %v6196
    %v6211 = vmul.f32 %v6134, %v6192
    %v6212 = vmul.f32 %v6135, %v6196
    %v6213 = vmul.f32 %v6136, %v6192
    %v6214 = vmul.f32 %v6137, %v6196
    %v6215 = vmul.f32 %v6138, %v6192
    %v6216 = vmul.f32 %v6139, %v6196
    %v6217 = vmul.f32 %v6140, %v6192
    %v6218 = vmul.f32 %v6141, %v6196
    %v6219 = vmul.f32 %v6142, %v6192
    %v6220 = vmul.f32 %v6143, %v6196
    %v6221 = vmul.f32 %v6144, %v6192
    %v6222 = vmul.f32 %v6145, %v6196
    %v6223 = vmul.f32 %v6146, %v6192
    %v6224 = vmul.f32 %v6147, %v6196
    %v6225 = vmul.f32 %v6148, %v6192
    %v6226 = vmul.f32 %v6149, %v6196
    %v6227 = vmul.f32 %v6150, %v6192
    %v6228 = vmul.f32 %v6151, %v6196
    %v6229 = vmul.f32 %v6152, %v6192
    %v6230 = vmul.f32 %v6153, %v6196
    %v6231 = vmul.f32 %v6154, %v6192
    %v6232 = vmul.f32 %v6155, %v6196
    %v6233 = vmul.f32 %v6156, %v6192
    %v6234 = vmul.f32 %v6157, %v6196
    %v6235 = vmul.f32 %v6158, %v6192
    %v6236 = vmul.f32 %v6159, %v6196
    %v6237 = vmul.f32 %v6160, %v6192
    %v6238 = vmul.f32 %v6161, %v6196
    %v6239 = vmul.f32 %v6162, %v6192
    %v6240 = vmul.f32 %v6163, %v6196
    %v6241 = vmul.f32 %v6164, %v6192
    %v6242 = vmul.f32 %v6165, %v6196
    %v6243 = vmul.f32 %v6166, %v6192
    %v6244 = vmul.f32 %v6167, %v6196
    %v6245 = vmul.f32 %v6168, %v6192
    %v6246 = vmul.f32 %v6169, %v6196
    %v6247 = vmul.f32 %v6170, %v6192
    %v6248 = vmul.f32 %v6171, %v6196
    %v6249 = vmul.f32 %v6172, %v6192
    %v6250 = vmul.f32 %v6173, %v6196
    %v6251 = vmul.f32 %v6174, %v6192
    %v6252 = vmul.f32 %v6175, %v6196
    %v6253 = vmul.f32 %v6176, %v6192
    %v6254 = vmul.f32 %v6177, %v6196
    %v6255 = vmul.f32 %v6178, %v6192
    %v6256 = vmul.f32 %v6179, %v6196
    %v6257 = vmul.f32 %v6180, %v6192
    %v6258 = vmul.f32 %v6181, %v6196
    %v6259 = vmul.f32 %v6182, %v6192
    %v6260 = vmul.f32 %v6183, %v6196
    %v6261 = vmul.f32 %v6184, %v6192
    %v6262 = vmul.f32 %v6185, %v6196
    %s6263 = scalar_lea.vmem [#allocation8], 20
    %v6264 = vld [vmem:[%s6263] ss:$8 sm:$0x3]
    %v6266 = vlaneseq
    %v6267 = vshrl.u32 %v6266, 7
    %v6268 = vsub.s32 0, %v6267
    %v6269 = vrot.slane %v6264, %v6268
    %v6270 = vlaneseq
    %v6271 = vshrl.u32 %v6270, 7
    %v6272 = vsub.s32 1, %v6271
    %v6273 = vrot.slane %v6264, %v6272
    %v6276 = vadd.f32 %v6199, %v6269
    %v6277 = vadd.f32 %v6200, %v6273
    %v6278 = vadd.f32 %v6201, %v6269
    %v6279 = vadd.f32 %v6202, %v6273
    %v6280 = vadd.f32 %v6203, %v6269
    %v6281 = vadd.f32 %v6204, %v6273
    %v6282 = vadd.f32 %v6205, %v6269
    %v6283 = vadd.f32 %v6206, %v6273
    %v6284 = vadd.f32 %v6207, %v6269
    %v6285 = vadd.f32 %v6208, %v6273
    %v6286 = vadd.f32 %v6209, %v6269
    %v6287 = vadd.f32 %v6210, %v6273
    %v6288 = vadd.f32 %v6211, %v6269
    %v6289 = vadd.f32 %v6212, %v6273
    %v6290 = vadd.f32 %v6213, %v6269
    %v6291 = vadd.f32 %v6214, %v6273
    %v6292 = vadd.f32 %v6215, %v6269
    %v6293 = vadd.f32 %v6216, %v6273
    %v6294 = vadd.f32 %v6217, %v6269
    %v6295 = vadd.f32 %v6218, %v6273
    %v6296 = vadd.f32 %v6219, %v6269
    %v6297 = vadd.f32 %v6220, %v6273
    %v6298 = vadd.f32 %v6221, %v6269
    %v6299 = vadd.f32 %v6222, %v6273
    %v6300 = vadd.f32 %v6223, %v6269
    %v6301 = vadd.f32 %v6224, %v6273
    %v6302 = vadd.f32 %v6225, %v6269
    %v6303 = vadd.f32 %v6226, %v6273
    %v6304 = vadd.f32 %v6227, %v6269
    %v6305 = vadd.f32 %v6228, %v6273
    %v6306 = vadd.f32 %v6229, %v6269
    %v6307 = vadd.f32 %v6230, %v6273
    %v6308 = vadd.f32 %v6231, %v6269
    %v6309 = vadd.f32 %v6232, %v6273
    %v6310 = vadd.f32 %v6233, %v6269
    %v6311 = vadd.f32 %v6234, %v6273
    %v6312 = vadd.f32 %v6235, %v6269
    %v6313 = vadd.f32 %v6236, %v6273
    %v6314 = vadd.f32 %v6237, %v6269
    %v6315 = vadd.f32 %v6238, %v6273
    %v6316 = vadd.f32 %v6239, %v6269
    %v6317 = vadd.f32 %v6240, %v6273
    %v6318 = vadd.f32 %v6241, %v6269
    %v6319 = vadd.f32 %v6242, %v6273
    %v6320 = vadd.f32 %v6243, %v6269
    %v6321 = vadd.f32 %v6244, %v6273
    %v6322 = vadd.f32 %v6245, %v6269
    %v6323 = vadd.f32 %v6246, %v6273
    %v6324 = vadd.f32 %v6247, %v6269
    %v6325 = vadd.f32 %v6248, %v6273
    %v6326 = vadd.f32 %v6249, %v6269
    %v6327 = vadd.f32 %v6250, %v6273
    %v6328 = vadd.f32 %v6251, %v6269
    %v6329 = vadd.f32 %v6252, %v6273
    %v6330 = vadd.f32 %v6253, %v6269
    %v6331 = vadd.f32 %v6254, %v6273
    %v6332 = vadd.f32 %v6255, %v6269
    %v6333 = vadd.f32 %v6256, %v6273
    %v6334 = vadd.f32 %v6257, %v6269
    %v6335 = vadd.f32 %v6258, %v6273
    %v6336 = vadd.f32 %v6259, %v6269
    %v6337 = vadd.f32 %v6260, %v6273
    %v6338 = vadd.f32 %v6261, %v6269
    %v6339 = vadd.f32 %v6262, %v6273
    %v6340 = vmax.f32 %v6276, 0.0
    %v6341 = vmax.f32 %v6277, 0.0
    %v6342 = vmax.f32 %v6278, 0.0
    %v6343 = vmax.f32 %v6279, 0.0
    %v6344 = vmax.f32 %v6280, 0.0
    %v6345 = vmax.f32 %v6281, 0.0
    %v6346 = vmax.f32 %v6282, 0.0
    %v6347 = vmax.f32 %v6283, 0.0
    %v6348 = vmax.f32 %v6284, 0.0
    %v6349 = vmax.f32 %v6285, 0.0
    %v6350 = vmax.f32 %v6286, 0.0
    %v6351 = vmax.f32 %v6287, 0.0
    %v6352 = vmax.f32 %v6288, 0.0
    %v6353 = vmax.f32 %v6289, 0.0
    %v6354 = vmax.f32 %v6290, 0.0
    %v6355 = vmax.f32 %v6291, 0.0
    %v6356 = vmax.f32 %v6292, 0.0
    %v6357 = vmax.f32 %v6293, 0.0
    %v6358 = vmax.f32 %v6294, 0.0
    %v6359 = vmax.f32 %v6295, 0.0
    %v6360 = vmax.f32 %v6296, 0.0
    %v6361 = vmax.f32 %v6297, 0.0
    %v6362 = vmax.f32 %v6298, 0.0
    %v6363 = vmax.f32 %v6299, 0.0
    %v6364 = vmax.f32 %v6300, 0.0
    %v6365 = vmax.f32 %v6301, 0.0
    %v6366 = vmax.f32 %v6302, 0.0
    %v6367 = vmax.f32 %v6303, 0.0
    %v6368 = vmax.f32 %v6304, 0.0
    %v6369 = vmax.f32 %v6305, 0.0
    %v6370 = vmax.f32 %v6306, 0.0
    %v6371 = vmax.f32 %v6307, 0.0
    %v6372 = vmax.f32 %v6308, 0.0
    %v6373 = vmax.f32 %v6309, 0.0
    %v6374 = vmax.f32 %v6310, 0.0
    %v6375 = vmax.f32 %v6311, 0.0
    %v6376 = vmax.f32 %v6312, 0.0
    %v6377 = vmax.f32 %v6313, 0.0
    %v6378 = vmax.f32 %v6314, 0.0
    %v6379 = vmax.f32 %v6315, 0.0
    %v6380 = vmax.f32 %v6316, 0.0
    %v6381 = vmax.f32 %v6317, 0.0
    %v6382 = vmax.f32 %v6318, 0.0
    %v6383 = vmax.f32 %v6319, 0.0
    %v6384 = vmax.f32 %v6320, 0.0
    %v6385 = vmax.f32 %v6321, 0.0
    %v6386 = vmax.f32 %v6322, 0.0
    %v6387 = vmax.f32 %v6323, 0.0
    %v6388 = vmax.f32 %v6324, 0.0
    %v6389 = vmax.f32 %v6325, 0.0
    %v6390 = vmax.f32 %v6326, 0.0
    %v6391 = vmax.f32 %v6327, 0.0
    %v6392 = vmax.f32 %v6328, 0.0
    %v6393 = vmax.f32 %v6329, 0.0
    %v6394 = vmax.f32 %v6330, 0.0
    %v6395 = vmax.f32 %v6331, 0.0
    %v6396 = vmax.f32 %v6332, 0.0
    %v6397 = vmax.f32 %v6333, 0.0
    %v6398 = vmax.f32 %v6334, 0.0
    %v6399 = vmax.f32 %v6335, 0.0
    %v6400 = vmax.f32 %v6336, 0.0
    %v6401 = vmax.f32 %v6337, 0.0
    %v6402 = vmax.f32 %v6338, 0.0
    %v6403 = vmax.f32 %v6339, 0.0
    %v6404 = vadd.f32 %v5050, %v6340
    %v6405 = vadd.f32 %v5051, %v6341
    %v6406 = vadd.f32 %v5052, %v6342
    %v6407 = vadd.f32 %v5053, %v6343
    %v6408 = vadd.f32 %v5054, %v6344
    %v6409 = vadd.f32 %v5055, %v6345
    %v6410 = vadd.f32 %v5056, %v6346
    %v6411 = vadd.f32 %v5057, %v6347
    %v6412 = vadd.f32 %v5058, %v6348
    %v6413 = vadd.f32 %v5059, %v6349
    %v6414 = vadd.f32 %v5060, %v6350
    %v6415 = vadd.f32 %v5061, %v6351
    %v6416 = vadd.f32 %v5062, %v6352
    %v6417 = vadd.f32 %v5063, %v6353
    %v6418 = vadd.f32 %v5064, %v6354
    %v6419 = vadd.f32 %v5065, %v6355
    %v6420 = vadd.f32 %v5066, %v6356
    %v6421 = vadd.f32 %v5067, %v6357
    %v6422 = vadd.f32 %v5068, %v6358
    %v6423 = vadd.f32 %v5069, %v6359
    %v6424 = vadd.f32 %v5070, %v6360
    %v6425 = vadd.f32 %v5071, %v6361
    %v6426 = vadd.f32 %v5072, %v6362
    %v6427 = vadd.f32 %v5073, %v6363
    %v6428 = vadd.f32 %v5074, %v6364
    %v6429 = vadd.f32 %v5075, %v6365
    %v6430 = vadd.f32 %v5076, %v6366
    %v6431 = vadd.f32 %v5077, %v6367
    %v6432 = vadd.f32 %v5078, %v6368
    %v6433 = vadd.f32 %v5079, %v6369
    %v6434 = vadd.f32 %v5080, %v6370
    %v6435 = vadd.f32 %v5081, %v6371
    %v6436 = vadd.f32 %v5082, %v6372
    %v6437 = vadd.f32 %v5083, %v6373
    %v6438 = vadd.f32 %v5084, %v6374
    %v6439 = vadd.f32 %v5085, %v6375
    %v6440 = vadd.f32 %v5086, %v6376
    %v6441 = vadd.f32 %v5087, %v6377
    %v6442 = vadd.f32 %v5088, %v6378
    %v6443 = vadd.f32 %v5089, %v6379
    %v6444 = vadd.f32 %v5090, %v6380
    %v6445 = vadd.f32 %v5091, %v6381
    %v6446 = vadd.f32 %v5092, %v6382
    %v6447 = vadd.f32 %v5093, %v6383
    %v6448 = vadd.f32 %v5094, %v6384
    %v6449 = vadd.f32 %v5095, %v6385
    %v6450 = vadd.f32 %v5096, %v6386
    %v6451 = vadd.f32 %v5097, %v6387
    %v6452 = vadd.f32 %v5098, %v6388
    %v6453 = vadd.f32 %v5099, %v6389
    %v6454 = vadd.f32 %v5100, %v6390
    %v6455 = vadd.f32 %v5101, %v6391
    %v6456 = vadd.f32 %v5102, %v6392
    %v6457 = vadd.f32 %v5103, %v6393
    %v6458 = vadd.f32 %v5104, %v6394
    %v6459 = vadd.f32 %v5105, %v6395
    %v6460 = vadd.f32 %v5106, %v6396
    %v6461 = vadd.f32 %v5107, %v6397
    %v6462 = vadd.f32 %v5108, %v6398
    %v6463 = vadd.f32 %v5109, %v6399
    %v6464 = vadd.f32 %v5110, %v6400
    %v6465 = vadd.f32 %v5111, %v6401
    %v6466 = vadd.f32 %v5112, %v6402
    %v6467 = vadd.f32 %v5113, %v6403
    %v6468 = vld [vmem:[#allocation5] sm:$0xff]
    %v6469 = vld [vmem:[#allocation5 + $0x8] sm:$0xff]
    %v6470 = vpack.c.bf16 %v6406, %v6404
    %v6471 = vpack.c.bf16 %v6407, %v6405
    %v6472 = vpack.c.bf16 %v6410, %v6408
    %v6473 = vpack.c.bf16 %v6411, %v6409
    %v6474 = vpack.c.bf16 %v6414, %v6412
    %v6475 = vpack.c.bf16 %v6415, %v6413
    %v6476 = vpack.c.bf16 %v6418, %v6416
    %v6477 = vpack.c.bf16 %v6419, %v6417
    %v6478 = vpack.c.bf16 %v6422, %v6420
    %v6479 = vpack.c.bf16 %v6423, %v6421
    %v6480 = vpack.c.bf16 %v6426, %v6424
    %v6481 = vpack.c.bf16 %v6427, %v6425
    %v6482 = vpack.c.bf16 %v6430, %v6428
    %v6483 = vpack.c.bf16 %v6431, %v6429
    %v6484 = vpack.c.bf16 %v6434, %v6432
    %v6485 = vpack.c.bf16 %v6435, %v6433
    %v6486 = vpack.c.bf16 %v6438, %v6436
    %v6487 = vpack.c.bf16 %v6439, %v6437
    %v6488 = vpack.c.bf16 %v6442, %v6440
    %v6489 = vpack.c.bf16 %v6443, %v6441
    %v6490 = vpack.c.bf16 %v6446, %v6444
    %v6491 = vpack.c.bf16 %v6447, %v6445
    %v6492 = vpack.c.bf16 %v6450, %v6448
    %v6493 = vpack.c.bf16 %v6451, %v6449
    %v6494 = vpack.c.bf16 %v6454, %v6452
    %v6495 = vpack.c.bf16 %v6455, %v6453
    %v6496 = vpack.c.bf16 %v6458, %v6456
    %v6497 = vpack.c.bf16 %v6459, %v6457
    %v6498 = vpack.c.bf16 %v6462, %v6460
    %v6499 = vpack.c.bf16 %v6463, %v6461
    %v6500 = vpack.c.bf16 %v6466, %v6464
    %v6501 = vpack.c.bf16 %v6467, %v6465
    %v6504 = vunpack.c.l.b16 %v6468
    %v6505 = vunpack.c.h.b16 %v6468
    %v6506 = vunpack.c.l.b16 %v6469
    %v6507 = vunpack.c.h.b16 %v6469
    %v6508 = vpack.c.b16 %v6506, %v6504
    %v6509 = vpack.c.b16 %v6507, %v6505
    %6512 = vmatprep.subr.bf16.mxu0 %v6471
    %6513 = vmatpush1.bf16.msra.mxu0 %v6470
    %6514 = vmatprep.subr.bf16.mxu0 %v6473
    %6515 = vmatpush1.bf16.msra.mxu0 %v6472
    %6516 = vmatprep.subr.bf16.mxu0 %v6475
    %6517 = vmatpush1.bf16.msra.mxu0 %v6474
    %6518 = vmatprep.subr.bf16.mxu0 %v6477
    %6519 = vmatpush1.bf16.msra.mxu0 %v6476
    %6520 = vmatprep.subr.bf16.mxu0 %v6479
    %6521 = vmatpush1.bf16.msra.mxu0 %v6478
    %6522 = vmatprep.subr.bf16.mxu0 %v6481
    %6523 = vmatpush1.bf16.msra.mxu0 %v6480
    %6524 = vmatprep.subr.bf16.mxu0 %v6483
    %6525 = vmatpush1.bf16.msra.mxu0 %v6482
    %6526 = vmatprep.subr.bf16.mxu0 %v6485
    %6527 = vmatpush1.bf16.msra.mxu0 %v6484
    %6528 = vmatprep.subr.bf16.mxu0 %v6487
    %6529 = vmatpush1.bf16.msra.mxu0 %v6486
    %6530 = vmatprep.subr.bf16.mxu0 %v6489
    %6531 = vmatpush1.bf16.msra.mxu0 %v6488
    %6532 = vmatprep.subr.bf16.mxu0 %v6491
    %6533 = vmatpush1.bf16.msra.mxu0 %v6490
    %6534 = vmatprep.subr.bf16.mxu0 %v6493
    %6535 = vmatpush1.bf16.msra.mxu0 %v6492
    %6536 = vmatprep.subr.bf16.mxu0 %v6495
    %6537 = vmatpush1.bf16.msra.mxu0 %v6494
    %6538 = vmatprep.subr.bf16.mxu0 %v6497
    %6539 = vmatpush1.bf16.msra.mxu0 %v6496
    %6540 = vmatprep.subr.bf16.mxu0 %v6499
    %6541 = vmatpush1.bf16.msra.mxu0 %v6498
    %6542 = vmatprep.subr.bf16.mxu0 %v6501
    %6543 = vmatpush1.bf16.msra.mxu0 %v6500
    %6544 = vmatprep.mubr.bf16.mxu0 %v6509
    %6545 = vmatmul.mubr.bf16.gmra.mrb[0].mxu0 %v6508
    %v6546 = vpop.f32.mrb[0].mxu0
    %v6547 = vadd.f32 0.0, %v6546
    %v6548 = vpop.f32.mrb[0].mxu0
    %v6549 = vadd.f32 0.0, %v6548
    %v6550 = vpop.f32.mrb[0].mxu0
    %v6551 = vadd.f32 0.0, %v6550
    %v6552 = vpop.f32.mrb[0].mxu0
    %v6553 = vadd.f32 0.0, %v6552
    %6554 = vdwg.mxu0
    %v6555 = vpack.c.bf16 %v6551, %v6547
    %v6556 = vpack.c.bf16 %v6553, %v6549
    %s6557 = scalar_lea.vmem [#allocation7], 1280
    %v6558 = vld [vmem:[%s6557] sm:$0xff]
    %v6559 = vld [vmem:[%s6557 + $0x8] sm:$0xff]
    %v6560 = vld [vmem:[%s6557 + $0x10] sm:$0xff]
    %v6561 = vld [vmem:[%s6557 + $0x18] sm:$0xff]
    %v6562 = vld [vmem:[%s6557 + $0x20] sm:$0xff]
    %v6563 = vld [vmem:[%s6557 + $0x28] sm:$0xff]
    %v6564 = vld [vmem:[%s6557 + $0x30] sm:$0xff]
    %v6565 = vld [vmem:[%s6557 + $0x38] sm:$0xff]
    %v6566 = vld [vmem:[%s6557 + $0x40] sm:$0xff]
    %v6567 = vld [vmem:[%s6557 + $0x48] sm:$0xff]
    %v6568 = vld [vmem:[%s6557 + $0x50] sm:$0xff]
    %v6569 = vld [vmem:[%s6557 + $0x58] sm:$0xff]
    %v6570 = vld [vmem:[%s6557 + $0x60] sm:$0xff]
    %v6571 = vld [vmem:[%s6557 + $0x68] sm:$0xff]
    %v6572 = vld [vmem:[%s6557 + $0x70] sm:$0xff]
    %v6573 = vld [vmem:[%s6557 + $0x78] sm:$0xff]
    %v6574 = vld [vmem:[%s6557 + $0x80] sm:$0xff]
    %v6575 = vld [vmem:[%s6557 + $0x88] sm:$0xff]
    %v6576 = vld [vmem:[%s6557 + $0x90] sm:$0xff]
    %v6577 = vld [vmem:[%s6557 + $0x98] sm:$0xff]
    %v6578 = vld [vmem:[%s6557 + $0xa0] sm:$0xff]
    %v6579 = vld [vmem:[%s6557 + $0xa8] sm:$0xff]
    %v6580 = vld [vmem:[%s6557 + $0xb0] sm:$0xff]
    %v6581 = vld [vmem:[%s6557 + $0xb8] sm:$0xff]
    %v6582 = vld [vmem:[%s6557 + $0xc0] sm:$0xff]
    %v6583 = vld [vmem:[%s6557 + $0xc8] sm:$0xff]
    %v6584 = vld [vmem:[%s6557 + $0xd0] sm:$0xff]
    %v6585 = vld [vmem:[%s6557 + $0xd8] sm:$0xff]
    %v6586 = vld [vmem:[%s6557 + $0xe0] sm:$0xff]
    %v6587 = vld [vmem:[%s6557 + $0xe8] sm:$0xff]
    %v6588 = vld [vmem:[%s6557 + $0xf0] sm:$0xff]
    %v6589 = vld [vmem:[%s6557 + $0xf8] sm:$0xff]
    %s6590 = scalar_lea.vmem [#allocation8], 21
    %v6591 = vld [vmem:[%s6590] ss:$8 sm:$0x3]
    %v6593 = vlaneseq
    %v6594 = vshrl.u32 %v6593, 7
    %v6595 = vsub.s32 0, %v6594
    %v6596 = vrot.slane %v6591, %v6595
    %v6597 = vlaneseq
    %v6598 = vshrl.u32 %v6597, 7
    %v6599 = vsub.s32 1, %v6598
    %v6600 = vrot.slane %v6591, %v6599
    %v6635 = vunpack.c.l.b16 %v6558
    %v6636 = vunpack.c.h.b16 %v6558
    %v6637 = vunpack.c.l.b16 %v6559
    %v6638 = vunpack.c.h.b16 %v6559
    %v6639 = vunpack.c.l.b16 %v6560
    %v6640 = vunpack.c.h.b16 %v6560
    %v6641 = vunpack.c.l.b16 %v6561
    %v6642 = vunpack.c.h.b16 %v6561
    %v6643 = vunpack.c.l.b16 %v6562
    %v6644 = vunpack.c.h.b16 %v6562
    %v6645 = vunpack.c.l.b16 %v6563
    %v6646 = vunpack.c.h.b16 %v6563
    %v6647 = vunpack.c.l.b16 %v6564
    %v6648 = vunpack.c.h.b16 %v6564
    %v6649 = vunpack.c.l.b16 %v6565
    %v6650 = vunpack.c.h.b16 %v6565
    %v6651 = vunpack.c.l.b16 %v6566
    %v6652 = vunpack.c.h.b16 %v6566
    %v6653 = vunpack.c.l.b16 %v6567
    %v6654 = vunpack.c.h.b16 %v6567
    %v6655 = vunpack.c.l.b16 %v6568
    %v6656 = vunpack.c.h.b16 %v6568
    %v6657 = vunpack.c.l.b16 %v6569
    %v6658 = vunpack.c.h.b16 %v6569
    %v6659 = vunpack.c.l.b16 %v6570
    %v6660 = vunpack.c.h.b16 %v6570
    %v6661 = vunpack.c.l.b16 %v6571
    %v6662 = vunpack.c.h.b16 %v6571
    %v6663 = vunpack.c.l.b16 %v6572
    %v6664 = vunpack.c.h.b16 %v6572
    %v6665 = vunpack.c.l.b16 %v6573
    %v6666 = vunpack.c.h.b16 %v6573
    %v6667 = vunpack.c.l.b16 %v6574
    %v6668 = vunpack.c.h.b16 %v6574
    %v6669 = vunpack.c.l.b16 %v6575
    %v6670 = vunpack.c.h.b16 %v6575
    %v6671 = vunpack.c.l.b16 %v6576
    %v6672 = vunpack.c.h.b16 %v6576
    %v6673 = vunpack.c.l.b16 %v6577
    %v6674 = vunpack.c.h.b16 %v6577
    %v6675 = vunpack.c.l.b16 %v6578
    %v6676 = vunpack.c.h.b16 %v6578
    %v6677 = vunpack.c.l.b16 %v6579
    %v6678 = vunpack.c.h.b16 %v6579
    %v6679 = vunpack.c.l.b16 %v6580
    %v6680 = vunpack.c.h.b16 %v6580
    %v6681 = vunpack.c.l.b16 %v6581
    %v6682 = vunpack.c.h.b16 %v6581
    %v6683 = vunpack.c.l.b16 %v6582
    %v6684 = vunpack.c.h.b16 %v6582
    %v6685 = vunpack.c.l.b16 %v6583
    %v6686 = vunpack.c.h.b16 %v6583
    %v6687 = vunpack.c.l.b16 %v6584
    %v6688 = vunpack.c.h.b16 %v6584
    %v6689 = vunpack.c.l.b16 %v6585
    %v6690 = vunpack.c.h.b16 %v6585
    %v6691 = vunpack.c.l.b16 %v6586
    %v6692 = vunpack.c.h.b16 %v6586
    %v6693 = vunpack.c.l.b16 %v6587
    %v6694 = vunpack.c.h.b16 %v6587
    %v6695 = vunpack.c.l.b16 %v6588
    %v6696 = vunpack.c.h.b16 %v6588
    %v6697 = vunpack.c.l.b16 %v6589
    %v6698 = vunpack.c.h.b16 %v6589
    %v6699 = vpack.c.b16 %v6637, %v6635
    %v6700 = vpack.c.b16 %v6638, %v6636
    %v6701 = vpack.c.b16 %v6641, %v6639
    %v6702 = vpack.c.b16 %v6642, %v6640
    %v6703 = vpack.c.b16 %v6645, %v6643
    %v6704 = vpack.c.b16 %v6646, %v6644
    %v6705 = vpack.c.b16 %v6649, %v6647
    %v6706 = vpack.c.b16 %v6650, %v6648
    %v6707 = vpack.c.b16 %v6653, %v6651
    %v6708 = vpack.c.b16 %v6654, %v6652
    %v6709 = vpack.c.b16 %v6657, %v6655
    %v6710 = vpack.c.b16 %v6658, %v6656
    %v6711 = vpack.c.b16 %v6661, %v6659
    %v6712 = vpack.c.b16 %v6662, %v6660
    %v6713 = vpack.c.b16 %v6665, %v6663
    %v6714 = vpack.c.b16 %v6666, %v6664
    %v6715 = vpack.c.b16 %v6669, %v6667
    %v6716 = vpack.c.b16 %v6670, %v6668
    %v6717 = vpack.c.b16 %v6673, %v6671
    %v6718 = vpack.c.b16 %v6674, %v6672
    %v6719 = vpack.c.b16 %v6677, %v6675
    %v6720 = vpack.c.b16 %v6678, %v6676
    %v6721 = vpack.c.b16 %v6681, %v6679
    %v6722 = vpack.c.b16 %v6682, %v6680
    %v6723 = vpack.c.b16 %v6685, %v6683
    %v6724 = vpack.c.b16 %v6686, %v6684
    %v6725 = vpack.c.b16 %v6689, %v6687
    %v6726 = vpack.c.b16 %v6690, %v6688
    %v6727 = vpack.c.b16 %v6693, %v6691
    %v6728 = vpack.c.b16 %v6694, %v6692
    %v6729 = vpack.c.b16 %v6697, %v6695
    %v6730 = vpack.c.b16 %v6698, %v6696
    %6763 = vmatprep.subr.bf16.mxu0 %v6700
    %6764 = vmatpush1.bf16.msra.mxu0 %v6699
    %6765 = vmatprep.subr.bf16.mxu0 %v6702
    %6766 = vmatpush1.bf16.msra.mxu0 %v6701
    %6767 = vmatprep.subr.bf16.mxu0 %v6704
    %6768 = vmatpush1.bf16.msra.mxu0 %v6703
    %6769 = vmatprep.subr.bf16.mxu0 %v6706
    %6770 = vmatpush1.bf16.msra.mxu0 %v6705
    %6771 = vmatprep.subr.bf16.mxu0 %v6708
    %6772 = vmatpush1.bf16.msra.mxu0 %v6707
    %6773 = vmatprep.subr.bf16.mxu0 %v6710
    %6774 = vmatpush1.bf16.msra.mxu0 %v6709
    %6775 = vmatprep.subr.bf16.mxu0 %v6712
    %6776 = vmatpush1.bf16.msra.mxu0 %v6711
    %6777 = vmatprep.subr.bf16.mxu0 %v6714
    %6778 = vmatpush1.bf16.msra.mxu0 %v6713
    %6779 = vmatprep.subr.bf16.mxu0 %v6716
    %6780 = vmatpush1.bf16.msra.mxu0 %v6715
    %6781 = vmatprep.subr.bf16.mxu0 %v6718
    %6782 = vmatpush1.bf16.msra.mxu0 %v6717
    %6783 = vmatprep.subr.bf16.mxu0 %v6720
    %6784 = vmatpush1.bf16.msra.mxu0 %v6719
    %6785 = vmatprep.subr.bf16.mxu0 %v6722
    %6786 = vmatpush1.bf16.msra.mxu0 %v6721
    %6787 = vmatprep.subr.bf16.mxu0 %v6724
    %6788 = vmatpush1.bf16.msra.mxu0 %v6723
    %6789 = vmatprep.subr.bf16.mxu0 %v6726
    %6790 = vmatpush1.bf16.msra.mxu0 %v6725
    %6791 = vmatprep.subr.bf16.mxu0 %v6728
    %6792 = vmatpush1.bf16.msra.mxu0 %v6727
    %6793 = vmatprep.subr.bf16.mxu0 %v6730
    %6794 = vmatpush1.bf16.msra.mxu0 %v6729
    %6795 = vmatprep.mubr.bf16.mxu0 %v6556
    %6796 = vmatmul.mubr.bf16.gmra.mrb[0].mxu0 %v6555
    %v6797 = vpop.f32.mrb[0].mxu0
    %v6798 = vadd.f32 %v6596, %v6797
    %v6799 = vpop.f32.mrb[0].mxu0
    %v6800 = vadd.f32 %v6600, %v6799
    %v6801 = vpop.f32.mrb[0].mxu0
    %v6802 = vadd.f32 %v6596, %v6801
    %v6803 = vpop.f32.mrb[0].mxu0
    %v6804 = vadd.f32 %v6600, %v6803
    %6805 = vdwg.mxu0
    %v6806 = vmax.f32 %v6798, 0.0
    %v6807 = vmax.f32 %v6800, 0.0
    %v6808 = vmax.f32 %v6802, 0.0
    %v6809 = vmax.f32 %v6804, 0.0
    %v6810 = vpack.c.bf16 %v6808, %v6806
    %v6811 = vpack.c.bf16 %v6809, %v6807
    %s6812 = scalar_lea.vmem [#allocation7], 1536
    %v6813 = vld [vmem:[%s6812] sm:$0xff]
    %v6814 = vld [vmem:[%s6812 + $0x8] sm:$0xff]
    %v6815 = vld [vmem:[%s6812 + $0x10] sm:$0xff]
    %v6816 = vld [vmem:[%s6812 + $0x18] sm:$0xff]
    %v6817 = vld [vmem:[%s6812 + $0x20] sm:$0xff]
    %v6818 = vld [vmem:[%s6812 + $0x28] sm:$0xff]
    %v6819 = vld [vmem:[%s6812 + $0x30] sm:$0xff]
    %v6820 = vld [vmem:[%s6812 + $0x38] sm:$0xff]
    %v6821 = vld [vmem:[%s6812 + $0x40] sm:$0xff]
    %v6822 = vld [vmem:[%s6812 + $0x48] sm:$0xff]
    %v6823 = vld [vmem:[%s6812 + $0x50] sm:$0xff]
    %v6824 = vld [vmem:[%s6812 + $0x58] sm:$0xff]
    %v6825 = vld [vmem:[%s6812 + $0x60] sm:$0xff]
    %v6826 = vld [vmem:[%s6812 + $0x68] sm:$0xff]
    %v6827 = vld [vmem:[%s6812 + $0x70] sm:$0xff]
    %v6828 = vld [vmem:[%s6812 + $0x78] sm:$0xff]
    %v6829 = vld [vmem:[%s6812 + $0x80] sm:$0xff]
    %v6830 = vld [vmem:[%s6812 + $0x88] sm:$0xff]
    %v6831 = vld [vmem:[%s6812 + $0x90] sm:$0xff]
    %v6832 = vld [vmem:[%s6812 + $0x98] sm:$0xff]
    %v6833 = vld [vmem:[%s6812 + $0xa0] sm:$0xff]
    %v6834 = vld [vmem:[%s6812 + $0xa8] sm:$0xff]
    %v6835 = vld [vmem:[%s6812 + $0xb0] sm:$0xff]
    %v6836 = vld [vmem:[%s6812 + $0xb8] sm:$0xff]
    %v6837 = vld [vmem:[%s6812 + $0xc0] sm:$0xff]
    %v6838 = vld [vmem:[%s6812 + $0xc8] sm:$0xff]
    %v6839 = vld [vmem:[%s6812 + $0xd0] sm:$0xff]
    %v6840 = vld [vmem:[%s6812 + $0xd8] sm:$0xff]
    %v6841 = vld [vmem:[%s6812 + $0xe0] sm:$0xff]
    %v6842 = vld [vmem:[%s6812 + $0xe8] sm:$0xff]
    %v6843 = vld [vmem:[%s6812 + $0xf0] sm:$0xff]
    %v6844 = vld [vmem:[%s6812 + $0xf8] sm:$0xff]
    %s6845 = scalar_lea.vmem [#allocation8], 22
    %v6846 = vld [vmem:[%s6845] ss:$8 sm:$0x3]
    %v6848 = vlaneseq
    %v6849 = vshrl.u32 %v6848, 7
    %v6850 = vsub.s32 0, %v6849
    %v6851 = vrot.slane %v6846, %v6850
    %v6852 = vlaneseq
    %v6853 = vshrl.u32 %v6852, 7
    %v6854 = vsub.s32 1, %v6853
    %v6855 = vrot.slane %v6846, %v6854
    %v6890 = vunpack.c.l.b16 %v6813
    %v6891 = vunpack.c.h.b16 %v6813
    %v6892 = vunpack.c.l.b16 %v6814
    %v6893 = vunpack.c.h.b16 %v6814
    %v6894 = vunpack.c.l.b16 %v6815
    %v6895 = vunpack.c.h.b16 %v6815
    %v6896 = vunpack.c.l.b16 %v6816
    %v6897 = vunpack.c.h.b16 %v6816
    %v6898 = vunpack.c.l.b16 %v6817
    %v6899 = vunpack.c.h.b16 %v6817
    %v6900 = vunpack.c.l.b16 %v6818
    %v6901 = vunpack.c.h.b16 %v6818
    %v6902 = vunpack.c.l.b16 %v6819
    %v6903 = vunpack.c.h.b16 %v6819
    %v6904 = vunpack.c.l.b16 %v6820
    %v6905 = vunpack.c.h.b16 %v6820
    %v6906 = vunpack.c.l.b16 %v6821
    %v6907 = vunpack.c.h.b16 %v6821
    %v6908 = vunpack.c.l.b16 %v6822
    %v6909 = vunpack.c.h.b16 %v6822
    %v6910 = vunpack.c.l.b16 %v6823
    %v6911 = vunpack.c.h.b16 %v6823
    %v6912 = vunpack.c.l.b16 %v6824
    %v6913 = vunpack.c.h.b16 %v6824
    %v6914 = vunpack.c.l.b16 %v6825
    %v6915 = vunpack.c.h.b16 %v6825
    %v6916 = vunpack.c.l.b16 %v6826
    %v6917 = vunpack.c.h.b16 %v6826
    %v6918 = vunpack.c.l.b16 %v6827
    %v6919 = vunpack.c.h.b16 %v6827
    %v6920 = vunpack.c.l.b16 %v6828
    %v6921 = vunpack.c.h.b16 %v6828
    %v6922 = vunpack.c.l.b16 %v6829
    %v6923 = vunpack.c.h.b16 %v6829
    %v6924 = vunpack.c.l.b16 %v6830
    %v6925 = vunpack.c.h.b16 %v6830
    %v6926 = vunpack.c.l.b16 %v6831
    %v6927 = vunpack.c.h.b16 %v6831
    %v6928 = vunpack.c.l.b16 %v6832
    %v6929 = vunpack.c.h.b16 %v6832
    %v6930 = vunpack.c.l.b16 %v6833
    %v6931 = vunpack.c.h.b16 %v6833
    %v6932 = vunpack.c.l.b16 %v6834
    %v6933 = vunpack.c.h.b16 %v6834
    %v6934 = vunpack.c.l.b16 %v6835
    %v6935 = vunpack.c.h.b16 %v6835
    %v6936 = vunpack.c.l.b16 %v6836
    %v6937 = vunpack.c.h.b16 %v6836
    %v6938 = vunpack.c.l.b16 %v6837
    %v6939 = vunpack.c.h.b16 %v6837
    %v6940 = vunpack.c.l.b16 %v6838
    %v6941 = vunpack.c.h.b16 %v6838
    %v6942 = vunpack.c.l.b16 %v6839
    %v6943 = vunpack.c.h.b16 %v6839
    %v6944 = vunpack.c.l.b16 %v6840
    %v6945 = vunpack.c.h.b16 %v6840
    %v6946 = vunpack.c.l.b16 %v6841
    %v6947 = vunpack.c.h.b16 %v6841
    %v6948 = vunpack.c.l.b16 %v6842
    %v6949 = vunpack.c.h.b16 %v6842
    %v6950 = vunpack.c.l.b16 %v6843
    %v6951 = vunpack.c.h.b16 %v6843
    %v6952 = vunpack.c.l.b16 %v6844
    %v6953 = vunpack.c.h.b16 %v6844
    %v6954 = vpack.c.b16 %v6892, %v6890
    %v6955 = vpack.c.b16 %v6893, %v6891
    %v6956 = vpack.c.b16 %v6896, %v6894
    %v6957 = vpack.c.b16 %v6897, %v6895
    %v6958 = vpack.c.b16 %v6900, %v6898
    %v6959 = vpack.c.b16 %v6901, %v6899
    %v6960 = vpack.c.b16 %v6904, %v6902
    %v6961 = vpack.c.b16 %v6905, %v6903
    %v6962 = vpack.c.b16 %v6908, %v6906
    %v6963 = vpack.c.b16 %v6909, %v6907
    %v6964 = vpack.c.b16 %v6912, %v6910
    %v6965 = vpack.c.b16 %v6913, %v6911
    %v6966 = vpack.c.b16 %v6916, %v6914
    %v6967 = vpack.c.b16 %v6917, %v6915
    %v6968 = vpack.c.b16 %v6920, %v6918
    %v6969 = vpack.c.b16 %v6921, %v6919
    %v6970 = vpack.c.b16 %v6924, %v6922
    %v6971 = vpack.c.b16 %v6925, %v6923
    %v6972 = vpack.c.b16 %v6928, %v6926
    %v6973 = vpack.c.b16 %v6929, %v6927
    %v6974 = vpack.c.b16 %v6932, %v6930
    %v6975 = vpack.c.b16 %v6933, %v6931
    %v6976 = vpack.c.b16 %v6936, %v6934
    %v6977 = vpack.c.b16 %v6937, %v6935
    %v6978 = vpack.c.b16 %v6940, %v6938
    %v6979 = vpack.c.b16 %v6941, %v6939
    %v6980 = vpack.c.b16 %v6944, %v6942
    %v6981 = vpack.c.b16 %v6945, %v6943
    %v6982 = vpack.c.b16 %v6948, %v6946
    %v6983 = vpack.c.b16 %v6949, %v6947
    %v6984 = vpack.c.b16 %v6952, %v6950
    %v6985 = vpack.c.b16 %v6953, %v6951
    %7018 = vmatprep.subr.bf16.mxu0 %v6955
    %7019 = vmatpush1.bf16.msra.mxu0 %v6954
    %7020 = vmatprep.subr.bf16.mxu0 %v6957
    %7021 = vmatpush1.bf16.msra.mxu0 %v6956
    %7022 = vmatprep.subr.bf16.mxu0 %v6959
    %7023 = vmatpush1.bf16.msra.mxu0 %v6958
    %7024 = vmatprep.subr.bf16.mxu0 %v6961
    %7025 = vmatpush1.bf16.msra.mxu0 %v6960
    %7026 = vmatprep.subr.bf16.mxu0 %v6963
    %7027 = vmatpush1.bf16.msra.mxu0 %v6962
    %7028 = vmatprep.subr.bf16.mxu0 %v6965
    %7029 = vmatpush1.bf16.msra.mxu0 %v6964
    %7030 = vmatprep.subr.bf16.mxu0 %v6967
    %7031 = vmatpush1.bf16.msra.mxu0 %v6966
    %7032 = vmatprep.subr.bf16.mxu0 %v6969
    %7033 = vmatpush1.bf16.msra.mxu0 %v6968
    %7034 = vmatprep.subr.bf16.mxu0 %v6971
    %7035 = vmatpush1.bf16.msra.mxu0 %v6970
    %7036 = vmatprep.subr.bf16.mxu0 %v6973
    %7037 = vmatpush1.bf16.msra.mxu0 %v6972
    %7038 = vmatprep.subr.bf16.mxu0 %v6975
    %7039 = vmatpush1.bf16.msra.mxu0 %v6974
    %7040 = vmatprep.subr.bf16.mxu0 %v6977
    %7041 = vmatpush1.bf16.msra.mxu0 %v6976
    %7042 = vmatprep.subr.bf16.mxu0 %v6979
    %7043 = vmatpush1.bf16.msra.mxu0 %v6978
    %7044 = vmatprep.subr.bf16.mxu0 %v6981
    %7045 = vmatpush1.bf16.msra.mxu0 %v6980
    %7046 = vmatprep.subr.bf16.mxu0 %v6983
    %7047 = vmatpush1.bf16.msra.mxu0 %v6982
    %7048 = vmatprep.subr.bf16.mxu0 %v6985
    %7049 = vmatpush1.bf16.msra.mxu0 %v6984
    %7050 = vmatprep.mubr.bf16.mxu0 %v6811
    %7051 = vmatmul.mubr.bf16.gmra.mrb[0].mxu0 %v6810
    %v7052 = vpop.f32.mrb[0].mxu0
    %v7053 = vadd.f32 %v6851, %v7052
    %v7054 = vpop.f32.mrb[0].mxu0
    %v7055 = vadd.f32 %v6855, %v7054
    %v7056 = vpop.f32.mrb[0].mxu0
    %v7057 = vadd.f32 %v6851, %v7056
    %v7058 = vpop.f32.mrb[0].mxu0
    %v7059 = vadd.f32 %v6855, %v7058
    %7060 = vdwg.mxu0
    %v7061 = vmax.f32 %v7053, 0.0
    %v7062 = vmax.f32 %v7055, 0.0
    %v7063 = vmax.f32 %v7057, 0.0
    %v7064 = vmax.f32 %v7059, 0.0
    %v7065 = vpack.c.bf16 %v7063, %v7061
    %v7066 = vpack.c.bf16 %v7064, %v7062
    %s7067 = scalar_lea.vmem [#allocation7], 1792
    %v7068 = vld [vmem:[%s7067] sm:$0xff]
    %v7069 = vld [vmem:[%s7067 + $0x8] sm:$0xff]
    %v7070 = vld [vmem:[%s7067 + $0x10] sm:$0xff]
    %v7071 = vld [vmem:[%s7067 + $0x18] sm:$0xff]
    %v7072 = vld [vmem:[%s7067 + $0x20] sm:$0xff]
    %v7073 = vld [vmem:[%s7067 + $0x28] sm:$0xff]
    %v7074 = vld [vmem:[%s7067 + $0x30] sm:$0xff]
    %v7075 = vld [vmem:[%s7067 + $0x38] sm:$0xff]
    %v7076 = vld [vmem:[%s7067 + $0x40] sm:$0xff]
    %v7077 = vld [vmem:[%s7067 + $0x48] sm:$0xff]
    %v7078 = vld [vmem:[%s7067 + $0x50] sm:$0xff]
    %v7079 = vld [vmem:[%s7067 + $0x58] sm:$0xff]
    %v7080 = vld [vmem:[%s7067 + $0x60] sm:$0xff]
    %v7081 = vld [vmem:[%s7067 + $0x68] sm:$0xff]
    %v7082 = vld [vmem:[%s7067 + $0x70] sm:$0xff]
    %v7083 = vld [vmem:[%s7067 + $0x78] sm:$0xff]
    %v7084 = vld [vmem:[%s7067 + $0x80] sm:$0xff]
    %v7085 = vld [vmem:[%s7067 + $0x88] sm:$0xff]
    %v7086 = vld [vmem:[%s7067 + $0x90] sm:$0xff]
    %v7087 = vld [vmem:[%s7067 + $0x98] sm:$0xff]
    %v7088 = vld [vmem:[%s7067 + $0xa0] sm:$0xff]
    %v7089 = vld [vmem:[%s7067 + $0xa8] sm:$0xff]
    %v7090 = vld [vmem:[%s7067 + $0xb0] sm:$0xff]
    %v7091 = vld [vmem:[%s7067 + $0xb8] sm:$0xff]
    %v7092 = vld [vmem:[%s7067 + $0xc0] sm:$0xff]
    %v7093 = vld [vmem:[%s7067 + $0xc8] sm:$0xff]
    %v7094 = vld [vmem:[%s7067 + $0xd0] sm:$0xff]
    %v7095 = vld [vmem:[%s7067 + $0xd8] sm:$0xff]
    %v7096 = vld [vmem:[%s7067 + $0xe0] sm:$0xff]
    %v7097 = vld [vmem:[%s7067 + $0xe8] sm:$0xff]
    %v7098 = vld [vmem:[%s7067 + $0xf0] sm:$0xff]
    %v7099 = vld [vmem:[%s7067 + $0xf8] sm:$0xff]
    %s7100 = scalar_lea.vmem [#allocation8], 23
    %v7101 = vld [vmem:[%s7100] ss:$8 sm:$0x3]
    %v7103 = vlaneseq
    %v7104 = vshrl.u32 %v7103, 7
    %v7105 = vsub.s32 0, %v7104
    %v7106 = vrot.slane %v7101, %v7105
    %v7107 = vlaneseq
    %v7108 = vshrl.u32 %v7107, 7
    %v7109 = vsub.s32 1, %v7108
    %v7110 = vrot.slane %v7101, %v7109
    %v7145 = vunpack.c.l.b16 %v7068
    %v7146 = vunpack.c.h.b16 %v7068
    %v7147 = vunpack.c.l.b16 %v7069
    %v7148 = vunpack.c.h.b16 %v7069
    %v7149 = vunpack.c.l.b16 %v7070
    %v7150 = vunpack.c.h.b16 %v7070
    %v7151 = vunpack.c.l.b16 %v7071
    %v7152 = vunpack.c.h.b16 %v7071
    %v7153 = vunpack.c.l.b16 %v7072
    %v7154 = vunpack.c.h.b16 %v7072
    %v7155 = vunpack.c.l.b16 %v7073
    %v7156 = vunpack.c.h.b16 %v7073
    %v7157 = vunpack.c.l.b16 %v7074
    %v7158 = vunpack.c.h.b16 %v7074
    %v7159 = vunpack.c.l.b16 %v7075
    %v7160 = vunpack.c.h.b16 %v7075
    %v7161 = vunpack.c.l.b16 %v7076
    %v7162 = vunpack.c.h.b16 %v7076
    %v7163 = vunpack.c.l.b16 %v7077
    %v7164 = vunpack.c.h.b16 %v7077
    %v7165 = vunpack.c.l.b16 %v7078
    %v7166 = vunpack.c.h.b16 %v7078
    %v7167 = vunpack.c.l.b16 %v7079
    %v7168 = vunpack.c.h.b16 %v7079
    %v7169 = vunpack.c.l.b16 %v7080
    %v7170 = vunpack.c.h.b16 %v7080
    %v7171 = vunpack.c.l.b16 %v7081
    %v7172 = vunpack.c.h.b16 %v7081
    %v7173 = vunpack.c.l.b16 %v7082
    %v7174 = vunpack.c.h.b16 %v7082
    %v7175 = vunpack.c.l.b16 %v7083
    %v7176 = vunpack.c.h.b16 %v7083
    %v7177 = vunpack.c.l.b16 %v7084
    %v7178 = vunpack.c.h.b16 %v7084
    %v7179 = vunpack.c.l.b16 %v7085
    %v7180 = vunpack.c.h.b16 %v7085
    %v7181 = vunpack.c.l.b16 %v7086
    %v7182 = vunpack.c.h.b16 %v7086
    %v7183 = vunpack.c.l.b16 %v7087
    %v7184 = vunpack.c.h.b16 %v7087
    %v7185 = vunpack.c.l.b16 %v7088
    %v7186 = vunpack.c.h.b16 %v7088
    %v7187 = vunpack.c.l.b16 %v7089
    %v7188 = vunpack.c.h.b16 %v7089
    %v7189 = vunpack.c.l.b16 %v7090
    %v7190 = vunpack.c.h.b16 %v7090
    %v7191 = vunpack.c.l.b16 %v7091
    %v7192 = vunpack.c.h.b16 %v7091
    %v7193 = vunpack.c.l.b16 %v7092
    %v7194 = vunpack.c.h.b16 %v7092
    %v7195 = vunpack.c.l.b16 %v7093
    %v7196 = vunpack.c.h.b16 %v7093
    %v7197 = vunpack.c.l.b16 %v7094
    %v7198 = vunpack.c.h.b16 %v7094
    %v7199 = vunpack.c.l.b16 %v7095
    %v7200 = vunpack.c.h.b16 %v7095
    %v7201 = vunpack.c.l.b16 %v7096
    %v7202 = vunpack.c.h.b16 %v7096
    %v7203 = vunpack.c.l.b16 %v7097
    %v7204 = vunpack.c.h.b16 %v7097
    %v7205 = vunpack.c.l.b16 %v7098
    %v7206 = vunpack.c.h.b16 %v7098
    %v7207 = vunpack.c.l.b16 %v7099
    %v7208 = vunpack.c.h.b16 %v7099
    %v7209 = vpack.c.b16 %v7147, %v7145
    %v7210 = vpack.c.b16 %v7148, %v7146
    %v7211 = vpack.c.b16 %v7151, %v7149
    %v7212 = vpack.c.b16 %v7152, %v7150
    %v7213 = vpack.c.b16 %v7155, %v7153
    %v7214 = vpack.c.b16 %v7156, %v7154
    %v7215 = vpack.c.b16 %v7159, %v7157
    %v7216 = vpack.c.b16 %v7160, %v7158
    %v7217 = vpack.c.b16 %v7163, %v7161
    %v7218 = vpack.c.b16 %v7164, %v7162
    %v7219 = vpack.c.b16 %v7167, %v7165
    %v7220 = vpack.c.b16 %v7168, %v7166
    %v7221 = vpack.c.b16 %v7171, %v7169
    %v7222 = vpack.c.b16 %v7172, %v7170
    %v7223 = vpack.c.b16 %v7175, %v7173
    %v7224 = vpack.c.b16 %v7176, %v7174
    %v7225 = vpack.c.b16 %v7179, %v7177
    %v7226 = vpack.c.b16 %v7180, %v7178
    %v7227 = vpack.c.b16 %v7183, %v7181
    %v7228 = vpack.c.b16 %v7184, %v7182
    %v7229 = vpack.c.b16 %v7187, %v7185
    %v7230 = vpack.c.b16 %v7188, %v7186
    %v7231 = vpack.c.b16 %v7191, %v7189
    %v7232 = vpack.c.b16 %v7192, %v7190
    %v7233 = vpack.c.b16 %v7195, %v7193
    %v7234 = vpack.c.b16 %v7196, %v7194
    %v7235 = vpack.c.b16 %v7199, %v7197
    %v7236 = vpack.c.b16 %v7200, %v7198
    %v7237 = vpack.c.b16 %v7203, %v7201
    %v7238 = vpack.c.b16 %v7204, %v7202
    %v7239 = vpack.c.b16 %v7207, %v7205
    %v7240 = vpack.c.b16 %v7208, %v7206
    %7273 = vmatprep.subr.bf16.mxu0 %v7210
    %7274 = vmatpush1.bf16.msra.mxu0 %v7209
    %7275 = vmatprep.subr.bf16.mxu0 %v7212
    %7276 = vmatpush1.bf16.msra.mxu0 %v7211
    %7277 = vmatprep.subr.bf16.mxu0 %v7214
    %7278 = vmatpush1.bf16.msra.mxu0 %v7213
    %7279 = vmatprep.subr.bf16.mxu0 %v7216
    %7280 = vmatpush1.bf16.msra.mxu0 %v7215
    %7281 = vmatprep.subr.bf16.mxu0 %v7218
    %7282 = vmatpush1.bf16.msra.mxu0 %v7217
    %7283 = vmatprep.subr.bf16.mxu0 %v7220
    %7284 = vmatpush1.bf16.msra.mxu0 %v7219
    %7285 = vmatprep.subr.bf16.mxu0 %v7222
    %7286 = vmatpush1.bf16.msra.mxu0 %v7221
    %7287 = vmatprep.subr.bf16.mxu0 %v7224
    %7288 = vmatpush1.bf16.msra.mxu0 %v7223
    %7289 = vmatprep.subr.bf16.mxu0 %v7226
    %7290 = vmatpush1.bf16.msra.mxu0 %v7225
    %7291 = vmatprep.subr.bf16.mxu0 %v7228
    %7292 = vmatpush1.bf16.msra.mxu0 %v7227
    %7293 = vmatprep.subr.bf16.mxu0 %v7230
    %7294 = vmatpush1.bf16.msra.mxu0 %v7229
    %7295 = vmatprep.subr.bf16.mxu0 %v7232
    %7296 = vmatpush1.bf16.msra.mxu0 %v7231
    %7297 = vmatprep.subr.bf16.mxu0 %v7234
    %7298 = vmatpush1.bf16.msra.mxu0 %v7233
    %7299 = vmatprep.subr.bf16.mxu0 %v7236
    %7300 = vmatpush1.bf16.msra.mxu0 %v7235
    %7301 = vmatprep.subr.bf16.mxu0 %v7238
    %7302 = vmatpush1.bf16.msra.mxu0 %v7237
    %7303 = vmatprep.subr.bf16.mxu0 %v7240
    %7304 = vmatpush1.bf16.msra.mxu0 %v7239
    %7305 = vmatprep.mubr.bf16.mxu0 %v7066
    %7306 = vmatmul.mubr.bf16.gmra.mrb[0].mxu0 %v7065
    %v7307 = vpop.f32.mrb[0].mxu0
    %v7308 = vadd.f32 %v7106, %v7307
    %v7309 = vpop.f32.mrb[0].mxu0
    %v7310 = vadd.f32 %v7110, %v7309
    %v7311 = vpop.f32.mrb[0].mxu0
    %v7312 = vadd.f32 %v7106, %v7311
    %v7313 = vpop.f32.mrb[0].mxu0
    %v7314 = vadd.f32 %v7110, %v7313
    %7315 = vdwg.mxu0
    %7316 = vst [vmem:[#allocation10] sm:$0xff] %v7308
    %7317 = vst [vmem:[#allocation10 + $0x8] sm:$0xff] %v7310
    %7318 = vst [vmem:[#allocation10 + $0x10] sm:$0xff] %v7312
    %7319 = vst [vmem:[#allocation10 + $0x18] sm:$0xff] %v7314
    // Predicated region
    $region42: #{tpu_custom_call.1} parent=1 // pred_check
      _
    $region43: #{tpu_custom_call.1} parent=1 // pred_check_branch
      %7321 = sbr.rel (0) target = $region45
    $region44: #{tpu_custom_call.1} parent=1 // pred_region
      %s7323 = ssub.s32 512, 512
      %7324 = vsyncadd [#allocation4], %s7323
      %s7325 = sshll.u32 [#allocation10], 4
      %s7326 = int_to_ptr.vmem [resolvable:$true] %s7325
      %7331 = dma.vmem_to_hbm [thread:$0]  %s7326, 512, %s6, [#allocation4], 256, 256, 16
    $region45: #{tpu_custom_call.1} parent=1 // pred_fallthru
      _
    // Predicated region
    $region46: #{tpu_custom_call.1} parent=1 // pred_check
      _
    $region47: #{tpu_custom_call.1} parent=1 // pred_check_branch
      %7333 = sbr.rel (0) target = $region49
    $region48: #{tpu_custom_call.1} parent=1 // pred_region
      %7334 = dma.done [#allocation4], 512
    $region49: #{tpu_custom_call.1} parent=1 // pred_fallthru
      _
    %7335 = vsyncpa [#allocation3], 1
    %7336 = vsyncpa [#allocation6], 1
    %7337 = vsyncpa [#allocation9], 1
    %7338 = vsyncpa [#allocation4], 1

</llo_original>
